<compile_context>
chip_gen: v7x
topology: tpu7x:2x2x1
jax: 0.10.0
libtpu: 0.0.40
codegen_flags: <defaults>
</compile_context>

<pallas_src>
import functools

import numpy as np
import jax
import jax.numpy as jnp
from jax import lax
from jax.experimental import pallas as pl
from jax.experimental.pallas import tpu as pltpu

EPS = 1e-5  # torch GroupNorm default


# ----------------------------- fused whole-encoder kernel --------------------


def _encoder_kernel(*refs, plan):
    """Runs init 1x1 conv + all ResnetBlocks + all Downsamples for one image,
    entirely in VMEM, in (H, W*C) layout."""
    it = iter(refs)
    x_ref = next(it)
    blk_refs = []
    for blk in plan["blocks"]:
        d = {}
        if blk["has_pre"]:
            d["prew"], d["preb"] = next(it), next(it)
        d["bands"], d["prm"], d["gnp"] = next(it), next(it), next(it)
        if blk["has_down"]:
            d["dr"], d["dc"], d["dbl"] = next(it), next(it), next(it)
        blk_refs.append(d)
    o_ref = next(it)
    scratches = list(it)

    # Zero ONLY the halo rows (row 0 and row H+1) of each padding scratch.
    # Invariant: rows 1..H are always overwritten before being read, and the
    # halo rows are never written anywhere else in this kernel.
    for (Hs, WCs), sref in zip(plan["scratch_keys"], scratches):
        zrow = jnp.zeros((1, WCs), jnp.float32)
        sref[pl.ds(0, 1), :] = zrow
        sref[pl.ds(Hs + 1, 1), :] = zrow

    x = x_ref[0]                                   # (H0, W0*Cin0)

    for blk, d in zip(plan["blocks"], blk_refs):
        H = blk["H"]
        WC = blk["W"] * blk["C"]
        inv_cnt = 1.0 / float(H * (WC // blk["groups"]))   # 1/(H*W*C/groups)
        pad_ref = scratches[blk["scratch_idx"]]            # (H+2, WC)

        if blk["has_pre"]:                         # folded init 1x1 conv
            x = jnp.dot(x, d["prew"][...],
                        preferred_element_type=jnp.float32) + d["preb"][...]

        gnp = d["gnp"][...]
        band = d["bands"]
        prm = d["prm"]

        def conv_gn_silu(inp, ci, *, band=band, prm=prm, gnp=gnp,
                         pad_ref=pad_ref, H=H, inv_cnt=inv_cnt):
            # 3x3 conv (padding=1): W-padding is absorbed into the banded
            # weights; H-padding comes from the zeroed halo rows.  The centre
            # band reads `inp` directly (no round-trip through the scratch).
            pad_ref[pl.ds(1, H), :] = inp
            acc = jnp.dot(inp, band[ci, 1], preferred_element_type=jnp.float32)
            acc = acc + jnp.dot(pad_ref[pl.ds(0, H), :], band[ci, 0],
                                preferred_element_type=jnp.float32)
            acc = acc + jnp.dot(pad_ref[pl.ds(2, H), :], band[ci, 2],
                                preferred_element_type=jnp.float32)
            h = acc + prm[ci, 0]                   # conv bias
            # GroupNorm via same-group projection; var = E[x^2] - mean^2 keeps
            # the two M=1 projections independent (no serial h-mean re-pass).
            s1 = jnp.sum(h, axis=0, keepdims=True)
            s2 = jnp.sum(h * h, axis=0, keepdims=True)
            mean = jnp.dot(s1, gnp, preferred_element_type=jnp.float32) * inv_cnt
            m2 = jnp.dot(s2, gnp, preferred_element_type=jnp.float32) * inv_cnt
            var = m2 - mean * mean
            hn = (h - mean) * lax.rsqrt(var + EPS) * prm[ci, 1] + prm[ci, 2]
            return hn * jax.nn.sigmoid(hn)         # SiLU

        h1 = conv_gn_silu(x, 0)
        h2 = conv_gn_silu(h1, 1)
        hout = h2 + x                              # identity residual

        if blk["has_down"]:                        # AvgPool(pk) + 1x1 conv
            pooled = jnp.dot(d["dr"][...], hout,
                             preferred_element_type=jnp.float32)
            x = jnp.dot(pooled, d["dc"][...],
                        preferred_element_type=jnp.float32) + d["dbl"][...]
        else:
            x = hout

    o_ref[0] = x


# ----------------------------- pallas wrapper ---------------------------------


def _const_spec(arr):
    nd = arr.ndim
    return pl.BlockSpec(arr.shape, lambda n, _nd=nd: (0,) * _nd)


def _encoder_pallas_call(x, calls):
    N, H0, in_last = x.shape

    args = [x]
    in_specs = [pl.BlockSpec((1, H0, in_last), lambda n: (n, 0, 0))]

    def add_const(arr):
        arr = jnp.asarray(arr, jnp.float32)
        args.append(arr)
        in_specs.append(_const_spec(arr))

    plan_blocks = []
    scratch_keys = []                               # distinct (H, W*C)
    for call in calls:
        blk = {k: call[k]
               for k in ("H", "W", "C", "groups", "has_pre", "has_down")}
        key = (call["H"], call["W"] * call["C"])
        if key not in scratch_keys:
            scratch_keys.append(key)
        blk["scratch_idx"] = scratch_keys.index(key)
        plan_blocks.append(blk)
        if call["has_pre"]:
            add_const(call["prew"])
            add_const(call["preb"])
        add_const(call["bands"])
        add_const(call["prm"])
        add_const(call["gnp"])
        if call["has_down"]:
            add_const(call["dr"])
            add_const(call["dc"])
            add_const(call["dbl"])

    last = calls[-1]
    OH = last["out_H"]
    OWC = last["out_W"] * last["out_C"]
    plan = {"blocks": plan_blocks, "scratch_keys": tuple(scratch_keys)}
    kern = functools.partial(_encoder_kernel, plan=plan)

    return pl.pallas_call(
        kern,
        out_shape=jax.ShapeDtypeStruct((N, OH, OWC), jnp.float32),
        grid=(N,),
        in_specs=in_specs,
        out_specs=pl.BlockSpec((1, OH, OWC), lambda n: (n, 0, 0)),
        scratch_shapes=[pltpu.VMEM((h + 2, wc), jnp.float32)
                        for (h, wc) in scratch_keys],
        compiler_params=pltpu.CompilerParams(
            dimension_semantics=("parallel",)),
    )(*args)


def encoder_forward(x_nchw, calls):
    N, C0, H, W = x_nchw.shape
    h = jnp.transpose(x_nchw, (0, 2, 3, 1)).reshape(N, H, W * C0)
    h = h.astype(jnp.float32)
    h = _encoder_pallas_call(h, calls)              # single fused pallas_call
    last = calls[-1]
    h = h.reshape(N, last["out_H"], last["out_W"], last["out_C"])
    return jnp.transpose(h, (0, 3, 1, 2))           # NHWC -> NCHW


# -------------------- constant (weight-layout) preparation --------------------


def _prep_fused(rb, *, H, W, C, groups, pk, pre=None, down=None):
    WC = W * C
    cs = C // groups
    to_np = lambda a: np.asarray(a, dtype=np.float32)

    def bands_for(w3):
        w3 = to_np(w3)                              # (3, 3, Cin, Cout) HWIO
        Cin, Cout = w3.shape[2], w3.shape[3]
        b = np.zeros((3, W * Cin, W * Cout), np.float32)
        for dy in range(3):
            for dx in range(3):
                for xo in range(W):
                    xi = xo + dx - 1
                    if 0 <= xi < W:
                        b[dy, xi * Cin:(xi + 1) * Cin,
                          xo * Cout:(xo + 1) * Cout] = w3[dy, dx]
        return b

    bands = np.stack([bands_for(rb["w1"]), bands_for(rb["w2"])])  # (2,3,WC,WC)
    prm = np.zeros((2, 3, 1, WC), np.float32)
    for i, s in enumerate(("1", "2")):
        prm[i, 0, 0] = np.tile(to_np(rb["b" + s]), W)
        prm[i, 1, 0] = np.tile(to_np(rb["g" + s]), W)
        prm[i, 2, 0] = np.tile(to_np(rb["bt" + s]), W)
    cidx = np.arange(C)
    same = (cidx[:, None] // cs == cidx[None, :] // cs).astype(np.float32)
    gnp = np.kron(np.ones((W, W), np.float32), same)

    call = {"H": H, "W": W, "C": C, "groups": groups,
            "bands": bands, "prm": prm, "gnp": gnp,
            "has_pre": pre is not None, "has_down": down is not None,
            "out_H": H, "out_W": W, "out_C": C}
    if pre is not None:
        pw = to_np(pre["w"])                        # (Cin0, C)
        call["prew"] = np.kron(np.eye(W, dtype=np.float32), pw)
        call["preb"] = np.tile(to_np(pre["b"]), W)[None, :]
    if down is not None:
        dw = to_np(down["w"])                       # (C, Cout)
        Cout = dw.shape[1]
        HO, WO = H // pk, W // pk
        call["dr"] = np.kron(np.eye(HO, dtype=np.float32),
                             np.ones((1, pk), np.float32)) / pk     # (HO, H)
        S = np.kron(np.eye(WO, dtype=np.float32),
                    np.ones((pk, 1), np.float32)) / pk              # (W, WO)
        call["dc"] = np.kron(S, dw)                                 # (WC, WO*Cout)
        call["dbl"] = np.tile(to_np(down["b"]), WO)[None, :]
        call["out_H"], call["out_W"], call["out_C"] = HO, WO, Cout
    return call


def build_encoder_calls(params, *, groups, pk, H0, W0):
    calls = []
    H, W = H0, W0
    pre = params["init"]
    for stage in params["stages"]:
        rbs = stage["resblocks"]
        if not rbs:
            # TODO(synk): a stage with resnet_stacks == 0 (downsample only) is
            # not supported by the fused block kernel.
            raise NotImplementedError("resnet_stacks must be >= 1")
        for bi, rb in enumerate(rbs):
            C = int(rb["w1"].shape[2])
            down = stage["down"] if bi == len(rbs) - 1 else None
            calls.append(_prep_fused(rb, H=H, W=W, C=C, groups=groups, pk=pk,
                                     pre=pre, down=down))
            pre = None
        H //= pk
        W //= pk
    for rb in params["final_resblocks"]:
        C = int(rb["w1"].shape[2])
        calls.append(_prep_fused(rb, H=H, W=W, C=C, groups=groups, pk=pk))
    return calls


# ----------------------------- parameters -------------------------------------


def _resblock_params(nk, dim):
    p = {}
    for i in (1, 2):
        p[f"w{i}"] = (1.0 / np.sqrt(dim * 9)) * jax.random.normal(
            nk(), (3, 3, dim, dim), jnp.float32)
        p[f"b{i}"] = 0.05 * jax.random.normal(nk(), (dim,), jnp.float32)
        p[f"g{i}"] = 1.0 + 0.1 * jax.random.normal(nk(), (dim,), jnp.float32)
        p[f"bt{i}"] = 0.1 * jax.random.normal(nk(), (dim,), jnp.float32)
    return p


def init_params(key, in_planes, init_planes, plains_mults, resnet_stacks,
                last_resnet=False):
    dims = [init_planes] + [init_planes * m for m in plains_mults]
    in_out = list(zip(dims[:-1], dims[1:]))
    state = {"key": key}

    def nk():
        state["key"], sub = jax.random.split(state["key"])
        return sub

    params = {
        "init": {"w": (1.0 / np.sqrt(in_planes)) * jax.random.normal(
                     nk(), (in_planes, init_planes), jnp.float32),
                 "b": 0.05 * jax.random.normal(nk(), (init_planes,), jnp.float32)},
        "stages": [],
        "final_resblocks": [],
    }
    for dim_in, dim_out in in_out:
        rbs = [_resblock_params(nk, dim_in) for _ in range(resnet_stacks)]
        down = {"w": (1.0 / np.sqrt(dim_in)) * jax.random.normal(
                    nk(), (dim_in, dim_out), jnp.float32),
                "b": 0.05 * jax.random.normal(nk(), (dim_out,), jnp.float32)}
        params["stages"].append({"resblocks": rbs, "down": down})
    if last_resnet:
        params["final_resblocks"] = [_resblock_params(nk, dims[-1])
                                     for _ in range(resnet_stacks)]
    # TODO(synk): LinearAttention / PreNorm / Residual branch (attention=True)
    # is not implemented; the module default attention=False does not use it.
    return params


# ----------------------------- pure-JAX reference ------------------------------


def _ref_group_norm(y, gamma, beta, groups):
    N, H, W, C = y.shape
    cs = C // groups
    yg = y.reshape(N, H, W, groups, cs)
    mu = jnp.mean(yg, axis=(1, 2, 4), keepdims=True)
    var = jnp.mean((yg - mu) ** 2, axis=(1, 2, 4), keepdims=True)
    yn = ((yg - mu) / jnp.sqrt(var + EPS)).reshape(N, H, W, C)
    return yn * gamma + beta


def _ref_block(x, rb, groups):
    def cgs(h, w, b, g, bt):
        h = lax.conv_general_dilated(
            h, w, (1, 1), ((1, 1), (1, 1)),
            dimension_numbers=("NHWC", "HWIO", "NHWC")) + b
        h = _ref_group_norm(h, g, bt, groups)
        return h * jax.nn.sigmoid(h)

    h1 = cgs(x, rb["w1"], rb["b1"], rb["g1"], rb["bt1"])
    h2 = cgs(h1, rb["w2"], rb["b2"], rb["g2"], rb["bt2"])
    return h2 + x


def encoder_reference(x_nchw, params, groups, pk):
    h = jnp.transpose(x_nchw, (0, 2, 3, 1)).astype(jnp.float32)
    h = jnp.einsum("nhwc,cd->nhwd", h, params["init"]["w"]) + params["init"]["b"]
    for stage in params["stages"]:
        for rb in stage["resblocks"]:
            h = _ref_block(h, rb, groups)
        N, H, W, C = h.shape
        h = h.reshape(N, H // pk, pk, W // pk, pk, C).mean(axis=(2, 4))
        h = jnp.einsum("nhwc,cd->nhwd", h, stage["down"]["w"]) + stage["down"]["b"]
    for rb in params["final_resblocks"]:
        h = _ref_block(h, rb, groups)
    return jnp.transpose(h, (0, 3, 1, 2))


# ----------------------------- main --------------------------------------------


if __name__ == "__main__":
    key = jax.random.PRNGKey(0)
    kx, kp = jax.random.split(key)

    in_planes = 3
    init_planes = 8
    plains_mults = (1, 2)
    resnet_stacks = 2
    groups = 4
    pool_kern = 2
    N, H, W = 2, 16, 16

    x = jax.random.normal(kx, (N, in_planes, H, W), jnp.float32)     # NCHW
    params = init_params(kp, in_planes, init_planes, plains_mults, resnet_stacks)
    calls = build_encoder_calls(params, groups=groups, pk=pool_kern, H0=H, W0=W)

    fwd = jax.jit(functools.partial(encoder_forward, calls=calls))
    out = jax.block_until_ready(fwd(x))

    ref = jax.block_until_ready(encoder_reference(x, params, groups, pool_kern))

    expect_c = init_planes * plains_mults[-1]
    expect_hw = H // (pool_kern ** len(plains_mults))
    assert out.shape == (N, expect_c, expect_hw, expect_hw), out.shape
    assert bool(jnp.all(jnp.isfinite(out)))
    assert bool(jnp.allclose(out, ref, atol=2e-2, rtol=2e-2)), \
        float(jnp.max(jnp.abs(out - ref)))
    print("KERNEL_OK")
</pallas_src>

<mosaic_0001>
module attributes {stable_mosaic.version = 11 : i64} {
  func.func @_encoder_kernel(%arg0: i32, %arg1: memref<1x16x48xf32, #tpu.memory_space<vmem>>, %arg2: memref<48x128xf32, #tpu.memory_space<vmem>>, %arg3: memref<1x128xf32, #tpu.memory_space<vmem>>, %arg4: memref<2x3x128x128xf32, #tpu.memory_space<vmem>>, %arg5: memref<2x3x1x128xf32, #tpu.memory_space<vmem>>, %arg6: memref<128x128xf32, #tpu.memory_space<vmem>>, %arg7: memref<2x3x128x128xf32, #tpu.memory_space<vmem>>, %arg8: memref<2x3x1x128xf32, #tpu.memory_space<vmem>>, %arg9: memref<128x128xf32, #tpu.memory_space<vmem>>, %arg10: memref<8x16xf32, #tpu.memory_space<vmem>>, %arg11: memref<128x64xf32, #tpu.memory_space<vmem>>, %arg12: memref<1x64xf32, #tpu.memory_space<vmem>>, %arg13: memref<2x3x64x64xf32, #tpu.memory_space<vmem>>, %arg14: memref<2x3x1x64xf32, #tpu.memory_space<vmem>>, %arg15: memref<64x64xf32, #tpu.memory_space<vmem>>, %arg16: memref<2x3x64x64xf32, #tpu.memory_space<vmem>>, %arg17: memref<2x3x1x64xf32, #tpu.memory_space<vmem>>, %arg18: memref<64x64xf32, #tpu.memory_space<vmem>>, %arg19: memref<4x8xf32, #tpu.memory_space<vmem>>, %arg20: memref<64x64xf32, #tpu.memory_space<vmem>>, %arg21: memref<1x64xf32, #tpu.memory_space<vmem>>, %arg22: memref<1x4x64xf32, #tpu.memory_space<vmem>>, %arg23: memref<18x128xf32, #tpu.memory_space<vmem>>, %arg24: memref<10x64xf32, #tpu.memory_space<vmem>>) attributes {dimension_semantics = [#tpu.dimension_semantics<parallel>], iteration_bounds = array<i64: 2>, scalar_prefetch = 0 : i64, scratch_operands = 2 : i64, tpu.core_type = #tpu.core_type<tc>, window_params = [{transform_indices = @transform_0, window_bounds = array<i64: 1, 16, 48>}, {pipeline_mode = #tpu.pipeline_mode<synchronous>, transform_indices = @transform_1, window_bounds = array<i64: 48, 128>}, {pipeline_mode = #tpu.pipeline_mode<synchronous>, transform_indices = @transform_2, window_bounds = array<i64: 1, 128>}, {pipeline_mode = #tpu.pipeline_mode<synchronous>, transform_indices = @transform_3, window_bounds = array<i64: 2, 3, 128, 128>}, {pipeline_mode = #tpu.pipeline_mode<synchronous>, transform_indices = @transform_4, window_bounds = array<i64: 2, 3, 1, 128>}, {pipeline_mode = #tpu.pipeline_mode<synchronous>, transform_indices = @transform_5, window_bounds = array<i64: 128, 128>}, {pipeline_mode = #tpu.pipeline_mode<synchronous>, transform_indices = @transform_6, window_bounds = array<i64: 2, 3, 128, 128>}, {pipeline_mode = #tpu.pipeline_mode<synchronous>, transform_indices = @transform_7, window_bounds = array<i64: 2, 3, 1, 128>}, {pipeline_mode = #tpu.pipeline_mode<synchronous>, transform_indices = @transform_8, window_bounds = array<i64: 128, 128>}, {pipeline_mode = #tpu.pipeline_mode<synchronous>, transform_indices = @transform_9, window_bounds = array<i64: 8, 16>}, {pipeline_mode = #tpu.pipeline_mode<synchronous>, transform_indices = @transform_10, window_bounds = array<i64: 128, 64>}, {pipeline_mode = #tpu.pipeline_mode<synchronous>, transform_indices = @transform_11, window_bounds = array<i64: 1, 64>}, {pipeline_mode = #tpu.pipeline_mode<synchronous>, transform_indices = @transform_12, window_bounds = array<i64: 2, 3, 64, 64>}, {pipeline_mode = #tpu.pipeline_mode<synchronous>, transform_indices = @transform_13, window_bounds = array<i64: 2, 3, 1, 64>}, {pipeline_mode = #tpu.pipeline_mode<synchronous>, transform_indices = @transform_14, window_bounds = array<i64: 64, 64>}, {pipeline_mode = #tpu.pipeline_mode<synchronous>, transform_indices = @transform_15, window_bounds = array<i64: 2, 3, 64, 64>}, {pipeline_mode = #tpu.pipeline_mode<synchronous>, transform_indices = @transform_16, window_bounds = array<i64: 2, 3, 1, 64>}, {pipeline_mode = #tpu.pipeline_mode<synchronous>, transform_indices = @transform_17, window_bounds = array<i64: 64, 64>}, {pipeline_mode = #tpu.pipeline_mode<synchronous>, transform_indices = @transform_18, window_bounds = array<i64: 4, 8>}, {pipeline_mode = #tpu.pipeline_mode<synchronous>, transform_indices = @transform_19, window_bounds = array<i64: 64, 64>}, {pipeline_mode = #tpu.pipeline_mode<synchronous>, transform_indices = @transform_20, window_bounds = array<i64: 1, 64>}, {transform_indices = @transform_21, window_bounds = array<i64: 1, 4, 64>}]} {
    %cst = arith.constant 0.000000e+00 : f32
    %0 = vector.broadcast %cst : f32 to vector<1x128xf32>
    %c0 = arith.constant 0 : index
    %c0_0 = arith.constant 0 : index
    %1 = vector.load %arg23[%c0, %c0_0] : memref<18x128xf32, #tpu.memory_space<vmem>>, vector<1x128xf32>
    tpu.vector_store %arg23[%c0, %c0_0], %0 {strides = array<i32>} : memref<18x128xf32, #tpu.memory_space<vmem>>, vector<1x128xf32>,
    %c17 = arith.constant 17 : index
    %c0_1 = arith.constant 0 : index
    %2 = vector.load %arg23[%c17, %c0_1] : memref<18x128xf32, #tpu.memory_space<vmem>>, vector<1x128xf32>
    tpu.vector_store %arg23[%c17, %c0_1], %0 {strides = array<i32>} : memref<18x128xf32, #tpu.memory_space<vmem>>, vector<1x128xf32>,
    %cst_2 = arith.constant 0.000000e+00 : f32
    %3 = vector.broadcast %cst_2 : f32 to vector<1x64xf32>
    %c0_3 = arith.constant 0 : index
    %c0_4 = arith.constant 0 : index
    %4 = vector.load %arg24[%c0_3, %c0_4] : memref<10x64xf32, #tpu.memory_space<vmem>>, vector<1x64xf32>
    tpu.vector_store %arg24[%c0_3, %c0_4], %3 {strides = array<i32>} : memref<10x64xf32, #tpu.memory_space<vmem>>, vector<1x64xf32>,
    %c9 = arith.constant 9 : index
    %c0_5 = arith.constant 0 : index
    %5 = vector.load %arg24[%c9, %c0_5] : memref<10x64xf32, #tpu.memory_space<vmem>>, vector<1x64xf32>
    tpu.vector_store %arg24[%c9, %c0_5], %3 {strides = array<i32>} : memref<10x64xf32, #tpu.memory_space<vmem>>, vector<1x64xf32>,
    %c0_6 = arith.constant 0 : index
    %c0_7 = arith.constant 0 : index
    %c0_8 = arith.constant 0 : index
    %6 = vector.load %arg1[%c0_6, %c0_7, %c0_8] : memref<1x16x48xf32, #tpu.memory_space<vmem>>, vector<1x16x48xf32>
    %7 = vector.shape_cast %6 : vector<1x16x48xf32> to vector<16x48xf32>
    %c0_9 = arith.constant 0 : index
    %c0_10 = arith.constant 0 : index
    %8 = vector.load %arg2[%c0_9, %c0_10] : memref<48x128xf32, #tpu.memory_space<vmem>>, vector<48x128xf32>
    %cst_11 = arith.constant dense<0.000000e+00> : vector<16x128xf32>
    %9 = tpu.matmul %7, %8, %cst_11 {dimension_numbers = #tpu.dot_dimension_numbers<[1], [0], [0], [1], [0, 0, 1, 1], [], []>} : vector<16x48xf32>, vector<48x128xf32>, vector<16x128xf32> -> vector<16x128xf32>
    %c0_12 = arith.constant 0 : index
    %c0_13 = arith.constant 0 : index
    %10 = vector.load %arg3[%c0_12, %c0_13] : memref<1x128xf32, #tpu.memory_space<vmem>>, vector<1x128xf32>
    %11 = vector.broadcast %10 : vector<1x128xf32> to vector<16x128xf32>
    %12 = arith.addf %9, %11 : vector<16x128xf32>
    %c0_14 = arith.constant 0 : index
    %c0_15 = arith.constant 0 : index
    %13 = vector.load %arg6[%c0_14, %c0_15] : memref<128x128xf32, #tpu.memory_space<vmem>>, vector<128x128xf32>
    %c1 = arith.constant 1 : index
    %c0_16 = arith.constant 0 : index
    %14 = vector.load %arg23[%c1, %c0_16] : memref<18x128xf32, #tpu.memory_space<vmem>>, vector<16x128xf32>
    tpu.vector_store %arg23[%c1, %c0_16], %12 {strides = array<i32>} : memref<18x128xf32, #tpu.memory_space<vmem>>, vector<16x128xf32>,
    %c0_17 = arith.constant 0 : index
    %c1_18 = arith.constant 1 : index
    %c0_19 = arith.constant 0 : index
    %c0_20 = arith.constant 0 : index
    %15 = vector.load %arg4[%c0_17, %c1_18, %c0_19, %c0_20] : memref<2x3x128x128xf32, #tpu.memory_space<vmem>>, vector<1x1x128x128xf32>
    %16 = vector.shape_cast %15 : vector<1x1x128x128xf32> to vector<128x128xf32>
    %cst_21 = arith.constant dense<0.000000e+00> : vector<16x128xf32>
    %17 = tpu.matmul %12, %16, %cst_21 {dimension_numbers = #tpu.dot_dimension_numbers<[1], [0], [0], [1], [0, 0, 1, 1], [], []>} : vector<16x128xf32>, vector<128x128xf32>, vector<16x128xf32> -> vector<16x128xf32>
    %c0_22 = arith.constant 0 : index
    %c0_23 = arith.constant 0 : index
    %18 = vector.load %arg23[%c0_22, %c0_23] : memref<18x128xf32, #tpu.memory_space<vmem>>, vector<16x128xf32>
    %c0_24 = arith.constant 0 : index
    %c0_25 = arith.constant 0 : index
    %c0_26 = arith.constant 0 : index
    %c0_27 = arith.constant 0 : index
    %19 = vector.load %arg4[%c0_24, %c0_25, %c0_26, %c0_27] : memref<2x3x128x128xf32, #tpu.memory_space<vmem>>, vector<1x1x128x128xf32>
    %20 = vector.shape_cast %19 : vector<1x1x128x128xf32> to vector<128x128xf32>
    %cst_28 = arith.constant dense<0.000000e+00> : vector<16x128xf32>
    %21 = tpu.matmul %18, %20, %cst_28 {dimension_numbers = #tpu.dot_dimension_numbers<[1], [0], [0], [1], [0, 0, 1, 1], [], []>} : vector<16x128xf32>, vector<128x128xf32>, vector<16x128xf32> -> vector<16x128xf32>
    %22 = arith.addf %17, %21 : vector<16x128xf32>
    %c2 = arith.constant 2 : index
    %c0_29 = arith.constant 0 : index
    %23 = vector.load %arg23[%c2, %c0_29] : memref<18x128xf32, #tpu.memory_space<vmem>>, vector<16x128xf32>
    %c0_30 = arith.constant 0 : index
    %c2_31 = arith.constant 2 : index
    %c0_32 = arith.constant 0 : index
    %c0_33 = arith.constant 0 : index
    %24 = vector.load %arg4[%c0_30, %c2_31, %c0_32, %c0_33] : memref<2x3x128x128xf32, #tpu.memory_space<vmem>>, vector<1x1x128x128xf32>
    %25 = vector.shape_cast %24 : vector<1x1x128x128xf32> to vector<128x128xf32>
    %cst_34 = arith.constant dense<0.000000e+00> : vector<16x128xf32>
    %26 = tpu.matmul %23, %25, %cst_34 {dimension_numbers = #tpu.dot_dimension_numbers<[1], [0], [0], [1], [0, 0, 1, 1], [], []>} : vector<16x128xf32>, vector<128x128xf32>, vector<16x128xf32> -> vector<16x128xf32>
    %27 = arith.addf %22, %26 : vector<16x128xf32>
    %c0_35 = arith.constant 0 : index
    %c0_36 = arith.constant 0 : index
    %c0_37 = arith.constant 0 : index
    %c0_38 = arith.constant 0 : index
    %28 = vector.load %arg5[%c0_35, %c0_36, %c0_37, %c0_38] : memref<2x3x1x128xf32, #tpu.memory_space<vmem>>, vector<1x1x1x128xf32>
    %29 = vector.shape_cast %28 : vector<1x1x1x128xf32> to vector<1x128xf32>
    %30 = vector.broadcast %29 : vector<1x128xf32> to vector<16x128xf32>
    %31 = arith.addf %27, %30 : vector<16x128xf32>
    %cst_39 = arith.constant dense<0.000000e+00> : vector<128xf32>
    %32 = vector.multi_reduction <add>, %31, %cst_39 [0] : vector<16x128xf32> to vector<128xf32>
    %33 = vector.shape_cast %32 : vector<128xf32> to vector<1x128xf32>
    %34 = arith.mulf %31, %31 : vector<16x128xf32>
    %cst_40 = arith.constant dense<0.000000e+00> : vector<128xf32>
    %35 = vector.multi_reduction <add>, %34, %cst_40 [0] : vector<16x128xf32> to vector<128xf32>
    %36 = vector.shape_cast %35 : vector<128xf32> to vector<1x128xf32>
    %cst_41 = arith.constant dense<0.000000e+00> : vector<1x128xf32>
    %37 = tpu.matmul %33, %13, %cst_41 {dimension_numbers = #tpu.dot_dimension_numbers<[1], [0], [0], [1], [0, 0, 1, 1], [], []>} : vector<1x128xf32>, vector<128x128xf32>, vector<1x128xf32> -> vector<1x128xf32>
    %cst_42 = arith.constant 0.001953125 : f32
    %38 = vector.broadcast %cst_42 : f32 to vector<1x128xf32>
    %39 = arith.mulf %37, %38 : vector<1x128xf32>
    %cst_43 = arith.constant dense<0.000000e+00> : vector<1x128xf32>
    %40 = tpu.matmul %36, %13, %cst_43 {dimension_numbers = #tpu.dot_dimension_numbers<[1], [0], [0], [1], [0, 0, 1, 1], [], []>} : vector<1x128xf32>, vector<128x128xf32>, vector<1x128xf32> -> vector<1x128xf32>
    %cst_44 = arith.constant 0.001953125 : f32
    %41 = vector.broadcast %cst_44 : f32 to vector<1x128xf32>
    %42 = arith.mulf %40, %41 : vector<1x128xf32>
    %43 = arith.mulf %39, %39 : vector<1x128xf32>
    %44 = arith.subf %42, %43 : vector<1x128xf32>
    %45 = vector.broadcast %39 : vector<1x128xf32> to vector<16x128xf32>
    %46 = arith.subf %31, %45 : vector<16x128xf32>
    %cst_45 = arith.constant 9.99999974E-6 : f32
    %47 = vector.broadcast %cst_45 : f32 to vector<1x128xf32>
    %48 = arith.addf %44, %47 : vector<1x128xf32>
    %49 = math.rsqrt %48 : vector<1x128xf32>
    %50 = vector.broadcast %49 : vector<1x128xf32> to vector<16x128xf32>
    %51 = arith.mulf %46, %50 : vector<16x128xf32>
    %c0_46 = arith.constant 0 : index
    %c1_47 = arith.constant 1 : index
    %c0_48 = arith.constant 0 : index
    %c0_49 = arith.constant 0 : index
    %52 = vector.load %arg5[%c0_46, %c1_47, %c0_48, %c0_49] : memref<2x3x1x128xf32, #tpu.memory_space<vmem>>, vector<1x1x1x128xf32>
    %53 = vector.shape_cast %52 : vector<1x1x1x128xf32> to vector<1x128xf32>
    %54 = vector.broadcast %53 : vector<1x128xf32> to vector<16x128xf32>
    %55 = arith.mulf %51, %54 : vector<16x128xf32>
    %c0_50 = arith.constant 0 : index
    %c2_51 = arith.constant 2 : index
    %c0_52 = arith.constant 0 : index
    %c0_53 = arith.constant 0 : index
    %56 = vector.load %arg5[%c0_50, %c2_51, %c0_52, %c0_53] : memref<2x3x1x128xf32, #tpu.memory_space<vmem>>, vector<1x1x1x128xf32>
    %57 = vector.shape_cast %56 : vector<1x1x1x128xf32> to vector<1x128xf32>
    %58 = vector.broadcast %57 : vector<1x128xf32> to vector<16x128xf32>
    %59 = arith.addf %55, %58 : vector<16x128xf32>
    %60 = arith.negf %59 : vector<16x128xf32>
    %61 = math.exp %60 : vector<16x128xf32>
    %cst_54 = arith.constant 1.000000e+00 : f32
    %62 = vector.broadcast %cst_54 : f32 to vector<16x128xf32>
    %63 = arith.addf %62, %61 : vector<16x128xf32>
    %64 = arith.divf %62, %63 : vector<16x128xf32>
    %65 = arith.mulf %59, %64 : vector<16x128xf32>
    %c1_55 = arith.constant 1 : index
    %c0_56 = arith.constant 0 : index
    %66 = vector.load %arg23[%c1_55, %c0_56] : memref<18x128xf32, #tpu.memory_space<vmem>>, vector<16x128xf32>
    tpu.vector_store %arg23[%c1_55, %c0_56], %65 {strides = array<i32>} : memref<18x128xf32, #tpu.memory_space<vmem>>, vector<16x128xf32>,
    %c1_57 = arith.constant 1 : index
    %c1_58 = arith.constant 1 : index
    %c0_59 = arith.constant 0 : index
    %c0_60 = arith.constant 0 : index
    %67 = vector.load %arg4[%c1_57, %c1_58, %c0_59, %c0_60] : memref<2x3x128x128xf32, #tpu.memory_space<vmem>>, vector<1x1x128x128xf32>
    %68 = vector.shape_cast %67 : vector<1x1x128x128xf32> to vector<128x128xf32>
    %cst_61 = arith.constant dense<0.000000e+00> : vector<16x128xf32>
    %69 = tpu.matmul %65, %68, %cst_61 {dimension_numbers = #tpu.dot_dimension_numbers<[1], [0], [0], [1], [0, 0, 1, 1], [], []>} : vector<16x128xf32>, vector<128x128xf32>, vector<16x128xf32> -> vector<16x128xf32>
    %c0_62 = arith.constant 0 : index
    %c0_63 = arith.constant 0 : index
    %70 = vector.load %arg23[%c0_62, %c0_63] : memref<18x128xf32, #tpu.memory_space<vmem>>, vector<16x128xf32>
    %c1_64 = arith.constant 1 : index
    %c0_65 = arith.constant 0 : index
    %c0_66 = arith.constant 0 : index
    %c0_67 = arith.constant 0 : index
    %71 = vector.load %arg4[%c1_64, %c0_65, %c0_66, %c0_67] : memref<2x3x128x128xf32, #tpu.memory_space<vmem>>, vector<1x1x128x128xf32>
    %72 = vector.shape_cast %71 : vector<1x1x128x128xf32> to vector<128x128xf32>
    %cst_68 = arith.constant dense<0.000000e+00> : vector<16x128xf32>
    %73 = tpu.matmul %70, %72, %cst_68 {dimension_numbers = #tpu.dot_dimension_numbers<[1], [0], [0], [1], [0, 0, 1, 1], [], []>} : vector<16x128xf32>, vector<128x128xf32>, vector<16x128xf32> -> vector<16x128xf32>
    %74 = arith.addf %69, %73 : vector<16x128xf32>
    %c2_69 = arith.constant 2 : index
    %c0_70 = arith.constant 0 : index
    %75 = vector.load %arg23[%c2_69, %c0_70] : memref<18x128xf32, #tpu.memory_space<vmem>>, vector<16x128xf32>
    %c1_71 = arith.constant 1 : index
    %c2_72 = arith.constant 2 : index
    %c0_73 = arith.constant 0 : index
    %c0_74 = arith.constant 0 : index
    %76 = vector.load %arg4[%c1_71, %c2_72, %c0_73, %c0_74] : memref<2x3x128x128xf32, #tpu.memory_space<vmem>>, vector<1x1x128x128xf32>
    %77 = vector.shape_cast %76 : vector<1x1x128x128xf32> to vector<128x128xf32>
    %cst_75 = arith.constant dense<0.000000e+00> : vector<16x128xf32>
    %78 = tpu.matmul %75, %77, %cst_75 {dimension_numbers = #tpu.dot_dimension_numbers<[1], [0], [0], [1], [0, 0, 1, 1], [], []>} : vector<16x128xf32>, vector<128x128xf32>, vector<16x128xf32> -> vector<16x128xf32>
    %79 = arith.addf %74, %78 : vector<16x128xf32>
    %c1_76 = arith.constant 1 : index
    %c0_77 = arith.constant 0 : index
    %c0_78 = arith.constant 0 : index
    %c0_79 = arith.constant 0 : index
    %80 = vector.load %arg5[%c1_76, %c0_77, %c0_78, %c0_79] : memref<2x3x1x128xf32, #tpu.memory_space<vmem>>, vector<1x1x1x128xf32>
    %81 = vector.shape_cast %80 : vector<1x1x1x128xf32> to vector<1x128xf32>
    %82 = vector.broadcast %81 : vector<1x128xf32> to vector<16x128xf32>
    %83 = arith.addf %79, %82 : vector<16x128xf32>
    %cst_80 = arith.constant dense<0.000000e+00> : vector<128xf32>
    %84 = vector.multi_reduction <add>, %83, %cst_80 [0] : vector<16x128xf32> to vector<128xf32>
    %85 = vector.shape_cast %84 : vector<128xf32> to vector<1x128xf32>
    %86 = arith.mulf %83, %83 : vector<16x128xf32>
    %cst_81 = arith.constant dense<0.000000e+00> : vector<128xf32>
    %87 = vector.multi_reduction <add>, %86, %cst_81 [0] : vector<16x128xf32> to vector<128xf32>
    %88 = vector.shape_cast %87 : vector<128xf32> to vector<1x128xf32>
    %cst_82 = arith.constant dense<0.000000e+00> : vector<1x128xf32>
    %89 = tpu.matmul %85, %13, %cst_82 {dimension_numbers = #tpu.dot_dimension_numbers<[1], [0], [0], [1], [0, 0, 1, 1], [], []>} : vector<1x128xf32>, vector<128x128xf32>, vector<1x128xf32> -> vector<1x128xf32>
    %cst_83 = arith.constant 0.001953125 : f32
    %90 = vector.broadcast %cst_83 : f32 to vector<1x128xf32>
    %91 = arith.mulf %89, %90 : vector<1x128xf32>
    %cst_84 = arith.constant dense<0.000000e+00> : vector<1x128xf32>
    %92 = tpu.matmul %88, %13, %cst_84 {dimension_numbers = #tpu.dot_dimension_numbers<[1], [0], [0], [1], [0, 0, 1, 1], [], []>} : vector<1x128xf32>, vector<128x128xf32>, vector<1x128xf32> -> vector<1x128xf32>
    %cst_85 = arith.constant 0.001953125 : f32
    %93 = vector.broadcast %cst_85 : f32 to vector<1x128xf32>
    %94 = arith.mulf %92, %93 : vector<1x128xf32>
    %95 = arith.mulf %91, %91 : vector<1x128xf32>
    %96 = arith.subf %94, %95 : vector<1x128xf32>
    %97 = vector.broadcast %91 : vector<1x128xf32> to vector<16x128xf32>
    %98 = arith.subf %83, %97 : vector<16x128xf32>
    %cst_86 = arith.constant 9.99999974E-6 : f32
    %99 = vector.broadcast %cst_86 : f32 to vector<1x128xf32>
    %100 = arith.addf %96, %99 : vector<1x128xf32>
    %101 = math.rsqrt %100 : vector<1x128xf32>
    %102 = vector.broadcast %101 : vector<1x128xf32> to vector<16x128xf32>
    %103 = arith.mulf %98, %102 : vector<16x128xf32>
    %c1_87 = arith.constant 1 : index
    %c1_88 = arith.constant 1 : index
    %c0_89 = arith.constant 0 : index
    %c0_90 = arith.constant 0 : index
    %104 = vector.load %arg5[%c1_87, %c1_88, %c0_89, %c0_90] : memref<2x3x1x128xf32, #tpu.memory_space<vmem>>, vector<1x1x1x128xf32>
    %105 = vector.shape_cast %104 : vector<1x1x1x128xf32> to vector<1x128xf32>
    %106 = vector.broadcast %105 : vector<1x128xf32> to vector<16x128xf32>
    %107 = arith.mulf %103, %106 : vector<16x128xf32>
    %c1_91 = arith.constant 1 : index
    %c2_92 = arith.constant 2 : index
    %c0_93 = arith.constant 0 : index
    %c0_94 = arith.constant 0 : index
    %108 = vector.load %arg5[%c1_91, %c2_92, %c0_93, %c0_94] : memref<2x3x1x128xf32, #tpu.memory_space<vmem>>, vector<1x1x1x128xf32>
    %109 = vector.shape_cast %108 : vector<1x1x1x128xf32> to vector<1x128xf32>
    %110 = vector.broadcast %109 : vector<1x128xf32> to vector<16x128xf32>
    %111 = arith.addf %107, %110 : vector<16x128xf32>
    %112 = arith.negf %111 : vector<16x128xf32>
    %113 = math.exp %112 : vector<16x128xf32>
    %cst_95 = arith.constant 1.000000e+00 : f32
    %114 = vector.broadcast %cst_95 : f32 to vector<16x128xf32>
    %115 = arith.addf %114, %113 : vector<16x128xf32>
    %116 = arith.divf %114, %115 : vector<16x128xf32>
    %117 = arith.mulf %111, %116 : vector<16x128xf32>
    %118 = arith.addf %117, %12 : vector<16x128xf32>
    %c0_96 = arith.constant 0 : index
    %c0_97 = arith.constant 0 : index
    %119 = vector.load %arg9[%c0_96, %c0_97] : memref<128x128xf32, #tpu.memory_space<vmem>>, vector<128x128xf32>
    %c1_98 = arith.constant 1 : index
    %c0_99 = arith.constant 0 : index
    %120 = vector.load %arg23[%c1_98, %c0_99] : memref<18x128xf32, #tpu.memory_space<vmem>>, vector<16x128xf32>
    tpu.vector_store %arg23[%c1_98, %c0_99], %118 {strides = array<i32>} : memref<18x128xf32, #tpu.memory_space<vmem>>, vector<16x128xf32>,
    %c0_100 = arith.constant 0 : index
    %c1_101 = arith.constant 1 : index
    %c0_102 = arith.constant 0 : index
    %c0_103 = arith.constant 0 : index
    %121 = vector.load %arg7[%c0_100, %c1_101, %c0_102, %c0_103] : memref<2x3x128x128xf32, #tpu.memory_space<vmem>>, vector<1x1x128x128xf32>
    %122 = vector.shape_cast %121 : vector<1x1x128x128xf32> to vector<128x128xf32>
    %cst_104 = arith.constant dense<0.000000e+00> : vector<16x128xf32>
    %123 = tpu.matmul %118, %122, %cst_104 {dimension_numbers = #tpu.dot_dimension_numbers<[1], [0], [0], [1], [0, 0, 1, 1], [], []>} : vector<16x128xf32>, vector<128x128xf32>, vector<16x128xf32> -> vector<16x128xf32>
    %c0_105 = arith.constant 0 : index
    %c0_106 = arith.constant 0 : index
    %124 = vector.load %arg23[%c0_105, %c0_106] : memref<18x128xf32, #tpu.memory_space<vmem>>, vector<16x128xf32>
    %c0_107 = arith.constant 0 : index
    %c0_108 = arith.constant 0 : index
    %c0_109 = arith.constant 0 : index
    %c0_110 = arith.constant 0 : index
    %125 = vector.load %arg7[%c0_107, %c0_108, %c0_109, %c0_110] : memref<2x3x128x128xf32, #tpu.memory_space<vmem>>, vector<1x1x128x128xf32>
    %126 = vector.shape_cast %125 : vector<1x1x128x128xf32> to vector<128x128xf32>
    %cst_111 = arith.constant dense<0.000000e+00> : vector<16x128xf32>
    %127 = tpu.matmul %124, %126, %cst_111 {dimension_numbers = #tpu.dot_dimension_numbers<[1], [0], [0], [1], [0, 0, 1, 1], [], []>} : vector<16x128xf32>, vector<128x128xf32>, vector<16x128xf32> -> vector<16x128xf32>
    %128 = arith.addf %123, %127 : vector<16x128xf32>
    %c2_112 = arith.constant 2 : index
    %c0_113 = arith.constant 0 : index
    %129 = vector.load %arg23[%c2_112, %c0_113] : memref<18x128xf32, #tpu.memory_space<vmem>>, vector<16x128xf32>
    %c0_114 = arith.constant 0 : index
    %c2_115 = arith.constant 2 : index
    %c0_116 = arith.constant 0 : index
    %c0_117 = arith.constant 0 : index
    %130 = vector.load %arg7[%c0_114, %c2_115, %c0_116, %c0_117] : memref<2x3x128x128xf32, #tpu.memory_space<vmem>>, vector<1x1x128x128xf32>
    %131 = vector.shape_cast %130 : vector<1x1x128x128xf32> to vector<128x128xf32>
    %cst_118 = arith.constant dense<0.000000e+00> : vector<16x128xf32>
    %132 = tpu.matmul %129, %131, %cst_118 {dimension_numbers = #tpu.dot_dimension_numbers<[1], [0], [0], [1], [0, 0, 1, 1], [], []>} : vector<16x128xf32>, vector<128x128xf32>, vector<16x128xf32> -> vector<16x128xf32>
    %133 = arith.addf %128, %132 : vector<16x128xf32>
    %c0_119 = arith.constant 0 : index
    %c0_120 = arith.constant 0 : index
    %c0_121 = arith.constant 0 : index
    %c0_122 = arith.constant 0 : index
    %134 = vector.load %arg8[%c0_119, %c0_120, %c0_121, %c0_122] : memref<2x3x1x128xf32, #tpu.memory_space<vmem>>, vector<1x1x1x128xf32>
    %135 = vector.shape_cast %134 : vector<1x1x1x128xf32> to vector<1x128xf32>
    %136 = vector.broadcast %135 : vector<1x128xf32> to vector<16x128xf32>
    %137 = arith.addf %133, %136 : vector<16x128xf32>
    %cst_123 = arith.constant dense<0.000000e+00> : vector<128xf32>
    %138 = vector.multi_reduction <add>, %137, %cst_123 [0] : vector<16x128xf32> to vector<128xf32>
    %139 = vector.shape_cast %138 : vector<128xf32> to vector<1x128xf32>
    %140 = arith.mulf %137, %137 : vector<16x128xf32>
    %cst_124 = arith.constant dense<0.000000e+00> : vector<128xf32>
    %141 = vector.multi_reduction <add>, %140, %cst_124 [0] : vector<16x128xf32> to vector<128xf32>
    %142 = vector.shape_cast %141 : vector<128xf32> to vector<1x128xf32>
    %cst_125 = arith.constant dense<0.000000e+00> : vector<1x128xf32>
    %143 = tpu.matmul %139, %119, %cst_125 {dimension_numbers = #tpu.dot_dimension_numbers<[1], [0], [0], [1], [0, 0, 1, 1], [], []>} : vector<1x128xf32>, vector<128x128xf32>, vector<1x128xf32> -> vector<1x128xf32>
    %cst_126 = arith.constant 0.001953125 : f32
    %144 = vector.broadcast %cst_126 : f32 to vector<1x128xf32>
    %145 = arith.mulf %143, %144 : vector<1x128xf32>
    %cst_127 = arith.constant dense<0.000000e+00> : vector<1x128xf32>
    %146 = tpu.matmul %142, %119, %cst_127 {dimension_numbers = #tpu.dot_dimension_numbers<[1], [0], [0], [1], [0, 0, 1, 1], [], []>} : vector<1x128xf32>, vector<128x128xf32>, vector<1x128xf32> -> vector<1x128xf32>
    %cst_128 = arith.constant 0.001953125 : f32
    %147 = vector.broadcast %cst_128 : f32 to vector<1x128xf32>
    %148 = arith.mulf %146, %147 : vector<1x128xf32>
    %149 = arith.mulf %145, %145 : vector<1x128xf32>
    %150 = arith.subf %148, %149 : vector<1x128xf32>
    %151 = vector.broadcast %145 : vector<1x128xf32> to vector<16x128xf32>
    %152 = arith.subf %137, %151 : vector<16x128xf32>
    %cst_129 = arith.constant 9.99999974E-6 : f32
    %153 = vector.broadcast %cst_129 : f32 to vector<1x128xf32>
    %154 = arith.addf %150, %153 : vector<1x128xf32>
    %155 = math.rsqrt %154 : vector<1x128xf32>
    %156 = vector.broadcast %155 : vector<1x128xf32> to vector<16x128xf32>
    %157 = arith.mulf %152, %156 : vector<16x128xf32>
    %c0_130 = arith.constant 0 : index
    %c1_131 = arith.constant 1 : index
    %c0_132 = arith.constant 0 : index
    %c0_133 = arith.constant 0 : index
    %158 = vector.load %arg8[%c0_130, %c1_131, %c0_132, %c0_133] : memref<2x3x1x128xf32, #tpu.memory_space<vmem>>, vector<1x1x1x128xf32>
    %159 = vector.shape_cast %158 : vector<1x1x1x128xf32> to vector<1x128xf32>
    %160 = vector.broadcast %159 : vector<1x128xf32> to vector<16x128xf32>
    %161 = arith.mulf %157, %160 : vector<16x128xf32>
    %c0_134 = arith.constant 0 : index
    %c2_135 = arith.constant 2 : index
    %c0_136 = arith.constant 0 : index
    %c0_137 = arith.constant 0 : index
    %162 = vector.load %arg8[%c0_134, %c2_135, %c0_136, %c0_137] : memref<2x3x1x128xf32, #tpu.memory_space<vmem>>, vector<1x1x1x128xf32>
    %163 = vector.shape_cast %162 : vector<1x1x1x128xf32> to vector<1x128xf32>
    %164 = vector.broadcast %163 : vector<1x128xf32> to vector<16x128xf32>
    %165 = arith.addf %161, %164 : vector<16x128xf32>
    %166 = arith.negf %165 : vector<16x128xf32>
    %167 = math.exp %166 : vector<16x128xf32>
    %cst_138 = arith.constant 1.000000e+00 : f32
    %168 = vector.broadcast %cst_138 : f32 to vector<16x128xf32>
    %169 = arith.addf %168, %167 : vector<16x128xf32>
    %170 = arith.divf %168, %169 : vector<16x128xf32>
    %171 = arith.mulf %165, %170 : vector<16x128xf32>
    %c1_139 = arith.constant 1 : index
    %c0_140 = arith.constant 0 : index
    %172 = vector.load %arg23[%c1_139, %c0_140] : memref<18x128xf32, #tpu.memory_space<vmem>>, vector<16x128xf32>
    tpu.vector_store %arg23[%c1_139, %c0_140], %171 {strides = array<i32>} : memref<18x128xf32, #tpu.memory_space<vmem>>, vector<16x128xf32>,
    %c1_141 = arith.constant 1 : index
    %c1_142 = arith.constant 1 : index
    %c0_143 = arith.constant 0 : index
    %c0_144 = arith.constant 0 : index
    %173 = vector.load %arg7[%c1_141, %c1_142, %c0_143, %c0_144] : memref<2x3x128x128xf32, #tpu.memory_space<vmem>>, vector<1x1x128x128xf32>
    %174 = vector.shape_cast %173 : vector<1x1x128x128xf32> to vector<128x128xf32>
    %cst_145 = arith.constant dense<0.000000e+00> : vector<16x128xf32>
    %175 = tpu.matmul %171, %174, %cst_145 {dimension_numbers = #tpu.dot_dimension_numbers<[1], [0], [0], [1], [0, 0, 1, 1], [], []>} : vector<16x128xf32>, vector<128x128xf32>, vector<16x128xf32> -> vector<16x128xf32>
    %c0_146 = arith.constant 0 : index
    %c0_147 = arith.constant 0 : index
    %176 = vector.load %arg23[%c0_146, %c0_147] : memref<18x128xf32, #tpu.memory_space<vmem>>, vector<16x128xf32>
    %c1_148 = arith.constant 1 : index
    %c0_149 = arith.constant 0 : index
    %c0_150 = arith.constant 0 : index
    %c0_151 = arith.constant 0 : index
    %177 = vector.load %arg7[%c1_148, %c0_149, %c0_150, %c0_151] : memref<2x3x128x128xf32, #tpu.memory_space<vmem>>, vector<1x1x128x128xf32>
    %178 = vector.shape_cast %177 : vector<1x1x128x128xf32> to vector<128x128xf32>
    %cst_152 = arith.constant dense<0.000000e+00> : vector<16x128xf32>
    %179 = tpu.matmul %176, %178, %cst_152 {dimension_numbers = #tpu.dot_dimension_numbers<[1], [0], [0], [1], [0, 0, 1, 1], [], []>} : vector<16x128xf32>, vector<128x128xf32>, vector<16x128xf32> -> vector<16x128xf32>
    %180 = arith.addf %175, %179 : vector<16x128xf32>
    %c2_153 = arith.constant 2 : index
    %c0_154 = arith.constant 0 : index
    %181 = vector.load %arg23[%c2_153, %c0_154] : memref<18x128xf32, #tpu.memory_space<vmem>>, vector<16x128xf32>
    %c1_155 = arith.constant 1 : index
    %c2_156 = arith.constant 2 : index
    %c0_157 = arith.constant 0 : index
    %c0_158 = arith.constant 0 : index
    %182 = vector.load %arg7[%c1_155, %c2_156, %c0_157, %c0_158] : memref<2x3x128x128xf32, #tpu.memory_space<vmem>>, vector<1x1x128x128xf32>
    %183 = vector.shape_cast %182 : vector<1x1x128x128xf32> to vector<128x128xf32>
    %cst_159 = arith.constant dense<0.000000e+00> : vector<16x128xf32>
    %184 = tpu.matmul %181, %183, %cst_159 {dimension_numbers = #tpu.dot_dimension_numbers<[1], [0], [0], [1], [0, 0, 1, 1], [], []>} : vector<16x128xf32>, vector<128x128xf32>, vector<16x128xf32> -> vector<16x128xf32>
    %185 = arith.addf %180, %184 : vector<16x128xf32>
    %c1_160 = arith.constant 1 : index
    %c0_161 = arith.constant 0 : index
    %c0_162 = arith.constant 0 : index
    %c0_163 = arith.constant 0 : index
    %186 = vector.load %arg8[%c1_160, %c0_161, %c0_162, %c0_163] : memref<2x3x1x128xf32, #tpu.memory_space<vmem>>, vector<1x1x1x128xf32>
    %187 = vector.shape_cast %186 : vector<1x1x1x128xf32> to vector<1x128xf32>
    %188 = vector.broadcast %187 : vector<1x128xf32> to vector<16x128xf32>
    %189 = arith.addf %185, %188 : vector<16x128xf32>
    %cst_164 = arith.constant dense<0.000000e+00> : vector<128xf32>
    %190 = vector.multi_reduction <add>, %189, %cst_164 [0] : vector<16x128xf32> to vector<128xf32>
    %191 = vector.shape_cast %190 : vector<128xf32> to vector<1x128xf32>
    %192 = arith.mulf %189, %189 : vector<16x128xf32>
    %cst_165 = arith.constant dense<0.000000e+00> : vector<128xf32>
    %193 = vector.multi_reduction <add>, %192, %cst_165 [0] : vector<16x128xf32> to vector<128xf32>
    %194 = vector.shape_cast %193 : vector<128xf32> to vector<1x128xf32>
    %cst_166 = arith.constant dense<0.000000e+00> : vector<1x128xf32>
    %195 = tpu.matmul %191, %119, %cst_166 {dimension_numbers = #tpu.dot_dimension_numbers<[1], [0], [0], [1], [0, 0, 1, 1], [], []>} : vector<1x128xf32>, vector<128x128xf32>, vector<1x128xf32> -> vector<1x128xf32>
    %cst_167 = arith.constant 0.001953125 : f32
    %196 = vector.broadcast %cst_167 : f32 to vector<1x128xf32>
    %197 = arith.mulf %195, %196 : vector<1x128xf32>
    %cst_168 = arith.constant dense<0.000000e+00> : vector<1x128xf32>
    %198 = tpu.matmul %194, %119, %cst_168 {dimension_numbers = #tpu.dot_dimension_numbers<[1], [0], [0], [1], [0, 0, 1, 1], [], []>} : vector<1x128xf32>, vector<128x128xf32>, vector<1x128xf32> -> vector<1x128xf32>
    %cst_169 = arith.constant 0.001953125 : f32
    %199 = vector.broadcast %cst_169 : f32 to vector<1x128xf32>
    %200 = arith.mulf %198, %199 : vector<1x128xf32>
    %201 = arith.mulf %197, %197 : vector<1x128xf32>
    %202 = arith.subf %200, %201 : vector<1x128xf32>
    %203 = vector.broadcast %197 : vector<1x128xf32> to vector<16x128xf32>
    %204 = arith.subf %189, %203 : vector<16x128xf32>
    %cst_170 = arith.constant 9.99999974E-6 : f32
    %205 = vector.broadcast %cst_170 : f32 to vector<1x128xf32>
    %206 = arith.addf %202, %205 : vector<1x128xf32>
    %207 = math.rsqrt %206 : vector<1x128xf32>
    %208 = vector.broadcast %207 : vector<1x128xf32> to vector<16x128xf32>
    %209 = arith.mulf %204, %208 : vector<16x128xf32>
    %c1_171 = arith.constant 1 : index
    %c1_172 = arith.constant 1 : index
    %c0_173 = arith.constant 0 : index
    %c0_174 = arith.constant 0 : index
    %210 = vector.load %arg8[%c1_171, %c1_172, %c0_173, %c0_174] : memref<2x3x1x128xf32, #tpu.memory_space<vmem>>, vector<1x1x1x128xf32>
    %211 = vector.shape_cast %210 : vector<1x1x1x128xf32> to vector<1x128xf32>
    %212 = vector.broadcast %211 : vector<1x128xf32> to vector<16x128xf32>
    %213 = arith.mulf %209, %212 : vector<16x128xf32>
    %c1_175 = arith.constant 1 : index
    %c2_176 = arith.constant 2 : index
    %c0_177 = arith.constant 0 : index
    %c0_178 = arith.constant 0 : index
    %214 = vector.load %arg8[%c1_175, %c2_176, %c0_177, %c0_178] : memref<2x3x1x128xf32, #tpu.memory_space<vmem>>, vector<1x1x1x128xf32>
    %215 = vector.shape_cast %214 : vector<1x1x1x128xf32> to vector<1x128xf32>
    %216 = vector.broadcast %215 : vector<1x128xf32> to vector<16x128xf32>
    %217 = arith.addf %213, %216 : vector<16x128xf32>
    %218 = arith.negf %217 : vector<16x128xf32>
    %219 = math.exp %218 : vector<16x128xf32>
    %cst_179 = arith.constant 1.000000e+00 : f32
    %220 = vector.broadcast %cst_179 : f32 to vector<16x128xf32>
    %221 = arith.addf %220, %219 : vector<16x128xf32>
    %222 = arith.divf %220, %221 : vector<16x128xf32>
    %223 = arith.mulf %217, %222 : vector<16x128xf32>
    %224 = arith.addf %223, %118 : vector<16x128xf32>
    %c0_180 = arith.constant 0 : index
    %c0_181 = arith.constant 0 : index
    %225 = vector.load %arg10[%c0_180, %c0_181] : memref<8x16xf32, #tpu.memory_space<vmem>>, vector<8x16xf32>
    %cst_182 = arith.constant dense<0.000000e+00> : vector<8x128xf32>
    %226 = tpu.matmul %225, %224, %cst_182 {dimension_numbers = #tpu.dot_dimension_numbers<[1], [0], [0], [1], [0, 0, 1, 1], [], []>} : vector<8x16xf32>, vector<16x128xf32>, vector<8x128xf32> -> vector<8x128xf32>
    %c0_183 = arith.constant 0 : index
    %c0_184 = arith.constant 0 : index
    %227 = vector.load %arg11[%c0_183, %c0_184] : memref<128x64xf32, #tpu.memory_space<vmem>>, vector<128x64xf32>
    %cst_185 = arith.constant dense<0.000000e+00> : vector<8x64xf32>
    %228 = tpu.matmul %226, %227, %cst_185 {dimension_numbers = #tpu.dot_dimension_numbers<[1], [0], [0], [1], [0, 0, 1, 1], [], []>} : vector<8x128xf32>, vector<128x64xf32>, vector<8x64xf32> -> vector<8x64xf32>
    %c0_186 = arith.constant 0 : index
    %c0_187 = arith.constant 0 : index
    %229 = vector.load %arg12[%c0_186, %c0_187] : memref<1x64xf32, #tpu.memory_space<vmem>>, vector<1x64xf32>
    %230 = vector.broadcast %229 : vector<1x64xf32> to vector<8x64xf32>
    %231 = arith.addf %228, %230 : vector<8x64xf32>
    %c0_188 = arith.constant 0 : index
    %c0_189 = arith.constant 0 : index
    %232 = vector.load %arg15[%c0_188, %c0_189] : memref<64x64xf32, #tpu.memory_space<vmem>>, vector<64x64xf32>
    %c1_190 = arith.constant 1 : index
    %c0_191 = arith.constant 0 : index
    %233 = vector.load %arg24[%c1_190, %c0_191] : memref<10x64xf32, #tpu.memory_space<vmem>>, vector<8x64xf32>
    tpu.vector_store %arg24[%c1_190, %c0_191], %231 {strides = array<i32>} : memref<10x64xf32, #tpu.memory_space<vmem>>, vector<8x64xf32>,
    %c0_192 = arith.constant 0 : index
    %c1_193 = arith.constant 1 : index
    %c0_194 = arith.constant 0 : index
    %c0_195 = arith.constant 0 : index
    %234 = vector.load %arg13[%c0_192, %c1_193, %c0_194, %c0_195] : memref<2x3x64x64xf32, #tpu.memory_space<vmem>>, vector<1x1x64x64xf32>
    %235 = vector.shape_cast %234 : vector<1x1x64x64xf32> to vector<64x64xf32>
    %cst_196 = arith.constant dense<0.000000e+00> : vector<8x64xf32>
    %236 = tpu.matmul %231, %235, %cst_196 {dimension_numbers = #tpu.dot_dimension_numbers<[1], [0], [0], [1], [0, 0, 1, 1], [], []>} : vector<8x64xf32>, vector<64x64xf32>, vector<8x64xf32> -> vector<8x64xf32>
    %c0_197 = arith.constant 0 : index
    %c0_198 = arith.constant 0 : index
    %237 = vector.load %arg24[%c0_197, %c0_198] : memref<10x64xf32, #tpu.memory_space<vmem>>, vector<8x64xf32>
    %c0_199 = arith.constant 0 : index
    %c0_200 = arith.constant 0 : index
    %c0_201 = arith.constant 0 : index
    %c0_202 = arith.constant 0 : index
    %238 = vector.load %arg13[%c0_199, %c0_200, %c0_201, %c0_202] : memref<2x3x64x64xf32, #tpu.memory_space<vmem>>, vector<1x1x64x64xf32>
    %239 = vector.shape_cast %238 : vector<1x1x64x64xf32> to vector<64x64xf32>
    %cst_203 = arith.constant dense<0.000000e+00> : vector<8x64xf32>
    %240 = tpu.matmul %237, %239, %cst_203 {dimension_numbers = #tpu.dot_dimension_numbers<[1], [0], [0], [1], [0, 0, 1, 1], [], []>} : vector<8x64xf32>, vector<64x64xf32>, vector<8x64xf32> -> vector<8x64xf32>
    %241 = arith.addf %236, %240 : vector<8x64xf32>
    %c2_204 = arith.constant 2 : index
    %c0_205 = arith.constant 0 : index
    %242 = vector.load %arg24[%c2_204, %c0_205] : memref<10x64xf32, #tpu.memory_space<vmem>>, vector<8x64xf32>
    %c0_206 = arith.constant 0 : index
    %c2_207 = arith.constant 2 : index
    %c0_208 = arith.constant 0 : index
    %c0_209 = arith.constant 0 : index
    %243 = vector.load %arg13[%c0_206, %c2_207, %c0_208, %c0_209] : memref<2x3x64x64xf32, #tpu.memory_space<vmem>>, vector<1x1x64x64xf32>
    %244 = vector.shape_cast %243 : vector<1x1x64x64xf32> to vector<64x64xf32>
    %cst_210 = arith.constant dense<0.000000e+00> : vector<8x64xf32>
    %245 = tpu.matmul %242, %244, %cst_210 {dimension_numbers = #tpu.dot_dimension_numbers<[1], [0], [0], [1], [0, 0, 1, 1], [], []>} : vector<8x64xf32>, vector<64x64xf32>, vector<8x64xf32> -> vector<8x64xf32>
    %246 = arith.addf %241, %245 : vector<8x64xf32>
    %c0_211 = arith.constant 0 : index
    %c0_212 = arith.constant 0 : index
    %c0_213 = arith.constant 0 : index
    %c0_214 = arith.constant 0 : index
    %247 = vector.load %arg14[%c0_211, %c0_212, %c0_213, %c0_214] : memref<2x3x1x64xf32, #tpu.memory_space<vmem>>, vector<1x1x1x64xf32>
    %248 = vector.shape_cast %247 : vector<1x1x1x64xf32> to vector<1x64xf32>
    %249 = vector.broadcast %248 : vector<1x64xf32> to vector<8x64xf32>
    %250 = arith.addf %246, %249 : vector<8x64xf32>
    %cst_215 = arith.constant dense<0.000000e+00> : vector<64xf32>
    %251 = vector.multi_reduction <add>, %250, %cst_215 [0] : vector<8x64xf32> to vector<64xf32>
    %252 = vector.shape_cast %251 : vector<64xf32> to vector<1x64xf32>
    %253 = arith.mulf %250, %250 : vector<8x64xf32>
    %cst_216 = arith.constant dense<0.000000e+00> : vector<64xf32>
    %254 = vector.multi_reduction <add>, %253, %cst_216 [0] : vector<8x64xf32> to vector<64xf32>
    %255 = vector.shape_cast %254 : vector<64xf32> to vector<1x64xf32>
    %cst_217 = arith.constant dense<0.000000e+00> : vector<1x64xf32>
    %256 = tpu.matmul %252, %232, %cst_217 {dimension_numbers = #tpu.dot_dimension_numbers<[1], [0], [0], [1], [0, 0, 1, 1], [], []>} : vector<1x64xf32>, vector<64x64xf32>, vector<1x64xf32> -> vector<1x64xf32>
    %cst_218 = arith.constant 7.812500e-03 : f32
    %257 = vector.broadcast %cst_218 : f32 to vector<1x64xf32>
    %258 = arith.mulf %256, %257 : vector<1x64xf32>
    %cst_219 = arith.constant dense<0.000000e+00> : vector<1x64xf32>
    %259 = tpu.matmul %255, %232, %cst_219 {dimension_numbers = #tpu.dot_dimension_numbers<[1], [0], [0], [1], [0, 0, 1, 1], [], []>} : vector<1x64xf32>, vector<64x64xf32>, vector<1x64xf32> -> vector<1x64xf32>
    %cst_220 = arith.constant 7.812500e-03 : f32
    %260 = vector.broadcast %cst_220 : f32 to vector<1x64xf32>
    %261 = arith.mulf %259, %260 : vector<1x64xf32>
    %262 = arith.mulf %258, %258 : vector<1x64xf32>
    %263 = arith.subf %261, %262 : vector<1x64xf32>
    %264 = vector.broadcast %258 : vector<1x64xf32> to vector<8x64xf32>
    %265 = arith.subf %250, %264 : vector<8x64xf32>
    %cst_221 = arith.constant 9.99999974E-6 : f32
    %266 = vector.broadcast %cst_221 : f32 to vector<1x64xf32>
    %267 = arith.addf %263, %266 : vector<1x64xf32>
    %268 = math.rsqrt %267 : vector<1x64xf32>
    %269 = vector.broadcast %268 : vector<1x64xf32> to vector<8x64xf32>
    %270 = arith.mulf %265, %269 : vector<8x64xf32>
    %c0_222 = arith.constant 0 : index
    %c1_223 = arith.constant 1 : index
    %c0_224 = arith.constant 0 : index
    %c0_225 = arith.constant 0 : index
    %271 = vector.load %arg14[%c0_222, %c1_223, %c0_224, %c0_225] : memref<2x3x1x64xf32, #tpu.memory_space<vmem>>, vector<1x1x1x64xf32>
    %272 = vector.shape_cast %271 : vector<1x1x1x64xf32> to vector<1x64xf32>
    %273 = vector.broadcast %272 : vector<1x64xf32> to vector<8x64xf32>
    %274 = arith.mulf %270, %273 : vector<8x64xf32>
    %c0_226 = arith.constant 0 : index
    %c2_227 = arith.constant 2 : index
    %c0_228 = arith.constant 0 : index
    %c0_229 = arith.constant 0 : index
    %275 = vector.load %arg14[%c0_226, %c2_227, %c0_228, %c0_229] : memref<2x3x1x64xf32, #tpu.memory_space<vmem>>, vector<1x1x1x64xf32>
    %276 = vector.shape_cast %275 : vector<1x1x1x64xf32> to vector<1x64xf32>
    %277 = vector.broadcast %276 : vector<1x64xf32> to vector<8x64xf32>
    %278 = arith.addf %274, %277 : vector<8x64xf32>
    %279 = arith.negf %278 : vector<8x64xf32>
    %280 = math.exp %279 : vector<8x64xf32>
    %cst_230 = arith.constant 1.000000e+00 : f32
    %281 = vector.broadcast %cst_230 : f32 to vector<8x64xf32>
    %282 = arith.addf %281, %280 : vector<8x64xf32>
    %283 = arith.divf %281, %282 : vector<8x64xf32>
    %284 = arith.mulf %278, %283 : vector<8x64xf32>
    %c1_231 = arith.constant 1 : index
    %c0_232 = arith.constant 0 : index
    %285 = vector.load %arg24[%c1_231, %c0_232] : memref<10x64xf32, #tpu.memory_space<vmem>>, vector<8x64xf32>
    tpu.vector_store %arg24[%c1_231, %c0_232], %284 {strides = array<i32>} : memref<10x64xf32, #tpu.memory_space<vmem>>, vector<8x64xf32>,
    %c1_233 = arith.constant 1 : index
    %c1_234 = arith.constant 1 : index
    %c0_235 = arith.constant 0 : index
    %c0_236 = arith.constant 0 : index
    %286 = vector.load %arg13[%c1_233, %c1_234, %c0_235, %c0_236] : memref<2x3x64x64xf32, #tpu.memory_space<vmem>>, vector<1x1x64x64xf32>
    %287 = vector.shape_cast %286 : vector<1x1x64x64xf32> to vector<64x64xf32>
    %cst_237 = arith.constant dense<0.000000e+00> : vector<8x64xf32>
    %288 = tpu.matmul %284, %287, %cst_237 {dimension_numbers = #tpu.dot_dimension_numbers<[1], [0], [0], [1], [0, 0, 1, 1], [], []>} : vector<8x64xf32>, vector<64x64xf32>, vector<8x64xf32> -> vector<8x64xf32>
    %c0_238 = arith.constant 0 : index
    %c0_239 = arith.constant 0 : index
    %289 = vector.load %arg24[%c0_238, %c0_239] : memref<10x64xf32, #tpu.memory_space<vmem>>, vector<8x64xf32>
    %c1_240 = arith.constant 1 : index
    %c0_241 = arith.constant 0 : index
    %c0_242 = arith.constant 0 : index
    %c0_243 = arith.constant 0 : index
    %290 = vector.load %arg13[%c1_240, %c0_241, %c0_242, %c0_243] : memref<2x3x64x64xf32, #tpu.memory_space<vmem>>, vector<1x1x64x64xf32>
    %291 = vector.shape_cast %290 : vector<1x1x64x64xf32> to vector<64x64xf32>
    %cst_244 = arith.constant dense<0.000000e+00> : vector<8x64xf32>
    %292 = tpu.matmul %289, %291, %cst_244 {dimension_numbers = #tpu.dot_dimension_numbers<[1], [0], [0], [1], [0, 0, 1, 1], [], []>} : vector<8x64xf32>, vector<64x64xf32>, vector<8x64xf32> -> vector<8x64xf32>
    %293 = arith.addf %288, %292 : vector<8x64xf32>
    %c2_245 = arith.constant 2 : index
    %c0_246 = arith.constant 0 : index
    %294 = vector.load %arg24[%c2_245, %c0_246] : memref<10x64xf32, #tpu.memory_space<vmem>>, vector<8x64xf32>
    %c1_247 = arith.constant 1 : index
    %c2_248 = arith.constant 2 : index
    %c0_249 = arith.constant 0 : index
    %c0_250 = arith.constant 0 : index
    %295 = vector.load %arg13[%c1_247, %c2_248, %c0_249, %c0_250] : memref<2x3x64x64xf32, #tpu.memory_space<vmem>>, vector<1x1x64x64xf32>
    %296 = vector.shape_cast %295 : vector<1x1x64x64xf32> to vector<64x64xf32>
    %cst_251 = arith.constant dense<0.000000e+00> : vector<8x64xf32>
    %297 = tpu.matmul %294, %296, %cst_251 {dimension_numbers = #tpu.dot_dimension_numbers<[1], [0], [0], [1], [0, 0, 1, 1], [], []>} : vector<8x64xf32>, vector<64x64xf32>, vector<8x64xf32> -> vector<8x64xf32>
    %298 = arith.addf %293, %297 : vector<8x64xf32>
    %c1_252 = arith.constant 1 : index
    %c0_253 = arith.constant 0 : index
    %c0_254 = arith.constant 0 : index
    %c0_255 = arith.constant 0 : index
    %299 = vector.load %arg14[%c1_252, %c0_253, %c0_254, %c0_255] : memref<2x3x1x64xf32, #tpu.memory_space<vmem>>, vector<1x1x1x64xf32>
    %300 = vector.shape_cast %299 : vector<1x1x1x64xf32> to vector<1x64xf32>
    %301 = vector.broadcast %300 : vector<1x64xf32> to vector<8x64xf32>
    %302 = arith.addf %298, %301 : vector<8x64xf32>
    %cst_256 = arith.constant dense<0.000000e+00> : vector<64xf32>
    %303 = vector.multi_reduction <add>, %302, %cst_256 [0] : vector<8x64xf32> to vector<64xf32>
    %304 = vector.shape_cast %303 : vector<64xf32> to vector<1x64xf32>
    %305 = arith.mulf %302, %302 : vector<8x64xf32>
    %cst_257 = arith.constant dense<0.000000e+00> : vector<64xf32>
    %306 = vector.multi_reduction <add>, %305, %cst_257 [0] : vector<8x64xf32> to vector<64xf32>
    %307 = vector.shape_cast %306 : vector<64xf32> to vector<1x64xf32>
    %cst_258 = arith.constant dense<0.000000e+00> : vector<1x64xf32>
    %308 = tpu.matmul %304, %232, %cst_258 {dimension_numbers = #tpu.dot_dimension_numbers<[1], [0], [0], [1], [0, 0, 1, 1], [], []>} : vector<1x64xf32>, vector<64x64xf32>, vector<1x64xf32> -> vector<1x64xf32>
    %cst_259 = arith.constant 7.812500e-03 : f32
    %309 = vector.broadcast %cst_259 : f32 to vector<1x64xf32>
    %310 = arith.mulf %308, %309 : vector<1x64xf32>
    %cst_260 = arith.constant dense<0.000000e+00> : vector<1x64xf32>
    %311 = tpu.matmul %307, %232, %cst_260 {dimension_numbers = #tpu.dot_dimension_numbers<[1], [0], [0], [1], [0, 0, 1, 1], [], []>} : vector<1x64xf32>, vector<64x64xf32>, vector<1x64xf32> -> vector<1x64xf32>
    %cst_261 = arith.constant 7.812500e-03 : f32
    %312 = vector.broadcast %cst_261 : f32 to vector<1x64xf32>
    %313 = arith.mulf %311, %312 : vector<1x64xf32>
    %314 = arith.mulf %310, %310 : vector<1x64xf32>
    %315 = arith.subf %313, %314 : vector<1x64xf32>
    %316 = vector.broadcast %310 : vector<1x64xf32> to vector<8x64xf32>
    %317 = arith.subf %302, %316 : vector<8x64xf32>
    %cst_262 = arith.constant 9.99999974E-6 : f32
    %318 = vector.broadcast %cst_262 : f32 to vector<1x64xf32>
    %319 = arith.addf %315, %318 : vector<1x64xf32>
    %320 = math.rsqrt %319 : vector<1x64xf32>
    %321 = vector.broadcast %320 : vector<1x64xf32> to vector<8x64xf32>
    %322 = arith.mulf %317, %321 : vector<8x64xf32>
    %c1_263 = arith.constant 1 : index
    %c1_264 = arith.constant 1 : index
    %c0_265 = arith.constant 0 : index
    %c0_266 = arith.constant 0 : index
    %323 = vector.load %arg14[%c1_263, %c1_264, %c0_265, %c0_266] : memref<2x3x1x64xf32, #tpu.memory_space<vmem>>, vector<1x1x1x64xf32>
    %324 = vector.shape_cast %323 : vector<1x1x1x64xf32> to vector<1x64xf32>
    %325 = vector.broadcast %324 : vector<1x64xf32> to vector<8x64xf32>
    %326 = arith.mulf %322, %325 : vector<8x64xf32>
    %c1_267 = arith.constant 1 : index
    %c2_268 = arith.constant 2 : index
    %c0_269 = arith.constant 0 : index
    %c0_270 = arith.constant 0 : index
    %327 = vector.load %arg14[%c1_267, %c2_268, %c0_269, %c0_270] : memref<2x3x1x64xf32, #tpu.memory_space<vmem>>, vector<1x1x1x64xf32>
    %328 = vector.shape_cast %327 : vector<1x1x1x64xf32> to vector<1x64xf32>
    %329 = vector.broadcast %328 : vector<1x64xf32> to vector<8x64xf32>
    %330 = arith.addf %326, %329 : vector<8x64xf32>
    %331 = arith.negf %330 : vector<8x64xf32>
    %332 = math.exp %331 : vector<8x64xf32>
    %cst_271 = arith.constant 1.000000e+00 : f32
    %333 = vector.broadcast %cst_271 : f32 to vector<8x64xf32>
    %334 = arith.addf %333, %332 : vector<8x64xf32>
    %335 = arith.divf %333, %334 : vector<8x64xf32>
    %336 = arith.mulf %330, %335 : vector<8x64xf32>
    %337 = arith.addf %336, %231 : vector<8x64xf32>
    %c0_272 = arith.constant 0 : index
    %c0_273 = arith.constant 0 : index
    %338 = vector.load %arg18[%c0_272, %c0_273] : memref<64x64xf32, #tpu.memory_space<vmem>>, vector<64x64xf32>
    %c1_274 = arith.constant 1 : index
    %c0_275 = arith.constant 0 : index
    %339 = vector.load %arg24[%c1_274, %c0_275] : memref<10x64xf32, #tpu.memory_space<vmem>>, vector<8x64xf32>
    tpu.vector_store %arg24[%c1_274, %c0_275], %337 {strides = array<i32>} : memref<10x64xf32, #tpu.memory_space<vmem>>, vector<8x64xf32>,
    %c0_276 = arith.constant 0 : index
    %c1_277 = arith.constant 1 : index
    %c0_278 = arith.constant 0 : index
    %c0_279 = arith.constant 0 : index
    %340 = vector.load %arg16[%c0_276, %c1_277, %c0_278, %c0_279] : memref<2x3x64x64xf32, #tpu.memory_space<vmem>>, vector<1x1x64x64xf32>
    %341 = vector.shape_cast %340 : vector<1x1x64x64xf32> to vector<64x64xf32>
    %cst_280 = arith.constant dense<0.000000e+00> : vector<8x64xf32>
    %342 = tpu.matmul %337, %341, %cst_280 {dimension_numbers = #tpu.dot_dimension_numbers<[1], [0], [0], [1], [0, 0, 1, 1], [], []>} : vector<8x64xf32>, vector<64x64xf32>, vector<8x64xf32> -> vector<8x64xf32>
    %c0_281 = arith.constant 0 : index
    %c0_282 = arith.constant 0 : index
    %343 = vector.load %arg24[%c0_281, %c0_282] : memref<10x64xf32, #tpu.memory_space<vmem>>, vector<8x64xf32>
    %c0_283 = arith.constant 0 : index
    %c0_284 = arith.constant 0 : index
    %c0_285 = arith.constant 0 : index
    %c0_286 = arith.constant 0 : index
    %344 = vector.load %arg16[%c0_283, %c0_284, %c0_285, %c0_286] : memref<2x3x64x64xf32, #tpu.memory_space<vmem>>, vector<1x1x64x64xf32>
    %345 = vector.shape_cast %344 : vector<1x1x64x64xf32> to vector<64x64xf32>
    %cst_287 = arith.constant dense<0.000000e+00> : vector<8x64xf32>
    %346 = tpu.matmul %343, %345, %cst_287 {dimension_numbers = #tpu.dot_dimension_numbers<[1], [0], [0], [1], [0, 0, 1, 1], [], []>} : vector<8x64xf32>, vector<64x64xf32>, vector<8x64xf32> -> vector<8x64xf32>
    %347 = arith.addf %342, %346 : vector<8x64xf32>
    %c2_288 = arith.constant 2 : index
    %c0_289 = arith.constant 0 : index
    %348 = vector.load %arg24[%c2_288, %c0_289] : memref<10x64xf32, #tpu.memory_space<vmem>>, vector<8x64xf32>
    %c0_290 = arith.constant 0 : index
    %c2_291 = arith.constant 2 : index
    %c0_292 = arith.constant 0 : index
    %c0_293 = arith.constant 0 : index
    %349 = vector.load %arg16[%c0_290, %c2_291, %c0_292, %c0_293] : memref<2x3x64x64xf32, #tpu.memory_space<vmem>>, vector<1x1x64x64xf32>
    %350 = vector.shape_cast %349 : vector<1x1x64x64xf32> to vector<64x64xf32>
    %cst_294 = arith.constant dense<0.000000e+00> : vector<8x64xf32>
    %351 = tpu.matmul %348, %350, %cst_294 {dimension_numbers = #tpu.dot_dimension_numbers<[1], [0], [0], [1], [0, 0, 1, 1], [], []>} : vector<8x64xf32>, vector<64x64xf32>, vector<8x64xf32> -> vector<8x64xf32>
    %352 = arith.addf %347, %351 : vector<8x64xf32>
    %c0_295 = arith.constant 0 : index
    %c0_296 = arith.constant 0 : index
    %c0_297 = arith.constant 0 : index
    %c0_298 = arith.constant 0 : index
    %353 = vector.load %arg17[%c0_295, %c0_296, %c0_297, %c0_298] : memref<2x3x1x64xf32, #tpu.memory_space<vmem>>, vector<1x1x1x64xf32>
    %354 = vector.shape_cast %353 : vector<1x1x1x64xf32> to vector<1x64xf32>
    %355 = vector.broadcast %354 : vector<1x64xf32> to vector<8x64xf32>
    %356 = arith.addf %352, %355 : vector<8x64xf32>
    %cst_299 = arith.constant dense<0.000000e+00> : vector<64xf32>
    %357 = vector.multi_reduction <add>, %356, %cst_299 [0] : vector<8x64xf32> to vector<64xf32>
    %358 = vector.shape_cast %357 : vector<64xf32> to vector<1x64xf32>
    %359 = arith.mulf %356, %356 : vector<8x64xf32>
    %cst_300 = arith.constant dense<0.000000e+00> : vector<64xf32>
    %360 = vector.multi_reduction <add>, %359, %cst_300 [0] : vector<8x64xf32> to vector<64xf32>
    %361 = vector.shape_cast %360 : vector<64xf32> to vector<1x64xf32>
    %cst_301 = arith.constant dense<0.000000e+00> : vector<1x64xf32>
    %362 = tpu.matmul %358, %338, %cst_301 {dimension_numbers = #tpu.dot_dimension_numbers<[1], [0], [0], [1], [0, 0, 1, 1], [], []>} : vector<1x64xf32>, vector<64x64xf32>, vector<1x64xf32> -> vector<1x64xf32>
    %cst_302 = arith.constant 7.812500e-03 : f32
    %363 = vector.broadcast %cst_302 : f32 to vector<1x64xf32>
    %364 = arith.mulf %362, %363 : vector<1x64xf32>
    %cst_303 = arith.constant dense<0.000000e+00> : vector<1x64xf32>
    %365 = tpu.matmul %361, %338, %cst_303 {dimension_numbers = #tpu.dot_dimension_numbers<[1], [0], [0], [1], [0, 0, 1, 1], [], []>} : vector<1x64xf32>, vector<64x64xf32>, vector<1x64xf32> -> vector<1x64xf32>
    %cst_304 = arith.constant 7.812500e-03 : f32
    %366 = vector.broadcast %cst_304 : f32 to vector<1x64xf32>
    %367 = arith.mulf %365, %366 : vector<1x64xf32>
    %368 = arith.mulf %364, %364 : vector<1x64xf32>
    %369 = arith.subf %367, %368 : vector<1x64xf32>
    %370 = vector.broadcast %364 : vector<1x64xf32> to vector<8x64xf32>
    %371 = arith.subf %356, %370 : vector<8x64xf32>
    %cst_305 = arith.constant 9.99999974E-6 : f32
    %372 = vector.broadcast %cst_305 : f32 to vector<1x64xf32>
    %373 = arith.addf %369, %372 : vector<1x64xf32>
    %374 = math.rsqrt %373 : vector<1x64xf32>
    %375 = vector.broadcast %374 : vector<1x64xf32> to vector<8x64xf32>
    %376 = arith.mulf %371, %375 : vector<8x64xf32>
    %c0_306 = arith.constant 0 : index
    %c1_307 = arith.constant 1 : index
    %c0_308 = arith.constant 0 : index
    %c0_309 = arith.constant 0 : index
    %377 = vector.load %arg17[%c0_306, %c1_307, %c0_308, %c0_309] : memref<2x3x1x64xf32, #tpu.memory_space<vmem>>, vector<1x1x1x64xf32>
    %378 = vector.shape_cast %377 : vector<1x1x1x64xf32> to vector<1x64xf32>
    %379 = vector.broadcast %378 : vector<1x64xf32> to vector<8x64xf32>
    %380 = arith.mulf %376, %379 : vector<8x64xf32>
    %c0_310 = arith.constant 0 : index
    %c2_311 = arith.constant 2 : index
    %c0_312 = arith.constant 0 : index
    %c0_313 = arith.constant 0 : index
    %381 = vector.load %arg17[%c0_310, %c2_311, %c0_312, %c0_313] : memref<2x3x1x64xf32, #tpu.memory_space<vmem>>, vector<1x1x1x64xf32>
    %382 = vector.shape_cast %381 : vector<1x1x1x64xf32> to vector<1x64xf32>
    %383 = vector.broadcast %382 : vector<1x64xf32> to vector<8x64xf32>
    %384 = arith.addf %380, %383 : vector<8x64xf32>
    %385 = arith.negf %384 : vector<8x64xf32>
    %386 = math.exp %385 : vector<8x64xf32>
    %cst_314 = arith.constant 1.000000e+00 : f32
    %387 = vector.broadcast %cst_314 : f32 to vector<8x64xf32>
    %388 = arith.addf %387, %386 : vector<8x64xf32>
    %389 = arith.divf %387, %388 : vector<8x64xf32>
    %390 = arith.mulf %384, %389 : vector<8x64xf32>
    %c1_315 = arith.constant 1 : index
    %c0_316 = arith.constant 0 : index
    %391 = vector.load %arg24[%c1_315, %c0_316] : memref<10x64xf32, #tpu.memory_space<vmem>>, vector<8x64xf32>
    tpu.vector_store %arg24[%c1_315, %c0_316], %390 {strides = array<i32>} : memref<10x64xf32, #tpu.memory_space<vmem>>, vector<8x64xf32>,
    %c1_317 = arith.constant 1 : index
    %c1_318 = arith.constant 1 : index
    %c0_319 = arith.constant 0 : index
    %c0_320 = arith.constant 0 : index
    %392 = vector.load %arg16[%c1_317, %c1_318, %c0_319, %c0_320] : memref<2x3x64x64xf32, #tpu.memory_space<vmem>>, vector<1x1x64x64xf32>
    %393 = vector.shape_cast %392 : vector<1x1x64x64xf32> to vector<64x64xf32>
    %cst_321 = arith.constant dense<0.000000e+00> : vector<8x64xf32>
    %394 = tpu.matmul %390, %393, %cst_321 {dimension_numbers = #tpu.dot_dimension_numbers<[1], [0], [0], [1], [0, 0, 1, 1], [], []>} : vector<8x64xf32>, vector<64x64xf32>, vector<8x64xf32> -> vector<8x64xf32>
    %c0_322 = arith.constant 0 : index
    %c0_323 = arith.constant 0 : index
    %395 = vector.load %arg24[%c0_322, %c0_323] : memref<10x64xf32, #tpu.memory_space<vmem>>, vector<8x64xf32>
    %c1_324 = arith.constant 1 : index
    %c0_325 = arith.constant 0 : index
    %c0_326 = arith.constant 0 : index
    %c0_327 = arith.constant 0 : index
    %396 = vector.load %arg16[%c1_324, %c0_325, %c0_326, %c0_327] : memref<2x3x64x64xf32, #tpu.memory_space<vmem>>, vector<1x1x64x64xf32>
    %397 = vector.shape_cast %396 : vector<1x1x64x64xf32> to vector<64x64xf32>
    %cst_328 = arith.constant dense<0.000000e+00> : vector<8x64xf32>
    %398 = tpu.matmul %395, %397, %cst_328 {dimension_numbers = #tpu.dot_dimension_numbers<[1], [0], [0], [1], [0, 0, 1, 1], [], []>} : vector<8x64xf32>, vector<64x64xf32>, vector<8x64xf32> -> vector<8x64xf32>
    %399 = arith.addf %394, %398 : vector<8x64xf32>
    %c2_329 = arith.constant 2 : index
    %c0_330 = arith.constant 0 : index
    %400 = vector.load %arg24[%c2_329, %c0_330] : memref<10x64xf32, #tpu.memory_space<vmem>>, vector<8x64xf32>
    %c1_331 = arith.constant 1 : index
    %c2_332 = arith.constant 2 : index
    %c0_333 = arith.constant 0 : index
    %c0_334 = arith.constant 0 : index
    %401 = vector.load %arg16[%c1_331, %c2_332, %c0_333, %c0_334] : memref<2x3x64x64xf32, #tpu.memory_space<vmem>>, vector<1x1x64x64xf32>
    %402 = vector.shape_cast %401 : vector<1x1x64x64xf32> to vector<64x64xf32>
    %cst_335 = arith.constant dense<0.000000e+00> : vector<8x64xf32>
    %403 = tpu.matmul %400, %402, %cst_335 {dimension_numbers = #tpu.dot_dimension_numbers<[1], [0], [0], [1], [0, 0, 1, 1], [], []>} : vector<8x64xf32>, vector<64x64xf32>, vector<8x64xf32> -> vector<8x64xf32>
    %404 = arith.addf %399, %403 : vector<8x64xf32>
    %c1_336 = arith.constant 1 : index
    %c0_337 = arith.constant 0 : index
    %c0_338 = arith.constant 0 : index
    %c0_339 = arith.constant 0 : index
    %405 = vector.load %arg17[%c1_336, %c0_337, %c0_338, %c0_339] : memref<2x3x1x64xf32, #tpu.memory_space<vmem>>, vector<1x1x1x64xf32>
    %406 = vector.shape_cast %405 : vector<1x1x1x64xf32> to vector<1x64xf32>
    %407 = vector.broadcast %406 : vector<1x64xf32> to vector<8x64xf32>
    %408 = arith.addf %404, %407 : vector<8x64xf32>
    %cst_340 = arith.constant dense<0.000000e+00> : vector<64xf32>
    %409 = vector.multi_reduction <add>, %408, %cst_340 [0] : vector<8x64xf32> to vector<64xf32>
    %410 = vector.shape_cast %409 : vector<64xf32> to vector<1x64xf32>
    %411 = arith.mulf %408, %408 : vector<8x64xf32>
    %cst_341 = arith.constant dense<0.000000e+00> : vector<64xf32>
    %412 = vector.multi_reduction <add>, %411, %cst_341 [0] : vector<8x64xf32> to vector<64xf32>
    %413 = vector.shape_cast %412 : vector<64xf32> to vector<1x64xf32>
    %cst_342 = arith.constant dense<0.000000e+00> : vector<1x64xf32>
    %414 = tpu.matmul %410, %338, %cst_342 {dimension_numbers = #tpu.dot_dimension_numbers<[1], [0], [0], [1], [0, 0, 1, 1], [], []>} : vector<1x64xf32>, vector<64x64xf32>, vector<1x64xf32> -> vector<1x64xf32>
    %cst_343 = arith.constant 7.812500e-03 : f32
    %415 = vector.broadcast %cst_343 : f32 to vector<1x64xf32>
    %416 = arith.mulf %414, %415 : vector<1x64xf32>
    %cst_344 = arith.constant dense<0.000000e+00> : vector<1x64xf32>
    %417 = tpu.matmul %413, %338, %cst_344 {dimension_numbers = #tpu.dot_dimension_numbers<[1], [0], [0], [1], [0, 0, 1, 1], [], []>} : vector<1x64xf32>, vector<64x64xf32>, vector<1x64xf32> -> vector<1x64xf32>
    %cst_345 = arith.constant 7.812500e-03 : f32
    %418 = vector.broadcast %cst_345 : f32 to vector<1x64xf32>
    %419 = arith.mulf %417, %418 : vector<1x64xf32>
    %420 = arith.mulf %416, %416 : vector<1x64xf32>
    %421 = arith.subf %419, %420 : vector<1x64xf32>
    %422 = vector.broadcast %416 : vector<1x64xf32> to vector<8x64xf32>
    %423 = arith.subf %408, %422 : vector<8x64xf32>
    %cst_346 = arith.constant 9.99999974E-6 : f32
    %424 = vector.broadcast %cst_346 : f32 to vector<1x64xf32>
    %425 = arith.addf %421, %424 : vector<1x64xf32>
    %426 = math.rsqrt %425 : vector<1x64xf32>
    %427 = vector.broadcast %426 : vector<1x64xf32> to vector<8x64xf32>
    %428 = arith.mulf %423, %427 : vector<8x64xf32>
    %c1_347 = arith.constant 1 : index
    %c1_348 = arith.constant 1 : index
    %c0_349 = arith.constant 0 : index
    %c0_350 = arith.constant 0 : index
    %429 = vector.load %arg17[%c1_347, %c1_348, %c0_349, %c0_350] : memref<2x3x1x64xf32, #tpu.memory_space<vmem>>, vector<1x1x1x64xf32>
    %430 = vector.shape_cast %429 : vector<1x1x1x64xf32> to vector<1x64xf32>
    %431 = vector.broadcast %430 : vector<1x64xf32> to vector<8x64xf32>
    %432 = arith.mulf %428, %431 : vector<8x64xf32>
    %c1_351 = arith.constant 1 : index
    %c2_352 = arith.constant 2 : index
    %c0_353 = arith.constant 0 : index
    %c0_354 = arith.constant 0 : index
    %433 = vector.load %arg17[%c1_351, %c2_352, %c0_353, %c0_354] : memref<2x3x1x64xf32, #tpu.memory_space<vmem>>, vector<1x1x1x64xf32>
    %434 = vector.shape_cast %433 : vector<1x1x1x64xf32> to vector<1x64xf32>
    %435 = vector.broadcast %434 : vector<1x64xf32> to vector<8x64xf32>
    %436 = arith.addf %432, %435 : vector<8x64xf32>
    %437 = arith.negf %436 : vector<8x64xf32>
    %438 = math.exp %437 : vector<8x64xf32>
    %cst_355 = arith.constant 1.000000e+00 : f32
    %439 = vector.broadcast %cst_355 : f32 to vector<8x64xf32>
    %440 = arith.addf %439, %438 : vector<8x64xf32>
    %441 = arith.divf %439, %440 : vector<8x64xf32>
    %442 = arith.mulf %436, %441 : vector<8x64xf32>
    %443 = arith.addf %442, %337 : vector<8x64xf32>
    %c0_356 = arith.constant 0 : index
    %c0_357 = arith.constant 0 : index
    %444 = vector.load %arg19[%c0_356, %c0_357] : memref<4x8xf32, #tpu.memory_space<vmem>>, vector<4x8xf32>
    %cst_358 = arith.constant dense<0.000000e+00> : vector<4x64xf32>
    %445 = tpu.matmul %444, %443, %cst_358 {dimension_numbers = #tpu.dot_dimension_numbers<[1], [0], [0], [1], [0, 0, 1, 1], [], []>} : vector<4x8xf32>, vector<8x64xf32>, vector<4x64xf32> -> vector<4x64xf32>
    %c0_359 = arith.constant 0 : index
    %c0_360 = arith.constant 0 : index
    %446 = vector.load %arg20[%c0_359, %c0_360] : memref<64x64xf32, #tpu.memory_space<vmem>>, vector<64x64xf32>
    %cst_361 = arith.constant dense<0.000000e+00> : vector<4x64xf32>
    %447 = tpu.matmul %445, %446, %cst_361 {dimension_numbers = #tpu.dot_dimension_numbers<[1], [0], [0], [1], [0, 0, 1, 1], [], []>} : vector<4x64xf32>, vector<64x64xf32>, vector<4x64xf32> -> vector<4x64xf32>
    %c0_362 = arith.constant 0 : index
    %c0_363 = arith.constant 0 : index
    %448 = vector.load %arg21[%c0_362, %c0_363] : memref<1x64xf32, #tpu.memory_space<vmem>>, vector<1x64xf32>
    %449 = vector.broadcast %448 : vector<1x64xf32> to vector<4x64xf32>
    %450 = arith.addf %447, %449 : vector<4x64xf32>
    %c0_364 = arith.constant 0 : index
    %c0_365 = arith.constant 0 : index
    %c0_366 = arith.constant 0 : index
    %451 = vector.load %arg22[%c0_364, %c0_365, %c0_366] : memref<1x4x64xf32, #tpu.memory_space<vmem>>, vector<1x4x64xf32>
    %452 = vector.shape_cast %451 : vector<1x4x64xf32> to vector<4x64xf32>
    %453 = vector.shape_cast %450 : vector<4x64xf32> to vector<1x4x64xf32>
    tpu.vector_store %arg22[%c0_364, %c0_365, %c0_366], %453 {strides = array<i32>} : memref<1x4x64xf32, #tpu.memory_space<vmem>>, vector<1x4x64xf32>,
    return
  }
  func.func @transform_0(%arg0: i32) -> (i32, i32, i32) {
    %c0_i32 = arith.constant 0 : i32
    %c0_i32_0 = arith.constant 0 : i32
    %c0_i32_1 = arith.constant 0 : i32
    return %arg0, %c0_i32, %c0_i32_0 : i32, i32, i32
  }
  func.func @transform_1(%arg0: i32) -> (i32, i32) {
    %c0_i32 = arith.constant 0 : i32
    %c0_i32_0 = arith.constant 0 : i32
    %c0_i32_1 = arith.constant 0 : i32
    return %c0_i32, %c0_i32_0 : i32, i32
  }
  func.func @transform_2(%arg0: i32) -> (i32, i32) {
    %c0_i32 = arith.constant 0 : i32
    %c0_i32_0 = arith.constant 0 : i32
    %c0_i32_1 = arith.constant 0 : i32
    return %c0_i32, %c0_i32_0 : i32, i32
  }
  func.func @transform_3(%arg0: i32) -> (i32, i32, i32, i32) {
    %c0_i32 = arith.constant 0 : i32
    %c0_i32_0 = arith.constant 0 : i32
    %c0_i32_1 = arith.constant 0 : i32
    %c0_i32_2 = arith.constant 0 : i32
    %c0_i32_3 = arith.constant 0 : i32
    return %c0_i32, %c0_i32_0, %c0_i32_1, %c0_i32_2 : i32, i32, i32, i32
  }
  func.func @transform_4(%arg0: i32) -> (i32, i32, i32, i32) {
    %c0_i32 = arith.constant 0 : i32
    %c0_i32_0 = arith.constant 0 : i32
    %c0_i32_1 = arith.constant 0 : i32
    %c0_i32_2 = arith.constant 0 : i32
    %c0_i32_3 = arith.constant 0 : i32
    return %c0_i32, %c0_i32_0, %c0_i32_1, %c0_i32_2 : i32, i32, i32, i32
  }
  func.func @transform_5(%arg0: i32) -> (i32, i32) {
    %c0_i32 = arith.constant 0 : i32
    %c0_i32_0 = arith.constant 0 : i32
    %c0_i32_1 = arith.constant 0 : i32
    return %c0_i32, %c0_i32_0 : i32, i32
  }
  func.func @transform_6(%arg0: i32) -> (i32, i32, i32, i32) {
    %c0_i32 = arith.constant 0 : i32
    %c0_i32_0 = arith.constant 0 : i32
    %c0_i32_1 = arith.constant 0 : i32
    %c0_i32_2 = arith.constant 0 : i32
    %c0_i32_3 = arith.constant 0 : i32
    return %c0_i32, %c0_i32_0, %c0_i32_1, %c0_i32_2 : i32, i32, i32, i32
  }
  func.func @transform_7(%arg0: i32) -> (i32, i32, i32, i32) {
    %c0_i32 = arith.constant 0 : i32
    %c0_i32_0 = arith.constant 0 : i32
    %c0_i32_1 = arith.constant 0 : i32
    %c0_i32_2 = arith.constant 0 : i32
    %c0_i32_3 = arith.constant 0 : i32
    return %c0_i32, %c0_i32_0, %c0_i32_1, %c0_i32_2 : i32, i32, i32, i32
  }
  func.func @transform_8(%arg0: i32) -> (i32, i32) {
    %c0_i32 = arith.constant 0 : i32
    %c0_i32_0 = arith.constant 0 : i32
    %c0_i32_1 = arith.constant 0 : i32
    return %c0_i32, %c0_i32_0 : i32, i32
  }
  func.func @transform_9(%arg0: i32) -> (i32, i32) {
    %c0_i32 = arith.constant 0 : i32
    %c0_i32_0 = arith.constant 0 : i32
    %c0_i32_1 = arith.constant 0 : i32
    return %c0_i32, %c0_i32_0 : i32, i32
  }
  func.func @transform_10(%arg0: i32) -> (i32, i32) {
    %c0_i32 = arith.constant 0 : i32
    %c0_i32_0 = arith.constant 0 : i32
    %c0_i32_1 = arith.constant 0 : i32
    return %c0_i32, %c0_i32_0 : i32, i32
  }
  func.func @transform_11(%arg0: i32) -> (i32, i32) {
    %c0_i32 = arith.constant 0 : i32
    %c0_i32_0 = arith.constant 0 : i32
    %c0_i32_1 = arith.constant 0 : i32
    return %c0_i32, %c0_i32_0 : i32, i32
  }
  func.func @transform_12(%arg0: i32) -> (i32, i32, i32, i32) {
    %c0_i32 = arith.constant 0 : i32
    %c0_i32_0 = arith.constant 0 : i32
    %c0_i32_1 = arith.constant 0 : i32
    %c0_i32_2 = arith.constant 0 : i32
    %c0_i32_3 = arith.constant 0 : i32
    return %c0_i32, %c0_i32_0, %c0_i32_1, %c0_i32_2 : i32, i32, i32, i32
  }
  func.func @transform_13(%arg0: i32) -> (i32, i32, i32, i32) {
    %c0_i32 = arith.constant 0 : i32
    %c0_i32_0 = arith.constant 0 : i32
    %c0_i32_1 = arith.constant 0 : i32
    %c0_i32_2 = arith.constant 0 : i32
    %c0_i32_3 = arith.constant 0 : i32
    return %c0_i32, %c0_i32_0, %c0_i32_1, %c0_i32_2 : i32, i32, i32, i32
  }
  func.func @transform_14(%arg0: i32) -> (i32, i32) {
    %c0_i32 = arith.constant 0 : i32
    %c0_i32_0 = arith.constant 0 : i32
    %c0_i32_1 = arith.constant 0 : i32
    return %c0_i32, %c0_i32_0 : i32, i32
  }
  func.func @transform_15(%arg0: i32) -> (i32, i32, i32, i32) {
    %c0_i32 = arith.constant 0 : i32
    %c0_i32_0 = arith.constant 0 : i32
    %c0_i32_1 = arith.constant 0 : i32
    %c0_i32_2 = arith.constant 0 : i32
    %c0_i32_3 = arith.constant 0 : i32
    return %c0_i32, %c0_i32_0, %c0_i32_1, %c0_i32_2 : i32, i32, i32, i32
  }
  func.func @transform_16(%arg0: i32) -> (i32, i32, i32, i32) {
    %c0_i32 = arith.constant 0 : i32
    %c0_i32_0 = arith.constant 0 : i32
    %c0_i32_1 = arith.constant 0 : i32
    %c0_i32_2 = arith.constant 0 : i32
    %c0_i32_3 = arith.constant 0 : i32
    return %c0_i32, %c0_i32_0, %c0_i32_1, %c0_i32_2 : i32, i32, i32, i32
  }
  func.func @transform_17(%arg0: i32) -> (i32, i32) {
    %c0_i32 = arith.constant 0 : i32
    %c0_i32_0 = arith.constant 0 : i32
    %c0_i32_1 = arith.constant 0 : i32
    return %c0_i32, %c0_i32_0 : i32, i32
  }
  func.func @transform_18(%arg0: i32) -> (i32, i32) {
    %c0_i32 = arith.constant 0 : i32
    %c0_i32_0 = arith.constant 0 : i32
    %c0_i32_1 = arith.constant 0 : i32
    return %c0_i32, %c0_i32_0 : i32, i32
  }
  func.func @transform_19(%arg0: i32) -> (i32, i32) {
    %c0_i32 = arith.constant 0 : i32
    %c0_i32_0 = arith.constant 0 : i32
    %c0_i32_1 = arith.constant 0 : i32
    return %c0_i32, %c0_i32_0 : i32, i32
  }
  func.func @transform_20(%arg0: i32) -> (i32, i32) {
    %c0_i32 = arith.constant 0 : i32
    %c0_i32_0 = arith.constant 0 : i32
    %c0_i32_1 = arith.constant 0 : i32
    return %c0_i32, %c0_i32_0 : i32, i32
  }
  func.func @transform_21(%arg0: i32) -> (i32, i32, i32) {
    %c0_i32 = arith.constant 0 : i32
    %c0_i32_0 = arith.constant 0 : i32
    %c0_i32_1 = arith.constant 0 : i32
    return %arg0, %c0_i32, %c0_i32_0 : i32, i32, i32
  }
}

</mosaic_0001>

<llo_original>
// kernel: encoder_forward.1
$region0: #{encoder_forward.1}
  #allocation0 [shape = 'u32[]', space=smem, size = 0x4, offset = 0x4, fixed_abs, tag = 'smem constant byte address 0x4 - core index']
  #allocation1 [shape = 'u32[144,128]{1,0:T(1,128)}', space=vmem, size = 0x12000, scoped, tag = 'internal scratch']
  #allocation2 [shape = 'f32[18,128]{1,0:T(8,128)}', space=vmem, size = 0x3000, scoped, tag = 'scratch operand']
  #allocation3 [shape = 'f32[10,64]{1,0:T(8,128)}', space=vmem, size = 0x2000, scoped, tag = 'scratch operand']
  %s0 = inlined_call_operand.vmem [shape: f32[2,16,48], index: 0, kind: input, shape index: {}]
  %s1 = inlined_call_operand.vmem [shape: f32[48,128], index: 1, kind: input, shape index: {}]
  %s2 = inlined_call_operand.vmem [shape: f32[1,128], index: 2, kind: input, shape index: {}]
  %s3 = inlined_call_operand.hbm [shape: f32[2,3,128,128], index: 3, kind: input, shape index: {}]
  %s4 = inlined_call_operand.vmem [shape: f32[2,3,1,128], index: 4, kind: input, shape index: {}]
  %s5 = inlined_call_operand.vmem [shape: f32[128,128], index: 5, kind: input, shape index: {}, may-alias: {5,8}]
  %s6 = inlined_call_operand.hbm [shape: f32[2,3,128,128], index: 6, kind: input, shape index: {}]
  %s7 = inlined_call_operand.hbm [shape: f32[2,3,1,128], index: 7, kind: input, shape index: {}]
  %s8 = inlined_call_operand.vmem [shape: f32[128,128], index: 8, kind: input, shape index: {}, may-alias: {5,8}]
  %s9 = inlined_call_operand.hbm [shape: f32[8,16], index: 9, kind: input, shape index: {}]
  %s10 = inlined_call_operand.vmem [shape: f32[128,64], index: 10, kind: input, shape index: {}]
  %s11 = inlined_call_operand.vmem [shape: f32[1,64], index: 11, kind: input, shape index: {}]
  %s12 = inlined_call_operand.hbm [shape: f32[2,3,64,64], index: 12, kind: input, shape index: {}]
  %s13 = inlined_call_operand.hbm [shape: f32[2,3,1,64], index: 13, kind: input, shape index: {}]
  %s14 = inlined_call_operand.vmem [shape: f32[64,64], index: 14, kind: input, shape index: {}, may-alias: {14,17}]
  %s15 = inlined_call_operand.hbm [shape: f32[2,3,64,64], index: 15, kind: input, shape index: {}]
  %s16 = inlined_call_operand.hbm [shape: f32[2,3,1,64], index: 16, kind: input, shape index: {}]
  %s17 = inlined_call_operand.vmem [shape: f32[64,64], index: 17, kind: input, shape index: {}, may-alias: {14,17}]
  %s18 = inlined_call_operand.hbm [shape: f32[4,8], index: 18, kind: input, shape index: {}]
  %s19 = inlined_call_operand.hbm [shape: f32[64,64], index: 19, kind: input, shape index: {}]
  %s20 = inlined_call_operand.vmem [shape: f32[1,64], index: 20, kind: input, shape index: {}]
  %s21 = inlined_call_operand.vmem [shape: f32[2,4,64], index: 21, kind: output, shape index: {}]
  %s22 = sld [smem:[#allocation0]]
  $region157: #{encoder_forward.1} parent=0
    _
  %s24 = ssub.s32 1, %s22
  %s25 = scalar_select 0, %s24, %s22
  $region1: #{encoder_forward.1} parent=0
    #allocation4 [shape = 'u8[393216]{0}', space=vmem, size = 0x60000, scoped, tag = 'input window, operand 3, single buffered']
    #allocation5 [shape = 's32[2]{0}', space=sflag, size = 0x8, scoped, tag = 'scoped memory for encoder_forward.1']
    #allocation6 [shape = 'u8[393216]{0}', space=vmem, size = 0x60000, scoped, tag = 'input window, operand 6, single buffered']
    #allocation7 [shape = 's32[1]{0}', space=sflag, size = 0x4, scoped, tag = 'scoped memory for encoder_forward.1']
    #allocation8 [shape = 'u8[3072]{0}', space=vmem, size = 0xc00, scoped, tag = 'input window, operand 7, single buffered']
    #allocation9 [shape = 'u8[4096]{0}', space=vmem, size = 0x1000, scoped, tag = 'input window, operand 9, single buffered']
    #allocation10 [shape = 's32[1]{0}', space=sflag, size = 0x4, scoped, tag = 'scoped memory for encoder_forward.1']
    #allocation11 [shape = 'u8[196608]{0}', space=vmem, size = 0x30000, scoped, tag = 'input window, operand 12, single buffered']
    #allocation12 [shape = 'u8[3072]{0}', space=vmem, size = 0xc00, scoped, tag = 'input window, operand 13, single buffered']
    #allocation13 [shape = 's32[1]{0}', space=sflag, size = 0x4, scoped, tag = 'scoped memory for encoder_forward.1']
    #allocation14 [shape = 'u8[196608]{0}', space=vmem, size = 0x30000, scoped, tag = 'input window, operand 15, single buffered']
    #allocation15 [shape = 'u8[3072]{0}', space=vmem, size = 0xc00, scoped, tag = 'input window, operand 16, single buffered']
    #allocation16 [shape = 's32[1]{0}', space=sflag, size = 0x4, scoped, tag = 'scoped memory for encoder_forward.1']
    #allocation17 [shape = 'u8[2048]{0}', space=vmem, size = 0x800, scoped, tag = 'input window, operand 18, single buffered']
    #allocation18 [shape = 'u8[32768]{0}', space=vmem, size = 0x8000, scoped, tag = 'input window, operand 19, single buffered']
    #allocation19 [shape = 's32[1]{0}', space=sflag, size = 0x4, scoped, tag = 'scoped memory for encoder_forward.1']
    %26 = vsyncpa [#allocation5], 0
    %27 = vsyncpa [#allocation7], 0
    %28 = vsyncpa [#allocation10], 0
    %29 = vsyncpa [#allocation13], 0
    %30 = vsyncpa [#allocation16], 0
    %31 = vsyncpa [#allocation19], 0
    loop: start=0, step=1, limit=4
    $region2: #{encoder_forward.1} parent=1 // loop_pre_header
      _
    $region3: #{encoder_forward.1} parent=1 // loop_header
      %s33 = sphi 0, %s37
      %p34 = scmp.ge.s32.totalorder %s33, 4
      %s43 = sphi 0, %s45
      %s46 = sphi 0, %s43
      %s47 = sphi 0, %s46
      %s63 = sphi 0, %s47
      %s67 = sphi 0, %s67
      %s69 = sphi 0, %s67
      %s70 = sphi 0, %s69
      %s84 = sphi 0, %s70
      %s88 = sphi 0, %s88
      %s90 = sphi 0, %s88
      %s91 = sphi 0, %s90
      %s105 = sphi 0, %s91
      %s109 = sphi 0, %s109
      %s111 = sphi 0, %s109
      %s112 = sphi 0, %s111
      %s126 = sphi 0, %s112
      %s130 = sphi 0, %s130
      %s132 = sphi 0, %s130
      %s133 = sphi 0, %s132
      %s147 = sphi 0, %s133
      %s151 = sphi 0, %s151
      %s153 = sphi 0, %s151
      %s154 = sphi 0, %s153
      %s168 = sphi 0, %s154
      %s172 = sphi 0, %s172
      %s174 = sphi 0, %s172
      %s175 = sphi 0, %s174
      %s189 = sphi 0, %s175
      %s193 = sphi 0, %s193
      %s195 = sphi 0, %s193
      %s196 = sphi 0, %s195
      %s210 = sphi 0, %s196
      %s214 = sphi 0, %s214
      %s216 = sphi 0, %s214
      %s217 = sphi 0, %s216
      %s231 = sphi 0, %s217
      %s235 = sphi 0, %s235
      %s237 = sphi 0, %s235
      %s238 = sphi 0, %s237
      %s252 = sphi 0, %s238
      %s256 = sphi 0, %s256
      %s258 = sphi 0, %s256
      %s259 = sphi 0, %s258
      %s273 = sphi 0, %s259
      %s277 = sphi 0, %s277
      %s279 = sphi 0, %s277
      %s280 = sphi 0, %s279
      %s294 = sphi 0, %s280
      %s298 = sphi 0, %s298
      %s300 = sphi 0, %s298
      %s301 = sphi 0, %s300
      %s315 = sphi 0, %s301
      %s319 = sphi 0, %s319
      %s321 = sphi 0, %s319
      %s322 = sphi 0, %s321
      %s336 = sphi 0, %s322
      %s340 = sphi 0, %s340
      %s342 = sphi 0, %s340
      %s343 = sphi 0, %s342
      %s357 = sphi 0, %s343
      %s361 = sphi 0, %s361
      %s363 = sphi 0, %s361
      %s364 = sphi 0, %s363
      %s378 = sphi 0, %s364
      %s382 = sphi 0, %s382
      %s384 = sphi 0, %s382
      %s385 = sphi 0, %s384
      %s399 = sphi 0, %s385
      %s403 = sphi 0, %s403
      %s405 = sphi 0, %s403
      %s406 = sphi 0, %s405
      %s420 = sphi 0, %s406
      %s424 = sphi 0, %s424
      %s426 = sphi 0, %s424
      %s427 = sphi 0, %s426
      %s441 = sphi 0, %s427
      %s445 = sphi 0, %s445
      %s447 = sphi 0, %s445
      %s448 = sphi 0, %s447
      %s462 = sphi 0, %s448
      %s466 = sphi 0, %s466
      %s468 = sphi 0, %s466
      %s469 = sphi 0, %s468
      %s483 = sphi 0, %s469
      %s489 = sphi 0, %s491
      %s492 = sphi 0, %s489
      %s493 = sphi 0, %s492
      %s509 = sphi 0, %s493
    $region4: #{encoder_forward.1} parent=1 // loop_header_branch
      %36 = sbr.rel (%p34) target = $region8
    $region5: #{encoder_forward.1} parent=1 // loop_body
      %s38 = ssub.s32 %s33, 1
      %s39 = ssub.s32 %s33, 2
      %s40 = sadd.s32 %s33, 1
      %s41 = ssub.s32 %s33, %s40
      %p42 = scmp.eq.s32.totalorder %s41, 0
      %s44 = sadd.s32 %s43, 1
      %s45 = scalar_select %p42, %s43, %s44
      %p48 = pneg %p42
      %p49 = scmp.eq.s32.totalorder %s33, 1
      %p50 = por %p48, %p49
      %p51 = scmp.ne.s32.totalorder %s43, %s46
      %p52 = scmp.eq.s32.totalorder %s33, 0
      %p53 = por %p51, %p52
      %p54 = scmp.ne.s32.totalorder %s43, %s46
      %p55 = scmp.eq.s32.totalorder %s38, 1
      %p56 = por %p54, %p55
      %p57 = scmp.ne.s32.totalorder %s46, %s47
      %p58 = scmp.eq.s32.totalorder %s38, 0
      %p59 = por %p57, %p58
      %p60 = scmp.ne.s32.totalorder %s46, %s47
      %p61 = scmp.eq.s32.totalorder %s39, 1
      %p62 = por %p60, %p61
      %p64 = scmp.ne.s32.totalorder %s47, %s63
      %p65 = scmp.eq.s32.totalorder %s39, 0
      %p66 = por %p64, %p65
      %s68 = sadd.s32 %s67, 1
      %p71 = scmp.eq.s32.totalorder %s33, 1
      %p72 = scmp.ne.s32.totalorder %s67, %s69
      %p73 = scmp.eq.s32.totalorder %s33, 0
      %p74 = por %p72, %p73
      %p75 = scmp.ne.s32.totalorder %s67, %s69
      %p76 = scmp.eq.s32.totalorder %s38, 1
      %p77 = por %p75, %p76
      %p78 = scmp.ne.s32.totalorder %s69, %s70
      %p79 = scmp.eq.s32.totalorder %s38, 0
      %p80 = por %p78, %p79
      %p81 = scmp.ne.s32.totalorder %s69, %s70
      %p82 = scmp.eq.s32.totalorder %s39, 1
      %p83 = por %p81, %p82
      %p85 = scmp.ne.s32.totalorder %s70, %s84
      %p86 = scmp.eq.s32.totalorder %s39, 0
      %p87 = por %p85, %p86
      %s89 = sadd.s32 %s88, 1
      %p92 = scmp.eq.s32.totalorder %s33, 1
      %p93 = scmp.ne.s32.totalorder %s88, %s90
      %p94 = scmp.eq.s32.totalorder %s33, 0
      %p95 = por %p93, %p94
      %p96 = scmp.ne.s32.totalorder %s88, %s90
      %p97 = scmp.eq.s32.totalorder %s38, 1
      %p98 = por %p96, %p97
      %p99 = scmp.ne.s32.totalorder %s90, %s91
      %p100 = scmp.eq.s32.totalorder %s38, 0
      %p101 = por %p99, %p100
      %p102 = scmp.ne.s32.totalorder %s90, %s91
      %p103 = scmp.eq.s32.totalorder %s39, 1
      %p104 = por %p102, %p103
      %p106 = scmp.ne.s32.totalorder %s91, %s105
      %p107 = scmp.eq.s32.totalorder %s39, 0
      %p108 = por %p106, %p107
      %s110 = sadd.s32 %s109, 1
      %p113 = scmp.eq.s32.totalorder %s33, 1
      %p114 = scmp.ne.s32.totalorder %s109, %s111
      %p115 = scmp.eq.s32.totalorder %s33, 0
      %p116 = por %p114, %p115
      %p117 = scmp.ne.s32.totalorder %s109, %s111
      %p118 = scmp.eq.s32.totalorder %s38, 1
      %p119 = por %p117, %p118
      %p120 = scmp.ne.s32.totalorder %s111, %s112
      %p121 = scmp.eq.s32.totalorder %s38, 0
      %p122 = por %p120, %p121
      %p123 = scmp.ne.s32.totalorder %s111, %s112
      %p124 = scmp.eq.s32.totalorder %s39, 1
      %p125 = por %p123, %p124
      %p127 = scmp.ne.s32.totalorder %s112, %s126
      %p128 = scmp.eq.s32.totalorder %s39, 0
      %p129 = por %p127, %p128
      %s131 = sadd.s32 %s130, 1
      %p134 = scmp.eq.s32.totalorder %s33, 1
      %p135 = scmp.ne.s32.totalorder %s130, %s132
      %p136 = scmp.eq.s32.totalorder %s33, 0
      %p137 = por %p135, %p136
      %p138 = scmp.ne.s32.totalorder %s130, %s132
      %p139 = scmp.eq.s32.totalorder %s38, 1
      %p140 = por %p138, %p139
      %p141 = scmp.ne.s32.totalorder %s132, %s133
      %p142 = scmp.eq.s32.totalorder %s38, 0
      %p143 = por %p141, %p142
      %p144 = scmp.ne.s32.totalorder %s132, %s133
      %p145 = scmp.eq.s32.totalorder %s39, 1
      %p146 = por %p144, %p145
      %p148 = scmp.ne.s32.totalorder %s133, %s147
      %p149 = scmp.eq.s32.totalorder %s39, 0
      %p150 = por %p148, %p149
      %s152 = sadd.s32 %s151, 1
      %p155 = scmp.eq.s32.totalorder %s33, 1
      %p156 = scmp.ne.s32.totalorder %s151, %s153
      %p157 = scmp.eq.s32.totalorder %s33, 0
      %p158 = por %p156, %p157
      %p159 = scmp.ne.s32.totalorder %s151, %s153
      %p160 = scmp.eq.s32.totalorder %s38, 1
      %p161 = por %p159, %p160
      %p162 = scmp.ne.s32.totalorder %s153, %s154
      %p163 = scmp.eq.s32.totalorder %s38, 0
      %p164 = por %p162, %p163
      %p165 = scmp.ne.s32.totalorder %s153, %s154
      %p166 = scmp.eq.s32.totalorder %s39, 1
      %p167 = por %p165, %p166
      %p169 = scmp.ne.s32.totalorder %s154, %s168
      %p170 = scmp.eq.s32.totalorder %s39, 0
      %p171 = por %p169, %p170
      %s173 = sadd.s32 %s172, 1
      %p176 = scmp.eq.s32.totalorder %s33, 1
      %p177 = scmp.ne.s32.totalorder %s172, %s174
      %p178 = scmp.eq.s32.totalorder %s33, 0
      %p179 = por %p177, %p178
      %p180 = scmp.ne.s32.totalorder %s172, %s174
      %p181 = scmp.eq.s32.totalorder %s38, 1
      %p182 = por %p180, %p181
      %p183 = scmp.ne.s32.totalorder %s174, %s175
      %p184 = scmp.eq.s32.totalorder %s38, 0
      %p185 = por %p183, %p184
      %p186 = scmp.ne.s32.totalorder %s174, %s175
      %p187 = scmp.eq.s32.totalorder %s39, 1
      %p188 = por %p186, %p187
      %p190 = scmp.ne.s32.totalorder %s175, %s189
      %p191 = scmp.eq.s32.totalorder %s39, 0
      %p192 = por %p190, %p191
      %s194 = sadd.s32 %s193, 1
      %p197 = scmp.eq.s32.totalorder %s33, 1
      %p198 = scmp.ne.s32.totalorder %s193, %s195
      %p199 = scmp.eq.s32.totalorder %s33, 0
      %p200 = por %p198, %p199
      %p201 = scmp.ne.s32.totalorder %s193, %s195
      %p202 = scmp.eq.s32.totalorder %s38, 1
      %p203 = por %p201, %p202
      %p204 = scmp.ne.s32.totalorder %s195, %s196
      %p205 = scmp.eq.s32.totalorder %s38, 0
      %p206 = por %p204, %p205
      %p207 = scmp.ne.s32.totalorder %s195, %s196
      %p208 = scmp.eq.s32.totalorder %s39, 1
      %p209 = por %p207, %p208
      %p211 = scmp.ne.s32.totalorder %s196, %s210
      %p212 = scmp.eq.s32.totalorder %s39, 0
      %p213 = por %p211, %p212
      %s215 = sadd.s32 %s214, 1
      %p218 = scmp.eq.s32.totalorder %s33, 1
      %p219 = scmp.ne.s32.totalorder %s214, %s216
      %p220 = scmp.eq.s32.totalorder %s33, 0
      %p221 = por %p219, %p220
      %p222 = scmp.ne.s32.totalorder %s214, %s216
      %p223 = scmp.eq.s32.totalorder %s38, 1
      %p224 = por %p222, %p223
      %p225 = scmp.ne.s32.totalorder %s216, %s217
      %p226 = scmp.eq.s32.totalorder %s38, 0
      %p227 = por %p225, %p226
      %p228 = scmp.ne.s32.totalorder %s216, %s217
      %p229 = scmp.eq.s32.totalorder %s39, 1
      %p230 = por %p228, %p229
      %p232 = scmp.ne.s32.totalorder %s217, %s231
      %p233 = scmp.eq.s32.totalorder %s39, 0
      %p234 = por %p232, %p233
      %s236 = sadd.s32 %s235, 1
      %p239 = scmp.eq.s32.totalorder %s33, 1
      %p240 = scmp.ne.s32.totalorder %s235, %s237
      %p241 = scmp.eq.s32.totalorder %s33, 0
      %p242 = por %p240, %p241
      %p243 = scmp.ne.s32.totalorder %s235, %s237
      %p244 = scmp.eq.s32.totalorder %s38, 1
      %p245 = por %p243, %p244
      %p246 = scmp.ne.s32.totalorder %s237, %s238
      %p247 = scmp.eq.s32.totalorder %s38, 0
      %p248 = por %p246, %p247
      %p249 = scmp.ne.s32.totalorder %s237, %s238
      %p250 = scmp.eq.s32.totalorder %s39, 1
      %p251 = por %p249, %p250
      %p253 = scmp.ne.s32.totalorder %s238, %s252
      %p254 = scmp.eq.s32.totalorder %s39, 0
      %p255 = por %p253, %p254
      %s257 = sadd.s32 %s256, 1
      %p260 = scmp.eq.s32.totalorder %s33, 1
      %p261 = scmp.ne.s32.totalorder %s256, %s258
      %p262 = scmp.eq.s32.totalorder %s33, 0
      %p263 = por %p261, %p262
      %p264 = scmp.ne.s32.totalorder %s256, %s258
      %p265 = scmp.eq.s32.totalorder %s38, 1
      %p266 = por %p264, %p265
      %p267 = scmp.ne.s32.totalorder %s258, %s259
      %p268 = scmp.eq.s32.totalorder %s38, 0
      %p269 = por %p267, %p268
      %p270 = scmp.ne.s32.totalorder %s258, %s259
      %p271 = scmp.eq.s32.totalorder %s39, 1
      %p272 = por %p270, %p271
      %p274 = scmp.ne.s32.totalorder %s259, %s273
      %p275 = scmp.eq.s32.totalorder %s39, 0
      %p276 = por %p274, %p275
      %s278 = sadd.s32 %s277, 1
      %p281 = scmp.eq.s32.totalorder %s33, 1
      %p282 = scmp.ne.s32.totalorder %s277, %s279
      %p283 = scmp.eq.s32.totalorder %s33, 0
      %p284 = por %p282, %p283
      %p285 = scmp.ne.s32.totalorder %s277, %s279
      %p286 = scmp.eq.s32.totalorder %s38, 1
      %p287 = por %p285, %p286
      %p288 = scmp.ne.s32.totalorder %s279, %s280
      %p289 = scmp.eq.s32.totalorder %s38, 0
      %p290 = por %p288, %p289
      %p291 = scmp.ne.s32.totalorder %s279, %s280
      %p292 = scmp.eq.s32.totalorder %s39, 1
      %p293 = por %p291, %p292
      %p295 = scmp.ne.s32.totalorder %s280, %s294
      %p296 = scmp.eq.s32.totalorder %s39, 0
      %p297 = por %p295, %p296
      %s299 = sadd.s32 %s298, 1
      %p302 = scmp.eq.s32.totalorder %s33, 1
      %p303 = scmp.ne.s32.totalorder %s298, %s300
      %p304 = scmp.eq.s32.totalorder %s33, 0
      %p305 = por %p303, %p304
      %p306 = scmp.ne.s32.totalorder %s298, %s300
      %p307 = scmp.eq.s32.totalorder %s38, 1
      %p308 = por %p306, %p307
      %p309 = scmp.ne.s32.totalorder %s300, %s301
      %p310 = scmp.eq.s32.totalorder %s38, 0
      %p311 = por %p309, %p310
      %p312 = scmp.ne.s32.totalorder %s300, %s301
      %p313 = scmp.eq.s32.totalorder %s39, 1
      %p314 = por %p312, %p313
      %p316 = scmp.ne.s32.totalorder %s301, %s315
      %p317 = scmp.eq.s32.totalorder %s39, 0
      %p318 = por %p316, %p317
      %s320 = sadd.s32 %s319, 1
      %p323 = scmp.eq.s32.totalorder %s33, 1
      %p324 = scmp.ne.s32.totalorder %s319, %s321
      %p325 = scmp.eq.s32.totalorder %s33, 0
      %p326 = por %p324, %p325
      %p327 = scmp.ne.s32.totalorder %s319, %s321
      %p328 = scmp.eq.s32.totalorder %s38, 1
      %p329 = por %p327, %p328
      %p330 = scmp.ne.s32.totalorder %s321, %s322
      %p331 = scmp.eq.s32.totalorder %s38, 0
      %p332 = por %p330, %p331
      %p333 = scmp.ne.s32.totalorder %s321, %s322
      %p334 = scmp.eq.s32.totalorder %s39, 1
      %p335 = por %p333, %p334
      %p337 = scmp.ne.s32.totalorder %s322, %s336
      %p338 = scmp.eq.s32.totalorder %s39, 0
      %p339 = por %p337, %p338
      %s341 = sadd.s32 %s340, 1
      %p344 = scmp.eq.s32.totalorder %s33, 1
      %p345 = scmp.ne.s32.totalorder %s340, %s342
      %p346 = scmp.eq.s32.totalorder %s33, 0
      %p347 = por %p345, %p346
      %p348 = scmp.ne.s32.totalorder %s340, %s342
      %p349 = scmp.eq.s32.totalorder %s38, 1
      %p350 = por %p348, %p349
      %p351 = scmp.ne.s32.totalorder %s342, %s343
      %p352 = scmp.eq.s32.totalorder %s38, 0
      %p353 = por %p351, %p352
      %p354 = scmp.ne.s32.totalorder %s342, %s343
      %p355 = scmp.eq.s32.totalorder %s39, 1
      %p356 = por %p354, %p355
      %p358 = scmp.ne.s32.totalorder %s343, %s357
      %p359 = scmp.eq.s32.totalorder %s39, 0
      %p360 = por %p358, %p359
      %s362 = sadd.s32 %s361, 1
      %p365 = scmp.eq.s32.totalorder %s33, 1
      %p366 = scmp.ne.s32.totalorder %s361, %s363
      %p367 = scmp.eq.s32.totalorder %s33, 0
      %p368 = por %p366, %p367
      %p369 = scmp.ne.s32.totalorder %s361, %s363
      %p370 = scmp.eq.s32.totalorder %s38, 1
      %p371 = por %p369, %p370
      %p372 = scmp.ne.s32.totalorder %s363, %s364
      %p373 = scmp.eq.s32.totalorder %s38, 0
      %p374 = por %p372, %p373
      %p375 = scmp.ne.s32.totalorder %s363, %s364
      %p376 = scmp.eq.s32.totalorder %s39, 1
      %p377 = por %p375, %p376
      %p379 = scmp.ne.s32.totalorder %s364, %s378
      %p380 = scmp.eq.s32.totalorder %s39, 0
      %p381 = por %p379, %p380
      %s383 = sadd.s32 %s382, 1
      %p386 = scmp.eq.s32.totalorder %s33, 1
      %p387 = scmp.ne.s32.totalorder %s382, %s384
      %p388 = scmp.eq.s32.totalorder %s33, 0
      %p389 = por %p387, %p388
      %p390 = scmp.ne.s32.totalorder %s382, %s384
      %p391 = scmp.eq.s32.totalorder %s38, 1
      %p392 = por %p390, %p391
      %p393 = scmp.ne.s32.totalorder %s384, %s385
      %p394 = scmp.eq.s32.totalorder %s38, 0
      %p395 = por %p393, %p394
      %p396 = scmp.ne.s32.totalorder %s384, %s385
      %p397 = scmp.eq.s32.totalorder %s39, 1
      %p398 = por %p396, %p397
      %p400 = scmp.ne.s32.totalorder %s385, %s399
      %p401 = scmp.eq.s32.totalorder %s39, 0
      %p402 = por %p400, %p401
      %s404 = sadd.s32 %s403, 1
      %p407 = scmp.eq.s32.totalorder %s33, 1
      %p408 = scmp.ne.s32.totalorder %s403, %s405
      %p409 = scmp.eq.s32.totalorder %s33, 0
      %p410 = por %p408, %p409
      %p411 = scmp.ne.s32.totalorder %s403, %s405
      %p412 = scmp.eq.s32.totalorder %s38, 1
      %p413 = por %p411, %p412
      %p414 = scmp.ne.s32.totalorder %s405, %s406
      %p415 = scmp.eq.s32.totalorder %s38, 0
      %p416 = por %p414, %p415
      %p417 = scmp.ne.s32.totalorder %s405, %s406
      %p418 = scmp.eq.s32.totalorder %s39, 1
      %p419 = por %p417, %p418
      %p421 = scmp.ne.s32.totalorder %s406, %s420
      %p422 = scmp.eq.s32.totalorder %s39, 0
      %p423 = por %p421, %p422
      %s425 = sadd.s32 %s424, 1
      %p428 = scmp.eq.s32.totalorder %s33, 1
      %p429 = scmp.ne.s32.totalorder %s424, %s426
      %p430 = scmp.eq.s32.totalorder %s33, 0
      %p431 = por %p429, %p430
      %p432 = scmp.ne.s32.totalorder %s424, %s426
      %p433 = scmp.eq.s32.totalorder %s38, 1
      %p434 = por %p432, %p433
      %p435 = scmp.ne.s32.totalorder %s426, %s427
      %p436 = scmp.eq.s32.totalorder %s38, 0
      %p437 = por %p435, %p436
      %p438 = scmp.ne.s32.totalorder %s426, %s427
      %p439 = scmp.eq.s32.totalorder %s39, 1
      %p440 = por %p438, %p439
      %p442 = scmp.ne.s32.totalorder %s427, %s441
      %p443 = scmp.eq.s32.totalorder %s39, 0
      %p444 = por %p442, %p443
      %s446 = sadd.s32 %s445, 1
      %p449 = scmp.eq.s32.totalorder %s33, 1
      %p450 = scmp.ne.s32.totalorder %s445, %s447
      %p451 = scmp.eq.s32.totalorder %s33, 0
      %p452 = por %p450, %p451
      %p453 = scmp.ne.s32.totalorder %s445, %s447
      %p454 = scmp.eq.s32.totalorder %s38, 1
      %p455 = por %p453, %p454
      %p456 = scmp.ne.s32.totalorder %s447, %s448
      %p457 = scmp.eq.s32.totalorder %s38, 0
      %p458 = por %p456, %p457
      %p459 = scmp.ne.s32.totalorder %s447, %s448
      %p460 = scmp.eq.s32.totalorder %s39, 1
      %p461 = por %p459, %p460
      %p463 = scmp.ne.s32.totalorder %s448, %s462
      %p464 = scmp.eq.s32.totalorder %s39, 0
      %p465 = por %p463, %p464
      %s467 = sadd.s32 %s466, 1
      %p470 = scmp.eq.s32.totalorder %s33, 1
      %p471 = scmp.ne.s32.totalorder %s466, %s468
      %p472 = scmp.eq.s32.totalorder %s33, 0
      %p473 = por %p471, %p472
      %p474 = scmp.ne.s32.totalorder %s466, %s468
      %p475 = scmp.eq.s32.totalorder %s38, 1
      %p476 = por %p474, %p475
      %p477 = scmp.ne.s32.totalorder %s468, %s469
      %p478 = scmp.eq.s32.totalorder %s38, 0
      %p479 = por %p477, %p478
      %p480 = scmp.ne.s32.totalorder %s468, %s469
      %p481 = scmp.eq.s32.totalorder %s39, 1
      %p482 = por %p480, %p481
      %p484 = scmp.ne.s32.totalorder %s469, %s483
      %p485 = scmp.eq.s32.totalorder %s39, 0
      %p486 = por %p484, %p485
      %s487 = ssub.s32 %s33, %s40
      %p488 = scmp.eq.s32.totalorder %s487, 0
      %s490 = sadd.s32 %s489, 1
      %s491 = scalar_select %p488, %s489, %s490
      %p494 = pneg %p488
      %p495 = scmp.eq.s32.totalorder %s33, 1
      %p496 = por %p494, %p495
      %p497 = scmp.ne.s32.totalorder %s489, %s492
      %p498 = scmp.eq.s32.totalorder %s33, 0
      %p499 = por %p497, %p498
      %p500 = scmp.ne.s32.totalorder %s489, %s492
      %p501 = scmp.eq.s32.totalorder %s38, 1
      %p502 = por %p500, %p501
      %p503 = scmp.ne.s32.totalorder %s492, %s493
      %p504 = scmp.eq.s32.totalorder %s38, 0
      %p505 = por %p503, %p504
      %p506 = scmp.ne.s32.totalorder %s492, %s493
      %p507 = scmp.eq.s32.totalorder %s39, 1
      %p508 = por %p506, %p507
      %p510 = scmp.ne.s32.totalorder %s493, %s509
      %p511 = scmp.eq.s32.totalorder %s39, 0
      %p512 = por %p510, %p511
      %p513 = scmp.le.s32.totalorder 1, %s33
      %p514 = scmp.lt.s32.totalorder %s33, 3
      %p515 = pnand %p513, %p514
      %p516 = pneg %p515
      // Predicated region
      $region9: #{encoder_forward.1} parent=5 // pred_check
        _
      $region10: #{encoder_forward.1} parent=5 // pred_check_branch
        %518 = sbr.rel (%p515) target = $region12
      $region11: #{encoder_forward.1} parent=5 // pred_region
        %s519 = ssub.s32 %s33, 1
        // Predicated region
        $region13: #{encoder_forward.1} parent=11 // pred_check
          %p520 = pneg %p80
        $region14: #{encoder_forward.1} parent=11 // pred_check_branch
          %522 = sbr.rel (%p520) target = $region16
        $region15: #{encoder_forward.1} parent=11 // pred_region
          _
        $region16: #{encoder_forward.1} parent=11 // pred_fallthru
          _
        // Predicated region
        $region17: #{encoder_forward.1} parent=11 // pred_check
          %p523 = pneg %p101
        $region18: #{encoder_forward.1} parent=11 // pred_check_branch
          %525 = sbr.rel (%p523) target = $region20
        $region19: #{encoder_forward.1} parent=11 // pred_region
          _
        $region20: #{encoder_forward.1} parent=11 // pred_fallthru
          _
        // Predicated region
        $region21: #{encoder_forward.1} parent=11 // pred_check
          %p526 = pneg %p122
        $region22: #{encoder_forward.1} parent=11 // pred_check_branch
          %528 = sbr.rel (%p526) target = $region24
        $region23: #{encoder_forward.1} parent=11 // pred_region
          %s530 = ssub.s32 12288, 12288
          %531 = vsyncadd [#allocation5], %s530
          %s532 = sshll.u32 [#allocation4], 4
          %s533 = int_to_ptr.vmem [resolvable:$true] %s532
          %538 = dma.hbm_to_vmem [thread:$0]  %s3, 12288, %s533, [#allocation5], 128, 128, 8
        $region24: #{encoder_forward.1} parent=11 // pred_fallthru
          _
        // Predicated region
        $region25: #{encoder_forward.1} parent=11 // pred_check
          %p539 = pneg %p143
        $region26: #{encoder_forward.1} parent=11 // pred_check_branch
          %541 = sbr.rel (%p539) target = $region28
        $region27: #{encoder_forward.1} parent=11 // pred_region
          _
        $region28: #{encoder_forward.1} parent=11 // pred_fallthru
          _
        // Predicated region
        $region29: #{encoder_forward.1} parent=11 // pred_check
          %p542 = pneg %p164
        $region30: #{encoder_forward.1} parent=11 // pred_check_branch
          %544 = sbr.rel (%p542) target = $region32
        $region31: #{encoder_forward.1} parent=11 // pred_region
          _
        $region32: #{encoder_forward.1} parent=11 // pred_fallthru
          _
        // Predicated region
        $region33: #{encoder_forward.1} parent=11 // pred_check
          %p545 = pneg %p185
        $region34: #{encoder_forward.1} parent=11 // pred_check_branch
          %547 = sbr.rel (%p545) target = $region36
        $region35: #{encoder_forward.1} parent=11 // pred_region
          %s549 = ssub.s32 12288, 12288
          %550 = vsyncadd [#allocation7], %s549
          %s551 = sshll.u32 [#allocation6], 4
          %s552 = int_to_ptr.vmem [resolvable:$true] %s551
          %557 = dma.hbm_to_vmem [thread:$0]  %s6, 12288, %s552, [#allocation7], 128, 128, 8
        $region36: #{encoder_forward.1} parent=11 // pred_fallthru
          _
        // Predicated region
        $region37: #{encoder_forward.1} parent=11 // pred_check
          %p558 = pneg %p206
        $region38: #{encoder_forward.1} parent=11 // pred_check_branch
          %560 = sbr.rel (%p558) target = $region40
        $region39: #{encoder_forward.1} parent=11 // pred_region
          %s562 = ssub.s32 96, 96
          %563 = vsyncadd [#allocation7], %s562
          %s564 = sshll.u32 [#allocation8], 4
          %s565 = int_to_ptr.vmem [resolvable:$true] %s564
          %570 = dma.hbm_to_vmem [thread:$0]  %s7, 96, %s565, [#allocation7], 16, 16, 1
        $region40: #{encoder_forward.1} parent=11 // pred_fallthru
          _
        // Predicated region
        $region41: #{encoder_forward.1} parent=11 // pred_check
          %p571 = pneg %p227
        $region42: #{encoder_forward.1} parent=11 // pred_check_branch
          %573 = sbr.rel (%p571) target = $region44
        $region43: #{encoder_forward.1} parent=11 // pred_region
          _
        $region44: #{encoder_forward.1} parent=11 // pred_fallthru
          _
        // Predicated region
        $region45: #{encoder_forward.1} parent=11 // pred_check
          %p574 = pneg %p248
        $region46: #{encoder_forward.1} parent=11 // pred_check_branch
          %576 = sbr.rel (%p574) target = $region48
        $region47: #{encoder_forward.1} parent=11 // pred_region
          %s578 = ssub.s32 128, 128
          %579 = vsyncadd [#allocation10], %s578
          %s581 = sshll.u32 [#allocation9], 4
          %s582 = int_to_ptr.vmem [resolvable:$true] %s581
          %584 = dma.hbm_to_vmem [thread:$0]  %s9, 128, %s582, [#allocation10]
        $region48: #{encoder_forward.1} parent=11 // pred_fallthru
          _
        // Predicated region
        $region49: #{encoder_forward.1} parent=11 // pred_check
          %p585 = pneg %p269
        $region50: #{encoder_forward.1} parent=11 // pred_check_branch
          %587 = sbr.rel (%p585) target = $region52
        $region51: #{encoder_forward.1} parent=11 // pred_region
          _
        $region52: #{encoder_forward.1} parent=11 // pred_fallthru
          _
        // Predicated region
        $region53: #{encoder_forward.1} parent=11 // pred_check
          %p588 = pneg %p290
        $region54: #{encoder_forward.1} parent=11 // pred_check_branch
          %590 = sbr.rel (%p588) target = $region56
        $region55: #{encoder_forward.1} parent=11 // pred_region
          _
        $region56: #{encoder_forward.1} parent=11 // pred_fallthru
          _
        // Predicated region
        $region57: #{encoder_forward.1} parent=11 // pred_check
          %p591 = pneg %p311
        $region58: #{encoder_forward.1} parent=11 // pred_check_branch
          %593 = sbr.rel (%p591) target = $region60
        $region59: #{encoder_forward.1} parent=11 // pred_region
          %s595 = ssub.s32 6144, 6144
          %596 = vsyncadd [#allocation10], %s595
          %s597 = sshll.u32 [#allocation11], 4
          %s598 = int_to_ptr.vmem [resolvable:$true] %s597
          %603 = dma.hbm_to_vmem [thread:$0]  %s12, 6144, %s598, [#allocation10], 128, 128, 8
        $region60: #{encoder_forward.1} parent=11 // pred_fallthru
          _
        // Predicated region
        $region61: #{encoder_forward.1} parent=11 // pred_check
          %p604 = pneg %p332
        $region62: #{encoder_forward.1} parent=11 // pred_check_branch
          %606 = sbr.rel (%p604) target = $region64
        $region63: #{encoder_forward.1} parent=11 // pred_region
          %s608 = ssub.s32 96, 96
          %609 = vsyncadd [#allocation13], %s608
          %s610 = sshll.u32 [#allocation12], 4
          %s611 = int_to_ptr.vmem [resolvable:$true] %s610
          %616 = dma.hbm_to_vmem [thread:$0]  %s13, 96, %s611, [#allocation13], 16, 16, 1
        $region64: #{encoder_forward.1} parent=11 // pred_fallthru
          _
        // Predicated region
        $region65: #{encoder_forward.1} parent=11 // pred_check
          %p617 = pneg %p353
        $region66: #{encoder_forward.1} parent=11 // pred_check_branch
          %619 = sbr.rel (%p617) target = $region68
        $region67: #{encoder_forward.1} parent=11 // pred_region
          _
        $region68: #{encoder_forward.1} parent=11 // pred_fallthru
          _
        // Predicated region
        $region69: #{encoder_forward.1} parent=11 // pred_check
          %p620 = pneg %p374
        $region70: #{encoder_forward.1} parent=11 // pred_check_branch
          %622 = sbr.rel (%p620) target = $region72
        $region71: #{encoder_forward.1} parent=11 // pred_region
          %s624 = ssub.s32 6144, 6144
          %625 = vsyncadd [#allocation13], %s624
          %s626 = sshll.u32 [#allocation14], 4
          %s627 = int_to_ptr.vmem [resolvable:$true] %s626
          %632 = dma.hbm_to_vmem [thread:$0]  %s15, 6144, %s627, [#allocation13], 128, 128, 8
        $region72: #{encoder_forward.1} parent=11 // pred_fallthru
          _
        // Predicated region
        $region73: #{encoder_forward.1} parent=11 // pred_check
          %p633 = pneg %p395
        $region74: #{encoder_forward.1} parent=11 // pred_check_branch
          %635 = sbr.rel (%p633) target = $region76
        $region75: #{encoder_forward.1} parent=11 // pred_region
          %s637 = ssub.s32 96, 96
          %638 = vsyncadd [#allocation16], %s637
          %s639 = sshll.u32 [#allocation15], 4
          %s640 = int_to_ptr.vmem [resolvable:$true] %s639
          %645 = dma.hbm_to_vmem [thread:$0]  %s16, 96, %s640, [#allocation16], 16, 16, 1
        $region76: #{encoder_forward.1} parent=11 // pred_fallthru
          _
        // Predicated region
        $region77: #{encoder_forward.1} parent=11 // pred_check
          %p646 = pneg %p416
        $region78: #{encoder_forward.1} parent=11 // pred_check_branch
          %648 = sbr.rel (%p646) target = $region80
        $region79: #{encoder_forward.1} parent=11 // pred_region
          _
        $region80: #{encoder_forward.1} parent=11 // pred_fallthru
          _
        // Predicated region
        $region81: #{encoder_forward.1} parent=11 // pred_check
          %p649 = pneg %p437
        $region82: #{encoder_forward.1} parent=11 // pred_check_branch
          %651 = sbr.rel (%p649) target = $region84
        $region83: #{encoder_forward.1} parent=11 // pred_region
          %s653 = ssub.s32 64, 64
          %654 = vsyncadd [#allocation16], %s653
          %s656 = sshll.u32 [#allocation17], 4
          %s657 = int_to_ptr.vmem [resolvable:$true] %s656
          %659 = dma.hbm_to_vmem [thread:$0]  %s18, 64, %s657, [#allocation16]
        $region84: #{encoder_forward.1} parent=11 // pred_fallthru
          _
        // Predicated region
        $region85: #{encoder_forward.1} parent=11 // pred_check
          %p660 = pneg %p458
        $region86: #{encoder_forward.1} parent=11 // pred_check_branch
          %662 = sbr.rel (%p660) target = $region88
        $region87: #{encoder_forward.1} parent=11 // pred_region
          %s664 = ssub.s32 1024, 1024
          %665 = vsyncadd [#allocation19], %s664
          %s666 = sshll.u32 [#allocation18], 4
          %s667 = int_to_ptr.vmem [resolvable:$true] %s666
          %672 = dma.hbm_to_vmem [thread:$0]  %s19, 1024, %s667, [#allocation19], 128, 128, 8
        $region88: #{encoder_forward.1} parent=11 // pred_fallthru
          _
        // Predicated region
        $region89: #{encoder_forward.1} parent=11 // pred_check
          %p673 = pneg %p479
        $region90: #{encoder_forward.1} parent=11 // pred_check_branch
          %675 = sbr.rel (%p673) target = $region92
        $region91: #{encoder_forward.1} parent=11 // pred_region
          _
        $region92: #{encoder_forward.1} parent=11 // pred_fallthru
          _
      $region12: #{encoder_forward.1} parent=5 // pred_fallthru
        _
      %p676 = scmp.lt.s32.totalorder %s33, 2
      // Predicated region
      $region93: #{encoder_forward.1} parent=5 // pred_check
        %p677 = pneg %p676
      $region94: #{encoder_forward.1} parent=5 // pred_check_branch
        %679 = sbr.rel (%p677) target = $region96
      $region95: #{encoder_forward.1} parent=5 // pred_region
        // Predicated region
        $region97: #{encoder_forward.1} parent=95 // pred_check
          %p680 = pneg %p53
        $region98: #{encoder_forward.1} parent=95 // pred_check_branch
          %682 = sbr.rel (%p680) target = $region100
        $region99: #{encoder_forward.1} parent=95 // pred_region
          %p683 = scmp.lt.s32.totalorder %s33, 1
          %s684 = scalar_select %p683, %s33, 1
          %s685 = smul.addr %s684, 2
          %s686 = smul.addr %s685, 8
          %s687 = scalar_lea.vmem %s0, %s686
        $region100: #{encoder_forward.1} parent=95 // pred_fallthru
          _
      $region96: #{encoder_forward.1} parent=5 // pred_fallthru
        _
      %p688 = scmp.le.s32.totalorder 1, %s33
      %p689 = scmp.lt.s32.totalorder %s33, 3
      %p690 = pnand %p688, %p689
      %p691 = pneg %p690
      // Predicated region
      $region101: #{encoder_forward.1} parent=5 // pred_check
        _
      $region102: #{encoder_forward.1} parent=5 // pred_check_branch
        %693 = sbr.rel (%p690) target = $region104
      $region103: #{encoder_forward.1} parent=5 // pred_region
        %s694 = ssub.s32 %s33, 1
        // Predicated region
        $region105: #{encoder_forward.1} parent=103 // pred_check
          %p695 = pneg %p122
        $region106: #{encoder_forward.1} parent=103 // pred_check_branch
          %697 = sbr.rel (%p695) target = $region108
        $region107: #{encoder_forward.1} parent=103 // pred_region
          %698 = dma.done [#allocation5], 12288
        $region108: #{encoder_forward.1} parent=103 // pred_fallthru
          _
        // Predicated region
        $region109: #{encoder_forward.1} parent=103 // pred_check
          %p699 = pneg %p185
        $region110: #{encoder_forward.1} parent=103 // pred_check_branch
          %701 = sbr.rel (%p699) target = $region112
        $region111: #{encoder_forward.1} parent=103 // pred_region
          %702 = dma.done [#allocation7], 12288
        $region112: #{encoder_forward.1} parent=103 // pred_fallthru
          _
        // Predicated region
        $region113: #{encoder_forward.1} parent=103 // pred_check
          %p703 = pneg %p206
        $region114: #{encoder_forward.1} parent=103 // pred_check_branch
          %705 = sbr.rel (%p703) target = $region116
        $region115: #{encoder_forward.1} parent=103 // pred_region
          %706 = dma.done [#allocation7], 96
        $region116: #{encoder_forward.1} parent=103 // pred_fallthru
          _
        // Predicated region
        $region117: #{encoder_forward.1} parent=103 // pred_check
          %p707 = pneg %p248
        $region118: #{encoder_forward.1} parent=103 // pred_check_branch
          %709 = sbr.rel (%p707) target = $region120
        $region119: #{encoder_forward.1} parent=103 // pred_region
          %710 = dma.done [#allocation10], 128
        $region120: #{encoder_forward.1} parent=103 // pred_fallthru
          _
        // Predicated region
        $region121: #{encoder_forward.1} parent=103 // pred_check
          %p711 = pneg %p311
        $region122: #{encoder_forward.1} parent=103 // pred_check_branch
          %713 = sbr.rel (%p711) target = $region124
        $region123: #{encoder_forward.1} parent=103 // pred_region
          %714 = dma.done [#allocation10], 6144
        $region124: #{encoder_forward.1} parent=103 // pred_fallthru
          _
        // Predicated region
        $region125: #{encoder_forward.1} parent=103 // pred_check
          %p715 = pneg %p332
        $region126: #{encoder_forward.1} parent=103 // pred_check_branch
          %717 = sbr.rel (%p715) target = $region128
        $region127: #{encoder_forward.1} parent=103 // pred_region
          %718 = dma.done [#allocation13], 96
        $region128: #{encoder_forward.1} parent=103 // pred_fallthru
          _
        // Predicated region
        $region129: #{encoder_forward.1} parent=103 // pred_check
          %p719 = pneg %p374
        $region130: #{encoder_forward.1} parent=103 // pred_check_branch
          %721 = sbr.rel (%p719) target = $region132
        $region131: #{encoder_forward.1} parent=103 // pred_region
          %722 = dma.done [#allocation13], 6144
        $region132: #{encoder_forward.1} parent=103 // pred_fallthru
          _
        // Predicated region
        $region133: #{encoder_forward.1} parent=103 // pred_check
          %p723 = pneg %p395
        $region134: #{encoder_forward.1} parent=103 // pred_check_branch
          %725 = sbr.rel (%p723) target = $region136
        $region135: #{encoder_forward.1} parent=103 // pred_region
          %726 = dma.done [#allocation16], 96
        $region136: #{encoder_forward.1} parent=103 // pred_fallthru
          _
        // Predicated region
        $region137: #{encoder_forward.1} parent=103 // pred_check
          %p727 = pneg %p437
        $region138: #{encoder_forward.1} parent=103 // pred_check_branch
          %729 = sbr.rel (%p727) target = $region140
        $region139: #{encoder_forward.1} parent=103 // pred_region
          %730 = dma.done [#allocation16], 64
        $region140: #{encoder_forward.1} parent=103 // pred_fallthru
          _
        // Predicated region
        $region141: #{encoder_forward.1} parent=103 // pred_check
          %p731 = pneg %p458
        $region142: #{encoder_forward.1} parent=103 // pred_check_branch
          %733 = sbr.rel (%p731) target = $region144
        $region143: #{encoder_forward.1} parent=103 // pred_region
          %734 = dma.done [#allocation19], 1024
        $region144: #{encoder_forward.1} parent=103 // pred_fallthru
          _
        %p735 = scmp.lt.s32.totalorder %s38, 1
        %s736 = scalar_select %p735, %s38, 1
        %s737 = smul.addr %s736, 2
        %s738 = smul.addr %s737, 8
        %s739 = scalar_lea.vmem %s0, %s738
        %p740 = pneg %p59
        %p741 = pneg %p56
        %p742 = pneg %p80
        %p743 = pneg %p77
        %p744 = pneg %p101
        %p745 = pneg %p98
        %p746 = pneg %p122
        %p747 = pneg %p119
        %p748 = pneg %p143
        %p749 = pneg %p140
        %p750 = pneg %p164
        %p751 = pneg %p161
        %p752 = pneg %p185
        %p753 = pneg %p182
        %p754 = pneg %p206
        %p755 = pneg %p203
        %p756 = pneg %p227
        %p757 = pneg %p224
        %p758 = pneg %p248
        %p759 = pneg %p245
        %p760 = pneg %p269
        %p761 = pneg %p266
        %p762 = pneg %p290
        %p763 = pneg %p287
        %p764 = pneg %p311
        %p765 = pneg %p308
        %p766 = pneg %p332
        %p767 = pneg %p329
        %p768 = pneg %p353
        %p769 = pneg %p350
        %p770 = pneg %p374
        %p771 = pneg %p371
        %p772 = pneg %p395
        %p773 = pneg %p392
        %p774 = pneg %p416
        %p775 = pneg %p413
        %p776 = pneg %p437
        %p777 = pneg %p434
        %p778 = pneg %p458
        %p779 = pneg %p455
        %p780 = pneg %p479
        %p781 = pneg %p476
        %p782 = pneg %p505
        %p783 = pneg %p502
        %p784 = scmp.lt.s32.totalorder %s38, 1
        %s785 = scalar_select %p784, %s38, 1
        %s786 = smul.addr %s785, 4
        %s787 = scalar_lea.vmem %s21, %s786
        %p788 = scmp.lt.s32.totalorder %s38, 1
        %s789 = scalar_select %p788, %s38, 1
        %s790 = smul.addr %s789, 2
        %s791 = smul.addr %s790, 8
        %s792 = scalar_lea.vmem %s0, %s791
        %p793 = scmp.lt.s32.totalorder %s38, 1
        %s794 = scalar_select %p793, %s38, 1
        %s795 = smul.addr %s794, 4
        %s796 = scalar_lea.vmem %s21, %s795
        %797 = vst [vmem:[#allocation2] sm:$0x1] 0.0
        %798 = vst [vmem:[#allocation2 + $0x11] sm:$0x1] 0.0
        %vm799 = vcmask 516096
        %800 = vst.msk [vmem:[#allocation3] sm:$0x1] %vm799, 0.0
        %801 = vst.msk [vmem:[#allocation3 + $0x9] sm:$0x1] %vm799, 0.0
        %v802 = vld [vmem:[%s792] sm:$0xff]
        %v803 = vld [vmem:[%s792 + $0x8] sm:$0xff]
        %v804 = vld [vmem:[%s1] sm:$0xff]
        %v805 = vld [vmem:[%s1 + $0x8] sm:$0xff]
        %v806 = vld [vmem:[%s1 + $0x10] sm:$0xff]
        %v807 = vld [vmem:[%s1 + $0x18] sm:$0xff]
        %v808 = vld [vmem:[%s1 + $0x20] sm:$0xff]
        %v809 = vld [vmem:[%s1 + $0x28] sm:$0xff]
        %v810 = vld [vmem:[%s2] sm:$0x1]
        %v812 = vlaneseq
        %v813 = vshrl.u32 %v812, 7
        %v814 = vsub.s32 0, %v813
        %v815 = vrot.slane %v810, %v814
        %vm817 = vcmask 392192
        %v819 = vsel %vm817, %v802, 0
        %v822 = vsel %vm817, %v803, 0
        %824 = vmatprep.subr.mxu0 0.0
        %825 = vmatpush1.msra.mxu0 %v804
        %826 = vmatprep.subr.mxu0 0.0
        %827 = vmatpush1.msra.mxu0 %v805
        %828 = vmatprep.subr.mxu0 0.0
        %829 = vmatpush1.msra.mxu0 %v806
        %830 = vmatprep.subr.mxu0 0.0
        %831 = vmatpush1.msra.mxu0 %v807
        %832 = vmatprep.subr.mxu0 0.0
        %833 = vmatpush1.msra.mxu0 %v808
        %834 = vmatprep.subr.mxu0 0.0
        %835 = vmatpush1.msra.mxu0 %v809
        %836 = vmatprep.subr.mxu0 0.0
        %837 = vmatpush1.msra.mxu0 0.0
        %838 = vmatprep.subr.mxu0 0.0
        %839 = vmatpush1.msra.mxu0 0.0
        %840 = vmatprep.subr.mxu0 0.0
        %841 = vmatpush1.msra.mxu0 0.0
        %842 = vmatprep.subr.mxu0 0.0
        %843 = vmatpush1.msra.mxu0 0.0
        %844 = vmatprep.subr.mxu0 0.0
        %845 = vmatpush1.msra.mxu0 0.0
        %846 = vmatprep.subr.mxu0 0.0
        %847 = vmatpush1.msra.mxu0 0.0
        %848 = vmatprep.subr.mxu0 0.0
        %849 = vmatpush1.msra.mxu0 0.0
        %850 = vmatprep.subr.mxu0 0.0
        %851 = vmatpush1.msra.mxu0 0.0
        %852 = vmatprep.subr.mxu0 0.0
        %853 = vmatpush1.msra.mxu0 0.0
        %854 = vmatprep.subr.mxu0 0.0
        %855 = vmatpush1.msra.mxu0 0.0
        %856 = vmatprep.subr.mxu0 0.0
        %857 = vmatpush1.msra.mxu0 0.0
        %858 = vmatprep.subr.mxu0 0.0
        %859 = vmatpush1.msra.mxu0 0.0
        %860 = vmatprep.subr.mxu0 0.0
        %861 = vmatpush1.msra.mxu0 0.0
        %862 = vmatprep.subr.mxu0 0.0
        %863 = vmatpush1.msra.mxu0 0.0
        %864 = vmatprep.subr.mxu0 0.0
        %865 = vmatpush1.msra.mxu0 0.0
        %866 = vmatprep.subr.mxu0 0.0
        %867 = vmatpush1.msra.mxu0 0.0
        %868 = vmatprep.subr.mxu0 0.0
        %869 = vmatpush1.msra.mxu0 0.0
        %870 = vmatprep.subr.mxu0 0.0
        %871 = vmatpush1.msra.mxu0 0.0
        %872 = vmatprep.subr.mxu0 0.0
        %873 = vmatpush1.msra.mxu0 0.0
        %874 = vmatprep.subr.mxu0 0.0
        %875 = vmatpush1.msra.mxu0 0.0
        %876 = vmatprep.subr.mxu0 0.0
        %877 = vmatpush1.msra.mxu0 0.0
        %878 = vmatprep.subr.mxu0 0.0
        %879 = vmatpush1.msra.mxu0 0.0
        %880 = vmatprep.subr.mxu0 0.0
        %881 = vmatpush1.msra.mxu0 0.0
        %882 = vmatprep.subr.mxu0 0.0
        %883 = vmatpush1.msra.mxu0 0.0
        %884 = vmatprep.subr.mxu0 0.0
        %885 = vmatpush1.msra.mxu0 0.0
        %886 = vmatprep.subr.mxu0 0.0
        %887 = vmatpush1.msra.mxu0 0.0
        %888 = vmatprep.mubr.f32.mxu0 0.0
        %889 = vmatmul.mubr.f32.gmra.mrb[0].mxu0 %v819
        %v890 = vpop.f32.mrb[0].mxu0
        %v891 = vadd.f32 %v815, %v890
        %v892 = vpop.f32.mrb[0].mxu0
        %893 = vmatprep.mubr.f32.mxu0 0.0
        %894 = vmatmul.mubr.f32.gmra.mrb[0].mxu0 %v822
        %v895 = vpop.f32.mrb[0].mxu0
        %v896 = vadd.f32 %v815, %v895
        %v897 = vpop.f32.mrb[0].mxu0
        %898 = vdwg.mxu0
        %v899 = vld [vmem:[%s5] sm:$0xff]
        %v900 = vld [vmem:[%s5 + $0x8] sm:$0xff]
        %v901 = vld [vmem:[%s5 + $0x10] sm:$0xff]
        %v902 = vld [vmem:[%s5 + $0x18] sm:$0xff]
        %v903 = vld [vmem:[%s5 + $0x20] sm:$0xff]
        %v904 = vld [vmem:[%s5 + $0x28] sm:$0xff]
        %v905 = vld [vmem:[%s5 + $0x30] sm:$0xff]
        %v906 = vld [vmem:[%s5 + $0x38] sm:$0xff]
        %v907 = vld [vmem:[%s5 + $0x40] sm:$0xff]
        %v908 = vld [vmem:[%s5 + $0x48] sm:$0xff]
        %v909 = vld [vmem:[%s5 + $0x50] sm:$0xff]
        %v910 = vld [vmem:[%s5 + $0x58] sm:$0xff]
        %v911 = vld [vmem:[%s5 + $0x60] sm:$0xff]
        %v912 = vld [vmem:[%s5 + $0x68] sm:$0xff]
        %v913 = vld [vmem:[%s5 + $0x70] sm:$0xff]
        %v914 = vld [vmem:[%s5 + $0x78] sm:$0xff]
        %915 = vst [vmem:[#allocation2 + $0x1] sm:$0xff] %v891
        %916 = vst [vmem:[#allocation2 + $0x9] sm:$0xff] %v896
        %s917 = scalar_lea.vmem [#allocation4], 128
        %v918 = vld [vmem:[%s917] sm:$0xff]
        %v919 = vld [vmem:[%s917 + $0x8] sm:$0xff]
        %v920 = vld [vmem:[%s917 + $0x10] sm:$0xff]
        %v921 = vld [vmem:[%s917 + $0x18] sm:$0xff]
        %v922 = vld [vmem:[%s917 + $0x20] sm:$0xff]
        %v923 = vld [vmem:[%s917 + $0x28] sm:$0xff]
        %v924 = vld [vmem:[%s917 + $0x30] sm:$0xff]
        %v925 = vld [vmem:[%s917 + $0x38] sm:$0xff]
        %v926 = vld [vmem:[%s917 + $0x40] sm:$0xff]
        %v927 = vld [vmem:[%s917 + $0x48] sm:$0xff]
        %v928 = vld [vmem:[%s917 + $0x50] sm:$0xff]
        %v929 = vld [vmem:[%s917 + $0x58] sm:$0xff]
        %v930 = vld [vmem:[%s917 + $0x60] sm:$0xff]
        %v931 = vld [vmem:[%s917 + $0x68] sm:$0xff]
        %v932 = vld [vmem:[%s917 + $0x70] sm:$0xff]
        %v933 = vld [vmem:[%s917 + $0x78] sm:$0xff]
        %v934 = vld [vmem:[#allocation2] sm:$0xff]
        %v935 = vld [vmem:[#allocation2 + $0x8] sm:$0xff]
        %v936 = vld [vmem:[#allocation4] sm:$0xff]
        %v937 = vld [vmem:[#allocation4 + $0x8] sm:$0xff]
        %v938 = vld [vmem:[#allocation4 + $0x10] sm:$0xff]
        %v939 = vld [vmem:[#allocation4 + $0x18] sm:$0xff]
        %v940 = vld [vmem:[#allocation4 + $0x20] sm:$0xff]
        %v941 = vld [vmem:[#allocation4 + $0x28] sm:$0xff]
        %v942 = vld [vmem:[#allocation4 + $0x30] sm:$0xff]
        %v943 = vld [vmem:[#allocation4 + $0x38] sm:$0xff]
        %v944 = vld [vmem:[#allocation4 + $0x40] sm:$0xff]
        %v945 = vld [vmem:[#allocation4 + $0x48] sm:$0xff]
        %v946 = vld [vmem:[#allocation4 + $0x50] sm:$0xff]
        %v947 = vld [vmem:[#allocation4 + $0x58] sm:$0xff]
        %v948 = vld [vmem:[#allocation4 + $0x60] sm:$0xff]
        %v949 = vld [vmem:[#allocation4 + $0x68] sm:$0xff]
        %v950 = vld [vmem:[#allocation4 + $0x70] sm:$0xff]
        %v951 = vld [vmem:[#allocation4 + $0x78] sm:$0xff]
        %952 = vmatprep.subr.mxu0 0.0
        %953 = vmatpush1.msra.mxu0 %v936
        %954 = vmatprep.subr.mxu0 0.0
        %955 = vmatpush1.msra.mxu0 %v937
        %956 = vmatprep.subr.mxu0 0.0
        %957 = vmatpush1.msra.mxu0 %v938
        %958 = vmatprep.subr.mxu0 0.0
        %959 = vmatpush1.msra.mxu0 %v939
        %960 = vmatprep.subr.mxu0 0.0
        %961 = vmatpush1.msra.mxu0 %v940
        %962 = vmatprep.subr.mxu0 0.0
        %963 = vmatpush1.msra.mxu0 %v941
        %964 = vmatprep.subr.mxu0 0.0
        %965 = vmatpush1.msra.mxu0 %v942
        %966 = vmatprep.subr.mxu0 0.0
        %967 = vmatpush1.msra.mxu0 %v943
        %968 = vmatprep.subr.mxu0 0.0
        %969 = vmatpush1.msra.mxu0 %v944
        %970 = vmatprep.subr.mxu0 0.0
        %971 = vmatpush1.msra.mxu0 %v945
        %972 = vmatprep.subr.mxu0 0.0
        %973 = vmatpush1.msra.mxu0 %v946
        %974 = vmatprep.subr.mxu0 0.0
        %975 = vmatpush1.msra.mxu0 %v947
        %976 = vmatprep.subr.mxu0 0.0
        %977 = vmatpush1.msra.mxu0 %v948
        %978 = vmatprep.subr.mxu0 0.0
        %979 = vmatpush1.msra.mxu0 %v949
        %980 = vmatprep.subr.mxu0 0.0
        %981 = vmatpush1.msra.mxu0 %v950
        %982 = vmatprep.subr.mxu0 0.0
        %983 = vmatpush1.msra.mxu0 %v951
        %984 = vmatprep.subr.mxu0 0.0
        %985 = vmatpush1.msra.mxu0 0.0
        %986 = vmatprep.subr.mxu0 0.0
        %987 = vmatpush1.msra.mxu0 0.0
        %988 = vmatprep.subr.mxu0 0.0
        %989 = vmatpush1.msra.mxu0 0.0
        %990 = vmatprep.subr.mxu0 0.0
        %991 = vmatpush1.msra.mxu0 0.0
        %992 = vmatprep.subr.mxu0 0.0
        %993 = vmatpush1.msra.mxu0 0.0
        %994 = vmatprep.subr.mxu0 0.0
        %995 = vmatpush1.msra.mxu0 0.0
        %996 = vmatprep.subr.mxu0 0.0
        %997 = vmatpush1.msra.mxu0 0.0
        %998 = vmatprep.subr.mxu0 0.0
        %999 = vmatpush1.msra.mxu0 0.0
        %1000 = vmatprep.subr.mxu0 0.0
        %1001 = vmatpush1.msra.mxu0 0.0
        %1002 = vmatprep.subr.mxu0 0.0
        %1003 = vmatpush1.msra.mxu0 0.0
        %1004 = vmatprep.subr.mxu0 0.0
        %1005 = vmatpush1.msra.mxu0 0.0
        %1006 = vmatprep.subr.mxu0 0.0
        %1007 = vmatpush1.msra.mxu0 0.0
        %1008 = vmatprep.subr.mxu0 0.0
        %1009 = vmatpush1.msra.mxu0 0.0
        %1010 = vmatprep.subr.mxu0 0.0
        %1011 = vmatpush1.msra.mxu0 0.0
        %1012 = vmatprep.subr.mxu0 0.0
        %1013 = vmatpush1.msra.mxu0 0.0
        %1014 = vmatprep.subr.mxu0 0.0
        %1015 = vmatpush1.msra.mxu0 0.0
        %1016 = vmatprep.mubr.f32.mxu0 0.0
        %1017 = vmatmul.mubr.f32.gmra.mrb[0].mxu0 %v934
        %v1018 = vpop.f32.mrb[0].mxu0
        %v1019 = vadd.f32 0.0, %v1018
        %v1020 = vpop.f32.mrb[0].mxu0
        %1021 = vmatprep.mubr.f32.mxu0 0.0
        %1022 = vmatmul.mubr.f32.gmra.mrb[0].mxu0 %v935
        %v1023 = vpop.f32.mrb[0].mxu0
        %v1024 = vadd.f32 0.0, %v1023
        %v1025 = vpop.f32.mrb[0].mxu0
        %1026 = vdwg.mxu0
        %1027 = vmatprep.subr.mxu0 0.0
        %1028 = vmatpush1.msra.mxu0 %v918
        %1029 = vmatprep.subr.mxu0 0.0
        %1030 = vmatpush1.msra.mxu0 %v919
        %1031 = vmatprep.subr.mxu0 0.0
        %1032 = vmatpush1.msra.mxu0 %v920
        %1033 = vmatprep.subr.mxu0 0.0
        %1034 = vmatpush1.msra.mxu0 %v921
        %1035 = vmatprep.subr.mxu0 0.0
        %1036 = vmatpush1.msra.mxu0 %v922
        %1037 = vmatprep.subr.mxu0 0.0
        %1038 = vmatpush1.msra.mxu0 %v923
        %1039 = vmatprep.subr.mxu0 0.0
        %1040 = vmatpush1.msra.mxu0 %v924
        %1041 = vmatprep.subr.mxu0 0.0
        %1042 = vmatpush1.msra.mxu0 %v925
        %1043 = vmatprep.subr.mxu0 0.0
        %1044 = vmatpush1.msra.mxu0 %v926
        %1045 = vmatprep.subr.mxu0 0.0
        %1046 = vmatpush1.msra.mxu0 %v927
        %1047 = vmatprep.subr.mxu0 0.0
        %1048 = vmatpush1.msra.mxu0 %v928
        %1049 = vmatprep.subr.mxu0 0.0
        %1050 = vmatpush1.msra.mxu0 %v929
        %1051 = vmatprep.subr.mxu0 0.0
        %1052 = vmatpush1.msra.mxu0 %v930
        %1053 = vmatprep.subr.mxu0 0.0
        %1054 = vmatpush1.msra.mxu0 %v931
        %1055 = vmatprep.subr.mxu0 0.0
        %1056 = vmatpush1.msra.mxu0 %v932
        %1057 = vmatprep.subr.mxu0 0.0
        %1058 = vmatpush1.msra.mxu0 %v933
        %1059 = vmatprep.subr.mxu0 0.0
        %1060 = vmatpush1.msra.mxu0 0.0
        %1061 = vmatprep.subr.mxu0 0.0
        %1062 = vmatpush1.msra.mxu0 0.0
        %1063 = vmatprep.subr.mxu0 0.0
        %1064 = vmatpush1.msra.mxu0 0.0
        %1065 = vmatprep.subr.mxu0 0.0
        %1066 = vmatpush1.msra.mxu0 0.0
        %1067 = vmatprep.subr.mxu0 0.0
        %1068 = vmatpush1.msra.mxu0 0.0
        %1069 = vmatprep.subr.mxu0 0.0
        %1070 = vmatpush1.msra.mxu0 0.0
        %1071 = vmatprep.subr.mxu0 0.0
        %1072 = vmatpush1.msra.mxu0 0.0
        %1073 = vmatprep.subr.mxu0 0.0
        %1074 = vmatpush1.msra.mxu0 0.0
        %1075 = vmatprep.subr.mxu0 0.0
        %1076 = vmatpush1.msra.mxu0 0.0
        %1077 = vmatprep.subr.mxu0 0.0
        %1078 = vmatpush1.msra.mxu0 0.0
        %1079 = vmatprep.subr.mxu0 0.0
        %1080 = vmatpush1.msra.mxu0 0.0
        %1081 = vmatprep.subr.mxu0 0.0
        %1082 = vmatpush1.msra.mxu0 0.0
        %1083 = vmatprep.subr.mxu0 0.0
        %1084 = vmatpush1.msra.mxu0 0.0
        %1085 = vmatprep.subr.mxu0 0.0
        %1086 = vmatpush1.msra.mxu0 0.0
        %1087 = vmatprep.subr.mxu0 0.0
        %1088 = vmatpush1.msra.mxu0 0.0
        %1089 = vmatprep.subr.mxu0 0.0
        %1090 = vmatpush1.msra.mxu0 0.0
        %1091 = vmatprep.mubr.f32.mxu0 0.0
        %1092 = vmatmul.mubr.f32.gmra.mrb[0].mxu0 %v891
        %v1093 = vpop.f32.mrb[0].mxu0
        %v1094 = vadd.f32 %v1019, %v1093
        %v1095 = vpop.f32.mrb[0].mxu0
        %1096 = vmatprep.mubr.f32.mxu0 0.0
        %1097 = vmatmul.mubr.f32.gmra.mrb[0].mxu0 %v896
        %v1098 = vpop.f32.mrb[0].mxu0
        %v1099 = vadd.f32 %v1024, %v1098
        %v1100 = vpop.f32.mrb[0].mxu0
        %1101 = vdwg.mxu0
        %v1102 = vld [vmem:[#allocation2 + $0x2] sm:$0xff]
        %v1103 = vld [vmem:[#allocation2 + $0xa] sm:$0xff]
        %s1104 = scalar_lea.vmem [#allocation4], 256
        %v1105 = vld [vmem:[%s1104] sm:$0xff]
        %v1106 = vld [vmem:[%s1104 + $0x8] sm:$0xff]
        %v1107 = vld [vmem:[%s1104 + $0x10] sm:$0xff]
        %v1108 = vld [vmem:[%s1104 + $0x18] sm:$0xff]
        %v1109 = vld [vmem:[%s1104 + $0x20] sm:$0xff]
        %v1110 = vld [vmem:[%s1104 + $0x28] sm:$0xff]
        %v1111 = vld [vmem:[%s1104 + $0x30] sm:$0xff]
        %v1112 = vld [vmem:[%s1104 + $0x38] sm:$0xff]
        %v1113 = vld [vmem:[%s1104 + $0x40] sm:$0xff]
        %v1114 = vld [vmem:[%s1104 + $0x48] sm:$0xff]
        %v1115 = vld [vmem:[%s1104 + $0x50] sm:$0xff]
        %v1116 = vld [vmem:[%s1104 + $0x58] sm:$0xff]
        %v1117 = vld [vmem:[%s1104 + $0x60] sm:$0xff]
        %v1118 = vld [vmem:[%s1104 + $0x68] sm:$0xff]
        %v1119 = vld [vmem:[%s1104 + $0x70] sm:$0xff]
        %v1120 = vld [vmem:[%s1104 + $0x78] sm:$0xff]
        %1121 = vmatprep.subr.mxu0 0.0
        %1122 = vmatpush1.msra.mxu0 %v1105
        %1123 = vmatprep.subr.mxu0 0.0
        %1124 = vmatpush1.msra.mxu0 %v1106
        %1125 = vmatprep.subr.mxu0 0.0
        %1126 = vmatpush1.msra.mxu0 %v1107
        %1127 = vmatprep.subr.mxu0 0.0
        %1128 = vmatpush1.msra.mxu0 %v1108
        %1129 = vmatprep.subr.mxu0 0.0
        %1130 = vmatpush1.msra.mxu0 %v1109
        %1131 = vmatprep.subr.mxu0 0.0
        %1132 = vmatpush1.msra.mxu0 %v1110
        %1133 = vmatprep.subr.mxu0 0.0
        %1134 = vmatpush1.msra.mxu0 %v1111
        %1135 = vmatprep.subr.mxu0 0.0
        %1136 = vmatpush1.msra.mxu0 %v1112
        %1137 = vmatprep.subr.mxu0 0.0
        %1138 = vmatpush1.msra.mxu0 %v1113
        %1139 = vmatprep.subr.mxu0 0.0
        %1140 = vmatpush1.msra.mxu0 %v1114
        %1141 = vmatprep.subr.mxu0 0.0
        %1142 = vmatpush1.msra.mxu0 %v1115
        %1143 = vmatprep.subr.mxu0 0.0
        %1144 = vmatpush1.msra.mxu0 %v1116
        %1145 = vmatprep.subr.mxu0 0.0
        %1146 = vmatpush1.msra.mxu0 %v1117
        %1147 = vmatprep.subr.mxu0 0.0
        %1148 = vmatpush1.msra.mxu0 %v1118
        %1149 = vmatprep.subr.mxu0 0.0
        %1150 = vmatpush1.msra.mxu0 %v1119
        %1151 = vmatprep.subr.mxu0 0.0
        %1152 = vmatpush1.msra.mxu0 %v1120
        %1153 = vmatprep.subr.mxu0 0.0
        %1154 = vmatpush1.msra.mxu0 0.0
        %1155 = vmatprep.subr.mxu0 0.0
        %1156 = vmatpush1.msra.mxu0 0.0
        %1157 = vmatprep.subr.mxu0 0.0
        %1158 = vmatpush1.msra.mxu0 0.0
        %1159 = vmatprep.subr.mxu0 0.0
        %1160 = vmatpush1.msra.mxu0 0.0
        %1161 = vmatprep.subr.mxu0 0.0
        %1162 = vmatpush1.msra.mxu0 0.0
        %1163 = vmatprep.subr.mxu0 0.0
        %1164 = vmatpush1.msra.mxu0 0.0
        %1165 = vmatprep.subr.mxu0 0.0
        %1166 = vmatpush1.msra.mxu0 0.0
        %1167 = vmatprep.subr.mxu0 0.0
        %1168 = vmatpush1.msra.mxu0 0.0
        %1169 = vmatprep.subr.mxu0 0.0
        %1170 = vmatpush1.msra.mxu0 0.0
        %1171 = vmatprep.subr.mxu0 0.0
        %1172 = vmatpush1.msra.mxu0 0.0
        %1173 = vmatprep.subr.mxu0 0.0
        %1174 = vmatpush1.msra.mxu0 0.0
        %1175 = vmatprep.subr.mxu0 0.0
        %1176 = vmatpush1.msra.mxu0 0.0
        %1177 = vmatprep.subr.mxu0 0.0
        %1178 = vmatpush1.msra.mxu0 0.0
        %1179 = vmatprep.subr.mxu0 0.0
        %1180 = vmatpush1.msra.mxu0 0.0
        %1181 = vmatprep.subr.mxu0 0.0
        %1182 = vmatpush1.msra.mxu0 0.0
        %1183 = vmatprep.subr.mxu0 0.0
        %1184 = vmatpush1.msra.mxu0 0.0
        %1185 = vmatprep.mubr.f32.mxu0 0.0
        %1186 = vmatmul.mubr.f32.gmra.mrb[0].mxu0 %v1102
        %v1187 = vpop.f32.mrb[0].mxu0
        %v1188 = vadd.f32 0.0, %v1187
        %v1189 = vpop.f32.mrb[0].mxu0
        %1190 = vmatprep.mubr.f32.mxu0 0.0
        %1191 = vmatmul.mubr.f32.gmra.mrb[0].mxu0 %v1103
        %v1192 = vpop.f32.mrb[0].mxu0
        %v1193 = vadd.f32 0.0, %v1192
        %v1194 = vpop.f32.mrb[0].mxu0
        %1195 = vdwg.mxu0
        %v1196 = vadd.f32 %v1094, %v1188
        %v1197 = vadd.f32 %v1099, %v1193
        %v1198 = vld [vmem:[%s4] sm:$0x1]
        %v1200 = vlaneseq
        %v1201 = vshrl.u32 %v1200, 7
        %v1202 = vsub.s32 0, %v1201
        %v1203 = vrot.slane %v1198, %v1202
        %v1205 = vadd.f32 %v1196, %v1203
        %v1206 = vadd.f32 %v1197, %v1203
        %v1207 = vadd.f32 %v1205, %v1206
        %v1208 = vrot.slane %v1207, 4
        %v1209 = vadd.f32 %v1207, %v1208
        %v1210 = vrot.slane %v1209, 2
        %v1211 = vadd.f32 %v1209, %v1210
        %v1212 = vrot.slane %v1211, 1
        %v1213 = vadd.f32 %v1211, %v1212
        %v1214 = vmul.f32 %v1205, %v1205
        %v1215 = vmul.f32 %v1206, %v1206
        %v1216 = vadd.f32 %v1214, %v1215
        %v1217 = vrot.slane %v1216, 4
        %v1218 = vadd.f32 %v1216, %v1217
        %v1219 = vrot.slane %v1218, 2
        %v1220 = vadd.f32 %v1218, %v1219
        %v1221 = vrot.slane %v1220, 1
        %v1222 = vadd.f32 %v1220, %v1221
        %1223 = vmatprep.subr.mxu0 0.0
        %1224 = vmatpush1.msra.mxu0 %v899
        %1225 = vmatprep.subr.mxu0 0.0
        %1226 = vmatpush1.msra.mxu0 %v900
        %1227 = vmatprep.subr.mxu0 0.0
        %1228 = vmatpush1.msra.mxu0 %v901
        %1229 = vmatprep.subr.mxu0 0.0
        %1230 = vmatpush1.msra.mxu0 %v902
        %1231 = vmatprep.subr.mxu0 0.0
        %1232 = vmatpush1.msra.mxu0 %v903
        %1233 = vmatprep.subr.mxu0 0.0
        %1234 = vmatpush1.msra.mxu0 %v904
        %1235 = vmatprep.subr.mxu0 0.0
        %1236 = vmatpush1.msra.mxu0 %v905
        %1237 = vmatprep.subr.mxu0 0.0
        %1238 = vmatpush1.msra.mxu0 %v906
        %1239 = vmatprep.subr.mxu0 0.0
        %1240 = vmatpush1.msra.mxu0 %v907
        %1241 = vmatprep.subr.mxu0 0.0
        %1242 = vmatpush1.msra.mxu0 %v908
        %1243 = vmatprep.subr.mxu0 0.0
        %1244 = vmatpush1.msra.mxu0 %v909
        %1245 = vmatprep.subr.mxu0 0.0
        %1246 = vmatpush1.msra.mxu0 %v910
        %1247 = vmatprep.subr.mxu0 0.0
        %1248 = vmatpush1.msra.mxu0 %v911
        %1249 = vmatprep.subr.mxu0 0.0
        %1250 = vmatpush1.msra.mxu0 %v912
        %1251 = vmatprep.subr.mxu0 0.0
        %1252 = vmatpush1.msra.mxu0 %v913
        %1253 = vmatprep.subr.mxu0 0.0
        %1254 = vmatpush1.msra.mxu0 %v914
        %1255 = vmatprep.subr.mxu0 0.0
        %1256 = vmatpush1.msra.mxu0 0.0
        %1257 = vmatprep.subr.mxu0 0.0
        %1258 = vmatpush1.msra.mxu0 0.0
        %1259 = vmatprep.subr.mxu0 0.0
        %1260 = vmatpush1.msra.mxu0 0.0
        %1261 = vmatprep.subr.mxu0 0.0
        %1262 = vmatpush1.msra.mxu0 0.0
        %1263 = vmatprep.subr.mxu0 0.0
        %1264 = vmatpush1.msra.mxu0 0.0
        %1265 = vmatprep.subr.mxu0 0.0
        %1266 = vmatpush1.msra.mxu0 0.0
        %1267 = vmatprep.subr.mxu0 0.0
        %1268 = vmatpush1.msra.mxu0 0.0
        %1269 = vmatprep.subr.mxu0 0.0
        %1270 = vmatpush1.msra.mxu0 0.0
        %1271 = vmatprep.subr.mxu0 0.0
        %1272 = vmatpush1.msra.mxu0 0.0
        %1273 = vmatprep.subr.mxu0 0.0
        %1274 = vmatpush1.msra.mxu0 0.0
        %1275 = vmatprep.subr.mxu0 0.0
        %1276 = vmatpush1.msra.mxu0 0.0
        %1277 = vmatprep.subr.mxu0 0.0
        %1278 = vmatpush1.msra.mxu0 0.0
        %1279 = vmatprep.subr.mxu0 0.0
        %1280 = vmatpush1.msra.mxu0 0.0
        %1281 = vmatprep.subr.mxu0 0.0
        %1282 = vmatpush1.msra.mxu0 0.0
        %1283 = vmatprep.subr.mxu0 0.0
        %1284 = vmatpush1.msra.mxu0 0.0
        %1285 = vmatprep.subr.mxu0 0.0
        %1286 = vmatpush1.msra.mxu0 0.0
        %1287 = vmatprep.mubr.f32.mxu0 0.0
        %1288 = vmatmul.mubr.f32.gmra.mrb[0].mxu0 %v1213
        %v1289 = vpop.f32.mrb[0].mxu0
        %v1290 = vadd.f32 0.0, %v1289
        %v1291 = vpop.f32.mrb[0].mxu0
        %1292 = vdwg.mxu0
        %v1293 = vmul.f32 %v1290, 0.001953125
        %1294 = vmatprep.subr.mxu0 0.0
        %1295 = vmatpush1.msra.mxu0 %v899
        %1296 = vmatprep.subr.mxu0 0.0
        %1297 = vmatpush1.msra.mxu0 %v900
        %1298 = vmatprep.subr.mxu0 0.0
        %1299 = vmatpush1.msra.mxu0 %v901
        %1300 = vmatprep.subr.mxu0 0.0
        %1301 = vmatpush1.msra.mxu0 %v902
        %1302 = vmatprep.subr.mxu0 0.0
        %1303 = vmatpush1.msra.mxu0 %v903
        %1304 = vmatprep.subr.mxu0 0.0
        %1305 = vmatpush1.msra.mxu0 %v904
        %1306 = vmatprep.subr.mxu0 0.0
        %1307 = vmatpush1.msra.mxu0 %v905
        %1308 = vmatprep.subr.mxu0 0.0
        %1309 = vmatpush1.msra.mxu0 %v906
        %1310 = vmatprep.subr.mxu0 0.0
        %1311 = vmatpush1.msra.mxu0 %v907
        %1312 = vmatprep.subr.mxu0 0.0
        %1313 = vmatpush1.msra.mxu0 %v908
        %1314 = vmatprep.subr.mxu0 0.0
        %1315 = vmatpush1.msra.mxu0 %v909
        %1316 = vmatprep.subr.mxu0 0.0
        %1317 = vmatpush1.msra.mxu0 %v910
        %1318 = vmatprep.subr.mxu0 0.0
        %1319 = vmatpush1.msra.mxu0 %v911
        %1320 = vmatprep.subr.mxu0 0.0
        %1321 = vmatpush1.msra.mxu0 %v912
        %1322 = vmatprep.subr.mxu0 0.0
        %1323 = vmatpush1.msra.mxu0 %v913
        %1324 = vmatprep.subr.mxu0 0.0
        %1325 = vmatpush1.msra.mxu0 %v914
        %1326 = vmatprep.subr.mxu0 0.0
        %1327 = vmatpush1.msra.mxu0 0.0
        %1328 = vmatprep.subr.mxu0 0.0
        %1329 = vmatpush1.msra.mxu0 0.0
        %1330 = vmatprep.subr.mxu0 0.0
        %1331 = vmatpush1.msra.mxu0 0.0
        %1332 = vmatprep.subr.mxu0 0.0
        %1333 = vmatpush1.msra.mxu0 0.0
        %1334 = vmatprep.subr.mxu0 0.0
        %1335 = vmatpush1.msra.mxu0 0.0
        %1336 = vmatprep.subr.mxu0 0.0
        %1337 = vmatpush1.msra.mxu0 0.0
        %1338 = vmatprep.subr.mxu0 0.0
        %1339 = vmatpush1.msra.mxu0 0.0
        %1340 = vmatprep.subr.mxu0 0.0
        %1341 = vmatpush1.msra.mxu0 0.0
        %1342 = vmatprep.subr.mxu0 0.0
        %1343 = vmatpush1.msra.mxu0 0.0
        %1344 = vmatprep.subr.mxu0 0.0
        %1345 = vmatpush1.msra.mxu0 0.0
        %1346 = vmatprep.subr.mxu0 0.0
        %1347 = vmatpush1.msra.mxu0 0.0
        %1348 = vmatprep.subr.mxu0 0.0
        %1349 = vmatpush1.msra.mxu0 0.0
        %1350 = vmatprep.subr.mxu0 0.0
        %1351 = vmatpush1.msra.mxu0 0.0
        %1352 = vmatprep.subr.mxu0 0.0
        %1353 = vmatpush1.msra.mxu0 0.0
        %1354 = vmatprep.subr.mxu0 0.0
        %1355 = vmatpush1.msra.mxu0 0.0
        %1356 = vmatprep.subr.mxu0 0.0
        %1357 = vmatpush1.msra.mxu0 0.0
        %1358 = vmatprep.mubr.f32.mxu0 0.0
        %1359 = vmatmul.mubr.f32.gmra.mrb[0].mxu0 %v1222
        %v1360 = vpop.f32.mrb[0].mxu0
        %v1361 = vadd.f32 0.0, %v1360
        %v1362 = vpop.f32.mrb[0].mxu0
        %1363 = vdwg.mxu0
        %v1364 = vmul.f32 %v1361, 0.001953125
        %v1365 = vmul.f32 %v1293, %v1293
        %v1366 = vsub.f32 %v1364, %v1365
        %v1367 = vlaneseq
        %v1368 = vshrl.u32 %v1367, 7
        %v1369 = vsub.s32 0, %v1368
        %v1370 = vrot.slane %v1293, %v1369
        %v1371 = vsub.f32 %v1205, %v1370
        %v1372 = vsub.f32 %v1206, %v1370
        %v1373 = vadd.f32 %v1366, 1e-05
        %v1374 = vrsqrt.pop %v1373
        %v1375 = vlaneseq
        %v1376 = vshrl.u32 %v1375, 7
        %v1377 = vsub.s32 0, %v1376
        %v1378 = vrot.slane %v1374, %v1377
        %v1379 = vmul.f32 %v1371, %v1378
        %v1380 = vmul.f32 %v1372, %v1378
        %s1381 = scalar_lea.vmem %s4, 1
        %v1382 = vld [vmem:[%s1381] sm:$0x1]
        %v1384 = vlaneseq
        %v1385 = vshrl.u32 %v1384, 7
        %v1386 = vsub.s32 0, %v1385
        %v1387 = vrot.slane %v1382, %v1386
        %v1389 = vmul.f32 %v1379, %v1387
        %v1390 = vmul.f32 %v1380, %v1387
        %s1391 = scalar_lea.vmem %s4, 2
        %v1392 = vld [vmem:[%s1391] sm:$0x1]
        %v1394 = vlaneseq
        %v1395 = vshrl.u32 %v1394, 7
        %v1396 = vsub.s32 0, %v1395
        %v1397 = vrot.slane %v1392, %v1396
        %v1399 = vadd.f32 %v1389, %v1397
        %v1400 = vadd.f32 %v1390, %v1397
        %v1401 = vxor.u32 %v1399, 2147483648
        %v1402 = vxor.u32 %v1400, 2147483648
        %v1403 = vmul.f32 %v1401, 1.442695
        %v1404 = vpow.pop %v1403
        %v1405 = vmul.f32 %v1402, 1.442695
        %v1406 = vpow.pop %v1405
        %v1407 = vadd.f32 %v1404, 1.0
        %v1408 = vadd.f32 %v1406, 1.0
        %v1409 = vrcp.pop %v1407
        %v1410 = vmul.f32 1.0, %v1409
        %v1411 = vrcp.pop %v1408
        %v1412 = vmul.f32 1.0, %v1411
        %v1413 = vmul.f32 %v1399, %v1410
        %v1414 = vmul.f32 %v1400, %v1412
        %1415 = vst [vmem:[#allocation2 + $0x1] sm:$0xff] %v1413
        %1416 = vst [vmem:[#allocation2 + $0x9] sm:$0xff] %v1414
        %s1417 = scalar_lea.vmem [#allocation4], 512
        %v1418 = vld [vmem:[%s1417] sm:$0xff]
        %v1419 = vld [vmem:[%s1417 + $0x8] sm:$0xff]
        %v1420 = vld [vmem:[%s1417 + $0x10] sm:$0xff]
        %v1421 = vld [vmem:[%s1417 + $0x18] sm:$0xff]
        %v1422 = vld [vmem:[%s1417 + $0x20] sm:$0xff]
        %v1423 = vld [vmem:[%s1417 + $0x28] sm:$0xff]
        %v1424 = vld [vmem:[%s1417 + $0x30] sm:$0xff]
        %v1425 = vld [vmem:[%s1417 + $0x38] sm:$0xff]
        %v1426 = vld [vmem:[%s1417 + $0x40] sm:$0xff]
        %v1427 = vld [vmem:[%s1417 + $0x48] sm:$0xff]
        %v1428 = vld [vmem:[%s1417 + $0x50] sm:$0xff]
        %v1429 = vld [vmem:[%s1417 + $0x58] sm:$0xff]
        %v1430 = vld [vmem:[%s1417 + $0x60] sm:$0xff]
        %v1431 = vld [vmem:[%s1417 + $0x68] sm:$0xff]
        %v1432 = vld [vmem:[%s1417 + $0x70] sm:$0xff]
        %v1433 = vld [vmem:[%s1417 + $0x78] sm:$0xff]
        %v1434 = vld [vmem:[#allocation2] sm:$0xff]
        %v1435 = vld [vmem:[#allocation2 + $0x8] sm:$0xff]
        %s1436 = scalar_lea.vmem [#allocation4], 384
        %v1437 = vld [vmem:[%s1436] sm:$0xff]
        %v1438 = vld [vmem:[%s1436 + $0x8] sm:$0xff]
        %v1439 = vld [vmem:[%s1436 + $0x10] sm:$0xff]
        %v1440 = vld [vmem:[%s1436 + $0x18] sm:$0xff]
        %v1441 = vld [vmem:[%s1436 + $0x20] sm:$0xff]
        %v1442 = vld [vmem:[%s1436 + $0x28] sm:$0xff]
        %v1443 = vld [vmem:[%s1436 + $0x30] sm:$0xff]
        %v1444 = vld [vmem:[%s1436 + $0x38] sm:$0xff]
        %v1445 = vld [vmem:[%s1436 + $0x40] sm:$0xff]
        %v1446 = vld [vmem:[%s1436 + $0x48] sm:$0xff]
        %v1447 = vld [vmem:[%s1436 + $0x50] sm:$0xff]
        %v1448 = vld [vmem:[%s1436 + $0x58] sm:$0xff]
        %v1449 = vld [vmem:[%s1436 + $0x60] sm:$0xff]
        %v1450 = vld [vmem:[%s1436 + $0x68] sm:$0xff]
        %v1451 = vld [vmem:[%s1436 + $0x70] sm:$0xff]
        %v1452 = vld [vmem:[%s1436 + $0x78] sm:$0xff]
        %1453 = vmatprep.subr.mxu0 0.0
        %1454 = vmatpush1.msra.mxu0 %v1437
        %1455 = vmatprep.subr.mxu0 0.0
        %1456 = vmatpush1.msra.mxu0 %v1438
        %1457 = vmatprep.subr.mxu0 0.0
        %1458 = vmatpush1.msra.mxu0 %v1439
        %1459 = vmatprep.subr.mxu0 0.0
        %1460 = vmatpush1.msra.mxu0 %v1440
        %1461 = vmatprep.subr.mxu0 0.0
        %1462 = vmatpush1.msra.mxu0 %v1441
        %1463 = vmatprep.subr.mxu0 0.0
        %1464 = vmatpush1.msra.mxu0 %v1442
        %1465 = vmatprep.subr.mxu0 0.0
        %1466 = vmatpush1.msra.mxu0 %v1443
        %1467 = vmatprep.subr.mxu0 0.0
        %1468 = vmatpush1.msra.mxu0 %v1444
        %1469 = vmatprep.subr.mxu0 0.0
        %1470 = vmatpush1.msra.mxu0 %v1445
        %1471 = vmatprep.subr.mxu0 0.0
        %1472 = vmatpush1.msra.mxu0 %v1446
        %1473 = vmatprep.subr.mxu0 0.0
        %1474 = vmatpush1.msra.mxu0 %v1447
        %1475 = vmatprep.subr.mxu0 0.0
        %1476 = vmatpush1.msra.mxu0 %v1448
        %1477 = vmatprep.subr.mxu0 0.0
        %1478 = vmatpush1.msra.mxu0 %v1449
        %1479 = vmatprep.subr.mxu0 0.0
        %1480 = vmatpush1.msra.mxu0 %v1450
        %1481 = vmatprep.subr.mxu0 0.0
        %1482 = vmatpush1.msra.mxu0 %v1451
        %1483 = vmatprep.subr.mxu0 0.0
        %1484 = vmatpush1.msra.mxu0 %v1452
        %1485 = vmatprep.subr.mxu0 0.0
        %1486 = vmatpush1.msra.mxu0 0.0
        %1487 = vmatprep.subr.mxu0 0.0
        %1488 = vmatpush1.msra.mxu0 0.0
        %1489 = vmatprep.subr.mxu0 0.0
        %1490 = vmatpush1.msra.mxu0 0.0
        %1491 = vmatprep.subr.mxu0 0.0
        %1492 = vmatpush1.msra.mxu0 0.0
        %1493 = vmatprep.subr.mxu0 0.0
        %1494 = vmatpush1.msra.mxu0 0.0
        %1495 = vmatprep.subr.mxu0 0.0
        %1496 = vmatpush1.msra.mxu0 0.0
        %1497 = vmatprep.subr.mxu0 0.0
        %1498 = vmatpush1.msra.mxu0 0.0
        %1499 = vmatprep.subr.mxu0 0.0
        %1500 = vmatpush1.msra.mxu0 0.0
        %1501 = vmatprep.subr.mxu0 0.0
        %1502 = vmatpush1.msra.mxu0 0.0
        %1503 = vmatprep.subr.mxu0 0.0
        %1504 = vmatpush1.msra.mxu0 0.0
        %1505 = vmatprep.subr.mxu0 0.0
        %1506 = vmatpush1.msra.mxu0 0.0
        %1507 = vmatprep.subr.mxu0 0.0
        %1508 = vmatpush1.msra.mxu0 0.0
        %1509 = vmatprep.subr.mxu0 0.0
        %1510 = vmatpush1.msra.mxu0 0.0
        %1511 = vmatprep.subr.mxu0 0.0
        %1512 = vmatpush1.msra.mxu0 0.0
        %1513 = vmatprep.subr.mxu0 0.0
        %1514 = vmatpush1.msra.mxu0 0.0
        %1515 = vmatprep.subr.mxu0 0.0
        %1516 = vmatpush1.msra.mxu0 0.0
        %1517 = vmatprep.mubr.f32.mxu0 0.0
        %1518 = vmatmul.mubr.f32.gmra.mrb[0].mxu0 %v1434
        %v1519 = vpop.f32.mrb[0].mxu0
        %v1520 = vadd.f32 0.0, %v1519
        %v1521 = vpop.f32.mrb[0].mxu0
        %1522 = vmatprep.mubr.f32.mxu0 0.0
        %1523 = vmatmul.mubr.f32.gmra.mrb[0].mxu0 %v1435
        %v1524 = vpop.f32.mrb[0].mxu0
        %v1525 = vadd.f32 0.0, %v1524
        %v1526 = vpop.f32.mrb[0].mxu0
        %1527 = vdwg.mxu0
        %1528 = vmatprep.subr.mxu0 0.0
        %1529 = vmatpush1.msra.mxu0 %v1418
        %1530 = vmatprep.subr.mxu0 0.0
        %1531 = vmatpush1.msra.mxu0 %v1419
        %1532 = vmatprep.subr.mxu0 0.0
        %1533 = vmatpush1.msra.mxu0 %v1420
        %1534 = vmatprep.subr.mxu0 0.0
        %1535 = vmatpush1.msra.mxu0 %v1421
        %1536 = vmatprep.subr.mxu0 0.0
        %1537 = vmatpush1.msra.mxu0 %v1422
        %1538 = vmatprep.subr.mxu0 0.0
        %1539 = vmatpush1.msra.mxu0 %v1423
        %1540 = vmatprep.subr.mxu0 0.0
        %1541 = vmatpush1.msra.mxu0 %v1424
        %1542 = vmatprep.subr.mxu0 0.0
        %1543 = vmatpush1.msra.mxu0 %v1425
        %1544 = vmatprep.subr.mxu0 0.0
        %1545 = vmatpush1.msra.mxu0 %v1426
        %1546 = vmatprep.subr.mxu0 0.0
        %1547 = vmatpush1.msra.mxu0 %v1427
        %1548 = vmatprep.subr.mxu0 0.0
        %1549 = vmatpush1.msra.mxu0 %v1428
        %1550 = vmatprep.subr.mxu0 0.0
        %1551 = vmatpush1.msra.mxu0 %v1429
        %1552 = vmatprep.subr.mxu0 0.0
        %1553 = vmatpush1.msra.mxu0 %v1430
        %1554 = vmatprep.subr.mxu0 0.0
        %1555 = vmatpush1.msra.mxu0 %v1431
        %1556 = vmatprep.subr.mxu0 0.0
        %1557 = vmatpush1.msra.mxu0 %v1432
        %1558 = vmatprep.subr.mxu0 0.0
        %1559 = vmatpush1.msra.mxu0 %v1433
        %1560 = vmatprep.subr.mxu0 0.0
        %1561 = vmatpush1.msra.mxu0 0.0
        %1562 = vmatprep.subr.mxu0 0.0
        %1563 = vmatpush1.msra.mxu0 0.0
        %1564 = vmatprep.subr.mxu0 0.0
        %1565 = vmatpush1.msra.mxu0 0.0
        %1566 = vmatprep.subr.mxu0 0.0
        %1567 = vmatpush1.msra.mxu0 0.0
        %1568 = vmatprep.subr.mxu0 0.0
        %1569 = vmatpush1.msra.mxu0 0.0
        %1570 = vmatprep.subr.mxu0 0.0
        %1571 = vmatpush1.msra.mxu0 0.0
        %1572 = vmatprep.subr.mxu0 0.0
        %1573 = vmatpush1.msra.mxu0 0.0
        %1574 = vmatprep.subr.mxu0 0.0
        %1575 = vmatpush1.msra.mxu0 0.0
        %1576 = vmatprep.subr.mxu0 0.0
        %1577 = vmatpush1.msra.mxu0 0.0
        %1578 = vmatprep.subr.mxu0 0.0
        %1579 = vmatpush1.msra.mxu0 0.0
        %1580 = vmatprep.subr.mxu0 0.0
        %1581 = vmatpush1.msra.mxu0 0.0
        %1582 = vmatprep.subr.mxu0 0.0
        %1583 = vmatpush1.msra.mxu0 0.0
        %1584 = vmatprep.subr.mxu0 0.0
        %1585 = vmatpush1.msra.mxu0 0.0
        %1586 = vmatprep.subr.mxu0 0.0
        %1587 = vmatpush1.msra.mxu0 0.0
        %1588 = vmatprep.subr.mxu0 0.0
        %1589 = vmatpush1.msra.mxu0 0.0
        %1590 = vmatprep.subr.mxu0 0.0
        %1591 = vmatpush1.msra.mxu0 0.0
        %1592 = vmatprep.mubr.f32.mxu0 0.0
        %1593 = vmatmul.mubr.f32.gmra.mrb[0].mxu0 %v1413
        %v1594 = vpop.f32.mrb[0].mxu0
        %v1595 = vadd.f32 %v1520, %v1594
        %v1596 = vpop.f32.mrb[0].mxu0
        %1597 = vmatprep.mubr.f32.mxu0 0.0
        %1598 = vmatmul.mubr.f32.gmra.mrb[0].mxu0 %v1414
        %v1599 = vpop.f32.mrb[0].mxu0
        %v1600 = vadd.f32 %v1525, %v1599
        %v1601 = vpop.f32.mrb[0].mxu0
        %1602 = vdwg.mxu0
        %v1603 = vld [vmem:[#allocation2 + $0x2] sm:$0xff]
        %v1604 = vld [vmem:[#allocation2 + $0xa] sm:$0xff]
        %s1605 = scalar_lea.vmem [#allocation4], 640
        %v1606 = vld [vmem:[%s1605] sm:$0xff]
        %v1607 = vld [vmem:[%s1605 + $0x8] sm:$0xff]
        %v1608 = vld [vmem:[%s1605 + $0x10] sm:$0xff]
        %v1609 = vld [vmem:[%s1605 + $0x18] sm:$0xff]
        %v1610 = vld [vmem:[%s1605 + $0x20] sm:$0xff]
        %v1611 = vld [vmem:[%s1605 + $0x28] sm:$0xff]
        %v1612 = vld [vmem:[%s1605 + $0x30] sm:$0xff]
        %v1613 = vld [vmem:[%s1605 + $0x38] sm:$0xff]
        %v1614 = vld [vmem:[%s1605 + $0x40] sm:$0xff]
        %v1615 = vld [vmem:[%s1605 + $0x48] sm:$0xff]
        %v1616 = vld [vmem:[%s1605 + $0x50] sm:$0xff]
        %v1617 = vld [vmem:[%s1605 + $0x58] sm:$0xff]
        %v1618 = vld [vmem:[%s1605 + $0x60] sm:$0xff]
        %v1619 = vld [vmem:[%s1605 + $0x68] sm:$0xff]
        %v1620 = vld [vmem:[%s1605 + $0x70] sm:$0xff]
        %v1621 = vld [vmem:[%s1605 + $0x78] sm:$0xff]
        %1622 = vmatprep.subr.mxu0 0.0
        %1623 = vmatpush1.msra.mxu0 %v1606
        %1624 = vmatprep.subr.mxu0 0.0
        %1625 = vmatpush1.msra.mxu0 %v1607
        %1626 = vmatprep.subr.mxu0 0.0
        %1627 = vmatpush1.msra.mxu0 %v1608
        %1628 = vmatprep.subr.mxu0 0.0
        %1629 = vmatpush1.msra.mxu0 %v1609
        %1630 = vmatprep.subr.mxu0 0.0
        %1631 = vmatpush1.msra.mxu0 %v1610
        %1632 = vmatprep.subr.mxu0 0.0
        %1633 = vmatpush1.msra.mxu0 %v1611
        %1634 = vmatprep.subr.mxu0 0.0
        %1635 = vmatpush1.msra.mxu0 %v1612
        %1636 = vmatprep.subr.mxu0 0.0
        %1637 = vmatpush1.msra.mxu0 %v1613
        %1638 = vmatprep.subr.mxu0 0.0
        %1639 = vmatpush1.msra.mxu0 %v1614
        %1640 = vmatprep.subr.mxu0 0.0
        %1641 = vmatpush1.msra.mxu0 %v1615
        %1642 = vmatprep.subr.mxu0 0.0
        %1643 = vmatpush1.msra.mxu0 %v1616
        %1644 = vmatprep.subr.mxu0 0.0
        %1645 = vmatpush1.msra.mxu0 %v1617
        %1646 = vmatprep.subr.mxu0 0.0
        %1647 = vmatpush1.msra.mxu0 %v1618
        %1648 = vmatprep.subr.mxu0 0.0
        %1649 = vmatpush1.msra.mxu0 %v1619
        %1650 = vmatprep.subr.mxu0 0.0
        %1651 = vmatpush1.msra.mxu0 %v1620
        %1652 = vmatprep.subr.mxu0 0.0
        %1653 = vmatpush1.msra.mxu0 %v1621
        %1654 = vmatprep.subr.mxu0 0.0
        %1655 = vmatpush1.msra.mxu0 0.0
        %1656 = vmatprep.subr.mxu0 0.0
        %1657 = vmatpush1.msra.mxu0 0.0
        %1658 = vmatprep.subr.mxu0 0.0
        %1659 = vmatpush1.msra.mxu0 0.0
        %1660 = vmatprep.subr.mxu0 0.0
        %1661 = vmatpush1.msra.mxu0 0.0
        %1662 = vmatprep.subr.mxu0 0.0
        %1663 = vmatpush1.msra.mxu0 0.0
        %1664 = vmatprep.subr.mxu0 0.0
        %1665 = vmatpush1.msra.mxu0 0.0
        %1666 = vmatprep.subr.mxu0 0.0
        %1667 = vmatpush1.msra.mxu0 0.0
        %1668 = vmatprep.subr.mxu0 0.0
        %1669 = vmatpush1.msra.mxu0 0.0
        %1670 = vmatprep.subr.mxu0 0.0
        %1671 = vmatpush1.msra.mxu0 0.0
        %1672 = vmatprep.subr.mxu0 0.0
        %1673 = vmatpush1.msra.mxu0 0.0
        %1674 = vmatprep.subr.mxu0 0.0
        %1675 = vmatpush1.msra.mxu0 0.0
        %1676 = vmatprep.subr.mxu0 0.0
        %1677 = vmatpush1.msra.mxu0 0.0
        %1678 = vmatprep.subr.mxu0 0.0
        %1679 = vmatpush1.msra.mxu0 0.0
        %1680 = vmatprep.subr.mxu0 0.0
        %1681 = vmatpush1.msra.mxu0 0.0
        %1682 = vmatprep.subr.mxu0 0.0
        %1683 = vmatpush1.msra.mxu0 0.0
        %1684 = vmatprep.subr.mxu0 0.0
        %1685 = vmatpush1.msra.mxu0 0.0
        %1686 = vmatprep.mubr.f32.mxu0 0.0
        %1687 = vmatmul.mubr.f32.gmra.mrb[0].mxu0 %v1603
        %v1688 = vpop.f32.mrb[0].mxu0
        %v1689 = vadd.f32 0.0, %v1688
        %v1690 = vpop.f32.mrb[0].mxu0
        %1691 = vmatprep.mubr.f32.mxu0 0.0
        %1692 = vmatmul.mubr.f32.gmra.mrb[0].mxu0 %v1604
        %v1693 = vpop.f32.mrb[0].mxu0
        %v1694 = vadd.f32 0.0, %v1693
        %v1695 = vpop.f32.mrb[0].mxu0
        %1696 = vdwg.mxu0
        %v1697 = vadd.f32 %v1595, %v1689
        %v1698 = vadd.f32 %v1600, %v1694
        %s1699 = scalar_lea.vmem %s4, 3
        %v1700 = vld [vmem:[%s1699] sm:$0x1]
        %v1702 = vlaneseq
        %v1703 = vshrl.u32 %v1702, 7
        %v1704 = vsub.s32 0, %v1703
        %v1705 = vrot.slane %v1700, %v1704
        %v1707 = vadd.f32 %v1697, %v1705
        %v1708 = vadd.f32 %v1698, %v1705
        %v1709 = vadd.f32 %v1707, %v1708
        %v1710 = vrot.slane %v1709, 4
        %v1711 = vadd.f32 %v1709, %v1710
        %v1712 = vrot.slane %v1711, 2
        %v1713 = vadd.f32 %v1711, %v1712
        %v1714 = vrot.slane %v1713, 1
        %v1715 = vadd.f32 %v1713, %v1714
        %v1716 = vmul.f32 %v1707, %v1707
        %v1717 = vmul.f32 %v1708, %v1708
        %v1718 = vadd.f32 %v1716, %v1717
        %v1719 = vrot.slane %v1718, 4
        %v1720 = vadd.f32 %v1718, %v1719
        %v1721 = vrot.slane %v1720, 2
        %v1722 = vadd.f32 %v1720, %v1721
        %v1723 = vrot.slane %v1722, 1
        %v1724 = vadd.f32 %v1722, %v1723
        %1725 = vmatprep.subr.mxu0 0.0
        %1726 = vmatpush1.msra.mxu0 %v899
        %1727 = vmatprep.subr.mxu0 0.0
        %1728 = vmatpush1.msra.mxu0 %v900
        %1729 = vmatprep.subr.mxu0 0.0
        %1730 = vmatpush1.msra.mxu0 %v901
        %1731 = vmatprep.subr.mxu0 0.0
        %1732 = vmatpush1.msra.mxu0 %v902
        %1733 = vmatprep.subr.mxu0 0.0
        %1734 = vmatpush1.msra.mxu0 %v903
        %1735 = vmatprep.subr.mxu0 0.0
        %1736 = vmatpush1.msra.mxu0 %v904
        %1737 = vmatprep.subr.mxu0 0.0
        %1738 = vmatpush1.msra.mxu0 %v905
        %1739 = vmatprep.subr.mxu0 0.0
        %1740 = vmatpush1.msra.mxu0 %v906
        %1741 = vmatprep.subr.mxu0 0.0
        %1742 = vmatpush1.msra.mxu0 %v907
        %1743 = vmatprep.subr.mxu0 0.0
        %1744 = vmatpush1.msra.mxu0 %v908
        %1745 = vmatprep.subr.mxu0 0.0
        %1746 = vmatpush1.msra.mxu0 %v909
        %1747 = vmatprep.subr.mxu0 0.0
        %1748 = vmatpush1.msra.mxu0 %v910
        %1749 = vmatprep.subr.mxu0 0.0
        %1750 = vmatpush1.msra.mxu0 %v911
        %1751 = vmatprep.subr.mxu0 0.0
        %1752 = vmatpush1.msra.mxu0 %v912
        %1753 = vmatprep.subr.mxu0 0.0
        %1754 = vmatpush1.msra.mxu0 %v913
        %1755 = vmatprep.subr.mxu0 0.0
        %1756 = vmatpush1.msra.mxu0 %v914
        %1757 = vmatprep.subr.mxu0 0.0
        %1758 = vmatpush1.msra.mxu0 0.0
        %1759 = vmatprep.subr.mxu0 0.0
        %1760 = vmatpush1.msra.mxu0 0.0
        %1761 = vmatprep.subr.mxu0 0.0
        %1762 = vmatpush1.msra.mxu0 0.0
        %1763 = vmatprep.subr.mxu0 0.0
        %1764 = vmatpush1.msra.mxu0 0.0
        %1765 = vmatprep.subr.mxu0 0.0
        %1766 = vmatpush1.msra.mxu0 0.0
        %1767 = vmatprep.subr.mxu0 0.0
        %1768 = vmatpush1.msra.mxu0 0.0
        %1769 = vmatprep.subr.mxu0 0.0
        %1770 = vmatpush1.msra.mxu0 0.0
        %1771 = vmatprep.subr.mxu0 0.0
        %1772 = vmatpush1.msra.mxu0 0.0
        %1773 = vmatprep.subr.mxu0 0.0
        %1774 = vmatpush1.msra.mxu0 0.0
        %1775 = vmatprep.subr.mxu0 0.0
        %1776 = vmatpush1.msra.mxu0 0.0
        %1777 = vmatprep.subr.mxu0 0.0
        %1778 = vmatpush1.msra.mxu0 0.0
        %1779 = vmatprep.subr.mxu0 0.0
        %1780 = vmatpush1.msra.mxu0 0.0
        %1781 = vmatprep.subr.mxu0 0.0
        %1782 = vmatpush1.msra.mxu0 0.0
        %1783 = vmatprep.subr.mxu0 0.0
        %1784 = vmatpush1.msra.mxu0 0.0
        %1785 = vmatprep.subr.mxu0 0.0
        %1786 = vmatpush1.msra.mxu0 0.0
        %1787 = vmatprep.subr.mxu0 0.0
        %1788 = vmatpush1.msra.mxu0 0.0
        %1789 = vmatprep.mubr.f32.mxu0 0.0
        %1790 = vmatmul.mubr.f32.gmra.mrb[0].mxu0 %v1715
        %v1791 = vpop.f32.mrb[0].mxu0
        %v1792 = vadd.f32 0.0, %v1791
        %v1793 = vpop.f32.mrb[0].mxu0
        %1794 = vdwg.mxu0
        %v1795 = vmul.f32 %v1792, 0.001953125
        %1796 = vmatprep.subr.mxu0 0.0
        %1797 = vmatpush1.msra.mxu0 %v899
        %1798 = vmatprep.subr.mxu0 0.0
        %1799 = vmatpush1.msra.mxu0 %v900
        %1800 = vmatprep.subr.mxu0 0.0
        %1801 = vmatpush1.msra.mxu0 %v901
        %1802 = vmatprep.subr.mxu0 0.0
        %1803 = vmatpush1.msra.mxu0 %v902
        %1804 = vmatprep.subr.mxu0 0.0
        %1805 = vmatpush1.msra.mxu0 %v903
        %1806 = vmatprep.subr.mxu0 0.0
        %1807 = vmatpush1.msra.mxu0 %v904
        %1808 = vmatprep.subr.mxu0 0.0
        %1809 = vmatpush1.msra.mxu0 %v905
        %1810 = vmatprep.subr.mxu0 0.0
        %1811 = vmatpush1.msra.mxu0 %v906
        %1812 = vmatprep.subr.mxu0 0.0
        %1813 = vmatpush1.msra.mxu0 %v907
        %1814 = vmatprep.subr.mxu0 0.0
        %1815 = vmatpush1.msra.mxu0 %v908
        %1816 = vmatprep.subr.mxu0 0.0
        %1817 = vmatpush1.msra.mxu0 %v909
        %1818 = vmatprep.subr.mxu0 0.0
        %1819 = vmatpush1.msra.mxu0 %v910
        %1820 = vmatprep.subr.mxu0 0.0
        %1821 = vmatpush1.msra.mxu0 %v911
        %1822 = vmatprep.subr.mxu0 0.0
        %1823 = vmatpush1.msra.mxu0 %v912
        %1824 = vmatprep.subr.mxu0 0.0
        %1825 = vmatpush1.msra.mxu0 %v913
        %1826 = vmatprep.subr.mxu0 0.0
        %1827 = vmatpush1.msra.mxu0 %v914
        %1828 = vmatprep.subr.mxu0 0.0
        %1829 = vmatpush1.msra.mxu0 0.0
        %1830 = vmatprep.subr.mxu0 0.0
        %1831 = vmatpush1.msra.mxu0 0.0
        %1832 = vmatprep.subr.mxu0 0.0
        %1833 = vmatpush1.msra.mxu0 0.0
        %1834 = vmatprep.subr.mxu0 0.0
        %1835 = vmatpush1.msra.mxu0 0.0
        %1836 = vmatprep.subr.mxu0 0.0
        %1837 = vmatpush1.msra.mxu0 0.0
        %1838 = vmatprep.subr.mxu0 0.0
        %1839 = vmatpush1.msra.mxu0 0.0
        %1840 = vmatprep.subr.mxu0 0.0
        %1841 = vmatpush1.msra.mxu0 0.0
        %1842 = vmatprep.subr.mxu0 0.0
        %1843 = vmatpush1.msra.mxu0 0.0
        %1844 = vmatprep.subr.mxu0 0.0
        %1845 = vmatpush1.msra.mxu0 0.0
        %1846 = vmatprep.subr.mxu0 0.0
        %1847 = vmatpush1.msra.mxu0 0.0
        %1848 = vmatprep.subr.mxu0 0.0
        %1849 = vmatpush1.msra.mxu0 0.0
        %1850 = vmatprep.subr.mxu0 0.0
        %1851 = vmatpush1.msra.mxu0 0.0
        %1852 = vmatprep.subr.mxu0 0.0
        %1853 = vmatpush1.msra.mxu0 0.0
        %1854 = vmatprep.subr.mxu0 0.0
        %1855 = vmatpush1.msra.mxu0 0.0
        %1856 = vmatprep.subr.mxu0 0.0
        %1857 = vmatpush1.msra.mxu0 0.0
        %1858 = vmatprep.subr.mxu0 0.0
        %1859 = vmatpush1.msra.mxu0 0.0
        %1860 = vmatprep.mubr.f32.mxu0 0.0
        %1861 = vmatmul.mubr.f32.gmra.mrb[0].mxu0 %v1724
        %v1862 = vpop.f32.mrb[0].mxu0
        %v1863 = vadd.f32 0.0, %v1862
        %v1864 = vpop.f32.mrb[0].mxu0
        %1865 = vdwg.mxu0
        %v1866 = vmul.f32 %v1863, 0.001953125
        %v1867 = vmul.f32 %v1795, %v1795
        %v1868 = vsub.f32 %v1866, %v1867
        %v1869 = vlaneseq
        %v1870 = vshrl.u32 %v1869, 7
        %v1871 = vsub.s32 0, %v1870
        %v1872 = vrot.slane %v1795, %v1871
        %v1873 = vsub.f32 %v1707, %v1872
        %v1874 = vsub.f32 %v1708, %v1872
        %v1875 = vadd.f32 %v1868, 1e-05
        %v1876 = vrsqrt.pop %v1875
        %v1877 = vlaneseq
        %v1878 = vshrl.u32 %v1877, 7
        %v1879 = vsub.s32 0, %v1878
        %v1880 = vrot.slane %v1876, %v1879
        %v1881 = vmul.f32 %v1873, %v1880
        %v1882 = vmul.f32 %v1874, %v1880
        %s1883 = scalar_lea.vmem %s4, 4
        %v1884 = vld [vmem:[%s1883] sm:$0x1]
        %v1886 = vlaneseq
        %v1887 = vshrl.u32 %v1886, 7
        %v1888 = vsub.s32 0, %v1887
        %v1889 = vrot.slane %v1884, %v1888
        %v1891 = vmul.f32 %v1881, %v1889
        %v1892 = vmul.f32 %v1882, %v1889
        %s1893 = scalar_lea.vmem %s4, 5
        %v1894 = vld [vmem:[%s1893] sm:$0x1]
        %v1896 = vlaneseq
        %v1897 = vshrl.u32 %v1896, 7
        %v1898 = vsub.s32 0, %v1897
        %v1899 = vrot.slane %v1894, %v1898
        %v1901 = vadd.f32 %v1891, %v1899
        %v1902 = vadd.f32 %v1892, %v1899
        %v1903 = vxor.u32 %v1901, 2147483648
        %v1904 = vxor.u32 %v1902, 2147483648
        %v1905 = vmul.f32 %v1903, 1.442695
        %v1906 = vpow.pop %v1905
        %v1907 = vmul.f32 %v1904, 1.442695
        %v1908 = vpow.pop %v1907
        %v1909 = vadd.f32 %v1906, 1.0
        %v1910 = vadd.f32 %v1908, 1.0
        %v1911 = vrcp.pop %v1909
        %v1912 = vmul.f32 1.0, %v1911
        %v1913 = vrcp.pop %v1910
        %v1914 = vmul.f32 1.0, %v1913
        %v1915 = vmul.f32 %v1901, %v1912
        %v1916 = vmul.f32 %v1902, %v1914
        %v1917 = vadd.f32 %v1915, %v891
        %v1918 = vadd.f32 %v1916, %v896
        %v1919 = vld [vmem:[%s8] sm:$0xff]
        %v1920 = vld [vmem:[%s8 + $0x8] sm:$0xff]
        %v1921 = vld [vmem:[%s8 + $0x10] sm:$0xff]
        %v1922 = vld [vmem:[%s8 + $0x18] sm:$0xff]
        %v1923 = vld [vmem:[%s8 + $0x20] sm:$0xff]
        %v1924 = vld [vmem:[%s8 + $0x28] sm:$0xff]
        %v1925 = vld [vmem:[%s8 + $0x30] sm:$0xff]
        %v1926 = vld [vmem:[%s8 + $0x38] sm:$0xff]
        %v1927 = vld [vmem:[%s8 + $0x40] sm:$0xff]
        %v1928 = vld [vmem:[%s8 + $0x48] sm:$0xff]
        %v1929 = vld [vmem:[%s8 + $0x50] sm:$0xff]
        %v1930 = vld [vmem:[%s8 + $0x58] sm:$0xff]
        %v1931 = vld [vmem:[%s8 + $0x60] sm:$0xff]
        %v1932 = vld [vmem:[%s8 + $0x68] sm:$0xff]
        %v1933 = vld [vmem:[%s8 + $0x70] sm:$0xff]
        %v1934 = vld [vmem:[%s8 + $0x78] sm:$0xff]
        %1935 = vst [vmem:[#allocation2 + $0x1] sm:$0xff] %v1917
        %1936 = vst [vmem:[#allocation2 + $0x9] sm:$0xff] %v1918
        %s1937 = scalar_lea.vmem [#allocation6], 128
        %v1938 = vld [vmem:[%s1937] sm:$0xff]
        %v1939 = vld [vmem:[%s1937 + $0x8] sm:$0xff]
        %v1940 = vld [vmem:[%s1937 + $0x10] sm:$0xff]
        %v1941 = vld [vmem:[%s1937 + $0x18] sm:$0xff]
        %v1942 = vld [vmem:[%s1937 + $0x20] sm:$0xff]
        %v1943 = vld [vmem:[%s1937 + $0x28] sm:$0xff]
        %v1944 = vld [vmem:[%s1937 + $0x30] sm:$0xff]
        %v1945 = vld [vmem:[%s1937 + $0x38] sm:$0xff]
        %v1946 = vld [vmem:[%s1937 + $0x40] sm:$0xff]
        %v1947 = vld [vmem:[%s1937 + $0x48] sm:$0xff]
        %v1948 = vld [vmem:[%s1937 + $0x50] sm:$0xff]
        %v1949 = vld [vmem:[%s1937 + $0x58] sm:$0xff]
        %v1950 = vld [vmem:[%s1937 + $0x60] sm:$0xff]
        %v1951 = vld [vmem:[%s1937 + $0x68] sm:$0xff]
        %v1952 = vld [vmem:[%s1937 + $0x70] sm:$0xff]
        %v1953 = vld [vmem:[%s1937 + $0x78] sm:$0xff]
        %v1954 = vld [vmem:[#allocation2] sm:$0xff]
        %v1955 = vld [vmem:[#allocation2 + $0x8] sm:$0xff]
        %v1956 = vld [vmem:[#allocation6] sm:$0xff]
        %v1957 = vld [vmem:[#allocation6 + $0x8] sm:$0xff]
        %v1958 = vld [vmem:[#allocation6 + $0x10] sm:$0xff]
        %v1959 = vld [vmem:[#allocation6 + $0x18] sm:$0xff]
        %v1960 = vld [vmem:[#allocation6 + $0x20] sm:$0xff]
        %v1961 = vld [vmem:[#allocation6 + $0x28] sm:$0xff]
        %v1962 = vld [vmem:[#allocation6 + $0x30] sm:$0xff]
        %v1963 = vld [vmem:[#allocation6 + $0x38] sm:$0xff]
        %v1964 = vld [vmem:[#allocation6 + $0x40] sm:$0xff]
        %v1965 = vld [vmem:[#allocation6 + $0x48] sm:$0xff]
        %v1966 = vld [vmem:[#allocation6 + $0x50] sm:$0xff]
        %v1967 = vld [vmem:[#allocation6 + $0x58] sm:$0xff]
        %v1968 = vld [vmem:[#allocation6 + $0x60] sm:$0xff]
        %v1969 = vld [vmem:[#allocation6 + $0x68] sm:$0xff]
        %v1970 = vld [vmem:[#allocation6 + $0x70] sm:$0xff]
        %v1971 = vld [vmem:[#allocation6 + $0x78] sm:$0xff]
        %1972 = vmatprep.subr.mxu0 0.0
        %1973 = vmatpush1.msra.mxu0 %v1956
        %1974 = vmatprep.subr.mxu0 0.0
        %1975 = vmatpush1.msra.mxu0 %v1957
        %1976 = vmatprep.subr.mxu0 0.0
        %1977 = vmatpush1.msra.mxu0 %v1958
        %1978 = vmatprep.subr.mxu0 0.0
        %1979 = vmatpush1.msra.mxu0 %v1959
        %1980 = vmatprep.subr.mxu0 0.0
        %1981 = vmatpush1.msra.mxu0 %v1960
        %1982 = vmatprep.subr.mxu0 0.0
        %1983 = vmatpush1.msra.mxu0 %v1961
        %1984 = vmatprep.subr.mxu0 0.0
        %1985 = vmatpush1.msra.mxu0 %v1962
        %1986 = vmatprep.subr.mxu0 0.0
        %1987 = vmatpush1.msra.mxu0 %v1963
        %1988 = vmatprep.subr.mxu0 0.0
        %1989 = vmatpush1.msra.mxu0 %v1964
        %1990 = vmatprep.subr.mxu0 0.0
        %1991 = vmatpush1.msra.mxu0 %v1965
        %1992 = vmatprep.subr.mxu0 0.0
        %1993 = vmatpush1.msra.mxu0 %v1966
        %1994 = vmatprep.subr.mxu0 0.0
        %1995 = vmatpush1.msra.mxu0 %v1967
        %1996 = vmatprep.subr.mxu0 0.0
        %1997 = vmatpush1.msra.mxu0 %v1968
        %1998 = vmatprep.subr.mxu0 0.0
        %1999 = vmatpush1.msra.mxu0 %v1969
        %2000 = vmatprep.subr.mxu0 0.0
        %2001 = vmatpush1.msra.mxu0 %v1970
        %2002 = vmatprep.subr.mxu0 0.0
        %2003 = vmatpush1.msra.mxu0 %v1971
        %2004 = vmatprep.subr.mxu0 0.0
        %2005 = vmatpush1.msra.mxu0 0.0
        %2006 = vmatprep.subr.mxu0 0.0
        %2007 = vmatpush1.msra.mxu0 0.0
        %2008 = vmatprep.subr.mxu0 0.0
        %2009 = vmatpush1.msra.mxu0 0.0
        %2010 = vmatprep.subr.mxu0 0.0
        %2011 = vmatpush1.msra.mxu0 0.0
        %2012 = vmatprep.subr.mxu0 0.0
        %2013 = vmatpush1.msra.mxu0 0.0
        %2014 = vmatprep.subr.mxu0 0.0
        %2015 = vmatpush1.msra.mxu0 0.0
        %2016 = vmatprep.subr.mxu0 0.0
        %2017 = vmatpush1.msra.mxu0 0.0
        %2018 = vmatprep.subr.mxu0 0.0
        %2019 = vmatpush1.msra.mxu0 0.0
        %2020 = vmatprep.subr.mxu0 0.0
        %2021 = vmatpush1.msra.mxu0 0.0
        %2022 = vmatprep.subr.mxu0 0.0
        %2023 = vmatpush1.msra.mxu0 0.0
        %2024 = vmatprep.subr.mxu0 0.0
        %2025 = vmatpush1.msra.mxu0 0.0
        %2026 = vmatprep.subr.mxu0 0.0
        %2027 = vmatpush1.msra.mxu0 0.0
        %2028 = vmatprep.subr.mxu0 0.0
        %2029 = vmatpush1.msra.mxu0 0.0
        %2030 = vmatprep.subr.mxu0 0.0
        %2031 = vmatpush1.msra.mxu0 0.0
        %2032 = vmatprep.subr.mxu0 0.0
        %2033 = vmatpush1.msra.mxu0 0.0
        %2034 = vmatprep.subr.mxu0 0.0
        %2035 = vmatpush1.msra.mxu0 0.0
        %2036 = vmatprep.mubr.f32.mxu0 0.0
        %2037 = vmatmul.mubr.f32.gmra.mrb[0].mxu0 %v1954
        %v2038 = vpop.f32.mrb[0].mxu0
        %v2039 = vadd.f32 0.0, %v2038
        %v2040 = vpop.f32.mrb[0].mxu0
        %2041 = vmatprep.mubr.f32.mxu0 0.0
        %2042 = vmatmul.mubr.f32.gmra.mrb[0].mxu0 %v1955
        %v2043 = vpop.f32.mrb[0].mxu0
        %v2044 = vadd.f32 0.0, %v2043
        %v2045 = vpop.f32.mrb[0].mxu0
        %2046 = vdwg.mxu0
        %2047 = vmatprep.subr.mxu0 0.0
        %2048 = vmatpush1.msra.mxu0 %v1938
        %2049 = vmatprep.subr.mxu0 0.0
        %2050 = vmatpush1.msra.mxu0 %v1939
        %2051 = vmatprep.subr.mxu0 0.0
        %2052 = vmatpush1.msra.mxu0 %v1940
        %2053 = vmatprep.subr.mxu0 0.0
        %2054 = vmatpush1.msra.mxu0 %v1941
        %2055 = vmatprep.subr.mxu0 0.0
        %2056 = vmatpush1.msra.mxu0 %v1942
        %2057 = vmatprep.subr.mxu0 0.0
        %2058 = vmatpush1.msra.mxu0 %v1943
        %2059 = vmatprep.subr.mxu0 0.0
        %2060 = vmatpush1.msra.mxu0 %v1944
        %2061 = vmatprep.subr.mxu0 0.0
        %2062 = vmatpush1.msra.mxu0 %v1945
        %2063 = vmatprep.subr.mxu0 0.0
        %2064 = vmatpush1.msra.mxu0 %v1946
        %2065 = vmatprep.subr.mxu0 0.0
        %2066 = vmatpush1.msra.mxu0 %v1947
        %2067 = vmatprep.subr.mxu0 0.0
        %2068 = vmatpush1.msra.mxu0 %v1948
        %2069 = vmatprep.subr.mxu0 0.0
        %2070 = vmatpush1.msra.mxu0 %v1949
        %2071 = vmatprep.subr.mxu0 0.0
        %2072 = vmatpush1.msra.mxu0 %v1950
        %2073 = vmatprep.subr.mxu0 0.0
        %2074 = vmatpush1.msra.mxu0 %v1951
        %2075 = vmatprep.subr.mxu0 0.0
        %2076 = vmatpush1.msra.mxu0 %v1952
        %2077 = vmatprep.subr.mxu0 0.0
        %2078 = vmatpush1.msra.mxu0 %v1953
        %2079 = vmatprep.subr.mxu0 0.0
        %2080 = vmatpush1.msra.mxu0 0.0
        %2081 = vmatprep.subr.mxu0 0.0
        %2082 = vmatpush1.msra.mxu0 0.0
        %2083 = vmatprep.subr.mxu0 0.0
        %2084 = vmatpush1.msra.mxu0 0.0
        %2085 = vmatprep.subr.mxu0 0.0
        %2086 = vmatpush1.msra.mxu0 0.0
        %2087 = vmatprep.subr.mxu0 0.0
        %2088 = vmatpush1.msra.mxu0 0.0
        %2089 = vmatprep.subr.mxu0 0.0
        %2090 = vmatpush1.msra.mxu0 0.0
        %2091 = vmatprep.subr.mxu0 0.0
        %2092 = vmatpush1.msra.mxu0 0.0
        %2093 = vmatprep.subr.mxu0 0.0
        %2094 = vmatpush1.msra.mxu0 0.0
        %2095 = vmatprep.subr.mxu0 0.0
        %2096 = vmatpush1.msra.mxu0 0.0
        %2097 = vmatprep.subr.mxu0 0.0
        %2098 = vmatpush1.msra.mxu0 0.0
        %2099 = vmatprep.subr.mxu0 0.0
        %2100 = vmatpush1.msra.mxu0 0.0
        %2101 = vmatprep.subr.mxu0 0.0
        %2102 = vmatpush1.msra.mxu0 0.0
        %2103 = vmatprep.subr.mxu0 0.0
        %2104 = vmatpush1.msra.mxu0 0.0
        %2105 = vmatprep.subr.mxu0 0.0
        %2106 = vmatpush1.msra.mxu0 0.0
        %2107 = vmatprep.subr.mxu0 0.0
        %2108 = vmatpush1.msra.mxu0 0.0
        %2109 = vmatprep.subr.mxu0 0.0
        %2110 = vmatpush1.msra.mxu0 0.0
        %2111 = vmatprep.mubr.f32.mxu0 0.0
        %2112 = vmatmul.mubr.f32.gmra.mrb[0].mxu0 %v1917
        %v2113 = vpop.f32.mrb[0].mxu0
        %v2114 = vadd.f32 %v2039, %v2113
        %v2115 = vpop.f32.mrb[0].mxu0
        %2116 = vmatprep.mubr.f32.mxu0 0.0
        %2117 = vmatmul.mubr.f32.gmra.mrb[0].mxu0 %v1918
        %v2118 = vpop.f32.mrb[0].mxu0
        %v2119 = vadd.f32 %v2044, %v2118
        %v2120 = vpop.f32.mrb[0].mxu0
        %2121 = vdwg.mxu0
        %v2122 = vld [vmem:[#allocation2 + $0x2] sm:$0xff]
        %v2123 = vld [vmem:[#allocation2 + $0xa] sm:$0xff]
        %s2124 = scalar_lea.vmem [#allocation6], 256
        %v2125 = vld [vmem:[%s2124] sm:$0xff]
        %v2126 = vld [vmem:[%s2124 + $0x8] sm:$0xff]
        %v2127 = vld [vmem:[%s2124 + $0x10] sm:$0xff]
        %v2128 = vld [vmem:[%s2124 + $0x18] sm:$0xff]
        %v2129 = vld [vmem:[%s2124 + $0x20] sm:$0xff]
        %v2130 = vld [vmem:[%s2124 + $0x28] sm:$0xff]
        %v2131 = vld [vmem:[%s2124 + $0x30] sm:$0xff]
        %v2132 = vld [vmem:[%s2124 + $0x38] sm:$0xff]
        %v2133 = vld [vmem:[%s2124 + $0x40] sm:$0xff]
        %v2134 = vld [vmem:[%s2124 + $0x48] sm:$0xff]
        %v2135 = vld [vmem:[%s2124 + $0x50] sm:$0xff]
        %v2136 = vld [vmem:[%s2124 + $0x58] sm:$0xff]
        %v2137 = vld [vmem:[%s2124 + $0x60] sm:$0xff]
        %v2138 = vld [vmem:[%s2124 + $0x68] sm:$0xff]
        %v2139 = vld [vmem:[%s2124 + $0x70] sm:$0xff]
        %v2140 = vld [vmem:[%s2124 + $0x78] sm:$0xff]
        %2141 = vmatprep.subr.mxu0 0.0
        %2142 = vmatpush1.msra.mxu0 %v2125
        %2143 = vmatprep.subr.mxu0 0.0
        %2144 = vmatpush1.msra.mxu0 %v2126
        %2145 = vmatprep.subr.mxu0 0.0
        %2146 = vmatpush1.msra.mxu0 %v2127
        %2147 = vmatprep.subr.mxu0 0.0
        %2148 = vmatpush1.msra.mxu0 %v2128
        %2149 = vmatprep.subr.mxu0 0.0
        %2150 = vmatpush1.msra.mxu0 %v2129
        %2151 = vmatprep.subr.mxu0 0.0
        %2152 = vmatpush1.msra.mxu0 %v2130
        %2153 = vmatprep.subr.mxu0 0.0
        %2154 = vmatpush1.msra.mxu0 %v2131
        %2155 = vmatprep.subr.mxu0 0.0
        %2156 = vmatpush1.msra.mxu0 %v2132
        %2157 = vmatprep.subr.mxu0 0.0
        %2158 = vmatpush1.msra.mxu0 %v2133
        %2159 = vmatprep.subr.mxu0 0.0
        %2160 = vmatpush1.msra.mxu0 %v2134
        %2161 = vmatprep.subr.mxu0 0.0
        %2162 = vmatpush1.msra.mxu0 %v2135
        %2163 = vmatprep.subr.mxu0 0.0
        %2164 = vmatpush1.msra.mxu0 %v2136
        %2165 = vmatprep.subr.mxu0 0.0
        %2166 = vmatpush1.msra.mxu0 %v2137
        %2167 = vmatprep.subr.mxu0 0.0
        %2168 = vmatpush1.msra.mxu0 %v2138
        %2169 = vmatprep.subr.mxu0 0.0
        %2170 = vmatpush1.msra.mxu0 %v2139
        %2171 = vmatprep.subr.mxu0 0.0
        %2172 = vmatpush1.msra.mxu0 %v2140
        %2173 = vmatprep.subr.mxu0 0.0
        %2174 = vmatpush1.msra.mxu0 0.0
        %2175 = vmatprep.subr.mxu0 0.0
        %2176 = vmatpush1.msra.mxu0 0.0
        %2177 = vmatprep.subr.mxu0 0.0
        %2178 = vmatpush1.msra.mxu0 0.0
        %2179 = vmatprep.subr.mxu0 0.0
        %2180 = vmatpush1.msra.mxu0 0.0
        %2181 = vmatprep.subr.mxu0 0.0
        %2182 = vmatpush1.msra.mxu0 0.0
        %2183 = vmatprep.subr.mxu0 0.0
        %2184 = vmatpush1.msra.mxu0 0.0
        %2185 = vmatprep.subr.mxu0 0.0
        %2186 = vmatpush1.msra.mxu0 0.0
        %2187 = vmatprep.subr.mxu0 0.0
        %2188 = vmatpush1.msra.mxu0 0.0
        %2189 = vmatprep.subr.mxu0 0.0
        %2190 = vmatpush1.msra.mxu0 0.0
        %2191 = vmatprep.subr.mxu0 0.0
        %2192 = vmatpush1.msra.mxu0 0.0
        %2193 = vmatprep.subr.mxu0 0.0
        %2194 = vmatpush1.msra.mxu0 0.0
        %2195 = vmatprep.subr.mxu0 0.0
        %2196 = vmatpush1.msra.mxu0 0.0
        %2197 = vmatprep.subr.mxu0 0.0
        %2198 = vmatpush1.msra.mxu0 0.0
        %2199 = vmatprep.subr.mxu0 0.0
        %2200 = vmatpush1.msra.mxu0 0.0
        %2201 = vmatprep.subr.mxu0 0.0
        %2202 = vmatpush1.msra.mxu0 0.0
        %2203 = vmatprep.subr.mxu0 0.0
        %2204 = vmatpush1.msra.mxu0 0.0
        %2205 = vmatprep.mubr.f32.mxu0 0.0
        %2206 = vmatmul.mubr.f32.gmra.mrb[0].mxu0 %v2122
        %v2207 = vpop.f32.mrb[0].mxu0
        %v2208 = vadd.f32 0.0, %v2207
        %v2209 = vpop.f32.mrb[0].mxu0
        %2210 = vmatprep.mubr.f32.mxu0 0.0
        %2211 = vmatmul.mubr.f32.gmra.mrb[0].mxu0 %v2123
        %v2212 = vpop.f32.mrb[0].mxu0
        %v2213 = vadd.f32 0.0, %v2212
        %v2214 = vpop.f32.mrb[0].mxu0
        %2215 = vdwg.mxu0
        %v2216 = vadd.f32 %v2114, %v2208
        %v2217 = vadd.f32 %v2119, %v2213
        %v2218 = vld [vmem:[#allocation8] sm:$0x1]
        %v2220 = vlaneseq
        %v2221 = vshrl.u32 %v2220, 7
        %v2222 = vsub.s32 0, %v2221
        %v2223 = vrot.slane %v2218, %v2222
        %v2225 = vadd.f32 %v2216, %v2223
        %v2226 = vadd.f32 %v2217, %v2223
        %v2227 = vadd.f32 %v2225, %v2226
        %v2228 = vrot.slane %v2227, 4
        %v2229 = vadd.f32 %v2227, %v2228
        %v2230 = vrot.slane %v2229, 2
        %v2231 = vadd.f32 %v2229, %v2230
        %v2232 = vrot.slane %v2231, 1
        %v2233 = vadd.f32 %v2231, %v2232
        %v2234 = vmul.f32 %v2225, %v2225
        %v2235 = vmul.f32 %v2226, %v2226
        %v2236 = vadd.f32 %v2234, %v2235
        %v2237 = vrot.slane %v2236, 4
        %v2238 = vadd.f32 %v2236, %v2237
        %v2239 = vrot.slane %v2238, 2
        %v2240 = vadd.f32 %v2238, %v2239
        %v2241 = vrot.slane %v2240, 1
        %v2242 = vadd.f32 %v2240, %v2241
        %2243 = vmatprep.subr.mxu0 0.0
        %2244 = vmatpush1.msra.mxu0 %v1919
        %2245 = vmatprep.subr.mxu0 0.0
        %2246 = vmatpush1.msra.mxu0 %v1920
        %2247 = vmatprep.subr.mxu0 0.0
        %2248 = vmatpush1.msra.mxu0 %v1921
        %2249 = vmatprep.subr.mxu0 0.0
        %2250 = vmatpush1.msra.mxu0 %v1922
        %2251 = vmatprep.subr.mxu0 0.0
        %2252 = vmatpush1.msra.mxu0 %v1923
        %2253 = vmatprep.subr.mxu0 0.0
        %2254 = vmatpush1.msra.mxu0 %v1924
        %2255 = vmatprep.subr.mxu0 0.0
        %2256 = vmatpush1.msra.mxu0 %v1925
        %2257 = vmatprep.subr.mxu0 0.0
        %2258 = vmatpush1.msra.mxu0 %v1926
        %2259 = vmatprep.subr.mxu0 0.0
        %2260 = vmatpush1.msra.mxu0 %v1927
        %2261 = vmatprep.subr.mxu0 0.0
        %2262 = vmatpush1.msra.mxu0 %v1928
        %2263 = vmatprep.subr.mxu0 0.0
        %2264 = vmatpush1.msra.mxu0 %v1929
        %2265 = vmatprep.subr.mxu0 0.0
        %2266 = vmatpush1.msra.mxu0 %v1930
        %2267 = vmatprep.subr.mxu0 0.0
        %2268 = vmatpush1.msra.mxu0 %v1931
        %2269 = vmatprep.subr.mxu0 0.0
        %2270 = vmatpush1.msra.mxu0 %v1932
        %2271 = vmatprep.subr.mxu0 0.0
        %2272 = vmatpush1.msra.mxu0 %v1933
        %2273 = vmatprep.subr.mxu0 0.0
        %2274 = vmatpush1.msra.mxu0 %v1934
        %2275 = vmatprep.subr.mxu0 0.0
        %2276 = vmatpush1.msra.mxu0 0.0
        %2277 = vmatprep.subr.mxu0 0.0
        %2278 = vmatpush1.msra.mxu0 0.0
        %2279 = vmatprep.subr.mxu0 0.0
        %2280 = vmatpush1.msra.mxu0 0.0
        %2281 = vmatprep.subr.mxu0 0.0
        %2282 = vmatpush1.msra.mxu0 0.0
        %2283 = vmatprep.subr.mxu0 0.0
        %2284 = vmatpush1.msra.mxu0 0.0
        %2285 = vmatprep.subr.mxu0 0.0
        %2286 = vmatpush1.msra.mxu0 0.0
        %2287 = vmatprep.subr.mxu0 0.0
        %2288 = vmatpush1.msra.mxu0 0.0
        %2289 = vmatprep.subr.mxu0 0.0
        %2290 = vmatpush1.msra.mxu0 0.0
        %2291 = vmatprep.subr.mxu0 0.0
        %2292 = vmatpush1.msra.mxu0 0.0
        %2293 = vmatprep.subr.mxu0 0.0
        %2294 = vmatpush1.msra.mxu0 0.0
        %2295 = vmatprep.subr.mxu0 0.0
        %2296 = vmatpush1.msra.mxu0 0.0
        %2297 = vmatprep.subr.mxu0 0.0
        %2298 = vmatpush1.msra.mxu0 0.0
        %2299 = vmatprep.subr.mxu0 0.0
        %2300 = vmatpush1.msra.mxu0 0.0
        %2301 = vmatprep.subr.mxu0 0.0
        %2302 = vmatpush1.msra.mxu0 0.0
        %2303 = vmatprep.subr.mxu0 0.0
        %2304 = vmatpush1.msra.mxu0 0.0
        %2305 = vmatprep.subr.mxu0 0.0
        %2306 = vmatpush1.msra.mxu0 0.0
        %2307 = vmatprep.mubr.f32.mxu0 0.0
        %2308 = vmatmul.mubr.f32.gmra.mrb[0].mxu0 %v2233
        %v2309 = vpop.f32.mrb[0].mxu0
        %v2310 = vadd.f32 0.0, %v2309
        %v2311 = vpop.f32.mrb[0].mxu0
        %2312 = vdwg.mxu0
        %v2313 = vmul.f32 %v2310, 0.001953125
        %2314 = vmatprep.subr.mxu0 0.0
        %2315 = vmatpush1.msra.mxu0 %v1919
        %2316 = vmatprep.subr.mxu0 0.0
        %2317 = vmatpush1.msra.mxu0 %v1920
        %2318 = vmatprep.subr.mxu0 0.0
        %2319 = vmatpush1.msra.mxu0 %v1921
        %2320 = vmatprep.subr.mxu0 0.0
        %2321 = vmatpush1.msra.mxu0 %v1922
        %2322 = vmatprep.subr.mxu0 0.0
        %2323 = vmatpush1.msra.mxu0 %v1923
        %2324 = vmatprep.subr.mxu0 0.0
        %2325 = vmatpush1.msra.mxu0 %v1924
        %2326 = vmatprep.subr.mxu0 0.0
        %2327 = vmatpush1.msra.mxu0 %v1925
        %2328 = vmatprep.subr.mxu0 0.0
        %2329 = vmatpush1.msra.mxu0 %v1926
        %2330 = vmatprep.subr.mxu0 0.0
        %2331 = vmatpush1.msra.mxu0 %v1927
        %2332 = vmatprep.subr.mxu0 0.0
        %2333 = vmatpush1.msra.mxu0 %v1928
        %2334 = vmatprep.subr.mxu0 0.0
        %2335 = vmatpush1.msra.mxu0 %v1929
        %2336 = vmatprep.subr.mxu0 0.0
        %2337 = vmatpush1.msra.mxu0 %v1930
        %2338 = vmatprep.subr.mxu0 0.0
        %2339 = vmatpush1.msra.mxu0 %v1931
        %2340 = vmatprep.subr.mxu0 0.0
        %2341 = vmatpush1.msra.mxu0 %v1932
        %2342 = vmatprep.subr.mxu0 0.0
        %2343 = vmatpush1.msra.mxu0 %v1933
        %2344 = vmatprep.subr.mxu0 0.0
        %2345 = vmatpush1.msra.mxu0 %v1934
        %2346 = vmatprep.subr.mxu0 0.0
        %2347 = vmatpush1.msra.mxu0 0.0
        %2348 = vmatprep.subr.mxu0 0.0
        %2349 = vmatpush1.msra.mxu0 0.0
        %2350 = vmatprep.subr.mxu0 0.0
        %2351 = vmatpush1.msra.mxu0 0.0
        %2352 = vmatprep.subr.mxu0 0.0
        %2353 = vmatpush1.msra.mxu0 0.0
        %2354 = vmatprep.subr.mxu0 0.0
        %2355 = vmatpush1.msra.mxu0 0.0
        %2356 = vmatprep.subr.mxu0 0.0
        %2357 = vmatpush1.msra.mxu0 0.0
        %2358 = vmatprep.subr.mxu0 0.0
        %2359 = vmatpush1.msra.mxu0 0.0
        %2360 = vmatprep.subr.mxu0 0.0
        %2361 = vmatpush1.msra.mxu0 0.0
        %2362 = vmatprep.subr.mxu0 0.0
        %2363 = vmatpush1.msra.mxu0 0.0
        %2364 = vmatprep.subr.mxu0 0.0
        %2365 = vmatpush1.msra.mxu0 0.0
        %2366 = vmatprep.subr.mxu0 0.0
        %2367 = vmatpush1.msra.mxu0 0.0
        %2368 = vmatprep.subr.mxu0 0.0
        %2369 = vmatpush1.msra.mxu0 0.0
        %2370 = vmatprep.subr.mxu0 0.0
        %2371 = vmatpush1.msra.mxu0 0.0
        %2372 = vmatprep.subr.mxu0 0.0
        %2373 = vmatpush1.msra.mxu0 0.0
        %2374 = vmatprep.subr.mxu0 0.0
        %2375 = vmatpush1.msra.mxu0 0.0
        %2376 = vmatprep.subr.mxu0 0.0
        %2377 = vmatpush1.msra.mxu0 0.0
        %2378 = vmatprep.mubr.f32.mxu0 0.0
        %2379 = vmatmul.mubr.f32.gmra.mrb[0].mxu0 %v2242
        %v2380 = vpop.f32.mrb[0].mxu0
        %v2381 = vadd.f32 0.0, %v2380
        %v2382 = vpop.f32.mrb[0].mxu0
        %2383 = vdwg.mxu0
        %v2384 = vmul.f32 %v2381, 0.001953125
        %v2385 = vmul.f32 %v2313, %v2313
        %v2386 = vsub.f32 %v2384, %v2385
        %v2387 = vlaneseq
        %v2388 = vshrl.u32 %v2387, 7
        %v2389 = vsub.s32 0, %v2388
        %v2390 = vrot.slane %v2313, %v2389
        %v2391 = vsub.f32 %v2225, %v2390
        %v2392 = vsub.f32 %v2226, %v2390
        %v2393 = vadd.f32 %v2386, 1e-05
        %v2394 = vrsqrt.pop %v2393
        %v2395 = vlaneseq
        %v2396 = vshrl.u32 %v2395, 7
        %v2397 = vsub.s32 0, %v2396
        %v2398 = vrot.slane %v2394, %v2397
        %v2399 = vmul.f32 %v2391, %v2398
        %v2400 = vmul.f32 %v2392, %v2398
        %s2401 = scalar_lea.vmem [#allocation8], 1
        %v2402 = vld [vmem:[%s2401] sm:$0x1]
        %v2404 = vlaneseq
        %v2405 = vshrl.u32 %v2404, 7
        %v2406 = vsub.s32 0, %v2405
        %v2407 = vrot.slane %v2402, %v2406
        %v2409 = vmul.f32 %v2399, %v2407
        %v2410 = vmul.f32 %v2400, %v2407
        %s2411 = scalar_lea.vmem [#allocation8], 2
        %v2412 = vld [vmem:[%s2411] sm:$0x1]
        %v2414 = vlaneseq
        %v2415 = vshrl.u32 %v2414, 7
        %v2416 = vsub.s32 0, %v2415
        %v2417 = vrot.slane %v2412, %v2416
        %v2419 = vadd.f32 %v2409, %v2417
        %v2420 = vadd.f32 %v2410, %v2417
        %v2421 = vxor.u32 %v2419, 2147483648
        %v2422 = vxor.u32 %v2420, 2147483648
        %v2423 = vmul.f32 %v2421, 1.442695
        %v2424 = vpow.pop %v2423
        %v2425 = vmul.f32 %v2422, 1.442695
        %v2426 = vpow.pop %v2425
        %v2427 = vadd.f32 %v2424, 1.0
        %v2428 = vadd.f32 %v2426, 1.0
        %v2429 = vrcp.pop %v2427
        %v2430 = vmul.f32 1.0, %v2429
        %v2431 = vrcp.pop %v2428
        %v2432 = vmul.f32 1.0, %v2431
        %v2433 = vmul.f32 %v2419, %v2430
        %v2434 = vmul.f32 %v2420, %v2432
        %2435 = vst [vmem:[#allocation2 + $0x1] sm:$0xff] %v2433
        %2436 = vst [vmem:[#allocation2 + $0x9] sm:$0xff] %v2434
        %s2437 = scalar_lea.vmem [#allocation6], 512
        %v2438 = vld [vmem:[%s2437] sm:$0xff]
        %v2439 = vld [vmem:[%s2437 + $0x8] sm:$0xff]
        %v2440 = vld [vmem:[%s2437 + $0x10] sm:$0xff]
        %v2441 = vld [vmem:[%s2437 + $0x18] sm:$0xff]
        %v2442 = vld [vmem:[%s2437 + $0x20] sm:$0xff]
        %v2443 = vld [vmem:[%s2437 + $0x28] sm:$0xff]
        %v2444 = vld [vmem:[%s2437 + $0x30] sm:$0xff]
        %v2445 = vld [vmem:[%s2437 + $0x38] sm:$0xff]
        %v2446 = vld [vmem:[%s2437 + $0x40] sm:$0xff]
        %v2447 = vld [vmem:[%s2437 + $0x48] sm:$0xff]
        %v2448 = vld [vmem:[%s2437 + $0x50] sm:$0xff]
        %v2449 = vld [vmem:[%s2437 + $0x58] sm:$0xff]
        %v2450 = vld [vmem:[%s2437 + $0x60] sm:$0xff]
        %v2451 = vld [vmem:[%s2437 + $0x68] sm:$0xff]
        %v2452 = vld [vmem:[%s2437 + $0x70] sm:$0xff]
        %v2453 = vld [vmem:[%s2437 + $0x78] sm:$0xff]
        %v2454 = vld [vmem:[#allocation2] sm:$0xff]
        %v2455 = vld [vmem:[#allocation2 + $0x8] sm:$0xff]
        %s2456 = scalar_lea.vmem [#allocation6], 384
        %v2457 = vld [vmem:[%s2456] sm:$0xff]
        %v2458 = vld [vmem:[%s2456 + $0x8] sm:$0xff]
        %v2459 = vld [vmem:[%s2456 + $0x10] sm:$0xff]
        %v2460 = vld [vmem:[%s2456 + $0x18] sm:$0xff]
        %v2461 = vld [vmem:[%s2456 + $0x20] sm:$0xff]
        %v2462 = vld [vmem:[%s2456 + $0x28] sm:$0xff]
        %v2463 = vld [vmem:[%s2456 + $0x30] sm:$0xff]
        %v2464 = vld [vmem:[%s2456 + $0x38] sm:$0xff]
        %v2465 = vld [vmem:[%s2456 + $0x40] sm:$0xff]
        %v2466 = vld [vmem:[%s2456 + $0x48] sm:$0xff]
        %v2467 = vld [vmem:[%s2456 + $0x50] sm:$0xff]
        %v2468 = vld [vmem:[%s2456 + $0x58] sm:$0xff]
        %v2469 = vld [vmem:[%s2456 + $0x60] sm:$0xff]
        %v2470 = vld [vmem:[%s2456 + $0x68] sm:$0xff]
        %v2471 = vld [vmem:[%s2456 + $0x70] sm:$0xff]
        %v2472 = vld [vmem:[%s2456 + $0x78] sm:$0xff]
        %2473 = vmatprep.subr.mxu0 0.0
        %2474 = vmatpush1.msra.mxu0 %v2457
        %2475 = vmatprep.subr.mxu0 0.0
        %2476 = vmatpush1.msra.mxu0 %v2458
        %2477 = vmatprep.subr.mxu0 0.0
        %2478 = vmatpush1.msra.mxu0 %v2459
        %2479 = vmatprep.subr.mxu0 0.0
        %2480 = vmatpush1.msra.mxu0 %v2460
        %2481 = vmatprep.subr.mxu0 0.0
        %2482 = vmatpush1.msra.mxu0 %v2461
        %2483 = vmatprep.subr.mxu0 0.0
        %2484 = vmatpush1.msra.mxu0 %v2462
        %2485 = vmatprep.subr.mxu0 0.0
        %2486 = vmatpush1.msra.mxu0 %v2463
        %2487 = vmatprep.subr.mxu0 0.0
        %2488 = vmatpush1.msra.mxu0 %v2464
        %2489 = vmatprep.subr.mxu0 0.0
        %2490 = vmatpush1.msra.mxu0 %v2465
        %2491 = vmatprep.subr.mxu0 0.0
        %2492 = vmatpush1.msra.mxu0 %v2466
        %2493 = vmatprep.subr.mxu0 0.0
        %2494 = vmatpush1.msra.mxu0 %v2467
        %2495 = vmatprep.subr.mxu0 0.0
        %2496 = vmatpush1.msra.mxu0 %v2468
        %2497 = vmatprep.subr.mxu0 0.0
        %2498 = vmatpush1.msra.mxu0 %v2469
        %2499 = vmatprep.subr.mxu0 0.0
        %2500 = vmatpush1.msra.mxu0 %v2470
        %2501 = vmatprep.subr.mxu0 0.0
        %2502 = vmatpush1.msra.mxu0 %v2471
        %2503 = vmatprep.subr.mxu0 0.0
        %2504 = vmatpush1.msra.mxu0 %v2472
        %2505 = vmatprep.subr.mxu0 0.0
        %2506 = vmatpush1.msra.mxu0 0.0
        %2507 = vmatprep.subr.mxu0 0.0
        %2508 = vmatpush1.msra.mxu0 0.0
        %2509 = vmatprep.subr.mxu0 0.0
        %2510 = vmatpush1.msra.mxu0 0.0
        %2511 = vmatprep.subr.mxu0 0.0
        %2512 = vmatpush1.msra.mxu0 0.0
        %2513 = vmatprep.subr.mxu0 0.0
        %2514 = vmatpush1.msra.mxu0 0.0
        %2515 = vmatprep.subr.mxu0 0.0
        %2516 = vmatpush1.msra.mxu0 0.0
        %2517 = vmatprep.subr.mxu0 0.0
        %2518 = vmatpush1.msra.mxu0 0.0
        %2519 = vmatprep.subr.mxu0 0.0
        %2520 = vmatpush1.msra.mxu0 0.0
        %2521 = vmatprep.subr.mxu0 0.0
        %2522 = vmatpush1.msra.mxu0 0.0
        %2523 = vmatprep.subr.mxu0 0.0
        %2524 = vmatpush1.msra.mxu0 0.0
        %2525 = vmatprep.subr.mxu0 0.0
        %2526 = vmatpush1.msra.mxu0 0.0
        %2527 = vmatprep.subr.mxu0 0.0
        %2528 = vmatpush1.msra.mxu0 0.0
        %2529 = vmatprep.subr.mxu0 0.0
        %2530 = vmatpush1.msra.mxu0 0.0
        %2531 = vmatprep.subr.mxu0 0.0
        %2532 = vmatpush1.msra.mxu0 0.0
        %2533 = vmatprep.subr.mxu0 0.0
        %2534 = vmatpush1.msra.mxu0 0.0
        %2535 = vmatprep.subr.mxu0 0.0
        %2536 = vmatpush1.msra.mxu0 0.0
        %2537 = vmatprep.mubr.f32.mxu0 0.0
        %2538 = vmatmul.mubr.f32.gmra.mrb[0].mxu0 %v2454
        %v2539 = vpop.f32.mrb[0].mxu0
        %v2540 = vadd.f32 0.0, %v2539
        %v2541 = vpop.f32.mrb[0].mxu0
        %2542 = vmatprep.mubr.f32.mxu0 0.0
        %2543 = vmatmul.mubr.f32.gmra.mrb[0].mxu0 %v2455
        %v2544 = vpop.f32.mrb[0].mxu0
        %v2545 = vadd.f32 0.0, %v2544
        %v2546 = vpop.f32.mrb[0].mxu0
        %2547 = vdwg.mxu0
        %2548 = vmatprep.subr.mxu0 0.0
        %2549 = vmatpush1.msra.mxu0 %v2438
        %2550 = vmatprep.subr.mxu0 0.0
        %2551 = vmatpush1.msra.mxu0 %v2439
        %2552 = vmatprep.subr.mxu0 0.0
        %2553 = vmatpush1.msra.mxu0 %v2440
        %2554 = vmatprep.subr.mxu0 0.0
        %2555 = vmatpush1.msra.mxu0 %v2441
        %2556 = vmatprep.subr.mxu0 0.0
        %2557 = vmatpush1.msra.mxu0 %v2442
        %2558 = vmatprep.subr.mxu0 0.0
        %2559 = vmatpush1.msra.mxu0 %v2443
        %2560 = vmatprep.subr.mxu0 0.0
        %2561 = vmatpush1.msra.mxu0 %v2444
        %2562 = vmatprep.subr.mxu0 0.0
        %2563 = vmatpush1.msra.mxu0 %v2445
        %2564 = vmatprep.subr.mxu0 0.0
        %2565 = vmatpush1.msra.mxu0 %v2446
        %2566 = vmatprep.subr.mxu0 0.0
        %2567 = vmatpush1.msra.mxu0 %v2447
        %2568 = vmatprep.subr.mxu0 0.0
        %2569 = vmatpush1.msra.mxu0 %v2448
        %2570 = vmatprep.subr.mxu0 0.0
        %2571 = vmatpush1.msra.mxu0 %v2449
        %2572 = vmatprep.subr.mxu0 0.0
        %2573 = vmatpush1.msra.mxu0 %v2450
        %2574 = vmatprep.subr.mxu0 0.0
        %2575 = vmatpush1.msra.mxu0 %v2451
        %2576 = vmatprep.subr.mxu0 0.0
        %2577 = vmatpush1.msra.mxu0 %v2452
        %2578 = vmatprep.subr.mxu0 0.0
        %2579 = vmatpush1.msra.mxu0 %v2453
        %2580 = vmatprep.subr.mxu0 0.0
        %2581 = vmatpush1.msra.mxu0 0.0
        %2582 = vmatprep.subr.mxu0 0.0
        %2583 = vmatpush1.msra.mxu0 0.0
        %2584 = vmatprep.subr.mxu0 0.0
        %2585 = vmatpush1.msra.mxu0 0.0
        %2586 = vmatprep.subr.mxu0 0.0
        %2587 = vmatpush1.msra.mxu0 0.0
        %2588 = vmatprep.subr.mxu0 0.0
        %2589 = vmatpush1.msra.mxu0 0.0
        %2590 = vmatprep.subr.mxu0 0.0
        %2591 = vmatpush1.msra.mxu0 0.0
        %2592 = vmatprep.subr.mxu0 0.0
        %2593 = vmatpush1.msra.mxu0 0.0
        %2594 = vmatprep.subr.mxu0 0.0
        %2595 = vmatpush1.msra.mxu0 0.0
        %2596 = vmatprep.subr.mxu0 0.0
        %2597 = vmatpush1.msra.mxu0 0.0
        %2598 = vmatprep.subr.mxu0 0.0
        %2599 = vmatpush1.msra.mxu0 0.0
        %2600 = vmatprep.subr.mxu0 0.0
        %2601 = vmatpush1.msra.mxu0 0.0
        %2602 = vmatprep.subr.mxu0 0.0
        %2603 = vmatpush1.msra.mxu0 0.0
        %2604 = vmatprep.subr.mxu0 0.0
        %2605 = vmatpush1.msra.mxu0 0.0
        %2606 = vmatprep.subr.mxu0 0.0
        %2607 = vmatpush1.msra.mxu0 0.0
        %2608 = vmatprep.subr.mxu0 0.0
        %2609 = vmatpush1.msra.mxu0 0.0
        %2610 = vmatprep.subr.mxu0 0.0
        %2611 = vmatpush1.msra.mxu0 0.0
        %2612 = vmatprep.mubr.f32.mxu0 0.0
        %2613 = vmatmul.mubr.f32.gmra.mrb[0].mxu0 %v2433
        %v2614 = vpop.f32.mrb[0].mxu0
        %v2615 = vadd.f32 %v2540, %v2614
        %v2616 = vpop.f32.mrb[0].mxu0
        %2617 = vmatprep.mubr.f32.mxu0 0.0
        %2618 = vmatmul.mubr.f32.gmra.mrb[0].mxu0 %v2434
        %v2619 = vpop.f32.mrb[0].mxu0
        %v2620 = vadd.f32 %v2545, %v2619
        %v2621 = vpop.f32.mrb[0].mxu0
        %2622 = vdwg.mxu0
        %v2623 = vld [vmem:[#allocation2 + $0x2] sm:$0xff]
        %v2624 = vld [vmem:[#allocation2 + $0xa] sm:$0xff]
        %s2625 = scalar_lea.vmem [#allocation6], 640
        %v2626 = vld [vmem:[%s2625] sm:$0xff]
        %v2627 = vld [vmem:[%s2625 + $0x8] sm:$0xff]
        %v2628 = vld [vmem:[%s2625 + $0x10] sm:$0xff]
        %v2629 = vld [vmem:[%s2625 + $0x18] sm:$0xff]
        %v2630 = vld [vmem:[%s2625 + $0x20] sm:$0xff]
        %v2631 = vld [vmem:[%s2625 + $0x28] sm:$0xff]
        %v2632 = vld [vmem:[%s2625 + $0x30] sm:$0xff]
        %v2633 = vld [vmem:[%s2625 + $0x38] sm:$0xff]
        %v2634 = vld [vmem:[%s2625 + $0x40] sm:$0xff]
        %v2635 = vld [vmem:[%s2625 + $0x48] sm:$0xff]
        %v2636 = vld [vmem:[%s2625 + $0x50] sm:$0xff]
        %v2637 = vld [vmem:[%s2625 + $0x58] sm:$0xff]
        %v2638 = vld [vmem:[%s2625 + $0x60] sm:$0xff]
        %v2639 = vld [vmem:[%s2625 + $0x68] sm:$0xff]
        %v2640 = vld [vmem:[%s2625 + $0x70] sm:$0xff]
        %v2641 = vld [vmem:[%s2625 + $0x78] sm:$0xff]
        %2642 = vmatprep.subr.mxu0 0.0
        %2643 = vmatpush1.msra.mxu0 %v2626
        %2644 = vmatprep.subr.mxu0 0.0
        %2645 = vmatpush1.msra.mxu0 %v2627
        %2646 = vmatprep.subr.mxu0 0.0
        %2647 = vmatpush1.msra.mxu0 %v2628
        %2648 = vmatprep.subr.mxu0 0.0
        %2649 = vmatpush1.msra.mxu0 %v2629
        %2650 = vmatprep.subr.mxu0 0.0
        %2651 = vmatpush1.msra.mxu0 %v2630
        %2652 = vmatprep.subr.mxu0 0.0
        %2653 = vmatpush1.msra.mxu0 %v2631
        %2654 = vmatprep.subr.mxu0 0.0
        %2655 = vmatpush1.msra.mxu0 %v2632
        %2656 = vmatprep.subr.mxu0 0.0
        %2657 = vmatpush1.msra.mxu0 %v2633
        %2658 = vmatprep.subr.mxu0 0.0
        %2659 = vmatpush1.msra.mxu0 %v2634
        %2660 = vmatprep.subr.mxu0 0.0
        %2661 = vmatpush1.msra.mxu0 %v2635
        %2662 = vmatprep.subr.mxu0 0.0
        %2663 = vmatpush1.msra.mxu0 %v2636
        %2664 = vmatprep.subr.mxu0 0.0
        %2665 = vmatpush1.msra.mxu0 %v2637
        %2666 = vmatprep.subr.mxu0 0.0
        %2667 = vmatpush1.msra.mxu0 %v2638
        %2668 = vmatprep.subr.mxu0 0.0
        %2669 = vmatpush1.msra.mxu0 %v2639
        %2670 = vmatprep.subr.mxu0 0.0
        %2671 = vmatpush1.msra.mxu0 %v2640
        %2672 = vmatprep.subr.mxu0 0.0
        %2673 = vmatpush1.msra.mxu0 %v2641
        %2674 = vmatprep.subr.mxu0 0.0
        %2675 = vmatpush1.msra.mxu0 0.0
        %2676 = vmatprep.subr.mxu0 0.0
        %2677 = vmatpush1.msra.mxu0 0.0
        %2678 = vmatprep.subr.mxu0 0.0
        %2679 = vmatpush1.msra.mxu0 0.0
        %2680 = vmatprep.subr.mxu0 0.0
        %2681 = vmatpush1.msra.mxu0 0.0
        %2682 = vmatprep.subr.mxu0 0.0
        %2683 = vmatpush1.msra.mxu0 0.0
        %2684 = vmatprep.subr.mxu0 0.0
        %2685 = vmatpush1.msra.mxu0 0.0
        %2686 = vmatprep.subr.mxu0 0.0
        %2687 = vmatpush1.msra.mxu0 0.0
        %2688 = vmatprep.subr.mxu0 0.0
        %2689 = vmatpush1.msra.mxu0 0.0
        %2690 = vmatprep.subr.mxu0 0.0
        %2691 = vmatpush1.msra.mxu0 0.0
        %2692 = vmatprep.subr.mxu0 0.0
        %2693 = vmatpush1.msra.mxu0 0.0
        %2694 = vmatprep.subr.mxu0 0.0
        %2695 = vmatpush1.msra.mxu0 0.0
        %2696 = vmatprep.subr.mxu0 0.0
        %2697 = vmatpush1.msra.mxu0 0.0
        %2698 = vmatprep.subr.mxu0 0.0
        %2699 = vmatpush1.msra.mxu0 0.0
        %2700 = vmatprep.subr.mxu0 0.0
        %2701 = vmatpush1.msra.mxu0 0.0
        %2702 = vmatprep.subr.mxu0 0.0
        %2703 = vmatpush1.msra.mxu0 0.0
        %2704 = vmatprep.subr.mxu0 0.0
        %2705 = vmatpush1.msra.mxu0 0.0
        %2706 = vmatprep.mubr.f32.mxu0 0.0
        %2707 = vmatmul.mubr.f32.gmra.mrb[0].mxu0 %v2623
        %v2708 = vpop.f32.mrb[0].mxu0
        %v2709 = vadd.f32 0.0, %v2708
        %v2710 = vpop.f32.mrb[0].mxu0
        %2711 = vmatprep.mubr.f32.mxu0 0.0
        %2712 = vmatmul.mubr.f32.gmra.mrb[0].mxu0 %v2624
        %v2713 = vpop.f32.mrb[0].mxu0
        %v2714 = vadd.f32 0.0, %v2713
        %v2715 = vpop.f32.mrb[0].mxu0
        %2716 = vdwg.mxu0
        %v2717 = vadd.f32 %v2615, %v2709
        %v2718 = vadd.f32 %v2620, %v2714
        %s2719 = scalar_lea.vmem [#allocation8], 3
        %v2720 = vld [vmem:[%s2719] sm:$0x1]
        %v2722 = vlaneseq
        %v2723 = vshrl.u32 %v2722, 7
        %v2724 = vsub.s32 0, %v2723
        %v2725 = vrot.slane %v2720, %v2724
        %v2727 = vadd.f32 %v2717, %v2725
        %v2728 = vadd.f32 %v2718, %v2725
        %v2729 = vadd.f32 %v2727, %v2728
        %v2730 = vrot.slane %v2729, 4
        %v2731 = vadd.f32 %v2729, %v2730
        %v2732 = vrot.slane %v2731, 2
        %v2733 = vadd.f32 %v2731, %v2732
        %v2734 = vrot.slane %v2733, 1
        %v2735 = vadd.f32 %v2733, %v2734
        %v2736 = vmul.f32 %v2727, %v2727
        %v2737 = vmul.f32 %v2728, %v2728
        %v2738 = vadd.f32 %v2736, %v2737
        %v2739 = vrot.slane %v2738, 4
        %v2740 = vadd.f32 %v2738, %v2739
        %v2741 = vrot.slane %v2740, 2
        %v2742 = vadd.f32 %v2740, %v2741
        %v2743 = vrot.slane %v2742, 1
        %v2744 = vadd.f32 %v2742, %v2743
        %2745 = vmatprep.subr.mxu0 0.0
        %2746 = vmatpush1.msra.mxu0 %v1919
        %2747 = vmatprep.subr.mxu0 0.0
        %2748 = vmatpush1.msra.mxu0 %v1920
        %2749 = vmatprep.subr.mxu0 0.0
        %2750 = vmatpush1.msra.mxu0 %v1921
        %2751 = vmatprep.subr.mxu0 0.0
        %2752 = vmatpush1.msra.mxu0 %v1922
        %2753 = vmatprep.subr.mxu0 0.0
        %2754 = vmatpush1.msra.mxu0 %v1923
        %2755 = vmatprep.subr.mxu0 0.0
        %2756 = vmatpush1.msra.mxu0 %v1924
        %2757 = vmatprep.subr.mxu0 0.0
        %2758 = vmatpush1.msra.mxu0 %v1925
        %2759 = vmatprep.subr.mxu0 0.0
        %2760 = vmatpush1.msra.mxu0 %v1926
        %2761 = vmatprep.subr.mxu0 0.0
        %2762 = vmatpush1.msra.mxu0 %v1927
        %2763 = vmatprep.subr.mxu0 0.0
        %2764 = vmatpush1.msra.mxu0 %v1928
        %2765 = vmatprep.subr.mxu0 0.0
        %2766 = vmatpush1.msra.mxu0 %v1929
        %2767 = vmatprep.subr.mxu0 0.0
        %2768 = vmatpush1.msra.mxu0 %v1930
        %2769 = vmatprep.subr.mxu0 0.0
        %2770 = vmatpush1.msra.mxu0 %v1931
        %2771 = vmatprep.subr.mxu0 0.0
        %2772 = vmatpush1.msra.mxu0 %v1932
        %2773 = vmatprep.subr.mxu0 0.0
        %2774 = vmatpush1.msra.mxu0 %v1933
        %2775 = vmatprep.subr.mxu0 0.0
        %2776 = vmatpush1.msra.mxu0 %v1934
        %2777 = vmatprep.subr.mxu0 0.0
        %2778 = vmatpush1.msra.mxu0 0.0
        %2779 = vmatprep.subr.mxu0 0.0
        %2780 = vmatpush1.msra.mxu0 0.0
        %2781 = vmatprep.subr.mxu0 0.0
        %2782 = vmatpush1.msra.mxu0 0.0
        %2783 = vmatprep.subr.mxu0 0.0
        %2784 = vmatpush1.msra.mxu0 0.0
        %2785 = vmatprep.subr.mxu0 0.0
        %2786 = vmatpush1.msra.mxu0 0.0
        %2787 = vmatprep.subr.mxu0 0.0
        %2788 = vmatpush1.msra.mxu0 0.0
        %2789 = vmatprep.subr.mxu0 0.0
        %2790 = vmatpush1.msra.mxu0 0.0
        %2791 = vmatprep.subr.mxu0 0.0
        %2792 = vmatpush1.msra.mxu0 0.0
        %2793 = vmatprep.subr.mxu0 0.0
        %2794 = vmatpush1.msra.mxu0 0.0
        %2795 = vmatprep.subr.mxu0 0.0
        %2796 = vmatpush1.msra.mxu0 0.0
        %2797 = vmatprep.subr.mxu0 0.0
        %2798 = vmatpush1.msra.mxu0 0.0
        %2799 = vmatprep.subr.mxu0 0.0
        %2800 = vmatpush1.msra.mxu0 0.0
        %2801 = vmatprep.subr.mxu0 0.0
        %2802 = vmatpush1.msra.mxu0 0.0
        %2803 = vmatprep.subr.mxu0 0.0
        %2804 = vmatpush1.msra.mxu0 0.0
        %2805 = vmatprep.subr.mxu0 0.0
        %2806 = vmatpush1.msra.mxu0 0.0
        %2807 = vmatprep.subr.mxu0 0.0
        %2808 = vmatpush1.msra.mxu0 0.0
        %2809 = vmatprep.mubr.f32.mxu0 0.0
        %2810 = vmatmul.mubr.f32.gmra.mrb[0].mxu0 %v2735
        %v2811 = vpop.f32.mrb[0].mxu0
        %v2812 = vadd.f32 0.0, %v2811
        %v2813 = vpop.f32.mrb[0].mxu0
        %2814 = vdwg.mxu0
        %v2815 = vmul.f32 %v2812, 0.001953125
        %2816 = vmatprep.subr.mxu0 0.0
        %2817 = vmatpush1.msra.mxu0 %v1919
        %2818 = vmatprep.subr.mxu0 0.0
        %2819 = vmatpush1.msra.mxu0 %v1920
        %2820 = vmatprep.subr.mxu0 0.0
        %2821 = vmatpush1.msra.mxu0 %v1921
        %2822 = vmatprep.subr.mxu0 0.0
        %2823 = vmatpush1.msra.mxu0 %v1922
        %2824 = vmatprep.subr.mxu0 0.0
        %2825 = vmatpush1.msra.mxu0 %v1923
        %2826 = vmatprep.subr.mxu0 0.0
        %2827 = vmatpush1.msra.mxu0 %v1924
        %2828 = vmatprep.subr.mxu0 0.0
        %2829 = vmatpush1.msra.mxu0 %v1925
        %2830 = vmatprep.subr.mxu0 0.0
        %2831 = vmatpush1.msra.mxu0 %v1926
        %2832 = vmatprep.subr.mxu0 0.0
        %2833 = vmatpush1.msra.mxu0 %v1927
        %2834 = vmatprep.subr.mxu0 0.0
        %2835 = vmatpush1.msra.mxu0 %v1928
        %2836 = vmatprep.subr.mxu0 0.0
        %2837 = vmatpush1.msra.mxu0 %v1929
        %2838 = vmatprep.subr.mxu0 0.0
        %2839 = vmatpush1.msra.mxu0 %v1930
        %2840 = vmatprep.subr.mxu0 0.0
        %2841 = vmatpush1.msra.mxu0 %v1931
        %2842 = vmatprep.subr.mxu0 0.0
        %2843 = vmatpush1.msra.mxu0 %v1932
        %2844 = vmatprep.subr.mxu0 0.0
        %2845 = vmatpush1.msra.mxu0 %v1933
        %2846 = vmatprep.subr.mxu0 0.0
        %2847 = vmatpush1.msra.mxu0 %v1934
        %2848 = vmatprep.subr.mxu0 0.0
        %2849 = vmatpush1.msra.mxu0 0.0
        %2850 = vmatprep.subr.mxu0 0.0
        %2851 = vmatpush1.msra.mxu0 0.0
        %2852 = vmatprep.subr.mxu0 0.0
        %2853 = vmatpush1.msra.mxu0 0.0
        %2854 = vmatprep.subr.mxu0 0.0
        %2855 = vmatpush1.msra.mxu0 0.0
        %2856 = vmatprep.subr.mxu0 0.0
        %2857 = vmatpush1.msra.mxu0 0.0
        %2858 = vmatprep.subr.mxu0 0.0
        %2859 = vmatpush1.msra.mxu0 0.0
        %2860 = vmatprep.subr.mxu0 0.0
        %2861 = vmatpush1.msra.mxu0 0.0
        %2862 = vmatprep.subr.mxu0 0.0
        %2863 = vmatpush1.msra.mxu0 0.0
        %2864 = vmatprep.subr.mxu0 0.0
        %2865 = vmatpush1.msra.mxu0 0.0
        %2866 = vmatprep.subr.mxu0 0.0
        %2867 = vmatpush1.msra.mxu0 0.0
        %2868 = vmatprep.subr.mxu0 0.0
        %2869 = vmatpush1.msra.mxu0 0.0
        %2870 = vmatprep.subr.mxu0 0.0
        %2871 = vmatpush1.msra.mxu0 0.0
        %2872 = vmatprep.subr.mxu0 0.0
        %2873 = vmatpush1.msra.mxu0 0.0
        %2874 = vmatprep.subr.mxu0 0.0
        %2875 = vmatpush1.msra.mxu0 0.0
        %2876 = vmatprep.subr.mxu0 0.0
        %2877 = vmatpush1.msra.mxu0 0.0
        %2878 = vmatprep.subr.mxu0 0.0
        %2879 = vmatpush1.msra.mxu0 0.0
        %2880 = vmatprep.mubr.f32.mxu0 0.0
        %2881 = vmatmul.mubr.f32.gmra.mrb[0].mxu0 %v2744
        %v2882 = vpop.f32.mrb[0].mxu0
        %v2883 = vadd.f32 0.0, %v2882
        %v2884 = vpop.f32.mrb[0].mxu0
        %2885 = vdwg.mxu0
        %v2886 = vmul.f32 %v2883, 0.001953125
        %v2887 = vmul.f32 %v2815, %v2815
        %v2888 = vsub.f32 %v2886, %v2887
        %v2889 = vlaneseq
        %v2890 = vshrl.u32 %v2889, 7
        %v2891 = vsub.s32 0, %v2890
        %v2892 = vrot.slane %v2815, %v2891
        %v2893 = vsub.f32 %v2727, %v2892
        %v2894 = vsub.f32 %v2728, %v2892
        %v2895 = vadd.f32 %v2888, 1e-05
        %v2896 = vrsqrt.pop %v2895
        %v2897 = vlaneseq
        %v2898 = vshrl.u32 %v2897, 7
        %v2899 = vsub.s32 0, %v2898
        %v2900 = vrot.slane %v2896, %v2899
        %v2901 = vmul.f32 %v2893, %v2900
        %v2902 = vmul.f32 %v2894, %v2900
        %s2903 = scalar_lea.vmem [#allocation8], 4
        %v2904 = vld [vmem:[%s2903] sm:$0x1]
        %v2906 = vlaneseq
        %v2907 = vshrl.u32 %v2906, 7
        %v2908 = vsub.s32 0, %v2907
        %v2909 = vrot.slane %v2904, %v2908
        %v2911 = vmul.f32 %v2901, %v2909
        %v2912 = vmul.f32 %v2902, %v2909
        %s2913 = scalar_lea.vmem [#allocation8], 5
        %v2914 = vld [vmem:[%s2913] sm:$0x1]
        %v2916 = vlaneseq
        %v2917 = vshrl.u32 %v2916, 7
        %v2918 = vsub.s32 0, %v2917
        %v2919 = vrot.slane %v2914, %v2918
        %v2921 = vadd.f32 %v2911, %v2919
        %v2922 = vadd.f32 %v2912, %v2919
        %v2923 = vxor.u32 %v2921, 2147483648
        %v2924 = vxor.u32 %v2922, 2147483648
        %v2925 = vmul.f32 %v2923, 1.442695
        %v2926 = vpow.pop %v2925
        %v2927 = vmul.f32 %v2924, 1.442695
        %v2928 = vpow.pop %v2927
        %v2929 = vadd.f32 %v2926, 1.0
        %v2930 = vadd.f32 %v2928, 1.0
        %v2931 = vrcp.pop %v2929
        %v2932 = vmul.f32 1.0, %v2931
        %v2933 = vrcp.pop %v2930
        %v2934 = vmul.f32 1.0, %v2933
        %v2935 = vmul.f32 %v2921, %v2932
        %v2936 = vmul.f32 %v2922, %v2934
        %v2937 = vadd.f32 %v2935, %v1917
        %v2938 = vadd.f32 %v2936, %v1918
        %v2939 = vld [vmem:[#allocation9] sm:$0xff]
        %vm2940 = vcmask 130048
        %v2942 = vsel %vm2940, %v2939, 0
        %2944 = vmatprep.subr.mxu0 0.0
        %2945 = vmatpush1.msra.mxu0 %v2937
        %2946 = vmatprep.subr.mxu0 0.0
        %2947 = vmatpush1.msra.mxu0 %v2938
        %2948 = vmatprep.subr.mxu0 0.0
        %2949 = vmatpush1.msra.mxu0 0.0
        %2950 = vmatprep.subr.mxu0 0.0
        %2951 = vmatpush1.msra.mxu0 0.0
        %2952 = vmatprep.subr.mxu0 0.0
        %2953 = vmatpush1.msra.mxu0 0.0
        %2954 = vmatprep.subr.mxu0 0.0
        %2955 = vmatpush1.msra.mxu0 0.0
        %2956 = vmatprep.subr.mxu0 0.0
        %2957 = vmatpush1.msra.mxu0 0.0
        %2958 = vmatprep.subr.mxu0 0.0
        %2959 = vmatpush1.msra.mxu0 0.0
        %2960 = vmatprep.subr.mxu0 0.0
        %2961 = vmatpush1.msra.mxu0 0.0
        %2962 = vmatprep.subr.mxu0 0.0
        %2963 = vmatpush1.msra.mxu0 0.0
        %2964 = vmatprep.subr.mxu0 0.0
        %2965 = vmatpush1.msra.mxu0 0.0
        %2966 = vmatprep.subr.mxu0 0.0
        %2967 = vmatpush1.msra.mxu0 0.0
        %2968 = vmatprep.subr.mxu0 0.0
        %2969 = vmatpush1.msra.mxu0 0.0
        %2970 = vmatprep.subr.mxu0 0.0
        %2971 = vmatpush1.msra.mxu0 0.0
        %2972 = vmatprep.subr.mxu0 0.0
        %2973 = vmatpush1.msra.mxu0 0.0
        %2974 = vmatprep.subr.mxu0 0.0
        %2975 = vmatpush1.msra.mxu0 0.0
        %2976 = vmatprep.subr.mxu0 0.0
        %2977 = vmatpush1.msra.mxu0 0.0
        %2978 = vmatprep.subr.mxu0 0.0
        %2979 = vmatpush1.msra.mxu0 0.0
        %2980 = vmatprep.subr.mxu0 0.0
        %2981 = vmatpush1.msra.mxu0 0.0
        %2982 = vmatprep.subr.mxu0 0.0
        %2983 = vmatpush1.msra.mxu0 0.0
        %2984 = vmatprep.subr.mxu0 0.0
        %2985 = vmatpush1.msra.mxu0 0.0
        %2986 = vmatprep.subr.mxu0 0.0
        %2987 = vmatpush1.msra.mxu0 0.0
        %2988 = vmatprep.subr.mxu0 0.0
        %2989 = vmatpush1.msra.mxu0 0.0
        %2990 = vmatprep.subr.mxu0 0.0
        %2991 = vmatpush1.msra.mxu0 0.0
        %2992 = vmatprep.subr.mxu0 0.0
        %2993 = vmatpush1.msra.mxu0 0.0
        %2994 = vmatprep.subr.mxu0 0.0
        %2995 = vmatpush1.msra.mxu0 0.0
        %2996 = vmatprep.subr.mxu0 0.0
        %2997 = vmatpush1.msra.mxu0 0.0
        %2998 = vmatprep.subr.mxu0 0.0
        %2999 = vmatpush1.msra.mxu0 0.0
        %3000 = vmatprep.subr.mxu0 0.0
        %3001 = vmatpush1.msra.mxu0 0.0
        %3002 = vmatprep.subr.mxu0 0.0
        %3003 = vmatpush1.msra.mxu0 0.0
        %3004 = vmatprep.subr.mxu0 0.0
        %3005 = vmatpush1.msra.mxu0 0.0
        %3006 = vmatprep.subr.mxu0 0.0
        %3007 = vmatpush1.msra.mxu0 0.0
        %3008 = vmatprep.mubr.f32.mxu0 0.0
        %3009 = vmatmul.mubr.f32.gmra.mrb[0].mxu0 %v2942
        %v3010 = vpop.f32.mrb[0].mxu0
        %v3011 = vadd.f32 0.0, %v3010
        %v3012 = vpop.f32.mrb[0].mxu0
        %3013 = vdwg.mxu0
        %v3014 = vld [vmem:[%s10] sm:$0xff]
        %v3015 = vld [vmem:[%s10 + $0x8] sm:$0xff]
        %v3016 = vld [vmem:[%s10 + $0x10] sm:$0xff]
        %v3017 = vld [vmem:[%s10 + $0x18] sm:$0xff]
        %v3018 = vld [vmem:[%s10 + $0x20] sm:$0xff]
        %v3019 = vld [vmem:[%s10 + $0x28] sm:$0xff]
        %v3020 = vld [vmem:[%s10 + $0x30] sm:$0xff]
        %v3021 = vld [vmem:[%s10 + $0x38] sm:$0xff]
        %v3022 = vld [vmem:[%s10 + $0x40] sm:$0xff]
        %v3023 = vld [vmem:[%s10 + $0x48] sm:$0xff]
        %v3024 = vld [vmem:[%s10 + $0x50] sm:$0xff]
        %v3025 = vld [vmem:[%s10 + $0x58] sm:$0xff]
        %v3026 = vld [vmem:[%s10 + $0x60] sm:$0xff]
        %v3027 = vld [vmem:[%s10 + $0x68] sm:$0xff]
        %v3028 = vld [vmem:[%s10 + $0x70] sm:$0xff]
        %v3029 = vld [vmem:[%s10 + $0x78] sm:$0xff]
        %v3030 = vld [vmem:[%s11] sm:$0x1]
        %v3032 = vlaneseq
        %v3033 = vshrl.u32 %v3032, 7
        %v3034 = vsub.s32 0, %v3033
        %v3035 = vrot.slane %v3030, %v3034
        %3037 = vmatprep.subr.mxu0 0.0
        %3038 = vmatpush1.msra.mxu0 %v3014
        %3039 = vmatprep.subr.mxu0 0.0
        %3040 = vmatpush1.msra.mxu0 %v3015
        %3041 = vmatprep.subr.mxu0 0.0
        %3042 = vmatpush1.msra.mxu0 %v3016
        %3043 = vmatprep.subr.mxu0 0.0
        %3044 = vmatpush1.msra.mxu0 %v3017
        %3045 = vmatprep.subr.mxu0 0.0
        %3046 = vmatpush1.msra.mxu0 %v3018
        %3047 = vmatprep.subr.mxu0 0.0
        %3048 = vmatpush1.msra.mxu0 %v3019
        %3049 = vmatprep.subr.mxu0 0.0
        %3050 = vmatpush1.msra.mxu0 %v3020
        %3051 = vmatprep.subr.mxu0 0.0
        %3052 = vmatpush1.msra.mxu0 %v3021
        %3053 = vmatprep.subr.mxu0 0.0
        %3054 = vmatpush1.msra.mxu0 %v3022
        %3055 = vmatprep.subr.mxu0 0.0
        %3056 = vmatpush1.msra.mxu0 %v3023
        %3057 = vmatprep.subr.mxu0 0.0
        %3058 = vmatpush1.msra.mxu0 %v3024
        %3059 = vmatprep.subr.mxu0 0.0
        %3060 = vmatpush1.msra.mxu0 %v3025
        %3061 = vmatprep.subr.mxu0 0.0
        %3062 = vmatpush1.msra.mxu0 %v3026
        %3063 = vmatprep.subr.mxu0 0.0
        %3064 = vmatpush1.msra.mxu0 %v3027
        %3065 = vmatprep.subr.mxu0 0.0
        %3066 = vmatpush1.msra.mxu0 %v3028
        %3067 = vmatprep.subr.mxu0 0.0
        %3068 = vmatpush1.msra.mxu0 %v3029
        %3069 = vmatprep.subr.mxu0 0.0
        %3070 = vmatpush1.msra.mxu0 0.0
        %3071 = vmatprep.subr.mxu0 0.0
        %3072 = vmatpush1.msra.mxu0 0.0
        %3073 = vmatprep.subr.mxu0 0.0
        %3074 = vmatpush1.msra.mxu0 0.0
        %3075 = vmatprep.subr.mxu0 0.0
        %3076 = vmatpush1.msra.mxu0 0.0
        %3077 = vmatprep.subr.mxu0 0.0
        %3078 = vmatpush1.msra.mxu0 0.0
        %3079 = vmatprep.subr.mxu0 0.0
        %3080 = vmatpush1.msra.mxu0 0.0
        %3081 = vmatprep.subr.mxu0 0.0
        %3082 = vmatpush1.msra.mxu0 0.0
        %3083 = vmatprep.subr.mxu0 0.0
        %3084 = vmatpush1.msra.mxu0 0.0
        %3085 = vmatprep.subr.mxu0 0.0
        %3086 = vmatpush1.msra.mxu0 0.0
        %3087 = vmatprep.subr.mxu0 0.0
        %3088 = vmatpush1.msra.mxu0 0.0
        %3089 = vmatprep.subr.mxu0 0.0
        %3090 = vmatpush1.msra.mxu0 0.0
        %3091 = vmatprep.subr.mxu0 0.0
        %3092 = vmatpush1.msra.mxu0 0.0
        %3093 = vmatprep.subr.mxu0 0.0
        %3094 = vmatpush1.msra.mxu0 0.0
        %3095 = vmatprep.subr.mxu0 0.0
        %3096 = vmatpush1.msra.mxu0 0.0
        %3097 = vmatprep.subr.mxu0 0.0
        %3098 = vmatpush1.msra.mxu0 0.0
        %3099 = vmatprep.subr.mxu0 0.0
        %3100 = vmatpush1.msra.mxu0 0.0
        %3101 = vmatprep.mubr.f32.mxu0 0.0
        %3102 = vmatmul.mubr.f32.gmra.mrb[0].mxu0 %v3011
        %v3103 = vpop.f32.mrb[0].mxu0
        %v3104 = vadd.f32 %v3035, %v3103
        %v3105 = vpop.f32.mrb[0].mxu0
        %3106 = vdwg.mxu0
        %v3107 = vld [vmem:[%s14] sm:$0xff]
        %v3108 = vld [vmem:[%s14 + $0x8] sm:$0xff]
        %v3109 = vld [vmem:[%s14 + $0x10] sm:$0xff]
        %v3110 = vld [vmem:[%s14 + $0x18] sm:$0xff]
        %v3111 = vld [vmem:[%s14 + $0x20] sm:$0xff]
        %v3112 = vld [vmem:[%s14 + $0x28] sm:$0xff]
        %v3113 = vld [vmem:[%s14 + $0x30] sm:$0xff]
        %v3114 = vld [vmem:[%s14 + $0x38] sm:$0xff]
        %vm3115 = vcmask 523264
        %3116 = vst.msk [vmem:[#allocation3 + $0x1] sm:$0xff] %vm3115, %v3104
        %s3117 = scalar_lea.vmem [#allocation11], 64
        %v3118 = vld [vmem:[%s3117] sm:$0xff]
        %v3119 = vld [vmem:[%s3117 + $0x8] sm:$0xff]
        %v3120 = vld [vmem:[%s3117 + $0x10] sm:$0xff]
        %v3121 = vld [vmem:[%s3117 + $0x18] sm:$0xff]
        %v3122 = vld [vmem:[%s3117 + $0x20] sm:$0xff]
        %v3123 = vld [vmem:[%s3117 + $0x28] sm:$0xff]
        %v3124 = vld [vmem:[%s3117 + $0x30] sm:$0xff]
        %v3125 = vld [vmem:[%s3117 + $0x38] sm:$0xff]
        %v3126 = vld [vmem:[#allocation3] sm:$0xff]
        %v3127 = vld [vmem:[#allocation11] sm:$0xff]
        %v3128 = vld [vmem:[#allocation11 + $0x8] sm:$0xff]
        %v3129 = vld [vmem:[#allocation11 + $0x10] sm:$0xff]
        %v3130 = vld [vmem:[#allocation11 + $0x18] sm:$0xff]
        %v3131 = vld [vmem:[#allocation11 + $0x20] sm:$0xff]
        %v3132 = vld [vmem:[#allocation11 + $0x28] sm:$0xff]
        %v3133 = vld [vmem:[#allocation11 + $0x30] sm:$0xff]
        %v3134 = vld [vmem:[#allocation11 + $0x38] sm:$0xff]
        %v3136 = vsel %vm3115, %v3126, 0
        %3138 = vmatprep.subr.mxu0 0.0
        %3139 = vmatpush1.msra.mxu0 %v3127
        %3140 = vmatprep.subr.mxu0 0.0
        %3141 = vmatpush1.msra.mxu0 %v3128
        %3142 = vmatprep.subr.mxu0 0.0
        %3143 = vmatpush1.msra.mxu0 %v3129
        %3144 = vmatprep.subr.mxu0 0.0
        %3145 = vmatpush1.msra.mxu0 %v3130
        %3146 = vmatprep.subr.mxu0 0.0
        %3147 = vmatpush1.msra.mxu0 %v3131
        %3148 = vmatprep.subr.mxu0 0.0
        %3149 = vmatpush1.msra.mxu0 %v3132
        %3150 = vmatprep.subr.mxu0 0.0
        %3151 = vmatpush1.msra.mxu0 %v3133
        %3152 = vmatprep.subr.mxu0 0.0
        %3153 = vmatpush1.msra.mxu0 %v3134
        %3154 = vmatprep.subr.mxu0 0.0
        %3155 = vmatpush1.msra.mxu0 0.0
        %3156 = vmatprep.subr.mxu0 0.0
        %3157 = vmatpush1.msra.mxu0 0.0
        %3158 = vmatprep.subr.mxu0 0.0
        %3159 = vmatpush1.msra.mxu0 0.0
        %3160 = vmatprep.subr.mxu0 0.0
        %3161 = vmatpush1.msra.mxu0 0.0
        %3162 = vmatprep.subr.mxu0 0.0
        %3163 = vmatpush1.msra.mxu0 0.0
        %3164 = vmatprep.subr.mxu0 0.0
        %3165 = vmatpush1.msra.mxu0 0.0
        %3166 = vmatprep.subr.mxu0 0.0
        %3167 = vmatpush1.msra.mxu0 0.0
        %3168 = vmatprep.subr.mxu0 0.0
        %3169 = vmatpush1.msra.mxu0 0.0
        %3170 = vmatprep.subr.mxu0 0.0
        %3171 = vmatpush1.msra.mxu0 0.0
        %3172 = vmatprep.subr.mxu0 0.0
        %3173 = vmatpush1.msra.mxu0 0.0
        %3174 = vmatprep.subr.mxu0 0.0
        %3175 = vmatpush1.msra.mxu0 0.0
        %3176 = vmatprep.subr.mxu0 0.0
        %3177 = vmatpush1.msra.mxu0 0.0
        %3178 = vmatprep.subr.mxu0 0.0
        %3179 = vmatpush1.msra.mxu0 0.0
        %3180 = vmatprep.subr.mxu0 0.0
        %3181 = vmatpush1.msra.mxu0 0.0
        %3182 = vmatprep.subr.mxu0 0.0
        %3183 = vmatpush1.msra.mxu0 0.0
        %3184 = vmatprep.subr.mxu0 0.0
        %3185 = vmatpush1.msra.mxu0 0.0
        %3186 = vmatprep.subr.mxu0 0.0
        %3187 = vmatpush1.msra.mxu0 0.0
        %3188 = vmatprep.subr.mxu0 0.0
        %3189 = vmatpush1.msra.mxu0 0.0
        %3190 = vmatprep.subr.mxu0 0.0
        %3191 = vmatpush1.msra.mxu0 0.0
        %3192 = vmatprep.subr.mxu0 0.0
        %3193 = vmatpush1.msra.mxu0 0.0
        %3194 = vmatprep.subr.mxu0 0.0
        %3195 = vmatpush1.msra.mxu0 0.0
        %3196 = vmatprep.subr.mxu0 0.0
        %3197 = vmatpush1.msra.mxu0 0.0
        %3198 = vmatprep.subr.mxu0 0.0
        %3199 = vmatpush1.msra.mxu0 0.0
        %3200 = vmatprep.subr.mxu0 0.0
        %3201 = vmatpush1.msra.mxu0 0.0
        %3202 = vmatprep.mubr.f32.mxu0 0.0
        %3203 = vmatmul.mubr.f32.gmra.mrb[0].mxu0 %v3136
        %v3204 = vpop.f32.mrb[0].mxu0
        %v3205 = vadd.f32 0.0, %v3204
        %v3206 = vpop.f32.mrb[0].mxu0
        %3207 = vdwg.mxu0
        %v3209 = vsel %vm3115, %v3104, 0
        %3211 = vmatprep.subr.mxu0 0.0
        %3212 = vmatpush1.msra.mxu0 %v3118
        %3213 = vmatprep.subr.mxu0 0.0
        %3214 = vmatpush1.msra.mxu0 %v3119
        %3215 = vmatprep.subr.mxu0 0.0
        %3216 = vmatpush1.msra.mxu0 %v3120
        %3217 = vmatprep.subr.mxu0 0.0
        %3218 = vmatpush1.msra.mxu0 %v3121
        %3219 = vmatprep.subr.mxu0 0.0
        %3220 = vmatpush1.msra.mxu0 %v3122
        %3221 = vmatprep.subr.mxu0 0.0
        %3222 = vmatpush1.msra.mxu0 %v3123
        %3223 = vmatprep.subr.mxu0 0.0
        %3224 = vmatpush1.msra.mxu0 %v3124
        %3225 = vmatprep.subr.mxu0 0.0
        %3226 = vmatpush1.msra.mxu0 %v3125
        %3227 = vmatprep.subr.mxu0 0.0
        %3228 = vmatpush1.msra.mxu0 0.0
        %3229 = vmatprep.subr.mxu0 0.0
        %3230 = vmatpush1.msra.mxu0 0.0
        %3231 = vmatprep.subr.mxu0 0.0
        %3232 = vmatpush1.msra.mxu0 0.0
        %3233 = vmatprep.subr.mxu0 0.0
        %3234 = vmatpush1.msra.mxu0 0.0
        %3235 = vmatprep.subr.mxu0 0.0
        %3236 = vmatpush1.msra.mxu0 0.0
        %3237 = vmatprep.subr.mxu0 0.0
        %3238 = vmatpush1.msra.mxu0 0.0
        %3239 = vmatprep.subr.mxu0 0.0
        %3240 = vmatpush1.msra.mxu0 0.0
        %3241 = vmatprep.subr.mxu0 0.0
        %3242 = vmatpush1.msra.mxu0 0.0
        %3243 = vmatprep.subr.mxu0 0.0
        %3244 = vmatpush1.msra.mxu0 0.0
        %3245 = vmatprep.subr.mxu0 0.0
        %3246 = vmatpush1.msra.mxu0 0.0
        %3247 = vmatprep.subr.mxu0 0.0
        %3248 = vmatpush1.msra.mxu0 0.0
        %3249 = vmatprep.subr.mxu0 0.0
        %3250 = vmatpush1.msra.mxu0 0.0
        %3251 = vmatprep.subr.mxu0 0.0
        %3252 = vmatpush1.msra.mxu0 0.0
        %3253 = vmatprep.subr.mxu0 0.0
        %3254 = vmatpush1.msra.mxu0 0.0
        %3255 = vmatprep.subr.mxu0 0.0
        %3256 = vmatpush1.msra.mxu0 0.0
        %3257 = vmatprep.subr.mxu0 0.0
        %3258 = vmatpush1.msra.mxu0 0.0
        %3259 = vmatprep.subr.mxu0 0.0
        %3260 = vmatpush1.msra.mxu0 0.0
        %3261 = vmatprep.subr.mxu0 0.0
        %3262 = vmatpush1.msra.mxu0 0.0
        %3263 = vmatprep.subr.mxu0 0.0
        %3264 = vmatpush1.msra.mxu0 0.0
        %3265 = vmatprep.subr.mxu0 0.0
        %3266 = vmatpush1.msra.mxu0 0.0
        %3267 = vmatprep.subr.mxu0 0.0
        %3268 = vmatpush1.msra.mxu0 0.0
        %3269 = vmatprep.subr.mxu0 0.0
        %3270 = vmatpush1.msra.mxu0 0.0
        %3271 = vmatprep.subr.mxu0 0.0
        %3272 = vmatpush1.msra.mxu0 0.0
        %3273 = vmatprep.subr.mxu0 0.0
        %3274 = vmatpush1.msra.mxu0 0.0
        %3275 = vmatprep.mubr.f32.mxu0 0.0
        %3276 = vmatmul.mubr.f32.gmra.mrb[0].mxu0 %v3209
        %v3277 = vpop.f32.mrb[0].mxu0
        %v3278 = vadd.f32 %v3205, %v3277
        %v3279 = vpop.f32.mrb[0].mxu0
        %3280 = vdwg.mxu0
        %v3281 = vld [vmem:[#allocation3 + $0x2] sm:$0xff]
        %s3282 = scalar_lea.vmem [#allocation11], 128
        %v3283 = vld [vmem:[%s3282] sm:$0xff]
        %v3284 = vld [vmem:[%s3282 + $0x8] sm:$0xff]
        %v3285 = vld [vmem:[%s3282 + $0x10] sm:$0xff]
        %v3286 = vld [vmem:[%s3282 + $0x18] sm:$0xff]
        %v3287 = vld [vmem:[%s3282 + $0x20] sm:$0xff]
        %v3288 = vld [vmem:[%s3282 + $0x28] sm:$0xff]
        %v3289 = vld [vmem:[%s3282 + $0x30] sm:$0xff]
        %v3290 = vld [vmem:[%s3282 + $0x38] sm:$0xff]
        %v3292 = vsel %vm3115, %v3281, 0
        %3294 = vmatprep.subr.mxu0 0.0
        %3295 = vmatpush1.msra.mxu0 %v3283
        %3296 = vmatprep.subr.mxu0 0.0
        %3297 = vmatpush1.msra.mxu0 %v3284
        %3298 = vmatprep.subr.mxu0 0.0
        %3299 = vmatpush1.msra.mxu0 %v3285
        %3300 = vmatprep.subr.mxu0 0.0
        %3301 = vmatpush1.msra.mxu0 %v3286
        %3302 = vmatprep.subr.mxu0 0.0
        %3303 = vmatpush1.msra.mxu0 %v3287
        %3304 = vmatprep.subr.mxu0 0.0
        %3305 = vmatpush1.msra.mxu0 %v3288
        %3306 = vmatprep.subr.mxu0 0.0
        %3307 = vmatpush1.msra.mxu0 %v3289
        %3308 = vmatprep.subr.mxu0 0.0
        %3309 = vmatpush1.msra.mxu0 %v3290
        %3310 = vmatprep.subr.mxu0 0.0
        %3311 = vmatpush1.msra.mxu0 0.0
        %3312 = vmatprep.subr.mxu0 0.0
        %3313 = vmatpush1.msra.mxu0 0.0
        %3314 = vmatprep.subr.mxu0 0.0
        %3315 = vmatpush1.msra.mxu0 0.0
        %3316 = vmatprep.subr.mxu0 0.0
        %3317 = vmatpush1.msra.mxu0 0.0
        %3318 = vmatprep.subr.mxu0 0.0
        %3319 = vmatpush1.msra.mxu0 0.0
        %3320 = vmatprep.subr.mxu0 0.0
        %3321 = vmatpush1.msra.mxu0 0.0
        %3322 = vmatprep.subr.mxu0 0.0
        %3323 = vmatpush1.msra.mxu0 0.0
        %3324 = vmatprep.subr.mxu0 0.0
        %3325 = vmatpush1.msra.mxu0 0.0
        %3326 = vmatprep.subr.mxu0 0.0
        %3327 = vmatpush1.msra.mxu0 0.0
        %3328 = vmatprep.subr.mxu0 0.0
        %3329 = vmatpush1.msra.mxu0 0.0
        %3330 = vmatprep.subr.mxu0 0.0
        %3331 = vmatpush1.msra.mxu0 0.0
        %3332 = vmatprep.subr.mxu0 0.0
        %3333 = vmatpush1.msra.mxu0 0.0
        %3334 = vmatprep.subr.mxu0 0.0
        %3335 = vmatpush1.msra.mxu0 0.0
        %3336 = vmatprep.subr.mxu0 0.0
        %3337 = vmatpush1.msra.mxu0 0.0
        %3338 = vmatprep.subr.mxu0 0.0
        %3339 = vmatpush1.msra.mxu0 0.0
        %3340 = vmatprep.subr.mxu0 0.0
        %3341 = vmatpush1.msra.mxu0 0.0
        %3342 = vmatprep.subr.mxu0 0.0
        %3343 = vmatpush1.msra.mxu0 0.0
        %3344 = vmatprep.subr.mxu0 0.0
        %3345 = vmatpush1.msra.mxu0 0.0
        %3346 = vmatprep.subr.mxu0 0.0
        %3347 = vmatpush1.msra.mxu0 0.0
        %3348 = vmatprep.subr.mxu0 0.0
        %3349 = vmatpush1.msra.mxu0 0.0
        %3350 = vmatprep.subr.mxu0 0.0
        %3351 = vmatpush1.msra.mxu0 0.0
        %3352 = vmatprep.subr.mxu0 0.0
        %3353 = vmatpush1.msra.mxu0 0.0
        %3354 = vmatprep.subr.mxu0 0.0
        %3355 = vmatpush1.msra.mxu0 0.0
        %3356 = vmatprep.subr.mxu0 0.0
        %3357 = vmatpush1.msra.mxu0 0.0
        %3358 = vmatprep.mubr.f32.mxu0 0.0
        %3359 = vmatmul.mubr.f32.gmra.mrb[0].mxu0 %v3292
        %v3360 = vpop.f32.mrb[0].mxu0
        %v3361 = vadd.f32 0.0, %v3360
        %v3362 = vpop.f32.mrb[0].mxu0
        %3363 = vdwg.mxu0
        %v3364 = vadd.f32 %v3278, %v3361
        %v3365 = vld [vmem:[#allocation12] sm:$0x1]
        %v3367 = vlaneseq
        %v3368 = vshrl.u32 %v3367, 7
        %v3369 = vsub.s32 0, %v3368
        %v3370 = vrot.slane %v3365, %v3369
        %v3372 = vadd.f32 %v3364, %v3370
        %v3373 = vsel %vm3115, %v3372, 0.0
        %v3374 = vrot.slane %v3373, 4
        %v3375 = vadd.f32 %v3373, %v3374
        %v3376 = vrot.slane %v3375, 2
        %v3377 = vadd.f32 %v3375, %v3376
        %v3378 = vrot.slane %v3377, 1
        %v3379 = vadd.f32 %v3377, %v3378
        %v3380 = vmul.f32 %v3372, %v3372
        %v3381 = vsel %vm3115, %v3380, 0.0
        %v3382 = vrot.slane %v3381, 4
        %v3383 = vadd.f32 %v3381, %v3382
        %v3384 = vrot.slane %v3383, 2
        %v3385 = vadd.f32 %v3383, %v3384
        %v3386 = vrot.slane %v3385, 1
        %v3387 = vadd.f32 %v3385, %v3386
        %v3389 = vsel %vm3115, %v3379, 0
        %3391 = vmatprep.subr.mxu0 0.0
        %3392 = vmatpush1.msra.mxu0 %v3107
        %3393 = vmatprep.subr.mxu0 0.0
        %3394 = vmatpush1.msra.mxu0 %v3108
        %3395 = vmatprep.subr.mxu0 0.0
        %3396 = vmatpush1.msra.mxu0 %v3109
        %3397 = vmatprep.subr.mxu0 0.0
        %3398 = vmatpush1.msra.mxu0 %v3110
        %3399 = vmatprep.subr.mxu0 0.0
        %3400 = vmatpush1.msra.mxu0 %v3111
        %3401 = vmatprep.subr.mxu0 0.0
        %3402 = vmatpush1.msra.mxu0 %v3112
        %3403 = vmatprep.subr.mxu0 0.0
        %3404 = vmatpush1.msra.mxu0 %v3113
        %3405 = vmatprep.subr.mxu0 0.0
        %3406 = vmatpush1.msra.mxu0 %v3114
        %3407 = vmatprep.subr.mxu0 0.0
        %3408 = vmatpush1.msra.mxu0 0.0
        %3409 = vmatprep.subr.mxu0 0.0
        %3410 = vmatpush1.msra.mxu0 0.0
        %3411 = vmatprep.subr.mxu0 0.0
        %3412 = vmatpush1.msra.mxu0 0.0
        %3413 = vmatprep.subr.mxu0 0.0
        %3414 = vmatpush1.msra.mxu0 0.0
        %3415 = vmatprep.subr.mxu0 0.0
        %3416 = vmatpush1.msra.mxu0 0.0
        %3417 = vmatprep.subr.mxu0 0.0
        %3418 = vmatpush1.msra.mxu0 0.0
        %3419 = vmatprep.subr.mxu0 0.0
        %3420 = vmatpush1.msra.mxu0 0.0
        %3421 = vmatprep.subr.mxu0 0.0
        %3422 = vmatpush1.msra.mxu0 0.0
        %3423 = vmatprep.subr.mxu0 0.0
        %3424 = vmatpush1.msra.mxu0 0.0
        %3425 = vmatprep.subr.mxu0 0.0
        %3426 = vmatpush1.msra.mxu0 0.0
        %3427 = vmatprep.subr.mxu0 0.0
        %3428 = vmatpush1.msra.mxu0 0.0
        %3429 = vmatprep.subr.mxu0 0.0
        %3430 = vmatpush1.msra.mxu0 0.0
        %3431 = vmatprep.subr.mxu0 0.0
        %3432 = vmatpush1.msra.mxu0 0.0
        %3433 = vmatprep.subr.mxu0 0.0
        %3434 = vmatpush1.msra.mxu0 0.0
        %3435 = vmatprep.subr.mxu0 0.0
        %3436 = vmatpush1.msra.mxu0 0.0
        %3437 = vmatprep.subr.mxu0 0.0
        %3438 = vmatpush1.msra.mxu0 0.0
        %3439 = vmatprep.subr.mxu0 0.0
        %3440 = vmatpush1.msra.mxu0 0.0
        %3441 = vmatprep.subr.mxu0 0.0
        %3442 = vmatpush1.msra.mxu0 0.0
        %3443 = vmatprep.subr.mxu0 0.0
        %3444 = vmatpush1.msra.mxu0 0.0
        %3445 = vmatprep.subr.mxu0 0.0
        %3446 = vmatpush1.msra.mxu0 0.0
        %3447 = vmatprep.subr.mxu0 0.0
        %3448 = vmatpush1.msra.mxu0 0.0
        %3449 = vmatprep.subr.mxu0 0.0
        %3450 = vmatpush1.msra.mxu0 0.0
        %3451 = vmatprep.subr.mxu0 0.0
        %3452 = vmatpush1.msra.mxu0 0.0
        %3453 = vmatprep.subr.mxu0 0.0
        %3454 = vmatpush1.msra.mxu0 0.0
        %3455 = vmatprep.mubr.f32.mxu0 0.0
        %3456 = vmatmul.mubr.f32.gmra.mrb[0].mxu0 %v3389
        %v3457 = vpop.f32.mrb[0].mxu0
        %v3458 = vadd.f32 0.0, %v3457
        %v3459 = vpop.f32.mrb[0].mxu0
        %3460 = vdwg.mxu0
        %v3461 = vmul.f32 %v3458, 0.0078125
        %v3463 = vsel %vm3115, %v3387, 0
        %3465 = vmatprep.subr.mxu0 0.0
        %3466 = vmatpush1.msra.mxu0 %v3107
        %3467 = vmatprep.subr.mxu0 0.0
        %3468 = vmatpush1.msra.mxu0 %v3108
        %3469 = vmatprep.subr.mxu0 0.0
        %3470 = vmatpush1.msra.mxu0 %v3109
        %3471 = vmatprep.subr.mxu0 0.0
        %3472 = vmatpush1.msra.mxu0 %v3110
        %3473 = vmatprep.subr.mxu0 0.0
        %3474 = vmatpush1.msra.mxu0 %v3111
        %3475 = vmatprep.subr.mxu0 0.0
        %3476 = vmatpush1.msra.mxu0 %v3112
        %3477 = vmatprep.subr.mxu0 0.0
        %3478 = vmatpush1.msra.mxu0 %v3113
        %3479 = vmatprep.subr.mxu0 0.0
        %3480 = vmatpush1.msra.mxu0 %v3114
        %3481 = vmatprep.subr.mxu0 0.0
        %3482 = vmatpush1.msra.mxu0 0.0
        %3483 = vmatprep.subr.mxu0 0.0
        %3484 = vmatpush1.msra.mxu0 0.0
        %3485 = vmatprep.subr.mxu0 0.0
        %3486 = vmatpush1.msra.mxu0 0.0
        %3487 = vmatprep.subr.mxu0 0.0
        %3488 = vmatpush1.msra.mxu0 0.0
        %3489 = vmatprep.subr.mxu0 0.0
        %3490 = vmatpush1.msra.mxu0 0.0
        %3491 = vmatprep.subr.mxu0 0.0
        %3492 = vmatpush1.msra.mxu0 0.0
        %3493 = vmatprep.subr.mxu0 0.0
        %3494 = vmatpush1.msra.mxu0 0.0
        %3495 = vmatprep.subr.mxu0 0.0
        %3496 = vmatpush1.msra.mxu0 0.0
        %3497 = vmatprep.subr.mxu0 0.0
        %3498 = vmatpush1.msra.mxu0 0.0
        %3499 = vmatprep.subr.mxu0 0.0
        %3500 = vmatpush1.msra.mxu0 0.0
        %3501 = vmatprep.subr.mxu0 0.0
        %3502 = vmatpush1.msra.mxu0 0.0
        %3503 = vmatprep.subr.mxu0 0.0
        %3504 = vmatpush1.msra.mxu0 0.0
        %3505 = vmatprep.subr.mxu0 0.0
        %3506 = vmatpush1.msra.mxu0 0.0
        %3507 = vmatprep.subr.mxu0 0.0
        %3508 = vmatpush1.msra.mxu0 0.0
        %3509 = vmatprep.subr.mxu0 0.0
        %3510 = vmatpush1.msra.mxu0 0.0
        %3511 = vmatprep.subr.mxu0 0.0
        %3512 = vmatpush1.msra.mxu0 0.0
        %3513 = vmatprep.subr.mxu0 0.0
        %3514 = vmatpush1.msra.mxu0 0.0
        %3515 = vmatprep.subr.mxu0 0.0
        %3516 = vmatpush1.msra.mxu0 0.0
        %3517 = vmatprep.subr.mxu0 0.0
        %3518 = vmatpush1.msra.mxu0 0.0
        %3519 = vmatprep.subr.mxu0 0.0
        %3520 = vmatpush1.msra.mxu0 0.0
        %3521 = vmatprep.subr.mxu0 0.0
        %3522 = vmatpush1.msra.mxu0 0.0
        %3523 = vmatprep.subr.mxu0 0.0
        %3524 = vmatpush1.msra.mxu0 0.0
        %3525 = vmatprep.subr.mxu0 0.0
        %3526 = vmatpush1.msra.mxu0 0.0
        %3527 = vmatprep.subr.mxu0 0.0
        %3528 = vmatpush1.msra.mxu0 0.0
        %3529 = vmatprep.mubr.f32.mxu0 0.0
        %3530 = vmatmul.mubr.f32.gmra.mrb[0].mxu0 %v3463
        %v3531 = vpop.f32.mrb[0].mxu0
        %v3532 = vadd.f32 0.0, %v3531
        %v3533 = vpop.f32.mrb[0].mxu0
        %3534 = vdwg.mxu0
        %v3535 = vmul.f32 %v3532, 0.0078125
        %v3536 = vmul.f32 %v3461, %v3461
        %v3537 = vsub.f32 %v3535, %v3536
        %v3538 = vlaneseq
        %v3539 = vshrl.u32 %v3538, 7
        %v3540 = vsub.s32 0, %v3539
        %v3541 = vrot.slane %v3461, %v3540
        %v3542 = vsub.f32 %v3372, %v3541
        %v3543 = vadd.f32 %v3537, 1e-05
        %v3544 = vrsqrt.pop %v3543
        %v3545 = vlaneseq
        %v3546 = vshrl.u32 %v3545, 7
        %v3547 = vsub.s32 0, %v3546
        %v3548 = vrot.slane %v3544, %v3547
        %v3549 = vmul.f32 %v3542, %v3548
        %s3550 = scalar_lea.vmem [#allocation12], 1
        %v3551 = vld [vmem:[%s3550] sm:$0x1]
        %v3553 = vlaneseq
        %v3554 = vshrl.u32 %v3553, 7
        %v3555 = vsub.s32 0, %v3554
        %v3556 = vrot.slane %v3551, %v3555
        %v3558 = vmul.f32 %v3549, %v3556
        %s3559 = scalar_lea.vmem [#allocation12], 2
        %v3560 = vld [vmem:[%s3559] sm:$0x1]
        %v3562 = vlaneseq
        %v3563 = vshrl.u32 %v3562, 7
        %v3564 = vsub.s32 0, %v3563
        %v3565 = vrot.slane %v3560, %v3564
        %v3567 = vadd.f32 %v3558, %v3565
        %v3568 = vxor.u32 %v3567, 2147483648
        %v3569 = vmul.f32 %v3568, 1.442695
        %v3570 = vpow.pop %v3569
        %v3571 = vadd.f32 %v3570, 1.0
        %v3572 = vrcp.pop %v3571
        %v3573 = vmul.f32 1.0, %v3572
        %v3574 = vmul.f32 %v3567, %v3573
        %3575 = vst.msk [vmem:[#allocation3 + $0x1] sm:$0xff] %vm3115, %v3574
        %s3576 = scalar_lea.vmem [#allocation11], 256
        %v3577 = vld [vmem:[%s3576] sm:$0xff]
        %v3578 = vld [vmem:[%s3576 + $0x8] sm:$0xff]
        %v3579 = vld [vmem:[%s3576 + $0x10] sm:$0xff]
        %v3580 = vld [vmem:[%s3576 + $0x18] sm:$0xff]
        %v3581 = vld [vmem:[%s3576 + $0x20] sm:$0xff]
        %v3582 = vld [vmem:[%s3576 + $0x28] sm:$0xff]
        %v3583 = vld [vmem:[%s3576 + $0x30] sm:$0xff]
        %v3584 = vld [vmem:[%s3576 + $0x38] sm:$0xff]
        %v3585 = vld [vmem:[#allocation3] sm:$0xff]
        %s3586 = scalar_lea.vmem [#allocation11], 192
        %v3587 = vld [vmem:[%s3586] sm:$0xff]
        %v3588 = vld [vmem:[%s3586 + $0x8] sm:$0xff]
        %v3589 = vld [vmem:[%s3586 + $0x10] sm:$0xff]
        %v3590 = vld [vmem:[%s3586 + $0x18] sm:$0xff]
        %v3591 = vld [vmem:[%s3586 + $0x20] sm:$0xff]
        %v3592 = vld [vmem:[%s3586 + $0x28] sm:$0xff]
        %v3593 = vld [vmem:[%s3586 + $0x30] sm:$0xff]
        %v3594 = vld [vmem:[%s3586 + $0x38] sm:$0xff]
        %v3596 = vsel %vm3115, %v3585, 0
        %3598 = vmatprep.subr.mxu0 0.0
        %3599 = vmatpush1.msra.mxu0 %v3587
        %3600 = vmatprep.subr.mxu0 0.0
        %3601 = vmatpush1.msra.mxu0 %v3588
        %3602 = vmatprep.subr.mxu0 0.0
        %3603 = vmatpush1.msra.mxu0 %v3589
        %3604 = vmatprep.subr.mxu0 0.0
        %3605 = vmatpush1.msra.mxu0 %v3590
        %3606 = vmatprep.subr.mxu0 0.0
        %3607 = vmatpush1.msra.mxu0 %v3591
        %3608 = vmatprep.subr.mxu0 0.0
        %3609 = vmatpush1.msra.mxu0 %v3592
        %3610 = vmatprep.subr.mxu0 0.0
        %3611 = vmatpush1.msra.mxu0 %v3593
        %3612 = vmatprep.subr.mxu0 0.0
        %3613 = vmatpush1.msra.mxu0 %v3594
        %3614 = vmatprep.subr.mxu0 0.0
        %3615 = vmatpush1.msra.mxu0 0.0
        %3616 = vmatprep.subr.mxu0 0.0
        %3617 = vmatpush1.msra.mxu0 0.0
        %3618 = vmatprep.subr.mxu0 0.0
        %3619 = vmatpush1.msra.mxu0 0.0
        %3620 = vmatprep.subr.mxu0 0.0
        %3621 = vmatpush1.msra.mxu0 0.0
        %3622 = vmatprep.subr.mxu0 0.0
        %3623 = vmatpush1.msra.mxu0 0.0
        %3624 = vmatprep.subr.mxu0 0.0
        %3625 = vmatpush1.msra.mxu0 0.0
        %3626 = vmatprep.subr.mxu0 0.0
        %3627 = vmatpush1.msra.mxu0 0.0
        %3628 = vmatprep.subr.mxu0 0.0
        %3629 = vmatpush1.msra.mxu0 0.0
        %3630 = vmatprep.subr.mxu0 0.0
        %3631 = vmatpush1.msra.mxu0 0.0
        %3632 = vmatprep.subr.mxu0 0.0
        %3633 = vmatpush1.msra.mxu0 0.0
        %3634 = vmatprep.subr.mxu0 0.0
        %3635 = vmatpush1.msra.mxu0 0.0
        %3636 = vmatprep.subr.mxu0 0.0
        %3637 = vmatpush1.msra.mxu0 0.0
        %3638 = vmatprep.subr.mxu0 0.0
        %3639 = vmatpush1.msra.mxu0 0.0
        %3640 = vmatprep.subr.mxu0 0.0
        %3641 = vmatpush1.msra.mxu0 0.0
        %3642 = vmatprep.subr.mxu0 0.0
        %3643 = vmatpush1.msra.mxu0 0.0
        %3644 = vmatprep.subr.mxu0 0.0
        %3645 = vmatpush1.msra.mxu0 0.0
        %3646 = vmatprep.subr.mxu0 0.0
        %3647 = vmatpush1.msra.mxu0 0.0
        %3648 = vmatprep.subr.mxu0 0.0
        %3649 = vmatpush1.msra.mxu0 0.0
        %3650 = vmatprep.subr.mxu0 0.0
        %3651 = vmatpush1.msra.mxu0 0.0
        %3652 = vmatprep.subr.mxu0 0.0
        %3653 = vmatpush1.msra.mxu0 0.0
        %3654 = vmatprep.subr.mxu0 0.0
        %3655 = vmatpush1.msra.mxu0 0.0
        %3656 = vmatprep.subr.mxu0 0.0
        %3657 = vmatpush1.msra.mxu0 0.0
        %3658 = vmatprep.subr.mxu0 0.0
        %3659 = vmatpush1.msra.mxu0 0.0
        %3660 = vmatprep.subr.mxu0 0.0
        %3661 = vmatpush1.msra.mxu0 0.0
        %3662 = vmatprep.mubr.f32.mxu0 0.0
        %3663 = vmatmul.mubr.f32.gmra.mrb[0].mxu0 %v3596
        %v3664 = vpop.f32.mrb[0].mxu0
        %v3665 = vadd.f32 0.0, %v3664
        %v3666 = vpop.f32.mrb[0].mxu0
        %3667 = vdwg.mxu0
        %v3669 = vsel %vm3115, %v3574, 0
        %3671 = vmatprep.subr.mxu0 0.0
        %3672 = vmatpush1.msra.mxu0 %v3577
        %3673 = vmatprep.subr.mxu0 0.0
        %3674 = vmatpush1.msra.mxu0 %v3578
        %3675 = vmatprep.subr.mxu0 0.0
        %3676 = vmatpush1.msra.mxu0 %v3579
        %3677 = vmatprep.subr.mxu0 0.0
        %3678 = vmatpush1.msra.mxu0 %v3580
        %3679 = vmatprep.subr.mxu0 0.0
        %3680 = vmatpush1.msra.mxu0 %v3581
        %3681 = vmatprep.subr.mxu0 0.0
        %3682 = vmatpush1.msra.mxu0 %v3582
        %3683 = vmatprep.subr.mxu0 0.0
        %3684 = vmatpush1.msra.mxu0 %v3583
        %3685 = vmatprep.subr.mxu0 0.0
        %3686 = vmatpush1.msra.mxu0 %v3584
        %3687 = vmatprep.subr.mxu0 0.0
        %3688 = vmatpush1.msra.mxu0 0.0
        %3689 = vmatprep.subr.mxu0 0.0
        %3690 = vmatpush1.msra.mxu0 0.0
        %3691 = vmatprep.subr.mxu0 0.0
        %3692 = vmatpush1.msra.mxu0 0.0
        %3693 = vmatprep.subr.mxu0 0.0
        %3694 = vmatpush1.msra.mxu0 0.0
        %3695 = vmatprep.subr.mxu0 0.0
        %3696 = vmatpush1.msra.mxu0 0.0
        %3697 = vmatprep.subr.mxu0 0.0
        %3698 = vmatpush1.msra.mxu0 0.0
        %3699 = vmatprep.subr.mxu0 0.0
        %3700 = vmatpush1.msra.mxu0 0.0
        %3701 = vmatprep.subr.mxu0 0.0
        %3702 = vmatpush1.msra.mxu0 0.0
        %3703 = vmatprep.subr.mxu0 0.0
        %3704 = vmatpush1.msra.mxu0 0.0
        %3705 = vmatprep.subr.mxu0 0.0
        %3706 = vmatpush1.msra.mxu0 0.0
        %3707 = vmatprep.subr.mxu0 0.0
        %3708 = vmatpush1.msra.mxu0 0.0
        %3709 = vmatprep.subr.mxu0 0.0
        %3710 = vmatpush1.msra.mxu0 0.0
        %3711 = vmatprep.subr.mxu0 0.0
        %3712 = vmatpush1.msra.mxu0 0.0
        %3713 = vmatprep.subr.mxu0 0.0
        %3714 = vmatpush1.msra.mxu0 0.0
        %3715 = vmatprep.subr.mxu0 0.0
        %3716 = vmatpush1.msra.mxu0 0.0
        %3717 = vmatprep.subr.mxu0 0.0
        %3718 = vmatpush1.msra.mxu0 0.0
        %3719 = vmatprep.subr.mxu0 0.0
        %3720 = vmatpush1.msra.mxu0 0.0
        %3721 = vmatprep.subr.mxu0 0.0
        %3722 = vmatpush1.msra.mxu0 0.0
        %3723 = vmatprep.subr.mxu0 0.0
        %3724 = vmatpush1.msra.mxu0 0.0
        %3725 = vmatprep.subr.mxu0 0.0
        %3726 = vmatpush1.msra.mxu0 0.0
        %3727 = vmatprep.subr.mxu0 0.0
        %3728 = vmatpush1.msra.mxu0 0.0
        %3729 = vmatprep.subr.mxu0 0.0
        %3730 = vmatpush1.msra.mxu0 0.0
        %3731 = vmatprep.subr.mxu0 0.0
        %3732 = vmatpush1.msra.mxu0 0.0
        %3733 = vmatprep.subr.mxu0 0.0
        %3734 = vmatpush1.msra.mxu0 0.0
        %3735 = vmatprep.mubr.f32.mxu0 0.0
        %3736 = vmatmul.mubr.f32.gmra.mrb[0].mxu0 %v3669
        %v3737 = vpop.f32.mrb[0].mxu0
        %v3738 = vadd.f32 %v3665, %v3737
        %v3739 = vpop.f32.mrb[0].mxu0
        %3740 = vdwg.mxu0
        %v3741 = vld [vmem:[#allocation3 + $0x2] sm:$0xff]
        %s3742 = scalar_lea.vmem [#allocation11], 320
        %v3743 = vld [vmem:[%s3742] sm:$0xff]
        %v3744 = vld [vmem:[%s3742 + $0x8] sm:$0xff]
        %v3745 = vld [vmem:[%s3742 + $0x10] sm:$0xff]
        %v3746 = vld [vmem:[%s3742 + $0x18] sm:$0xff]
        %v3747 = vld [vmem:[%s3742 + $0x20] sm:$0xff]
        %v3748 = vld [vmem:[%s3742 + $0x28] sm:$0xff]
        %v3749 = vld [vmem:[%s3742 + $0x30] sm:$0xff]
        %v3750 = vld [vmem:[%s3742 + $0x38] sm:$0xff]
        %v3752 = vsel %vm3115, %v3741, 0
        %3754 = vmatprep.subr.mxu0 0.0
        %3755 = vmatpush1.msra.mxu0 %v3743
        %3756 = vmatprep.subr.mxu0 0.0
        %3757 = vmatpush1.msra.mxu0 %v3744
        %3758 = vmatprep.subr.mxu0 0.0
        %3759 = vmatpush1.msra.mxu0 %v3745
        %3760 = vmatprep.subr.mxu0 0.0
        %3761 = vmatpush1.msra.mxu0 %v3746
        %3762 = vmatprep.subr.mxu0 0.0
        %3763 = vmatpush1.msra.mxu0 %v3747
        %3764 = vmatprep.subr.mxu0 0.0
        %3765 = vmatpush1.msra.mxu0 %v3748
        %3766 = vmatprep.subr.mxu0 0.0
        %3767 = vmatpush1.msra.mxu0 %v3749
        %3768 = vmatprep.subr.mxu0 0.0
        %3769 = vmatpush1.msra.mxu0 %v3750
        %3770 = vmatprep.subr.mxu0 0.0
        %3771 = vmatpush1.msra.mxu0 0.0
        %3772 = vmatprep.subr.mxu0 0.0
        %3773 = vmatpush1.msra.mxu0 0.0
        %3774 = vmatprep.subr.mxu0 0.0
        %3775 = vmatpush1.msra.mxu0 0.0
        %3776 = vmatprep.subr.mxu0 0.0
        %3777 = vmatpush1.msra.mxu0 0.0
        %3778 = vmatprep.subr.mxu0 0.0
        %3779 = vmatpush1.msra.mxu0 0.0
        %3780 = vmatprep.subr.mxu0 0.0
        %3781 = vmatpush1.msra.mxu0 0.0
        %3782 = vmatprep.subr.mxu0 0.0
        %3783 = vmatpush1.msra.mxu0 0.0
        %3784 = vmatprep.subr.mxu0 0.0
        %3785 = vmatpush1.msra.mxu0 0.0
        %3786 = vmatprep.subr.mxu0 0.0
        %3787 = vmatpush1.msra.mxu0 0.0
        %3788 = vmatprep.subr.mxu0 0.0
        %3789 = vmatpush1.msra.mxu0 0.0
        %3790 = vmatprep.subr.mxu0 0.0
        %3791 = vmatpush1.msra.mxu0 0.0
        %3792 = vmatprep.subr.mxu0 0.0
        %3793 = vmatpush1.msra.mxu0 0.0
        %3794 = vmatprep.subr.mxu0 0.0
        %3795 = vmatpush1.msra.mxu0 0.0
        %3796 = vmatprep.subr.mxu0 0.0
        %3797 = vmatpush1.msra.mxu0 0.0
        %3798 = vmatprep.subr.mxu0 0.0
        %3799 = vmatpush1.msra.mxu0 0.0
        %3800 = vmatprep.subr.mxu0 0.0
        %3801 = vmatpush1.msra.mxu0 0.0
        %3802 = vmatprep.subr.mxu0 0.0
        %3803 = vmatpush1.msra.mxu0 0.0
        %3804 = vmatprep.subr.mxu0 0.0
        %3805 = vmatpush1.msra.mxu0 0.0
        %3806 = vmatprep.subr.mxu0 0.0
        %3807 = vmatpush1.msra.mxu0 0.0
        %3808 = vmatprep.subr.mxu0 0.0
        %3809 = vmatpush1.msra.mxu0 0.0
        %3810 = vmatprep.subr.mxu0 0.0
        %3811 = vmatpush1.msra.mxu0 0.0
        %3812 = vmatprep.subr.mxu0 0.0
        %3813 = vmatpush1.msra.mxu0 0.0
        %3814 = vmatprep.subr.mxu0 0.0
        %3815 = vmatpush1.msra.mxu0 0.0
        %3816 = vmatprep.subr.mxu0 0.0
        %3817 = vmatpush1.msra.mxu0 0.0
        %3818 = vmatprep.mubr.f32.mxu0 0.0
        %3819 = vmatmul.mubr.f32.gmra.mrb[0].mxu0 %v3752
        %v3820 = vpop.f32.mrb[0].mxu0
        %v3821 = vadd.f32 0.0, %v3820
        %v3822 = vpop.f32.mrb[0].mxu0
        %3823 = vdwg.mxu0
        %v3824 = vadd.f32 %v3738, %v3821
        %s3825 = scalar_lea.vmem [#allocation12], 3
        %v3826 = vld [vmem:[%s3825] sm:$0x1]
        %v3828 = vlaneseq
        %v3829 = vshrl.u32 %v3828, 7
        %v3830 = vsub.s32 0, %v3829
        %v3831 = vrot.slane %v3826, %v3830
        %v3833 = vadd.f32 %v3824, %v3831
        %v3834 = vsel %vm3115, %v3833, 0.0
        %v3835 = vrot.slane %v3834, 4
        %v3836 = vadd.f32 %v3834, %v3835
        %v3837 = vrot.slane %v3836, 2
        %v3838 = vadd.f32 %v3836, %v3837
        %v3839 = vrot.slane %v3838, 1
        %v3840 = vadd.f32 %v3838, %v3839
        %v3841 = vmul.f32 %v3833, %v3833
        %v3842 = vsel %vm3115, %v3841, 0.0
        %v3843 = vrot.slane %v3842, 4
        %v3844 = vadd.f32 %v3842, %v3843
        %v3845 = vrot.slane %v3844, 2
        %v3846 = vadd.f32 %v3844, %v3845
        %v3847 = vrot.slane %v3846, 1
        %v3848 = vadd.f32 %v3846, %v3847
        %v3850 = vsel %vm3115, %v3840, 0
        %3852 = vmatprep.subr.mxu0 0.0
        %3853 = vmatpush1.msra.mxu0 %v3107
        %3854 = vmatprep.subr.mxu0 0.0
        %3855 = vmatpush1.msra.mxu0 %v3108
        %3856 = vmatprep.subr.mxu0 0.0
        %3857 = vmatpush1.msra.mxu0 %v3109
        %3858 = vmatprep.subr.mxu0 0.0
        %3859 = vmatpush1.msra.mxu0 %v3110
        %3860 = vmatprep.subr.mxu0 0.0
        %3861 = vmatpush1.msra.mxu0 %v3111
        %3862 = vmatprep.subr.mxu0 0.0
        %3863 = vmatpush1.msra.mxu0 %v3112
        %3864 = vmatprep.subr.mxu0 0.0
        %3865 = vmatpush1.msra.mxu0 %v3113
        %3866 = vmatprep.subr.mxu0 0.0
        %3867 = vmatpush1.msra.mxu0 %v3114
        %3868 = vmatprep.subr.mxu0 0.0
        %3869 = vmatpush1.msra.mxu0 0.0
        %3870 = vmatprep.subr.mxu0 0.0
        %3871 = vmatpush1.msra.mxu0 0.0
        %3872 = vmatprep.subr.mxu0 0.0
        %3873 = vmatpush1.msra.mxu0 0.0
        %3874 = vmatprep.subr.mxu0 0.0
        %3875 = vmatpush1.msra.mxu0 0.0
        %3876 = vmatprep.subr.mxu0 0.0
        %3877 = vmatpush1.msra.mxu0 0.0
        %3878 = vmatprep.subr.mxu0 0.0
        %3879 = vmatpush1.msra.mxu0 0.0
        %3880 = vmatprep.subr.mxu0 0.0
        %3881 = vmatpush1.msra.mxu0 0.0
        %3882 = vmatprep.subr.mxu0 0.0
        %3883 = vmatpush1.msra.mxu0 0.0
        %3884 = vmatprep.subr.mxu0 0.0
        %3885 = vmatpush1.msra.mxu0 0.0
        %3886 = vmatprep.subr.mxu0 0.0
        %3887 = vmatpush1.msra.mxu0 0.0
        %3888 = vmatprep.subr.mxu0 0.0
        %3889 = vmatpush1.msra.mxu0 0.0
        %3890 = vmatprep.subr.mxu0 0.0
        %3891 = vmatpush1.msra.mxu0 0.0
        %3892 = vmatprep.subr.mxu0 0.0
        %3893 = vmatpush1.msra.mxu0 0.0
        %3894 = vmatprep.subr.mxu0 0.0
        %3895 = vmatpush1.msra.mxu0 0.0
        %3896 = vmatprep.subr.mxu0 0.0
        %3897 = vmatpush1.msra.mxu0 0.0
        %3898 = vmatprep.subr.mxu0 0.0
        %3899 = vmatpush1.msra.mxu0 0.0
        %3900 = vmatprep.subr.mxu0 0.0
        %3901 = vmatpush1.msra.mxu0 0.0
        %3902 = vmatprep.subr.mxu0 0.0
        %3903 = vmatpush1.msra.mxu0 0.0
        %3904 = vmatprep.subr.mxu0 0.0
        %3905 = vmatpush1.msra.mxu0 0.0
        %3906 = vmatprep.subr.mxu0 0.0
        %3907 = vmatpush1.msra.mxu0 0.0
        %3908 = vmatprep.subr.mxu0 0.0
        %3909 = vmatpush1.msra.mxu0 0.0
        %3910 = vmatprep.subr.mxu0 0.0
        %3911 = vmatpush1.msra.mxu0 0.0
        %3912 = vmatprep.subr.mxu0 0.0
        %3913 = vmatpush1.msra.mxu0 0.0
        %3914 = vmatprep.subr.mxu0 0.0
        %3915 = vmatpush1.msra.mxu0 0.0
        %3916 = vmatprep.mubr.f32.mxu0 0.0
        %3917 = vmatmul.mubr.f32.gmra.mrb[0].mxu0 %v3850
        %v3918 = vpop.f32.mrb[0].mxu0
        %v3919 = vadd.f32 0.0, %v3918
        %v3920 = vpop.f32.mrb[0].mxu0
        %3921 = vdwg.mxu0
        %v3922 = vmul.f32 %v3919, 0.0078125
        %v3924 = vsel %vm3115, %v3848, 0
        %3926 = vmatprep.subr.mxu0 0.0
        %3927 = vmatpush1.msra.mxu0 %v3107
        %3928 = vmatprep.subr.mxu0 0.0
        %3929 = vmatpush1.msra.mxu0 %v3108
        %3930 = vmatprep.subr.mxu0 0.0
        %3931 = vmatpush1.msra.mxu0 %v3109
        %3932 = vmatprep.subr.mxu0 0.0
        %3933 = vmatpush1.msra.mxu0 %v3110
        %3934 = vmatprep.subr.mxu0 0.0
        %3935 = vmatpush1.msra.mxu0 %v3111
        %3936 = vmatprep.subr.mxu0 0.0
        %3937 = vmatpush1.msra.mxu0 %v3112
        %3938 = vmatprep.subr.mxu0 0.0
        %3939 = vmatpush1.msra.mxu0 %v3113
        %3940 = vmatprep.subr.mxu0 0.0
        %3941 = vmatpush1.msra.mxu0 %v3114
        %3942 = vmatprep.subr.mxu0 0.0
        %3943 = vmatpush1.msra.mxu0 0.0
        %3944 = vmatprep.subr.mxu0 0.0
        %3945 = vmatpush1.msra.mxu0 0.0
        %3946 = vmatprep.subr.mxu0 0.0
        %3947 = vmatpush1.msra.mxu0 0.0
        %3948 = vmatprep.subr.mxu0 0.0
        %3949 = vmatpush1.msra.mxu0 0.0
        %3950 = vmatprep.subr.mxu0 0.0
        %3951 = vmatpush1.msra.mxu0 0.0
        %3952 = vmatprep.subr.mxu0 0.0
        %3953 = vmatpush1.msra.mxu0 0.0
        %3954 = vmatprep.subr.mxu0 0.0
        %3955 = vmatpush1.msra.mxu0 0.0
        %3956 = vmatprep.subr.mxu0 0.0
        %3957 = vmatpush1.msra.mxu0 0.0
        %3958 = vmatprep.subr.mxu0 0.0
        %3959 = vmatpush1.msra.mxu0 0.0
        %3960 = vmatprep.subr.mxu0 0.0
        %3961 = vmatpush1.msra.mxu0 0.0
        %3962 = vmatprep.subr.mxu0 0.0
        %3963 = vmatpush1.msra.mxu0 0.0
        %3964 = vmatprep.subr.mxu0 0.0
        %3965 = vmatpush1.msra.mxu0 0.0
        %3966 = vmatprep.subr.mxu0 0.0
        %3967 = vmatpush1.msra.mxu0 0.0
        %3968 = vmatprep.subr.mxu0 0.0
        %3969 = vmatpush1.msra.mxu0 0.0
        %3970 = vmatprep.subr.mxu0 0.0
        %3971 = vmatpush1.msra.mxu0 0.0
        %3972 = vmatprep.subr.mxu0 0.0
        %3973 = vmatpush1.msra.mxu0 0.0
        %3974 = vmatprep.subr.mxu0 0.0
        %3975 = vmatpush1.msra.mxu0 0.0
        %3976 = vmatprep.subr.mxu0 0.0
        %3977 = vmatpush1.msra.mxu0 0.0
        %3978 = vmatprep.subr.mxu0 0.0
        %3979 = vmatpush1.msra.mxu0 0.0
        %3980 = vmatprep.subr.mxu0 0.0
        %3981 = vmatpush1.msra.mxu0 0.0
        %3982 = vmatprep.subr.mxu0 0.0
        %3983 = vmatpush1.msra.mxu0 0.0
        %3984 = vmatprep.subr.mxu0 0.0
        %3985 = vmatpush1.msra.mxu0 0.0
        %3986 = vmatprep.subr.mxu0 0.0
        %3987 = vmatpush1.msra.mxu0 0.0
        %3988 = vmatprep.subr.mxu0 0.0
        %3989 = vmatpush1.msra.mxu0 0.0
        %3990 = vmatprep.mubr.f32.mxu0 0.0
        %3991 = vmatmul.mubr.f32.gmra.mrb[0].mxu0 %v3924
        %v3992 = vpop.f32.mrb[0].mxu0
        %v3993 = vadd.f32 0.0, %v3992
        %v3994 = vpop.f32.mrb[0].mxu0
        %3995 = vdwg.mxu0
        %v3996 = vmul.f32 %v3993, 0.0078125
        %v3997 = vmul.f32 %v3922, %v3922
        %v3998 = vsub.f32 %v3996, %v3997
        %v3999 = vlaneseq
        %v4000 = vshrl.u32 %v3999, 7
        %v4001 = vsub.s32 0, %v4000
        %v4002 = vrot.slane %v3922, %v4001
        %v4003 = vsub.f32 %v3833, %v4002
        %v4004 = vadd.f32 %v3998, 1e-05
        %v4005 = vrsqrt.pop %v4004
        %v4006 = vlaneseq
        %v4007 = vshrl.u32 %v4006, 7
        %v4008 = vsub.s32 0, %v4007
        %v4009 = vrot.slane %v4005, %v4008
        %v4010 = vmul.f32 %v4003, %v4009
        %s4011 = scalar_lea.vmem [#allocation12], 4
        %v4012 = vld [vmem:[%s4011] sm:$0x1]
        %v4014 = vlaneseq
        %v4015 = vshrl.u32 %v4014, 7
        %v4016 = vsub.s32 0, %v4015
        %v4017 = vrot.slane %v4012, %v4016
        %v4019 = vmul.f32 %v4010, %v4017
        %s4020 = scalar_lea.vmem [#allocation12], 5
        %v4021 = vld [vmem:[%s4020] sm:$0x1]
        %v4023 = vlaneseq
        %v4024 = vshrl.u32 %v4023, 7
        %v4025 = vsub.s32 0, %v4024
        %v4026 = vrot.slane %v4021, %v4025
        %v4028 = vadd.f32 %v4019, %v4026
        %v4029 = vxor.u32 %v4028, 2147483648
        %v4030 = vmul.f32 %v4029, 1.442695
        %v4031 = vpow.pop %v4030
        %v4032 = vadd.f32 %v4031, 1.0
        %v4033 = vrcp.pop %v4032
        %v4034 = vmul.f32 1.0, %v4033
        %v4035 = vmul.f32 %v4028, %v4034
        %v4036 = vadd.f32 %v4035, %v3104
        %v4037 = vld [vmem:[%s17] sm:$0xff]
        %v4038 = vld [vmem:[%s17 + $0x8] sm:$0xff]
        %v4039 = vld [vmem:[%s17 + $0x10] sm:$0xff]
        %v4040 = vld [vmem:[%s17 + $0x18] sm:$0xff]
        %v4041 = vld [vmem:[%s17 + $0x20] sm:$0xff]
        %v4042 = vld [vmem:[%s17 + $0x28] sm:$0xff]
        %v4043 = vld [vmem:[%s17 + $0x30] sm:$0xff]
        %v4044 = vld [vmem:[%s17 + $0x38] sm:$0xff]
        %4045 = vst.msk [vmem:[#allocation3 + $0x1] sm:$0xff] %vm3115, %v4036
        %s4046 = scalar_lea.vmem [#allocation14], 64
        %v4047 = vld [vmem:[%s4046] sm:$0xff]
        %v4048 = vld [vmem:[%s4046 + $0x8] sm:$0xff]
        %v4049 = vld [vmem:[%s4046 + $0x10] sm:$0xff]
        %v4050 = vld [vmem:[%s4046 + $0x18] sm:$0xff]
        %v4051 = vld [vmem:[%s4046 + $0x20] sm:$0xff]
        %v4052 = vld [vmem:[%s4046 + $0x28] sm:$0xff]
        %v4053 = vld [vmem:[%s4046 + $0x30] sm:$0xff]
        %v4054 = vld [vmem:[%s4046 + $0x38] sm:$0xff]
        %v4055 = vld [vmem:[#allocation3] sm:$0xff]
        %v4056 = vld [vmem:[#allocation14] sm:$0xff]
        %v4057 = vld [vmem:[#allocation14 + $0x8] sm:$0xff]
        %v4058 = vld [vmem:[#allocation14 + $0x10] sm:$0xff]
        %v4059 = vld [vmem:[#allocation14 + $0x18] sm:$0xff]
        %v4060 = vld [vmem:[#allocation14 + $0x20] sm:$0xff]
        %v4061 = vld [vmem:[#allocation14 + $0x28] sm:$0xff]
        %v4062 = vld [vmem:[#allocation14 + $0x30] sm:$0xff]
        %v4063 = vld [vmem:[#allocation14 + $0x38] sm:$0xff]
        %v4065 = vsel %vm3115, %v4055, 0
        %4067 = vmatprep.subr.mxu0 0.0
        %4068 = vmatpush1.msra.mxu0 %v4056
        %4069 = vmatprep.subr.mxu0 0.0
        %4070 = vmatpush1.msra.mxu0 %v4057
        %4071 = vmatprep.subr.mxu0 0.0
        %4072 = vmatpush1.msra.mxu0 %v4058
        %4073 = vmatprep.subr.mxu0 0.0
        %4074 = vmatpush1.msra.mxu0 %v4059
        %4075 = vmatprep.subr.mxu0 0.0
        %4076 = vmatpush1.msra.mxu0 %v4060
        %4077 = vmatprep.subr.mxu0 0.0
        %4078 = vmatpush1.msra.mxu0 %v4061
        %4079 = vmatprep.subr.mxu0 0.0
        %4080 = vmatpush1.msra.mxu0 %v4062
        %4081 = vmatprep.subr.mxu0 0.0
        %4082 = vmatpush1.msra.mxu0 %v4063
        %4083 = vmatprep.subr.mxu0 0.0
        %4084 = vmatpush1.msra.mxu0 0.0
        %4085 = vmatprep.subr.mxu0 0.0
        %4086 = vmatpush1.msra.mxu0 0.0
        %4087 = vmatprep.subr.mxu0 0.0
        %4088 = vmatpush1.msra.mxu0 0.0
        %4089 = vmatprep.subr.mxu0 0.0
        %4090 = vmatpush1.msra.mxu0 0.0
        %4091 = vmatprep.subr.mxu0 0.0
        %4092 = vmatpush1.msra.mxu0 0.0
        %4093 = vmatprep.subr.mxu0 0.0
        %4094 = vmatpush1.msra.mxu0 0.0
        %4095 = vmatprep.subr.mxu0 0.0
        %4096 = vmatpush1.msra.mxu0 0.0
        %4097 = vmatprep.subr.mxu0 0.0
        %4098 = vmatpush1.msra.mxu0 0.0
        %4099 = vmatprep.subr.mxu0 0.0
        %4100 = vmatpush1.msra.mxu0 0.0
        %4101 = vmatprep.subr.mxu0 0.0
        %4102 = vmatpush1.msra.mxu0 0.0
        %4103 = vmatprep.subr.mxu0 0.0
        %4104 = vmatpush1.msra.mxu0 0.0
        %4105 = vmatprep.subr.mxu0 0.0
        %4106 = vmatpush1.msra.mxu0 0.0
        %4107 = vmatprep.subr.mxu0 0.0
        %4108 = vmatpush1.msra.mxu0 0.0
        %4109 = vmatprep.subr.mxu0 0.0
        %4110 = vmatpush1.msra.mxu0 0.0
        %4111 = vmatprep.subr.mxu0 0.0
        %4112 = vmatpush1.msra.mxu0 0.0
        %4113 = vmatprep.subr.mxu0 0.0
        %4114 = vmatpush1.msra.mxu0 0.0
        %4115 = vmatprep.subr.mxu0 0.0
        %4116 = vmatpush1.msra.mxu0 0.0
        %4117 = vmatprep.subr.mxu0 0.0
        %4118 = vmatpush1.msra.mxu0 0.0
        %4119 = vmatprep.subr.mxu0 0.0
        %4120 = vmatpush1.msra.mxu0 0.0
        %4121 = vmatprep.subr.mxu0 0.0
        %4122 = vmatpush1.msra.mxu0 0.0
        %4123 = vmatprep.subr.mxu0 0.0
        %4124 = vmatpush1.msra.mxu0 0.0
        %4125 = vmatprep.subr.mxu0 0.0
        %4126 = vmatpush1.msra.mxu0 0.0
        %4127 = vmatprep.subr.mxu0 0.0
        %4128 = vmatpush1.msra.mxu0 0.0
        %4129 = vmatprep.subr.mxu0 0.0
        %4130 = vmatpush1.msra.mxu0 0.0
        %4131 = vmatprep.mubr.f32.mxu0 0.0
        %4132 = vmatmul.mubr.f32.gmra.mrb[0].mxu0 %v4065
        %v4133 = vpop.f32.mrb[0].mxu0
        %v4134 = vadd.f32 0.0, %v4133
        %v4135 = vpop.f32.mrb[0].mxu0
        %4136 = vdwg.mxu0
        %v4138 = vsel %vm3115, %v4036, 0
        %4140 = vmatprep.subr.mxu0 0.0
        %4141 = vmatpush1.msra.mxu0 %v4047
        %4142 = vmatprep.subr.mxu0 0.0
        %4143 = vmatpush1.msra.mxu0 %v4048
        %4144 = vmatprep.subr.mxu0 0.0
        %4145 = vmatpush1.msra.mxu0 %v4049
        %4146 = vmatprep.subr.mxu0 0.0
        %4147 = vmatpush1.msra.mxu0 %v4050
        %4148 = vmatprep.subr.mxu0 0.0
        %4149 = vmatpush1.msra.mxu0 %v4051
        %4150 = vmatprep.subr.mxu0 0.0
        %4151 = vmatpush1.msra.mxu0 %v4052
        %4152 = vmatprep.subr.mxu0 0.0
        %4153 = vmatpush1.msra.mxu0 %v4053
        %4154 = vmatprep.subr.mxu0 0.0
        %4155 = vmatpush1.msra.mxu0 %v4054
        %4156 = vmatprep.subr.mxu0 0.0
        %4157 = vmatpush1.msra.mxu0 0.0
        %4158 = vmatprep.subr.mxu0 0.0
        %4159 = vmatpush1.msra.mxu0 0.0
        %4160 = vmatprep.subr.mxu0 0.0
        %4161 = vmatpush1.msra.mxu0 0.0
        %4162 = vmatprep.subr.mxu0 0.0
        %4163 = vmatpush1.msra.mxu0 0.0
        %4164 = vmatprep.subr.mxu0 0.0
        %4165 = vmatpush1.msra.mxu0 0.0
        %4166 = vmatprep.subr.mxu0 0.0
        %4167 = vmatpush1.msra.mxu0 0.0
        %4168 = vmatprep.subr.mxu0 0.0
        %4169 = vmatpush1.msra.mxu0 0.0
        %4170 = vmatprep.subr.mxu0 0.0
        %4171 = vmatpush1.msra.mxu0 0.0
        %4172 = vmatprep.subr.mxu0 0.0
        %4173 = vmatpush1.msra.mxu0 0.0
        %4174 = vmatprep.subr.mxu0 0.0
        %4175 = vmatpush1.msra.mxu0 0.0
        %4176 = vmatprep.subr.mxu0 0.0
        %4177 = vmatpush1.msra.mxu0 0.0
        %4178 = vmatprep.subr.mxu0 0.0
        %4179 = vmatpush1.msra.mxu0 0.0
        %4180 = vmatprep.subr.mxu0 0.0
        %4181 = vmatpush1.msra.mxu0 0.0
        %4182 = vmatprep.subr.mxu0 0.0
        %4183 = vmatpush1.msra.mxu0 0.0
        %4184 = vmatprep.subr.mxu0 0.0
        %4185 = vmatpush1.msra.mxu0 0.0
        %4186 = vmatprep.subr.mxu0 0.0
        %4187 = vmatpush1.msra.mxu0 0.0
        %4188 = vmatprep.subr.mxu0 0.0
        %4189 = vmatpush1.msra.mxu0 0.0
        %4190 = vmatprep.subr.mxu0 0.0
        %4191 = vmatpush1.msra.mxu0 0.0
        %4192 = vmatprep.subr.mxu0 0.0
        %4193 = vmatpush1.msra.mxu0 0.0
        %4194 = vmatprep.subr.mxu0 0.0
        %4195 = vmatpush1.msra.mxu0 0.0
        %4196 = vmatprep.subr.mxu0 0.0
        %4197 = vmatpush1.msra.mxu0 0.0
        %4198 = vmatprep.subr.mxu0 0.0
        %4199 = vmatpush1.msra.mxu0 0.0
        %4200 = vmatprep.subr.mxu0 0.0
        %4201 = vmatpush1.msra.mxu0 0.0
        %4202 = vmatprep.subr.mxu0 0.0
        %4203 = vmatpush1.msra.mxu0 0.0
        %4204 = vmatprep.mubr.f32.mxu0 0.0
        %4205 = vmatmul.mubr.f32.gmra.mrb[0].mxu0 %v4138
        %v4206 = vpop.f32.mrb[0].mxu0
        %v4207 = vadd.f32 %v4134, %v4206
        %v4208 = vpop.f32.mrb[0].mxu0
        %4209 = vdwg.mxu0
        %v4210 = vld [vmem:[#allocation3 + $0x2] sm:$0xff]
        %s4211 = scalar_lea.vmem [#allocation14], 128
        %v4212 = vld [vmem:[%s4211] sm:$0xff]
        %v4213 = vld [vmem:[%s4211 + $0x8] sm:$0xff]
        %v4214 = vld [vmem:[%s4211 + $0x10] sm:$0xff]
        %v4215 = vld [vmem:[%s4211 + $0x18] sm:$0xff]
        %v4216 = vld [vmem:[%s4211 + $0x20] sm:$0xff]
        %v4217 = vld [vmem:[%s4211 + $0x28] sm:$0xff]
        %v4218 = vld [vmem:[%s4211 + $0x30] sm:$0xff]
        %v4219 = vld [vmem:[%s4211 + $0x38] sm:$0xff]
        %v4221 = vsel %vm3115, %v4210, 0
        %4223 = vmatprep.subr.mxu0 0.0
        %4224 = vmatpush1.msra.mxu0 %v4212
        %4225 = vmatprep.subr.mxu0 0.0
        %4226 = vmatpush1.msra.mxu0 %v4213
        %4227 = vmatprep.subr.mxu0 0.0
        %4228 = vmatpush1.msra.mxu0 %v4214
        %4229 = vmatprep.subr.mxu0 0.0
        %4230 = vmatpush1.msra.mxu0 %v4215
        %4231 = vmatprep.subr.mxu0 0.0
        %4232 = vmatpush1.msra.mxu0 %v4216
        %4233 = vmatprep.subr.mxu0 0.0
        %4234 = vmatpush1.msra.mxu0 %v4217
        %4235 = vmatprep.subr.mxu0 0.0
        %4236 = vmatpush1.msra.mxu0 %v4218
        %4237 = vmatprep.subr.mxu0 0.0
        %4238 = vmatpush1.msra.mxu0 %v4219
        %4239 = vmatprep.subr.mxu0 0.0
        %4240 = vmatpush1.msra.mxu0 0.0
        %4241 = vmatprep.subr.mxu0 0.0
        %4242 = vmatpush1.msra.mxu0 0.0
        %4243 = vmatprep.subr.mxu0 0.0
        %4244 = vmatpush1.msra.mxu0 0.0
        %4245 = vmatprep.subr.mxu0 0.0
        %4246 = vmatpush1.msra.mxu0 0.0
        %4247 = vmatprep.subr.mxu0 0.0
        %4248 = vmatpush1.msra.mxu0 0.0
        %4249 = vmatprep.subr.mxu0 0.0
        %4250 = vmatpush1.msra.mxu0 0.0
        %4251 = vmatprep.subr.mxu0 0.0
        %4252 = vmatpush1.msra.mxu0 0.0
        %4253 = vmatprep.subr.mxu0 0.0
        %4254 = vmatpush1.msra.mxu0 0.0
        %4255 = vmatprep.subr.mxu0 0.0
        %4256 = vmatpush1.msra.mxu0 0.0
        %4257 = vmatprep.subr.mxu0 0.0
        %4258 = vmatpush1.msra.mxu0 0.0
        %4259 = vmatprep.subr.mxu0 0.0
        %4260 = vmatpush1.msra.mxu0 0.0
        %4261 = vmatprep.subr.mxu0 0.0
        %4262 = vmatpush1.msra.mxu0 0.0
        %4263 = vmatprep.subr.mxu0 0.0
        %4264 = vmatpush1.msra.mxu0 0.0
        %4265 = vmatprep.subr.mxu0 0.0
        %4266 = vmatpush1.msra.mxu0 0.0
        %4267 = vmatprep.subr.mxu0 0.0
        %4268 = vmatpush1.msra.mxu0 0.0
        %4269 = vmatprep.subr.mxu0 0.0
        %4270 = vmatpush1.msra.mxu0 0.0
        %4271 = vmatprep.subr.mxu0 0.0
        %4272 = vmatpush1.msra.mxu0 0.0
        %4273 = vmatprep.subr.mxu0 0.0
        %4274 = vmatpush1.msra.mxu0 0.0
        %4275 = vmatprep.subr.mxu0 0.0
        %4276 = vmatpush1.msra.mxu0 0.0
        %4277 = vmatprep.subr.mxu0 0.0
        %4278 = vmatpush1.msra.mxu0 0.0
        %4279 = vmatprep.subr.mxu0 0.0
        %4280 = vmatpush1.msra.mxu0 0.0
        %4281 = vmatprep.subr.mxu0 0.0
        %4282 = vmatpush1.msra.mxu0 0.0
        %4283 = vmatprep.subr.mxu0 0.0
        %4284 = vmatpush1.msra.mxu0 0.0
        %4285 = vmatprep.subr.mxu0 0.0
        %4286 = vmatpush1.msra.mxu0 0.0
        %4287 = vmatprep.mubr.f32.mxu0 0.0
        %4288 = vmatmul.mubr.f32.gmra.mrb[0].mxu0 %v4221
        %v4289 = vpop.f32.mrb[0].mxu0
        %v4290 = vadd.f32 0.0, %v4289
        %v4291 = vpop.f32.mrb[0].mxu0
        %4292 = vdwg.mxu0
        %v4293 = vadd.f32 %v4207, %v4290
        %v4294 = vld [vmem:[#allocation15] sm:$0x1]
        %v4296 = vlaneseq
        %v4297 = vshrl.u32 %v4296, 7
        %v4298 = vsub.s32 0, %v4297
        %v4299 = vrot.slane %v4294, %v4298
        %v4301 = vadd.f32 %v4293, %v4299
        %v4302 = vsel %vm3115, %v4301, 0.0
        %v4303 = vrot.slane %v4302, 4
        %v4304 = vadd.f32 %v4302, %v4303
        %v4305 = vrot.slane %v4304, 2
        %v4306 = vadd.f32 %v4304, %v4305
        %v4307 = vrot.slane %v4306, 1
        %v4308 = vadd.f32 %v4306, %v4307
        %v4309 = vmul.f32 %v4301, %v4301
        %v4310 = vsel %vm3115, %v4309, 0.0
        %v4311 = vrot.slane %v4310, 4
        %v4312 = vadd.f32 %v4310, %v4311
        %v4313 = vrot.slane %v4312, 2
        %v4314 = vadd.f32 %v4312, %v4313
        %v4315 = vrot.slane %v4314, 1
        %v4316 = vadd.f32 %v4314, %v4315
        %v4318 = vsel %vm3115, %v4308, 0
        %4320 = vmatprep.subr.mxu0 0.0
        %4321 = vmatpush1.msra.mxu0 %v4037
        %4322 = vmatprep.subr.mxu0 0.0
        %4323 = vmatpush1.msra.mxu0 %v4038
        %4324 = vmatprep.subr.mxu0 0.0
        %4325 = vmatpush1.msra.mxu0 %v4039
        %4326 = vmatprep.subr.mxu0 0.0
        %4327 = vmatpush1.msra.mxu0 %v4040
        %4328 = vmatprep.subr.mxu0 0.0
        %4329 = vmatpush1.msra.mxu0 %v4041
        %4330 = vmatprep.subr.mxu0 0.0
        %4331 = vmatpush1.msra.mxu0 %v4042
        %4332 = vmatprep.subr.mxu0 0.0
        %4333 = vmatpush1.msra.mxu0 %v4043
        %4334 = vmatprep.subr.mxu0 0.0
        %4335 = vmatpush1.msra.mxu0 %v4044
        %4336 = vmatprep.subr.mxu0 0.0
        %4337 = vmatpush1.msra.mxu0 0.0
        %4338 = vmatprep.subr.mxu0 0.0
        %4339 = vmatpush1.msra.mxu0 0.0
        %4340 = vmatprep.subr.mxu0 0.0
        %4341 = vmatpush1.msra.mxu0 0.0
        %4342 = vmatprep.subr.mxu0 0.0
        %4343 = vmatpush1.msra.mxu0 0.0
        %4344 = vmatprep.subr.mxu0 0.0
        %4345 = vmatpush1.msra.mxu0 0.0
        %4346 = vmatprep.subr.mxu0 0.0
        %4347 = vmatpush1.msra.mxu0 0.0
        %4348 = vmatprep.subr.mxu0 0.0
        %4349 = vmatpush1.msra.mxu0 0.0
        %4350 = vmatprep.subr.mxu0 0.0
        %4351 = vmatpush1.msra.mxu0 0.0
        %4352 = vmatprep.subr.mxu0 0.0
        %4353 = vmatpush1.msra.mxu0 0.0
        %4354 = vmatprep.subr.mxu0 0.0
        %4355 = vmatpush1.msra.mxu0 0.0
        %4356 = vmatprep.subr.mxu0 0.0
        %4357 = vmatpush1.msra.mxu0 0.0
        %4358 = vmatprep.subr.mxu0 0.0
        %4359 = vmatpush1.msra.mxu0 0.0
        %4360 = vmatprep.subr.mxu0 0.0
        %4361 = vmatpush1.msra.mxu0 0.0
        %4362 = vmatprep.subr.mxu0 0.0
        %4363 = vmatpush1.msra.mxu0 0.0
        %4364 = vmatprep.subr.mxu0 0.0
        %4365 = vmatpush1.msra.mxu0 0.0
        %4366 = vmatprep.subr.mxu0 0.0
        %4367 = vmatpush1.msra.mxu0 0.0
        %4368 = vmatprep.subr.mxu0 0.0
        %4369 = vmatpush1.msra.mxu0 0.0
        %4370 = vmatprep.subr.mxu0 0.0
        %4371 = vmatpush1.msra.mxu0 0.0
        %4372 = vmatprep.subr.mxu0 0.0
        %4373 = vmatpush1.msra.mxu0 0.0
        %4374 = vmatprep.subr.mxu0 0.0
        %4375 = vmatpush1.msra.mxu0 0.0
        %4376 = vmatprep.subr.mxu0 0.0
        %4377 = vmatpush1.msra.mxu0 0.0
        %4378 = vmatprep.subr.mxu0 0.0
        %4379 = vmatpush1.msra.mxu0 0.0
        %4380 = vmatprep.subr.mxu0 0.0
        %4381 = vmatpush1.msra.mxu0 0.0
        %4382 = vmatprep.subr.mxu0 0.0
        %4383 = vmatpush1.msra.mxu0 0.0
        %4384 = vmatprep.mubr.f32.mxu0 0.0
        %4385 = vmatmul.mubr.f32.gmra.mrb[0].mxu0 %v4318
        %v4386 = vpop.f32.mrb[0].mxu0
        %v4387 = vadd.f32 0.0, %v4386
        %v4388 = vpop.f32.mrb[0].mxu0
        %4389 = vdwg.mxu0
        %v4390 = vmul.f32 %v4387, 0.0078125
        %v4392 = vsel %vm3115, %v4316, 0
        %4394 = vmatprep.subr.mxu0 0.0
        %4395 = vmatpush1.msra.mxu0 %v4037
        %4396 = vmatprep.subr.mxu0 0.0
        %4397 = vmatpush1.msra.mxu0 %v4038
        %4398 = vmatprep.subr.mxu0 0.0
        %4399 = vmatpush1.msra.mxu0 %v4039
        %4400 = vmatprep.subr.mxu0 0.0
        %4401 = vmatpush1.msra.mxu0 %v4040
        %4402 = vmatprep.subr.mxu0 0.0
        %4403 = vmatpush1.msra.mxu0 %v4041
        %4404 = vmatprep.subr.mxu0 0.0
        %4405 = vmatpush1.msra.mxu0 %v4042
        %4406 = vmatprep.subr.mxu0 0.0
        %4407 = vmatpush1.msra.mxu0 %v4043
        %4408 = vmatprep.subr.mxu0 0.0
        %4409 = vmatpush1.msra.mxu0 %v4044
        %4410 = vmatprep.subr.mxu0 0.0
        %4411 = vmatpush1.msra.mxu0 0.0
        %4412 = vmatprep.subr.mxu0 0.0
        %4413 = vmatpush1.msra.mxu0 0.0
        %4414 = vmatprep.subr.mxu0 0.0
        %4415 = vmatpush1.msra.mxu0 0.0
        %4416 = vmatprep.subr.mxu0 0.0
        %4417 = vmatpush1.msra.mxu0 0.0
        %4418 = vmatprep.subr.mxu0 0.0
        %4419 = vmatpush1.msra.mxu0 0.0
        %4420 = vmatprep.subr.mxu0 0.0
        %4421 = vmatpush1.msra.mxu0 0.0
        %4422 = vmatprep.subr.mxu0 0.0
        %4423 = vmatpush1.msra.mxu0 0.0
        %4424 = vmatprep.subr.mxu0 0.0
        %4425 = vmatpush1.msra.mxu0 0.0
        %4426 = vmatprep.subr.mxu0 0.0
        %4427 = vmatpush1.msra.mxu0 0.0
        %4428 = vmatprep.subr.mxu0 0.0
        %4429 = vmatpush1.msra.mxu0 0.0
        %4430 = vmatprep.subr.mxu0 0.0
        %4431 = vmatpush1.msra.mxu0 0.0
        %4432 = vmatprep.subr.mxu0 0.0
        %4433 = vmatpush1.msra.mxu0 0.0
        %4434 = vmatprep.subr.mxu0 0.0
        %4435 = vmatpush1.msra.mxu0 0.0
        %4436 = vmatprep.subr.mxu0 0.0
        %4437 = vmatpush1.msra.mxu0 0.0
        %4438 = vmatprep.subr.mxu0 0.0
        %4439 = vmatpush1.msra.mxu0 0.0
        %4440 = vmatprep.subr.mxu0 0.0
        %4441 = vmatpush1.msra.mxu0 0.0
        %4442 = vmatprep.subr.mxu0 0.0
        %4443 = vmatpush1.msra.mxu0 0.0
        %4444 = vmatprep.subr.mxu0 0.0
        %4445 = vmatpush1.msra.mxu0 0.0
        %4446 = vmatprep.subr.mxu0 0.0
        %4447 = vmatpush1.msra.mxu0 0.0
        %4448 = vmatprep.subr.mxu0 0.0
        %4449 = vmatpush1.msra.mxu0 0.0
        %4450 = vmatprep.subr.mxu0 0.0
        %4451 = vmatpush1.msra.mxu0 0.0
        %4452 = vmatprep.subr.mxu0 0.0
        %4453 = vmatpush1.msra.mxu0 0.0
        %4454 = vmatprep.subr.mxu0 0.0
        %4455 = vmatpush1.msra.mxu0 0.0
        %4456 = vmatprep.subr.mxu0 0.0
        %4457 = vmatpush1.msra.mxu0 0.0
        %4458 = vmatprep.mubr.f32.mxu0 0.0
        %4459 = vmatmul.mubr.f32.gmra.mrb[0].mxu0 %v4392
        %v4460 = vpop.f32.mrb[0].mxu0
        %v4461 = vadd.f32 0.0, %v4460
        %v4462 = vpop.f32.mrb[0].mxu0
        %4463 = vdwg.mxu0
        %v4464 = vmul.f32 %v4461, 0.0078125
        %v4465 = vmul.f32 %v4390, %v4390
        %v4466 = vsub.f32 %v4464, %v4465
        %v4467 = vlaneseq
        %v4468 = vshrl.u32 %v4467, 7
        %v4469 = vsub.s32 0, %v4468
        %v4470 = vrot.slane %v4390, %v4469
        %v4471 = vsub.f32 %v4301, %v4470
        %v4472 = vadd.f32 %v4466, 1e-05
        %v4473 = vrsqrt.pop %v4472
        %v4474 = vlaneseq
        %v4475 = vshrl.u32 %v4474, 7
        %v4476 = vsub.s32 0, %v4475
        %v4477 = vrot.slane %v4473, %v4476
        %v4478 = vmul.f32 %v4471, %v4477
        %s4479 = scalar_lea.vmem [#allocation15], 1
        %v4480 = vld [vmem:[%s4479] sm:$0x1]
        %v4482 = vlaneseq
        %v4483 = vshrl.u32 %v4482, 7
        %v4484 = vsub.s32 0, %v4483
        %v4485 = vrot.slane %v4480, %v4484
        %v4487 = vmul.f32 %v4478, %v4485
        %s4488 = scalar_lea.vmem [#allocation15], 2
        %v4489 = vld [vmem:[%s4488] sm:$0x1]
        %v4491 = vlaneseq
        %v4492 = vshrl.u32 %v4491, 7
        %v4493 = vsub.s32 0, %v4492
        %v4494 = vrot.slane %v4489, %v4493
        %v4496 = vadd.f32 %v4487, %v4494
        %v4497 = vxor.u32 %v4496, 2147483648
        %v4498 = vmul.f32 %v4497, 1.442695
        %v4499 = vpow.pop %v4498
        %v4500 = vadd.f32 %v4499, 1.0
        %v4501 = vrcp.pop %v4500
        %v4502 = vmul.f32 1.0, %v4501
        %v4503 = vmul.f32 %v4496, %v4502
        %4504 = vst.msk [vmem:[#allocation3 + $0x1] sm:$0xff] %vm3115, %v4503
        %s4505 = scalar_lea.vmem [#allocation14], 256
        %v4506 = vld [vmem:[%s4505] sm:$0xff]
        %v4507 = vld [vmem:[%s4505 + $0x8] sm:$0xff]
        %v4508 = vld [vmem:[%s4505 + $0x10] sm:$0xff]
        %v4509 = vld [vmem:[%s4505 + $0x18] sm:$0xff]
        %v4510 = vld [vmem:[%s4505 + $0x20] sm:$0xff]
        %v4511 = vld [vmem:[%s4505 + $0x28] sm:$0xff]
        %v4512 = vld [vmem:[%s4505 + $0x30] sm:$0xff]
        %v4513 = vld [vmem:[%s4505 + $0x38] sm:$0xff]
        %v4514 = vld [vmem:[#allocation3] sm:$0xff]
        %s4515 = scalar_lea.vmem [#allocation14], 192
        %v4516 = vld [vmem:[%s4515] sm:$0xff]
        %v4517 = vld [vmem:[%s4515 + $0x8] sm:$0xff]
        %v4518 = vld [vmem:[%s4515 + $0x10] sm:$0xff]
        %v4519 = vld [vmem:[%s4515 + $0x18] sm:$0xff]
        %v4520 = vld [vmem:[%s4515 + $0x20] sm:$0xff]
        %v4521 = vld [vmem:[%s4515 + $0x28] sm:$0xff]
        %v4522 = vld [vmem:[%s4515 + $0x30] sm:$0xff]
        %v4523 = vld [vmem:[%s4515 + $0x38] sm:$0xff]
        %v4525 = vsel %vm3115, %v4514, 0
        %4527 = vmatprep.subr.mxu0 0.0
        %4528 = vmatpush1.msra.mxu0 %v4516
        %4529 = vmatprep.subr.mxu0 0.0
        %4530 = vmatpush1.msra.mxu0 %v4517
        %4531 = vmatprep.subr.mxu0 0.0
        %4532 = vmatpush1.msra.mxu0 %v4518
        %4533 = vmatprep.subr.mxu0 0.0
        %4534 = vmatpush1.msra.mxu0 %v4519
        %4535 = vmatprep.subr.mxu0 0.0
        %4536 = vmatpush1.msra.mxu0 %v4520
        %4537 = vmatprep.subr.mxu0 0.0
        %4538 = vmatpush1.msra.mxu0 %v4521
        %4539 = vmatprep.subr.mxu0 0.0
        %4540 = vmatpush1.msra.mxu0 %v4522
        %4541 = vmatprep.subr.mxu0 0.0
        %4542 = vmatpush1.msra.mxu0 %v4523
        %4543 = vmatprep.subr.mxu0 0.0
        %4544 = vmatpush1.msra.mxu0 0.0
        %4545 = vmatprep.subr.mxu0 0.0
        %4546 = vmatpush1.msra.mxu0 0.0
        %4547 = vmatprep.subr.mxu0 0.0
        %4548 = vmatpush1.msra.mxu0 0.0
        %4549 = vmatprep.subr.mxu0 0.0
        %4550 = vmatpush1.msra.mxu0 0.0
        %4551 = vmatprep.subr.mxu0 0.0
        %4552 = vmatpush1.msra.mxu0 0.0
        %4553 = vmatprep.subr.mxu0 0.0
        %4554 = vmatpush1.msra.mxu0 0.0
        %4555 = vmatprep.subr.mxu0 0.0
        %4556 = vmatpush1.msra.mxu0 0.0
        %4557 = vmatprep.subr.mxu0 0.0
        %4558 = vmatpush1.msra.mxu0 0.0
        %4559 = vmatprep.subr.mxu0 0.0
        %4560 = vmatpush1.msra.mxu0 0.0
        %4561 = vmatprep.subr.mxu0 0.0
        %4562 = vmatpush1.msra.mxu0 0.0
        %4563 = vmatprep.subr.mxu0 0.0
        %4564 = vmatpush1.msra.mxu0 0.0
        %4565 = vmatprep.subr.mxu0 0.0
        %4566 = vmatpush1.msra.mxu0 0.0
        %4567 = vmatprep.subr.mxu0 0.0
        %4568 = vmatpush1.msra.mxu0 0.0
        %4569 = vmatprep.subr.mxu0 0.0
        %4570 = vmatpush1.msra.mxu0 0.0
        %4571 = vmatprep.subr.mxu0 0.0
        %4572 = vmatpush1.msra.mxu0 0.0
        %4573 = vmatprep.subr.mxu0 0.0
        %4574 = vmatpush1.msra.mxu0 0.0
        %4575 = vmatprep.subr.mxu0 0.0
        %4576 = vmatpush1.msra.mxu0 0.0
        %4577 = vmatprep.subr.mxu0 0.0
        %4578 = vmatpush1.msra.mxu0 0.0
        %4579 = vmatprep.subr.mxu0 0.0
        %4580 = vmatpush1.msra.mxu0 0.0
        %4581 = vmatprep.subr.mxu0 0.0
        %4582 = vmatpush1.msra.mxu0 0.0
        %4583 = vmatprep.subr.mxu0 0.0
        %4584 = vmatpush1.msra.mxu0 0.0
        %4585 = vmatprep.subr.mxu0 0.0
        %4586 = vmatpush1.msra.mxu0 0.0
        %4587 = vmatprep.subr.mxu0 0.0
        %4588 = vmatpush1.msra.mxu0 0.0
        %4589 = vmatprep.subr.mxu0 0.0
        %4590 = vmatpush1.msra.mxu0 0.0
        %4591 = vmatprep.mubr.f32.mxu0 0.0
        %4592 = vmatmul.mubr.f32.gmra.mrb[0].mxu0 %v4525
        %v4593 = vpop.f32.mrb[0].mxu0
        %v4594 = vadd.f32 0.0, %v4593
        %v4595 = vpop.f32.mrb[0].mxu0
        %4596 = vdwg.mxu0
        %v4598 = vsel %vm3115, %v4503, 0
        %4600 = vmatprep.subr.mxu0 0.0
        %4601 = vmatpush1.msra.mxu0 %v4506
        %4602 = vmatprep.subr.mxu0 0.0
        %4603 = vmatpush1.msra.mxu0 %v4507
        %4604 = vmatprep.subr.mxu0 0.0
        %4605 = vmatpush1.msra.mxu0 %v4508
        %4606 = vmatprep.subr.mxu0 0.0
        %4607 = vmatpush1.msra.mxu0 %v4509
        %4608 = vmatprep.subr.mxu0 0.0
        %4609 = vmatpush1.msra.mxu0 %v4510
        %4610 = vmatprep.subr.mxu0 0.0
        %4611 = vmatpush1.msra.mxu0 %v4511
        %4612 = vmatprep.subr.mxu0 0.0
        %4613 = vmatpush1.msra.mxu0 %v4512
        %4614 = vmatprep.subr.mxu0 0.0
        %4615 = vmatpush1.msra.mxu0 %v4513
        %4616 = vmatprep.subr.mxu0 0.0
        %4617 = vmatpush1.msra.mxu0 0.0
        %4618 = vmatprep.subr.mxu0 0.0
        %4619 = vmatpush1.msra.mxu0 0.0
        %4620 = vmatprep.subr.mxu0 0.0
        %4621 = vmatpush1.msra.mxu0 0.0
        %4622 = vmatprep.subr.mxu0 0.0
        %4623 = vmatpush1.msra.mxu0 0.0
        %4624 = vmatprep.subr.mxu0 0.0
        %4625 = vmatpush1.msra.mxu0 0.0
        %4626 = vmatprep.subr.mxu0 0.0
        %4627 = vmatpush1.msra.mxu0 0.0
        %4628 = vmatprep.subr.mxu0 0.0
        %4629 = vmatpush1.msra.mxu0 0.0
        %4630 = vmatprep.subr.mxu0 0.0
        %4631 = vmatpush1.msra.mxu0 0.0
        %4632 = vmatprep.subr.mxu0 0.0
        %4633 = vmatpush1.msra.mxu0 0.0
        %4634 = vmatprep.subr.mxu0 0.0
        %4635 = vmatpush1.msra.mxu0 0.0
        %4636 = vmatprep.subr.mxu0 0.0
        %4637 = vmatpush1.msra.mxu0 0.0
        %4638 = vmatprep.subr.mxu0 0.0
        %4639 = vmatpush1.msra.mxu0 0.0
        %4640 = vmatprep.subr.mxu0 0.0
        %4641 = vmatpush1.msra.mxu0 0.0
        %4642 = vmatprep.subr.mxu0 0.0
        %4643 = vmatpush1.msra.mxu0 0.0
        %4644 = vmatprep.subr.mxu0 0.0
        %4645 = vmatpush1.msra.mxu0 0.0
        %4646 = vmatprep.subr.mxu0 0.0
        %4647 = vmatpush1.msra.mxu0 0.0
        %4648 = vmatprep.subr.mxu0 0.0
        %4649 = vmatpush1.msra.mxu0 0.0
        %4650 = vmatprep.subr.mxu0 0.0
        %4651 = vmatpush1.msra.mxu0 0.0
        %4652 = vmatprep.subr.mxu0 0.0
        %4653 = vmatpush1.msra.mxu0 0.0
        %4654 = vmatprep.subr.mxu0 0.0
        %4655 = vmatpush1.msra.mxu0 0.0
        %4656 = vmatprep.subr.mxu0 0.0
        %4657 = vmatpush1.msra.mxu0 0.0
        %4658 = vmatprep.subr.mxu0 0.0
        %4659 = vmatpush1.msra.mxu0 0.0
        %4660 = vmatprep.subr.mxu0 0.0
        %4661 = vmatpush1.msra.mxu0 0.0
        %4662 = vmatprep.subr.mxu0 0.0
        %4663 = vmatpush1.msra.mxu0 0.0
        %4664 = vmatprep.mubr.f32.mxu0 0.0
        %4665 = vmatmul.mubr.f32.gmra.mrb[0].mxu0 %v4598
        %v4666 = vpop.f32.mrb[0].mxu0
        %v4667 = vadd.f32 %v4594, %v4666
        %v4668 = vpop.f32.mrb[0].mxu0
        %4669 = vdwg.mxu0
        %v4670 = vld [vmem:[#allocation3 + $0x2] sm:$0xff]
        %s4671 = scalar_lea.vmem [#allocation14], 320
        %v4672 = vld [vmem:[%s4671] sm:$0xff]
        %v4673 = vld [vmem:[%s4671 + $0x8] sm:$0xff]
        %v4674 = vld [vmem:[%s4671 + $0x10] sm:$0xff]
        %v4675 = vld [vmem:[%s4671 + $0x18] sm:$0xff]
        %v4676 = vld [vmem:[%s4671 + $0x20] sm:$0xff]
        %v4677 = vld [vmem:[%s4671 + $0x28] sm:$0xff]
        %v4678 = vld [vmem:[%s4671 + $0x30] sm:$0xff]
        %v4679 = vld [vmem:[%s4671 + $0x38] sm:$0xff]
        %v4681 = vsel %vm3115, %v4670, 0
        %4683 = vmatprep.subr.mxu0 0.0
        %4684 = vmatpush1.msra.mxu0 %v4672
        %4685 = vmatprep.subr.mxu0 0.0
        %4686 = vmatpush1.msra.mxu0 %v4673
        %4687 = vmatprep.subr.mxu0 0.0
        %4688 = vmatpush1.msra.mxu0 %v4674
        %4689 = vmatprep.subr.mxu0 0.0
        %4690 = vmatpush1.msra.mxu0 %v4675
        %4691 = vmatprep.subr.mxu0 0.0
        %4692 = vmatpush1.msra.mxu0 %v4676
        %4693 = vmatprep.subr.mxu0 0.0
        %4694 = vmatpush1.msra.mxu0 %v4677
        %4695 = vmatprep.subr.mxu0 0.0
        %4696 = vmatpush1.msra.mxu0 %v4678
        %4697 = vmatprep.subr.mxu0 0.0
        %4698 = vmatpush1.msra.mxu0 %v4679
        %4699 = vmatprep.subr.mxu0 0.0
        %4700 = vmatpush1.msra.mxu0 0.0
        %4701 = vmatprep.subr.mxu0 0.0
        %4702 = vmatpush1.msra.mxu0 0.0
        %4703 = vmatprep.subr.mxu0 0.0
        %4704 = vmatpush1.msra.mxu0 0.0
        %4705 = vmatprep.subr.mxu0 0.0
        %4706 = vmatpush1.msra.mxu0 0.0
        %4707 = vmatprep.subr.mxu0 0.0
        %4708 = vmatpush1.msra.mxu0 0.0
        %4709 = vmatprep.subr.mxu0 0.0
        %4710 = vmatpush1.msra.mxu0 0.0
        %4711 = vmatprep.subr.mxu0 0.0
        %4712 = vmatpush1.msra.mxu0 0.0
        %4713 = vmatprep.subr.mxu0 0.0
        %4714 = vmatpush1.msra.mxu0 0.0
        %4715 = vmatprep.subr.mxu0 0.0
        %4716 = vmatpush1.msra.mxu0 0.0
        %4717 = vmatprep.subr.mxu0 0.0
        %4718 = vmatpush1.msra.mxu0 0.0
        %4719 = vmatprep.subr.mxu0 0.0
        %4720 = vmatpush1.msra.mxu0 0.0
        %4721 = vmatprep.subr.mxu0 0.0
        %4722 = vmatpush1.msra.mxu0 0.0
        %4723 = vmatprep.subr.mxu0 0.0
        %4724 = vmatpush1.msra.mxu0 0.0
        %4725 = vmatprep.subr.mxu0 0.0
        %4726 = vmatpush1.msra.mxu0 0.0
        %4727 = vmatprep.subr.mxu0 0.0
        %4728 = vmatpush1.msra.mxu0 0.0
        %4729 = vmatprep.subr.mxu0 0.0
        %4730 = vmatpush1.msra.mxu0 0.0
        %4731 = vmatprep.subr.mxu0 0.0
        %4732 = vmatpush1.msra.mxu0 0.0
        %4733 = vmatprep.subr.mxu0 0.0
        %4734 = vmatpush1.msra.mxu0 0.0
        %4735 = vmatprep.subr.mxu0 0.0
        %4736 = vmatpush1.msra.mxu0 0.0
        %4737 = vmatprep.subr.mxu0 0.0
        %4738 = vmatpush1.msra.mxu0 0.0
        %4739 = vmatprep.subr.mxu0 0.0
        %4740 = vmatpush1.msra.mxu0 0.0
        %4741 = vmatprep.subr.mxu0 0.0
        %4742 = vmatpush1.msra.mxu0 0.0
        %4743 = vmatprep.subr.mxu0 0.0
        %4744 = vmatpush1.msra.mxu0 0.0
        %4745 = vmatprep.subr.mxu0 0.0
        %4746 = vmatpush1.msra.mxu0 0.0
        %4747 = vmatprep.mubr.f32.mxu0 0.0
        %4748 = vmatmul.mubr.f32.gmra.mrb[0].mxu0 %v4681
        %v4749 = vpop.f32.mrb[0].mxu0
        %v4750 = vadd.f32 0.0, %v4749
        %v4751 = vpop.f32.mrb[0].mxu0
        %4752 = vdwg.mxu0
        %v4753 = vadd.f32 %v4667, %v4750
        %s4754 = scalar_lea.vmem [#allocation15], 3
        %v4755 = vld [vmem:[%s4754] sm:$0x1]
        %v4757 = vlaneseq
        %v4758 = vshrl.u32 %v4757, 7
        %v4759 = vsub.s32 0, %v4758
        %v4760 = vrot.slane %v4755, %v4759
        %v4762 = vadd.f32 %v4753, %v4760
        %v4763 = vsel %vm3115, %v4762, 0.0
        %v4764 = vrot.slane %v4763, 4
        %v4765 = vadd.f32 %v4763, %v4764
        %v4766 = vrot.slane %v4765, 2
        %v4767 = vadd.f32 %v4765, %v4766
        %v4768 = vrot.slane %v4767, 1
        %v4769 = vadd.f32 %v4767, %v4768
        %v4770 = vmul.f32 %v4762, %v4762
        %v4771 = vsel %vm3115, %v4770, 0.0
        %v4772 = vrot.slane %v4771, 4
        %v4773 = vadd.f32 %v4771, %v4772
        %v4774 = vrot.slane %v4773, 2
        %v4775 = vadd.f32 %v4773, %v4774
        %v4776 = vrot.slane %v4775, 1
        %v4777 = vadd.f32 %v4775, %v4776
        %v4779 = vsel %vm3115, %v4769, 0
        %4781 = vmatprep.subr.mxu0 0.0
        %4782 = vmatpush1.msra.mxu0 %v4037
        %4783 = vmatprep.subr.mxu0 0.0
        %4784 = vmatpush1.msra.mxu0 %v4038
        %4785 = vmatprep.subr.mxu0 0.0
        %4786 = vmatpush1.msra.mxu0 %v4039
        %4787 = vmatprep.subr.mxu0 0.0
        %4788 = vmatpush1.msra.mxu0 %v4040
        %4789 = vmatprep.subr.mxu0 0.0
        %4790 = vmatpush1.msra.mxu0 %v4041
        %4791 = vmatprep.subr.mxu0 0.0
        %4792 = vmatpush1.msra.mxu0 %v4042
        %4793 = vmatprep.subr.mxu0 0.0
        %4794 = vmatpush1.msra.mxu0 %v4043
        %4795 = vmatprep.subr.mxu0 0.0
        %4796 = vmatpush1.msra.mxu0 %v4044
        %4797 = vmatprep.subr.mxu0 0.0
        %4798 = vmatpush1.msra.mxu0 0.0
        %4799 = vmatprep.subr.mxu0 0.0
        %4800 = vmatpush1.msra.mxu0 0.0
        %4801 = vmatprep.subr.mxu0 0.0
        %4802 = vmatpush1.msra.mxu0 0.0
        %4803 = vmatprep.subr.mxu0 0.0
        %4804 = vmatpush1.msra.mxu0 0.0
        %4805 = vmatprep.subr.mxu0 0.0
        %4806 = vmatpush1.msra.mxu0 0.0
        %4807 = vmatprep.subr.mxu0 0.0
        %4808 = vmatpush1.msra.mxu0 0.0
        %4809 = vmatprep.subr.mxu0 0.0
        %4810 = vmatpush1.msra.mxu0 0.0
        %4811 = vmatprep.subr.mxu0 0.0
        %4812 = vmatpush1.msra.mxu0 0.0
        %4813 = vmatprep.subr.mxu0 0.0
        %4814 = vmatpush1.msra.mxu0 0.0
        %4815 = vmatprep.subr.mxu0 0.0
        %4816 = vmatpush1.msra.mxu0 0.0
        %4817 = vmatprep.subr.mxu0 0.0
        %4818 = vmatpush1.msra.mxu0 0.0
        %4819 = vmatprep.subr.mxu0 0.0
        %4820 = vmatpush1.msra.mxu0 0.0
        %4821 = vmatprep.subr.mxu0 0.0
        %4822 = vmatpush1.msra.mxu0 0.0
        %4823 = vmatprep.subr.mxu0 0.0
        %4824 = vmatpush1.msra.mxu0 0.0
        %4825 = vmatprep.subr.mxu0 0.0
        %4826 = vmatpush1.msra.mxu0 0.0
        %4827 = vmatprep.subr.mxu0 0.0
        %4828 = vmatpush1.msra.mxu0 0.0
        %4829 = vmatprep.subr.mxu0 0.0
        %4830 = vmatpush1.msra.mxu0 0.0
        %4831 = vmatprep.subr.mxu0 0.0
        %4832 = vmatpush1.msra.mxu0 0.0
        %4833 = vmatprep.subr.mxu0 0.0
        %4834 = vmatpush1.msra.mxu0 0.0
        %4835 = vmatprep.subr.mxu0 0.0
        %4836 = vmatpush1.msra.mxu0 0.0
        %4837 = vmatprep.subr.mxu0 0.0
        %4838 = vmatpush1.msra.mxu0 0.0
        %4839 = vmatprep.subr.mxu0 0.0
        %4840 = vmatpush1.msra.mxu0 0.0
        %4841 = vmatprep.subr.mxu0 0.0
        %4842 = vmatpush1.msra.mxu0 0.0
        %4843 = vmatprep.subr.mxu0 0.0
        %4844 = vmatpush1.msra.mxu0 0.0
        %4845 = vmatprep.mubr.f32.mxu0 0.0
        %4846 = vmatmul.mubr.f32.gmra.mrb[0].mxu0 %v4779
        %v4847 = vpop.f32.mrb[0].mxu0
        %v4848 = vadd.f32 0.0, %v4847
        %v4849 = vpop.f32.mrb[0].mxu0
        %4850 = vdwg.mxu0
        %v4851 = vmul.f32 %v4848, 0.0078125
        %v4853 = vsel %vm3115, %v4777, 0
        %4855 = vmatprep.subr.mxu0 0.0
        %4856 = vmatpush1.msra.mxu0 %v4037
        %4857 = vmatprep.subr.mxu0 0.0
        %4858 = vmatpush1.msra.mxu0 %v4038
        %4859 = vmatprep.subr.mxu0 0.0
        %4860 = vmatpush1.msra.mxu0 %v4039
        %4861 = vmatprep.subr.mxu0 0.0
        %4862 = vmatpush1.msra.mxu0 %v4040
        %4863 = vmatprep.subr.mxu0 0.0
        %4864 = vmatpush1.msra.mxu0 %v4041
        %4865 = vmatprep.subr.mxu0 0.0
        %4866 = vmatpush1.msra.mxu0 %v4042
        %4867 = vmatprep.subr.mxu0 0.0
        %4868 = vmatpush1.msra.mxu0 %v4043
        %4869 = vmatprep.subr.mxu0 0.0
        %4870 = vmatpush1.msra.mxu0 %v4044
        %4871 = vmatprep.subr.mxu0 0.0
        %4872 = vmatpush1.msra.mxu0 0.0
        %4873 = vmatprep.subr.mxu0 0.0
        %4874 = vmatpush1.msra.mxu0 0.0
        %4875 = vmatprep.subr.mxu0 0.0
        %4876 = vmatpush1.msra.mxu0 0.0
        %4877 = vmatprep.subr.mxu0 0.0
        %4878 = vmatpush1.msra.mxu0 0.0
        %4879 = vmatprep.subr.mxu0 0.0
        %4880 = vmatpush1.msra.mxu0 0.0
        %4881 = vmatprep.subr.mxu0 0.0
        %4882 = vmatpush1.msra.mxu0 0.0
        %4883 = vmatprep.subr.mxu0 0.0
        %4884 = vmatpush1.msra.mxu0 0.0
        %4885 = vmatprep.subr.mxu0 0.0
        %4886 = vmatpush1.msra.mxu0 0.0
        %4887 = vmatprep.subr.mxu0 0.0
        %4888 = vmatpush1.msra.mxu0 0.0
        %4889 = vmatprep.subr.mxu0 0.0
        %4890 = vmatpush1.msra.mxu0 0.0
        %4891 = vmatprep.subr.mxu0 0.0
        %4892 = vmatpush1.msra.mxu0 0.0
        %4893 = vmatprep.subr.mxu0 0.0
        %4894 = vmatpush1.msra.mxu0 0.0
        %4895 = vmatprep.subr.mxu0 0.0
        %4896 = vmatpush1.msra.mxu0 0.0
        %4897 = vmatprep.subr.mxu0 0.0
        %4898 = vmatpush1.msra.mxu0 0.0
        %4899 = vmatprep.subr.mxu0 0.0
        %4900 = vmatpush1.msra.mxu0 0.0
        %4901 = vmatprep.subr.mxu0 0.0
        %4902 = vmatpush1.msra.mxu0 0.0
        %4903 = vmatprep.subr.mxu0 0.0
        %4904 = vmatpush1.msra.mxu0 0.0
        %4905 = vmatprep.subr.mxu0 0.0
        %4906 = vmatpush1.msra.mxu0 0.0
        %4907 = vmatprep.subr.mxu0 0.0
        %4908 = vmatpush1.msra.mxu0 0.0
        %4909 = vmatprep.subr.mxu0 0.0
        %4910 = vmatpush1.msra.mxu0 0.0
        %4911 = vmatprep.subr.mxu0 0.0
        %4912 = vmatpush1.msra.mxu0 0.0
        %4913 = vmatprep.subr.mxu0 0.0
        %4914 = vmatpush1.msra.mxu0 0.0
        %4915 = vmatprep.subr.mxu0 0.0
        %4916 = vmatpush1.msra.mxu0 0.0
        %4917 = vmatprep.subr.mxu0 0.0
        %4918 = vmatpush1.msra.mxu0 0.0
        %4919 = vmatprep.mubr.f32.mxu0 0.0
        %4920 = vmatmul.mubr.f32.gmra.mrb[0].mxu0 %v4853
        %v4921 = vpop.f32.mrb[0].mxu0
        %v4922 = vadd.f32 0.0, %v4921
        %v4923 = vpop.f32.mrb[0].mxu0
        %4924 = vdwg.mxu0
        %v4925 = vmul.f32 %v4922, 0.0078125
        %v4926 = vmul.f32 %v4851, %v4851
        %v4927 = vsub.f32 %v4925, %v4926
        %v4928 = vlaneseq
        %v4929 = vshrl.u32 %v4928, 7
        %v4930 = vsub.s32 0, %v4929
        %v4931 = vrot.slane %v4851, %v4930
        %v4932 = vsub.f32 %v4762, %v4931
        %v4933 = vadd.f32 %v4927, 1e-05
        %v4934 = vrsqrt.pop %v4933
        %v4935 = vlaneseq
        %v4936 = vshrl.u32 %v4935, 7
        %v4937 = vsub.s32 0, %v4936
        %v4938 = vrot.slane %v4934, %v4937
        %v4939 = vmul.f32 %v4932, %v4938
        %s4940 = scalar_lea.vmem [#allocation15], 4
        %v4941 = vld [vmem:[%s4940] sm:$0x1]
        %v4943 = vlaneseq
        %v4944 = vshrl.u32 %v4943, 7
        %v4945 = vsub.s32 0, %v4944
        %v4946 = vrot.slane %v4941, %v4945
        %v4948 = vmul.f32 %v4939, %v4946
        %s4949 = scalar_lea.vmem [#allocation15], 5
        %v4950 = vld [vmem:[%s4949] sm:$0x1]
        %v4952 = vlaneseq
        %v4953 = vshrl.u32 %v4952, 7
        %v4954 = vsub.s32 0, %v4953
        %v4955 = vrot.slane %v4950, %v4954
        %v4957 = vadd.f32 %v4948, %v4955
        %v4958 = vxor.u32 %v4957, 2147483648
        %v4959 = vmul.f32 %v4958, 1.442695
        %v4960 = vpow.pop %v4959
        %v4961 = vadd.f32 %v4960, 1.0
        %v4962 = vrcp.pop %v4961
        %v4963 = vmul.f32 1.0, %v4962
        %v4964 = vmul.f32 %v4957, %v4963
        %v4965 = vadd.f32 %v4964, %v4036
        %v4966 = vld [vmem:[#allocation17] sm:$0xf]
        %vm4967 = vcmask 64512
        %v4969 = vsel %vm4967, %v4966, 0
        %4971 = vmatprep.subr.mxu0 0.0
        %4972 = vmatpush1.msra.mxu0 %v4965
        %4973 = vmatprep.subr.mxu0 0.0
        %4974 = vmatpush1.msra.mxu0 0.0
        %4975 = vmatprep.subr.mxu0 0.0
        %4976 = vmatpush1.msra.mxu0 0.0
        %4977 = vmatprep.subr.mxu0 0.0
        %4978 = vmatpush1.msra.mxu0 0.0
        %4979 = vmatprep.subr.mxu0 0.0
        %4980 = vmatpush1.msra.mxu0 0.0
        %4981 = vmatprep.subr.mxu0 0.0
        %4982 = vmatpush1.msra.mxu0 0.0
        %4983 = vmatprep.subr.mxu0 0.0
        %4984 = vmatpush1.msra.mxu0 0.0
        %4985 = vmatprep.subr.mxu0 0.0
        %4986 = vmatpush1.msra.mxu0 0.0
        %4987 = vmatprep.subr.mxu0 0.0
        %4988 = vmatpush1.msra.mxu0 0.0
        %4989 = vmatprep.subr.mxu0 0.0
        %4990 = vmatpush1.msra.mxu0 0.0
        %4991 = vmatprep.subr.mxu0 0.0
        %4992 = vmatpush1.msra.mxu0 0.0
        %4993 = vmatprep.subr.mxu0 0.0
        %4994 = vmatpush1.msra.mxu0 0.0
        %4995 = vmatprep.subr.mxu0 0.0
        %4996 = vmatpush1.msra.mxu0 0.0
        %4997 = vmatprep.subr.mxu0 0.0
        %4998 = vmatpush1.msra.mxu0 0.0
        %4999 = vmatprep.subr.mxu0 0.0
        %5000 = vmatpush1.msra.mxu0 0.0
        %5001 = vmatprep.subr.mxu0 0.0
        %5002 = vmatpush1.msra.mxu0 0.0
        %5003 = vmatprep.subr.mxu0 0.0
        %5004 = vmatpush1.msra.mxu0 0.0
        %5005 = vmatprep.subr.mxu0 0.0
        %5006 = vmatpush1.msra.mxu0 0.0
        %5007 = vmatprep.subr.mxu0 0.0
        %5008 = vmatpush1.msra.mxu0 0.0
        %5009 = vmatprep.subr.mxu0 0.0
        %5010 = vmatpush1.msra.mxu0 0.0
        %5011 = vmatprep.subr.mxu0 0.0
        %5012 = vmatpush1.msra.mxu0 0.0
        %5013 = vmatprep.subr.mxu0 0.0
        %5014 = vmatpush1.msra.mxu0 0.0
        %5015 = vmatprep.subr.mxu0 0.0
        %5016 = vmatpush1.msra.mxu0 0.0
        %5017 = vmatprep.subr.mxu0 0.0
        %5018 = vmatpush1.msra.mxu0 0.0
        %5019 = vmatprep.subr.mxu0 0.0
        %5020 = vmatpush1.msra.mxu0 0.0
        %5021 = vmatprep.subr.mxu0 0.0
        %5022 = vmatpush1.msra.mxu0 0.0
        %5023 = vmatprep.subr.mxu0 0.0
        %5024 = vmatpush1.msra.mxu0 0.0
        %5025 = vmatprep.subr.mxu0 0.0
        %5026 = vmatpush1.msra.mxu0 0.0
        %5027 = vmatprep.subr.mxu0 0.0
        %5028 = vmatpush1.msra.mxu0 0.0
        %5029 = vmatprep.subr.mxu0 0.0
        %5030 = vmatpush1.msra.mxu0 0.0
        %5031 = vmatprep.subr.mxu0 0.0
        %5032 = vmatpush1.msra.mxu0 0.0
        %5033 = vmatprep.subr.mxu0 0.0
        %5034 = vmatpush1.msra.mxu0 0.0
        %5035 = vmatprep.mubr.f32.mxu0 0.0
        %5036 = vmatmul.mubr.f32.gmra.mrb[0].mxu0 %v4969
        %v5037 = vpop.f32.mrb[0].mxu0
        %v5038 = vadd.f32 0.0, %v5037
        %v5039 = vpop.f32.mrb[0].mxu0
        %5040 = vdwg.mxu0
        %v5041 = vld [vmem:[#allocation18] sm:$0xff]
        %v5042 = vld [vmem:[#allocation18 + $0x8] sm:$0xff]
        %v5043 = vld [vmem:[#allocation18 + $0x10] sm:$0xff]
        %v5044 = vld [vmem:[#allocation18 + $0x18] sm:$0xff]
        %v5045 = vld [vmem:[#allocation18 + $0x20] sm:$0xff]
        %v5046 = vld [vmem:[#allocation18 + $0x28] sm:$0xff]
        %v5047 = vld [vmem:[#allocation18 + $0x30] sm:$0xff]
        %v5048 = vld [vmem:[#allocation18 + $0x38] sm:$0xff]
        %v5049 = vld [vmem:[%s20] sm:$0x1]
        %v5051 = vlaneseq
        %v5052 = vshrl.u32 %v5051, 7
        %v5053 = vsub.s32 0, %v5052
        %v5054 = vrot.slane %v5049, %v5053
        %v5057 = vsel %vm3115, %v5038, 0
        %5059 = vmatprep.subr.mxu0 0.0
        %5060 = vmatpush1.msra.mxu0 %v5041
        %5061 = vmatprep.subr.mxu0 0.0
        %5062 = vmatpush1.msra.mxu0 %v5042
        %5063 = vmatprep.subr.mxu0 0.0
        %5064 = vmatpush1.msra.mxu0 %v5043
        %5065 = vmatprep.subr.mxu0 0.0
        %5066 = vmatpush1.msra.mxu0 %v5044
        %5067 = vmatprep.subr.mxu0 0.0
        %5068 = vmatpush1.msra.mxu0 %v5045
        %5069 = vmatprep.subr.mxu0 0.0
        %5070 = vmatpush1.msra.mxu0 %v5046
        %5071 = vmatprep.subr.mxu0 0.0
        %5072 = vmatpush1.msra.mxu0 %v5047
        %5073 = vmatprep.subr.mxu0 0.0
        %5074 = vmatpush1.msra.mxu0 %v5048
        %5075 = vmatprep.subr.mxu0 0.0
        %5076 = vmatpush1.msra.mxu0 0.0
        %5077 = vmatprep.subr.mxu0 0.0
        %5078 = vmatpush1.msra.mxu0 0.0
        %5079 = vmatprep.subr.mxu0 0.0
        %5080 = vmatpush1.msra.mxu0 0.0
        %5081 = vmatprep.subr.mxu0 0.0
        %5082 = vmatpush1.msra.mxu0 0.0
        %5083 = vmatprep.subr.mxu0 0.0
        %5084 = vmatpush1.msra.mxu0 0.0
        %5085 = vmatprep.subr.mxu0 0.0
        %5086 = vmatpush1.msra.mxu0 0.0
        %5087 = vmatprep.subr.mxu0 0.0
        %5088 = vmatpush1.msra.mxu0 0.0
        %5089 = vmatprep.subr.mxu0 0.0
        %5090 = vmatpush1.msra.mxu0 0.0
        %5091 = vmatprep.subr.mxu0 0.0
        %5092 = vmatpush1.msra.mxu0 0.0
        %5093 = vmatprep.subr.mxu0 0.0
        %5094 = vmatpush1.msra.mxu0 0.0
        %5095 = vmatprep.subr.mxu0 0.0
        %5096 = vmatpush1.msra.mxu0 0.0
        %5097 = vmatprep.subr.mxu0 0.0
        %5098 = vmatpush1.msra.mxu0 0.0
        %5099 = vmatprep.subr.mxu0 0.0
        %5100 = vmatpush1.msra.mxu0 0.0
        %5101 = vmatprep.subr.mxu0 0.0
        %5102 = vmatpush1.msra.mxu0 0.0
        %5103 = vmatprep.subr.mxu0 0.0
        %5104 = vmatpush1.msra.mxu0 0.0
        %5105 = vmatprep.subr.mxu0 0.0
        %5106 = vmatpush1.msra.mxu0 0.0
        %5107 = vmatprep.subr.mxu0 0.0
        %5108 = vmatpush1.msra.mxu0 0.0
        %5109 = vmatprep.subr.mxu0 0.0
        %5110 = vmatpush1.msra.mxu0 0.0
        %5111 = vmatprep.subr.mxu0 0.0
        %5112 = vmatpush1.msra.mxu0 0.0
        %5113 = vmatprep.subr.mxu0 0.0
        %5114 = vmatpush1.msra.mxu0 0.0
        %5115 = vmatprep.subr.mxu0 0.0
        %5116 = vmatpush1.msra.mxu0 0.0
        %5117 = vmatprep.subr.mxu0 0.0
        %5118 = vmatpush1.msra.mxu0 0.0
        %5119 = vmatprep.subr.mxu0 0.0
        %5120 = vmatpush1.msra.mxu0 0.0
        %5121 = vmatprep.subr.mxu0 0.0
        %5122 = vmatpush1.msra.mxu0 0.0
        %5123 = vmatprep.mubr.f32.mxu0 0.0
        %5124 = vmatmul.mubr.f32.gmra.mrb[0].mxu0 %v5057
        %v5125 = vpop.f32.mrb[0].mxu0
        %v5126 = vadd.f32 %v5054, %v5125
        %v5127 = vpop.f32.mrb[0].mxu0
        %5128 = vdwg.mxu0
        %vm5129 = vcmask 519168
        %5130 = vst.msk [vmem:[%s796] sm:$0xf] %vm5129, %v5126
        %p5131 = scmp.lt.s32.totalorder %s38, 1
        %s5132 = scalar_select %p5131, %s38, 1
        %s5133 = smul.addr %s5132, 4
        %s5134 = scalar_lea.vmem %s21, %s5133
        // Predicated region
        $region145: #{encoder_forward.1} parent=103 // pred_check
          %p5135 = pneg %p502
        $region146: #{encoder_forward.1} parent=103 // pred_check_branch
          %5137 = sbr.rel (%p5135) target = $region148
        $region147: #{encoder_forward.1} parent=103 // pred_region
          _
        $region148: #{encoder_forward.1} parent=103 // pred_fallthru
          _
      $region104: #{encoder_forward.1} parent=5 // pred_fallthru
        _
      %p5138 = scmp.le.s32.totalorder 2, %s33
      // Predicated region
      $region149: #{encoder_forward.1} parent=5 // pred_check
        %p5139 = pneg %p5138
      $region150: #{encoder_forward.1} parent=5 // pred_check_branch
        %5141 = sbr.rel (%p5139) target = $region152
      $region151: #{encoder_forward.1} parent=5 // pred_region
        %s5142 = ssub.s32 %s33, 2
        // Predicated region
        $region153: #{encoder_forward.1} parent=151 // pred_check
          %p5143 = pneg %p508
        $region154: #{encoder_forward.1} parent=151 // pred_check_branch
          %5145 = sbr.rel (%p5143) target = $region156
        $region155: #{encoder_forward.1} parent=151 // pred_region
          %p5146 = scmp.lt.s32.totalorder %s39, 1
          %s5147 = scalar_select %p5146, %s39, 1
          %s5148 = smul.addr %s5147, 4
          %s5149 = scalar_lea.vmem %s21, %s5148
        $region156: #{encoder_forward.1} parent=151 // pred_fallthru
          _
      $region152: #{encoder_forward.1} parent=5 // pred_fallthru
        _
    $region6: #{encoder_forward.1} parent=1 // loop_footer
      %s37 = sadd.s32 1, %s33
    $region7: #{encoder_forward.1} parent=1 // loop_footer_branch
      %32 = sbr.rel target = $region3
    $region8: #{encoder_forward.1} parent=1 // loop_exit
      _
    %5150 = vsyncpa [#allocation5], 1
    %s5151 = scalar_lea.sflag [#allocation5], 1
    %5152 = vsyncpa %s5151, 1
    %5153 = vsyncpa [#allocation7], 1
    %5154 = vsyncpa [#allocation10], 1
    %5155 = vsyncpa [#allocation13], 1
    %5156 = vsyncpa [#allocation16], 1
    %5157 = vsyncpa [#allocation19], 1

</llo_original>
